<compile_context>
chip_gen: v7x
topology: tpu7x:2x2x1
jax: 0.10.0
libtpu: 0.0.40
codegen_flags: <defaults>
</compile_context>

<pallas_src>
import jax
import jax.numpy as jnp
from jax import lax
from jax.experimental import pallas as pl
from jax.experimental.pallas import tpu as pltpu

CONV_FILTERS = [256, 64, 8, 1]


def _valuehead_kernel(xc_ref, w1_ref, w2_ref, w3_ref, w4_ref, o_ref):
    B, ho1, wo1, k1 = xc_ref.shape          # pre-im2col'd conv1 input, k1 = 9*Cin
    ho2, wo2 = ho1 - 2, wo1 - 2
    ho3, wo3 = ho2 - 2, wo2 - 2
    ho4, wo4 = ho3 - 2, wo3 - 2
    c1 = w1_ref.shape[1]                    # 256
    c2 = w2_ref.shape[2]                    # 64
    c3 = w3_ref.shape[2]                    # 8

    # conv1 -> 256 + ReLU: one (B*ho1*wo1, 9*Cin) @ (9*Cin, 256) MXU matmul,
    # f32 accumulation (im2col was already done in the wrapper).
    x2d = xc_ref[...].reshape(B * ho1 * wo1, k1)
    h = jnp.dot(x2d, w1_ref[...], preferred_element_type=jnp.float32)
    h = jnp.maximum(h, 0.0).astype(jnp.bfloat16).reshape(B, ho1, wo1, c1)

    # conv2 -> 64 + ReLU: 9 tap-accumulated (M, 256) @ (256, 64) matmuls into an
    # f32 accumulator.  No (B, ho2, wo2, 9*256) im2col tensor is ever built.
    acc = jnp.zeros((B * ho2 * wo2, c2), jnp.float32)
    for ky in range(3):
        for kx in range(3):
            tap = ky * 3 + kx
            lhs = h[:, ky:ky + ho2, kx:kx + wo2, :].reshape(B * ho2 * wo2, c1)
            acc = acc + jnp.dot(lhs, w2_ref[tap],
                                preferred_element_type=jnp.float32)
    h = jnp.maximum(acc, 0.0).astype(jnp.bfloat16).reshape(B, ho2, wo2, c2)

    # conv3 -> 8 + ReLU: same tap accumulation, K=64 per tap; kept f32 for the tail.
    acc = jnp.zeros((B * ho3 * wo3, c3), jnp.float32)
    for ky in range(3):
        for kx in range(3):
            tap = ky * 3 + kx
            lhs = h[:, ky:ky + ho3, kx:kx + wo3, :].reshape(B * ho3 * wo3, c2)
            acc = acc + jnp.dot(lhs, w3_ref[tap],
                                preferred_element_type=jnp.float32)
    h = jnp.maximum(acc, 0.0).reshape(B, ho3, wo3, c3)          # (B, ho3, wo3, 8) f32

    # conv4 (-> 1, no bias) fused with AdaptiveAvgPool3d(1):
    #   mean_{y,x} conv4(h)[b] = sum_{tap,c} w4[tap,c] * mean_{y,x} h[b, y+ky, x+kx, c]
    # Done on VPU/XLU only (broadcast multiply + lane reduce), no 1-lane MXU dot.
    means = jnp.concatenate(
        [jnp.mean(h[:, ky:ky + ho4, kx:kx + wo4, :], axis=(1, 2))
         for ky in range(3) for kx in range(3)], axis=-1)        # (B, 72) f32
    pooled = jnp.sum(means * w4_ref[...], axis=-1)               # (B,) f32
    o_ref[...] = jnp.tanh(pooled).reshape(1, 1, B)


def _select_tiling(n):
    """Generation-aware batch tile: 32 on <=64 MiB-VMEM parts (v7x), 64 on 128 MiB
    parts (v5e/v6e), always >=2 grid steps when n >= 2 (v7x megacore)."""
    try:
        vmem_cap = pltpu.get_tpu_info().vmem_capacity_bytes
    except Exception:
        vmem_cap = 64 << 20                                      # conservative default
    if vmem_cap >= (100 << 20):
        max_tile, vmem_limit = 64, 100 << 20
    else:
        max_tile, vmem_limit = 32, 48 << 20
    num_tiles = max(2, pl.cdiv(n, max_tile)) if n >= 2 else 1
    b_tile = pl.cdiv(n, num_tiles)
    return b_tile, num_tiles, vmem_limit


def reduce_value_head(x_nchw, weights_oihw):
    """x_nchw: (N, width, H, W); weights_oihw: list of (Cout, Cin, 3, 3). Returns (N, 1)."""
    N, Cin, H, W = x_nchw.shape
    assert H >= 9 and W >= 9, "four VALID 3x3 convs need spatial >= 9x9"
    ho1, wo1 = H - 2, W - 2

    b_tile, num_tiles, vmem_limit = _select_tiling(N)
    n_pad = b_tile * num_tiles

    # NHWC bf16 input; conv1 im2col done here in XLA (cheap: input is tiny), so the
    # kernel reads a dense (.., 9*Cin) block and never shuffles 4-lane slices.
    x = jnp.transpose(x_nchw, (0, 2, 3, 1)).astype(jnp.bfloat16)         # (N, H, W, Cin)
    xc = jnp.concatenate([x[:, ky:ky + ho1, kx:kx + wo1, :]
                          for ky in range(3) for kx in range(3)], axis=-1)  # (N, ho1, wo1, 9*Cin)
    if n_pad > N:
        xc = jnp.pad(xc, ((0, n_pad - N), (0, 0), (0, 0), (0, 0)))

    w1, w2, w3, w4 = weights_oihw
    # conv1: im2col-flattened (9*Cin, 256), row order (ky, kx, cin).
    w1f = jnp.transpose(w1, (2, 3, 1, 0)).reshape(9 * w1.shape[1], w1.shape[0]).astype(jnp.bfloat16)
    # conv2 / conv3: per-tap stacks (9, Cin, Cout), tap = ky*3 + kx.
    w2s = jnp.transpose(w2, (2, 3, 1, 0)).reshape(9, w2.shape[1], w2.shape[0]).astype(jnp.bfloat16)
    w3s = jnp.transpose(w3, (2, 3, 1, 0)).reshape(9, w3.shape[1], w3.shape[0]).astype(jnp.bfloat16)
    # conv4 weight as a (1, 72) f32 row, column order (tap, channel) == `means` columns.
    w4f = jnp.transpose(w4[0], (1, 2, 0)).reshape(1, 9 * w4.shape[1]).astype(jnp.float32)

    in_specs = [
        pl.BlockSpec((b_tile, ho1, wo1, 9 * Cin), lambda g: (g, 0, 0, 0)),
        pl.BlockSpec(w1f.shape, lambda g: (0, 0)),       # weights: full blocks, grid-invariant
        pl.BlockSpec(w2s.shape, lambda g: (0, 0, 0)),
        pl.BlockSpec(w3s.shape, lambda g: (0, 0, 0)),
        pl.BlockSpec(w4f.shape, lambda g: (0, 0)),
    ]

    out = pl.pallas_call(
        _valuehead_kernel,
        out_shape=jax.ShapeDtypeStruct((num_tiles, 1, b_tile), jnp.float32),
        grid=(num_tiles,),
        in_specs=in_specs,
        out_specs=pl.BlockSpec((1, 1, b_tile), lambda g: (g, 0, 0)),
        compiler_params=pltpu.CompilerParams(
            dimension_semantics=("parallel",),            # megacore-shard the batch axis (v7x)
            vmem_limit_bytes=vmem_limit),
    )(xc, w1f, w2s, w3s, w4f)

    return out.reshape(n_pad, 1)[:N]                      # matches nn.Flatten() output (N, 1)


# ----------------------------- references (plain JAX) -----------------------------

def _reference_f32(x_nchw, weights_oihw):
    """Exact f32 forward of the PyTorch module (hex=False branch)."""
    h = x_nchw.astype(jnp.float32)
    for i, w in enumerate(weights_oihw):
        h = lax.conv_general_dilated(h, w.astype(jnp.float32), (1, 1), "VALID",
                                     dimension_numbers=("NCHW", "OIHW", "NCHW"))
        if i < len(weights_oihw) - 1:
            h = jnp.maximum(h, 0.0)
    return jnp.tanh(jnp.mean(h, axis=(1, 2, 3)))[:, None]


def _reference_mixed(x_nchw, weights_oihw):
    """Same precision chain as the kernel: bf16 inputs/weights, f32 accumulation,
    bf16 intermediates before conv2/conv3, f32 tail (conv3 output, conv4, pool)."""
    n = len(weights_oihw)
    h = x_nchw.astype(jnp.bfloat16)
    for i, w in enumerate(weights_oihw):
        if i < n - 1:
            h = lax.conv_general_dilated(h, w.astype(jnp.bfloat16), (1, 1), "VALID",
                                         dimension_numbers=("NCHW", "OIHW", "NCHW"),
                                         preferred_element_type=jnp.float32)
            h = jnp.maximum(h, 0.0)
            if i < n - 2:
                h = h.astype(jnp.bfloat16)
        else:
            h = lax.conv_general_dilated(h, w.astype(jnp.float32), (1, 1), "VALID",
                                         dimension_numbers=("NCHW", "OIHW", "NCHW"))
    return jnp.tanh(jnp.mean(h, axis=(1, 2, 3)))[:, None]


if __name__ == "__main__":
    key = jax.random.PRNGKey(0)
    N, width, H, W = 2, 4, 16, 16                           # width == in_channels
    k_x, *k_ws = jax.random.split(key, 1 + len(CONV_FILTERS))

    x = jax.random.normal(k_x, (N, width, H, W), jnp.float32)

    # Deterministic synthetic weights (He-style scale), PyTorch (Cout, Cin, 3, 3) layout.
    weights = []
    cin = width
    for k, cout in zip(k_ws, CONV_FILTERS):
        fan_in = cin * 9
        weights.append(jax.random.normal(k, (cout, cin, 3, 3), jnp.float32)
                       * (2.0 / fan_in) ** 0.5)
        cin = cout

    out = reduce_value_head(x, weights)
    jax.block_until_ready(out)
    assert out.shape == (N, 1), out.shape

    ref_mixed = _reference_mixed(x, weights)                # precision-matched check
    assert jnp.allclose(out, ref_mixed, atol=5e-3, rtol=5e-3), (out, ref_mixed)

    ref_f32 = _reference_f32(x, weights)                    # module-semantics sanity check
    assert jnp.allclose(out, ref_f32, atol=3e-2, rtol=3e-2), (out, ref_f32)

    print("KERNEL_OK")
</pallas_src>

<mosaic_0001>
module attributes {stable_mosaic.version = 11 : i64} {
  func.func @_valuehead_kernel(%arg0: i32, %arg1: memref<1x14x14x36xbf16, #tpu.memory_space<vmem>>, %arg2: memref<36x256xbf16, #tpu.memory_space<vmem>>, %arg3: memref<9x256x64xbf16, #tpu.memory_space<vmem>>, %arg4: memref<9x64x8xbf16, #tpu.memory_space<vmem>>, %arg5: memref<1x72xf32, #tpu.memory_space<vmem>>, %arg6: memref<1x1x1xf32, #tpu.memory_space<vmem>>) attributes {dimension_semantics = [#tpu.dimension_semantics<parallel>], iteration_bounds = array<i64: 2>, scalar_prefetch = 0 : i64, scratch_operands = 0 : i64, tpu.core_type = #tpu.core_type<tc>, window_params = [{transform_indices = @transform_0, window_bounds = array<i64: 1, 14, 14, 36>}, {pipeline_mode = #tpu.pipeline_mode<synchronous>, transform_indices = @transform_1, window_bounds = array<i64: 36, 256>}, {pipeline_mode = #tpu.pipeline_mode<synchronous>, transform_indices = @transform_2, window_bounds = array<i64: 9, 256, 64>}, {pipeline_mode = #tpu.pipeline_mode<synchronous>, transform_indices = @transform_3, window_bounds = array<i64: 9, 64, 8>}, {pipeline_mode = #tpu.pipeline_mode<synchronous>, transform_indices = @transform_4, window_bounds = array<i64: 1, 72>}, {transform_indices = @transform_5, window_bounds = array<i64: 1, 1, 1>}]} {
    %c0 = arith.constant 0 : index
    %c0_0 = arith.constant 0 : index
    %c0_1 = arith.constant 0 : index
    %c0_2 = arith.constant 0 : index
    %0 = vector.load %arg1[%c0, %c0_0, %c0_1, %c0_2] : memref<1x14x14x36xbf16, #tpu.memory_space<vmem>>, vector<1x14x14x36xbf16>
    %1 = vector.shape_cast %0 : vector<1x14x14x36xbf16> to vector<196x36xbf16>
    %c0_3 = arith.constant 0 : index
    %c0_4 = arith.constant 0 : index
    %2 = vector.load %arg2[%c0_3, %c0_4] : memref<36x256xbf16, #tpu.memory_space<vmem>>, vector<36x256xbf16>
    %cst = arith.constant dense<0.000000e+00> : vector<196x256xf32>
    %3 = tpu.matmul %1, %2, %cst {dimension_numbers = #tpu.dot_dimension_numbers<[1], [0], [0], [1], [0, 0, 1, 1], [], []>} : vector<196x36xbf16>, vector<36x256xbf16>, vector<196x256xf32> -> vector<196x256xf32>
    %cst_5 = arith.constant 0.000000e+00 : f32
    %4 = vector.broadcast %cst_5 : f32 to vector<196x256xf32>
    %5 = arith.maximumf %3, %4 : vector<196x256xf32>
    %6 = arith.truncf %5 : vector<196x256xf32> to vector<196x256xbf16>
    %7 = vector.shape_cast %6 : vector<196x256xbf16> to vector<1x14x14x256xbf16>
    %cst_6 = arith.constant 0.000000e+00 : f32
    %8 = vector.broadcast %cst_6 : f32 to vector<144x64xf32>
    %9 = vector.extract_strided_slice %7 {offsets = [0, 0, 0, 0], sizes = [1, 12, 12, 256], strides = [1, 1, 1, 1]} : vector<1x14x14x256xbf16> to vector<1x12x12x256xbf16>
    %10 = vector.shape_cast %9 : vector<1x12x12x256xbf16> to vector<144x256xbf16>
    %c0_7 = arith.constant 0 : index
    %c0_8 = arith.constant 0 : index
    %c0_9 = arith.constant 0 : index
    %11 = vector.load %arg3[%c0_7, %c0_8, %c0_9] : memref<9x256x64xbf16, #tpu.memory_space<vmem>>, vector<1x256x64xbf16>
    %12 = vector.shape_cast %11 : vector<1x256x64xbf16> to vector<256x64xbf16>
    %cst_10 = arith.constant dense<0.000000e+00> : vector<144x64xf32>
    %13 = tpu.matmul %10, %12, %cst_10 {dimension_numbers = #tpu.dot_dimension_numbers<[1], [0], [0], [1], [0, 0, 1, 1], [], []>} : vector<144x256xbf16>, vector<256x64xbf16>, vector<144x64xf32> -> vector<144x64xf32>
    %14 = arith.addf %8, %13 : vector<144x64xf32>
    %15 = vector.extract_strided_slice %7 {offsets = [0, 0, 1, 0], sizes = [1, 12, 12, 256], strides = [1, 1, 1, 1]} : vector<1x14x14x256xbf16> to vector<1x12x12x256xbf16>
    %16 = vector.shape_cast %15 : vector<1x12x12x256xbf16> to vector<144x256xbf16>
    %c1 = arith.constant 1 : index
    %c0_11 = arith.constant 0 : index
    %c0_12 = arith.constant 0 : index
    %17 = vector.load %arg3[%c1, %c0_11, %c0_12] : memref<9x256x64xbf16, #tpu.memory_space<vmem>>, vector<1x256x64xbf16>
    %18 = vector.shape_cast %17 : vector<1x256x64xbf16> to vector<256x64xbf16>
    %cst_13 = arith.constant dense<0.000000e+00> : vector<144x64xf32>
    %19 = tpu.matmul %16, %18, %cst_13 {dimension_numbers = #tpu.dot_dimension_numbers<[1], [0], [0], [1], [0, 0, 1, 1], [], []>} : vector<144x256xbf16>, vector<256x64xbf16>, vector<144x64xf32> -> vector<144x64xf32>
    %20 = arith.addf %14, %19 : vector<144x64xf32>
    %21 = vector.extract_strided_slice %7 {offsets = [0, 0, 2, 0], sizes = [1, 12, 12, 256], strides = [1, 1, 1, 1]} : vector<1x14x14x256xbf16> to vector<1x12x12x256xbf16>
    %22 = vector.shape_cast %21 : vector<1x12x12x256xbf16> to vector<144x256xbf16>
    %c2 = arith.constant 2 : index
    %c0_14 = arith.constant 0 : index
    %c0_15 = arith.constant 0 : index
    %23 = vector.load %arg3[%c2, %c0_14, %c0_15] : memref<9x256x64xbf16, #tpu.memory_space<vmem>>, vector<1x256x64xbf16>
    %24 = vector.shape_cast %23 : vector<1x256x64xbf16> to vector<256x64xbf16>
    %cst_16 = arith.constant dense<0.000000e+00> : vector<144x64xf32>
    %25 = tpu.matmul %22, %24, %cst_16 {dimension_numbers = #tpu.dot_dimension_numbers<[1], [0], [0], [1], [0, 0, 1, 1], [], []>} : vector<144x256xbf16>, vector<256x64xbf16>, vector<144x64xf32> -> vector<144x64xf32>
    %26 = arith.addf %20, %25 : vector<144x64xf32>
    %27 = vector.extract_strided_slice %7 {offsets = [0, 1, 0, 0], sizes = [1, 12, 12, 256], strides = [1, 1, 1, 1]} : vector<1x14x14x256xbf16> to vector<1x12x12x256xbf16>
    %28 = vector.shape_cast %27 : vector<1x12x12x256xbf16> to vector<144x256xbf16>
    %c3 = arith.constant 3 : index
    %c0_17 = arith.constant 0 : index
    %c0_18 = arith.constant 0 : index
    %29 = vector.load %arg3[%c3, %c0_17, %c0_18] : memref<9x256x64xbf16, #tpu.memory_space<vmem>>, vector<1x256x64xbf16>
    %30 = vector.shape_cast %29 : vector<1x256x64xbf16> to vector<256x64xbf16>
    %cst_19 = arith.constant dense<0.000000e+00> : vector<144x64xf32>
    %31 = tpu.matmul %28, %30, %cst_19 {dimension_numbers = #tpu.dot_dimension_numbers<[1], [0], [0], [1], [0, 0, 1, 1], [], []>} : vector<144x256xbf16>, vector<256x64xbf16>, vector<144x64xf32> -> vector<144x64xf32>
    %32 = arith.addf %26, %31 : vector<144x64xf32>
    %33 = vector.extract_strided_slice %7 {offsets = [0, 1, 1, 0], sizes = [1, 12, 12, 256], strides = [1, 1, 1, 1]} : vector<1x14x14x256xbf16> to vector<1x12x12x256xbf16>
    %34 = vector.shape_cast %33 : vector<1x12x12x256xbf16> to vector<144x256xbf16>
    %c4 = arith.constant 4 : index
    %c0_20 = arith.constant 0 : index
    %c0_21 = arith.constant 0 : index
    %35 = vector.load %arg3[%c4, %c0_20, %c0_21] : memref<9x256x64xbf16, #tpu.memory_space<vmem>>, vector<1x256x64xbf16>
    %36 = vector.shape_cast %35 : vector<1x256x64xbf16> to vector<256x64xbf16>
    %cst_22 = arith.constant dense<0.000000e+00> : vector<144x64xf32>
    %37 = tpu.matmul %34, %36, %cst_22 {dimension_numbers = #tpu.dot_dimension_numbers<[1], [0], [0], [1], [0, 0, 1, 1], [], []>} : vector<144x256xbf16>, vector<256x64xbf16>, vector<144x64xf32> -> vector<144x64xf32>
    %38 = arith.addf %32, %37 : vector<144x64xf32>
    %39 = vector.extract_strided_slice %7 {offsets = [0, 1, 2, 0], sizes = [1, 12, 12, 256], strides = [1, 1, 1, 1]} : vector<1x14x14x256xbf16> to vector<1x12x12x256xbf16>
    %40 = vector.shape_cast %39 : vector<1x12x12x256xbf16> to vector<144x256xbf16>
    %c5 = arith.constant 5 : index
    %c0_23 = arith.constant 0 : index
    %c0_24 = arith.constant 0 : index
    %41 = vector.load %arg3[%c5, %c0_23, %c0_24] : memref<9x256x64xbf16, #tpu.memory_space<vmem>>, vector<1x256x64xbf16>
    %42 = vector.shape_cast %41 : vector<1x256x64xbf16> to vector<256x64xbf16>
    %cst_25 = arith.constant dense<0.000000e+00> : vector<144x64xf32>
    %43 = tpu.matmul %40, %42, %cst_25 {dimension_numbers = #tpu.dot_dimension_numbers<[1], [0], [0], [1], [0, 0, 1, 1], [], []>} : vector<144x256xbf16>, vector<256x64xbf16>, vector<144x64xf32> -> vector<144x64xf32>
    %44 = arith.addf %38, %43 : vector<144x64xf32>
    %45 = vector.extract_strided_slice %7 {offsets = [0, 2, 0, 0], sizes = [1, 12, 12, 256], strides = [1, 1, 1, 1]} : vector<1x14x14x256xbf16> to vector<1x12x12x256xbf16>
    %46 = vector.shape_cast %45 : vector<1x12x12x256xbf16> to vector<144x256xbf16>
    %c6 = arith.constant 6 : index
    %c0_26 = arith.constant 0 : index
    %c0_27 = arith.constant 0 : index
    %47 = vector.load %arg3[%c6, %c0_26, %c0_27] : memref<9x256x64xbf16, #tpu.memory_space<vmem>>, vector<1x256x64xbf16>
    %48 = vector.shape_cast %47 : vector<1x256x64xbf16> to vector<256x64xbf16>
    %cst_28 = arith.constant dense<0.000000e+00> : vector<144x64xf32>
    %49 = tpu.matmul %46, %48, %cst_28 {dimension_numbers = #tpu.dot_dimension_numbers<[1], [0], [0], [1], [0, 0, 1, 1], [], []>} : vector<144x256xbf16>, vector<256x64xbf16>, vector<144x64xf32> -> vector<144x64xf32>
    %50 = arith.addf %44, %49 : vector<144x64xf32>
    %51 = vector.extract_strided_slice %7 {offsets = [0, 2, 1, 0], sizes = [1, 12, 12, 256], strides = [1, 1, 1, 1]} : vector<1x14x14x256xbf16> to vector<1x12x12x256xbf16>
    %52 = vector.shape_cast %51 : vector<1x12x12x256xbf16> to vector<144x256xbf16>
    %c7 = arith.constant 7 : index
    %c0_29 = arith.constant 0 : index
    %c0_30 = arith.constant 0 : index
    %53 = vector.load %arg3[%c7, %c0_29, %c0_30] : memref<9x256x64xbf16, #tpu.memory_space<vmem>>, vector<1x256x64xbf16>
    %54 = vector.shape_cast %53 : vector<1x256x64xbf16> to vector<256x64xbf16>
    %cst_31 = arith.constant dense<0.000000e+00> : vector<144x64xf32>
    %55 = tpu.matmul %52, %54, %cst_31 {dimension_numbers = #tpu.dot_dimension_numbers<[1], [0], [0], [1], [0, 0, 1, 1], [], []>} : vector<144x256xbf16>, vector<256x64xbf16>, vector<144x64xf32> -> vector<144x64xf32>
    %56 = arith.addf %50, %55 : vector<144x64xf32>
    %57 = vector.extract_strided_slice %7 {offsets = [0, 2, 2, 0], sizes = [1, 12, 12, 256], strides = [1, 1, 1, 1]} : vector<1x14x14x256xbf16> to vector<1x12x12x256xbf16>
    %58 = vector.shape_cast %57 : vector<1x12x12x256xbf16> to vector<144x256xbf16>
    %c8 = arith.constant 8 : index
    %c0_32 = arith.constant 0 : index
    %c0_33 = arith.constant 0 : index
    %59 = vector.load %arg3[%c8, %c0_32, %c0_33] : memref<9x256x64xbf16, #tpu.memory_space<vmem>>, vector<1x256x64xbf16>
    %60 = vector.shape_cast %59 : vector<1x256x64xbf16> to vector<256x64xbf16>
    %cst_34 = arith.constant dense<0.000000e+00> : vector<144x64xf32>
    %61 = tpu.matmul %58, %60, %cst_34 {dimension_numbers = #tpu.dot_dimension_numbers<[1], [0], [0], [1], [0, 0, 1, 1], [], []>} : vector<144x256xbf16>, vector<256x64xbf16>, vector<144x64xf32> -> vector<144x64xf32>
    %62 = arith.addf %56, %61 : vector<144x64xf32>
    %cst_35 = arith.constant 0.000000e+00 : f32
    %63 = vector.broadcast %cst_35 : f32 to vector<144x64xf32>
    %64 = arith.maximumf %62, %63 : vector<144x64xf32>
    %65 = arith.truncf %64 : vector<144x64xf32> to vector<144x64xbf16>
    %66 = vector.shape_cast %65 : vector<144x64xbf16> to vector<1x12x12x64xbf16>
    %cst_36 = arith.constant 0.000000e+00 : f32
    %67 = vector.broadcast %cst_36 : f32 to vector<100x8xf32>
    %68 = vector.extract_strided_slice %66 {offsets = [0, 0, 0, 0], sizes = [1, 10, 10, 64], strides = [1, 1, 1, 1]} : vector<1x12x12x64xbf16> to vector<1x10x10x64xbf16>
    %69 = vector.shape_cast %68 : vector<1x10x10x64xbf16> to vector<100x64xbf16>
    %c0_37 = arith.constant 0 : index
    %c0_38 = arith.constant 0 : index
    %c0_39 = arith.constant 0 : index
    %70 = vector.load %arg4[%c0_37, %c0_38, %c0_39] : memref<9x64x8xbf16, #tpu.memory_space<vmem>>, vector<1x64x8xbf16>
    %71 = vector.shape_cast %70 : vector<1x64x8xbf16> to vector<64x8xbf16>
    %cst_40 = arith.constant dense<0.000000e+00> : vector<100x8xf32>
    %72 = tpu.matmul %69, %71, %cst_40 {dimension_numbers = #tpu.dot_dimension_numbers<[1], [0], [0], [1], [0, 0, 1, 1], [], []>} : vector<100x64xbf16>, vector<64x8xbf16>, vector<100x8xf32> -> vector<100x8xf32>
    %73 = arith.addf %67, %72 : vector<100x8xf32>
    %74 = vector.extract_strided_slice %66 {offsets = [0, 0, 1, 0], sizes = [1, 10, 10, 64], strides = [1, 1, 1, 1]} : vector<1x12x12x64xbf16> to vector<1x10x10x64xbf16>
    %75 = vector.shape_cast %74 : vector<1x10x10x64xbf16> to vector<100x64xbf16>
    %c1_41 = arith.constant 1 : index
    %c0_42 = arith.constant 0 : index
    %c0_43 = arith.constant 0 : index
    %76 = vector.load %arg4[%c1_41, %c0_42, %c0_43] : memref<9x64x8xbf16, #tpu.memory_space<vmem>>, vector<1x64x8xbf16>
    %77 = vector.shape_cast %76 : vector<1x64x8xbf16> to vector<64x8xbf16>
    %cst_44 = arith.constant dense<0.000000e+00> : vector<100x8xf32>
    %78 = tpu.matmul %75, %77, %cst_44 {dimension_numbers = #tpu.dot_dimension_numbers<[1], [0], [0], [1], [0, 0, 1, 1], [], []>} : vector<100x64xbf16>, vector<64x8xbf16>, vector<100x8xf32> -> vector<100x8xf32>
    %79 = arith.addf %73, %78 : vector<100x8xf32>
    %80 = vector.extract_strided_slice %66 {offsets = [0, 0, 2, 0], sizes = [1, 10, 10, 64], strides = [1, 1, 1, 1]} : vector<1x12x12x64xbf16> to vector<1x10x10x64xbf16>
    %81 = vector.shape_cast %80 : vector<1x10x10x64xbf16> to vector<100x64xbf16>
    %c2_45 = arith.constant 2 : index
    %c0_46 = arith.constant 0 : index
    %c0_47 = arith.constant 0 : index
    %82 = vector.load %arg4[%c2_45, %c0_46, %c0_47] : memref<9x64x8xbf16, #tpu.memory_space<vmem>>, vector<1x64x8xbf16>
    %83 = vector.shape_cast %82 : vector<1x64x8xbf16> to vector<64x8xbf16>
    %cst_48 = arith.constant dense<0.000000e+00> : vector<100x8xf32>
    %84 = tpu.matmul %81, %83, %cst_48 {dimension_numbers = #tpu.dot_dimension_numbers<[1], [0], [0], [1], [0, 0, 1, 1], [], []>} : vector<100x64xbf16>, vector<64x8xbf16>, vector<100x8xf32> -> vector<100x8xf32>
    %85 = arith.addf %79, %84 : vector<100x8xf32>
    %86 = vector.extract_strided_slice %66 {offsets = [0, 1, 0, 0], sizes = [1, 10, 10, 64], strides = [1, 1, 1, 1]} : vector<1x12x12x64xbf16> to vector<1x10x10x64xbf16>
    %87 = vector.shape_cast %86 : vector<1x10x10x64xbf16> to vector<100x64xbf16>
    %c3_49 = arith.constant 3 : index
    %c0_50 = arith.constant 0 : index
    %c0_51 = arith.constant 0 : index
    %88 = vector.load %arg4[%c3_49, %c0_50, %c0_51] : memref<9x64x8xbf16, #tpu.memory_space<vmem>>, vector<1x64x8xbf16>
    %89 = vector.shape_cast %88 : vector<1x64x8xbf16> to vector<64x8xbf16>
    %cst_52 = arith.constant dense<0.000000e+00> : vector<100x8xf32>
    %90 = tpu.matmul %87, %89, %cst_52 {dimension_numbers = #tpu.dot_dimension_numbers<[1], [0], [0], [1], [0, 0, 1, 1], [], []>} : vector<100x64xbf16>, vector<64x8xbf16>, vector<100x8xf32> -> vector<100x8xf32>
    %91 = arith.addf %85, %90 : vector<100x8xf32>
    %92 = vector.extract_strided_slice %66 {offsets = [0, 1, 1, 0], sizes = [1, 10, 10, 64], strides = [1, 1, 1, 1]} : vector<1x12x12x64xbf16> to vector<1x10x10x64xbf16>
    %93 = vector.shape_cast %92 : vector<1x10x10x64xbf16> to vector<100x64xbf16>
    %c4_53 = arith.constant 4 : index
    %c0_54 = arith.constant 0 : index
    %c0_55 = arith.constant 0 : index
    %94 = vector.load %arg4[%c4_53, %c0_54, %c0_55] : memref<9x64x8xbf16, #tpu.memory_space<vmem>>, vector<1x64x8xbf16>
    %95 = vector.shape_cast %94 : vector<1x64x8xbf16> to vector<64x8xbf16>
    %cst_56 = arith.constant dense<0.000000e+00> : vector<100x8xf32>
    %96 = tpu.matmul %93, %95, %cst_56 {dimension_numbers = #tpu.dot_dimension_numbers<[1], [0], [0], [1], [0, 0, 1, 1], [], []>} : vector<100x64xbf16>, vector<64x8xbf16>, vector<100x8xf32> -> vector<100x8xf32>
    %97 = arith.addf %91, %96 : vector<100x8xf32>
    %98 = vector.extract_strided_slice %66 {offsets = [0, 1, 2, 0], sizes = [1, 10, 10, 64], strides = [1, 1, 1, 1]} : vector<1x12x12x64xbf16> to vector<1x10x10x64xbf16>
    %99 = vector.shape_cast %98 : vector<1x10x10x64xbf16> to vector<100x64xbf16>
    %c5_57 = arith.constant 5 : index
    %c0_58 = arith.constant 0 : index
    %c0_59 = arith.constant 0 : index
    %100 = vector.load %arg4[%c5_57, %c0_58, %c0_59] : memref<9x64x8xbf16, #tpu.memory_space<vmem>>, vector<1x64x8xbf16>
    %101 = vector.shape_cast %100 : vector<1x64x8xbf16> to vector<64x8xbf16>
    %cst_60 = arith.constant dense<0.000000e+00> : vector<100x8xf32>
    %102 = tpu.matmul %99, %101, %cst_60 {dimension_numbers = #tpu.dot_dimension_numbers<[1], [0], [0], [1], [0, 0, 1, 1], [], []>} : vector<100x64xbf16>, vector<64x8xbf16>, vector<100x8xf32> -> vector<100x8xf32>
    %103 = arith.addf %97, %102 : vector<100x8xf32>
    %104 = vector.extract_strided_slice %66 {offsets = [0, 2, 0, 0], sizes = [1, 10, 10, 64], strides = [1, 1, 1, 1]} : vector<1x12x12x64xbf16> to vector<1x10x10x64xbf16>
    %105 = vector.shape_cast %104 : vector<1x10x10x64xbf16> to vector<100x64xbf16>
    %c6_61 = arith.constant 6 : index
    %c0_62 = arith.constant 0 : index
    %c0_63 = arith.constant 0 : index
    %106 = vector.load %arg4[%c6_61, %c0_62, %c0_63] : memref<9x64x8xbf16, #tpu.memory_space<vmem>>, vector<1x64x8xbf16>
    %107 = vector.shape_cast %106 : vector<1x64x8xbf16> to vector<64x8xbf16>
    %cst_64 = arith.constant dense<0.000000e+00> : vector<100x8xf32>
    %108 = tpu.matmul %105, %107, %cst_64 {dimension_numbers = #tpu.dot_dimension_numbers<[1], [0], [0], [1], [0, 0, 1, 1], [], []>} : vector<100x64xbf16>, vector<64x8xbf16>, vector<100x8xf32> -> vector<100x8xf32>
    %109 = arith.addf %103, %108 : vector<100x8xf32>
    %110 = vector.extract_strided_slice %66 {offsets = [0, 2, 1, 0], sizes = [1, 10, 10, 64], strides = [1, 1, 1, 1]} : vector<1x12x12x64xbf16> to vector<1x10x10x64xbf16>
    %111 = vector.shape_cast %110 : vector<1x10x10x64xbf16> to vector<100x64xbf16>
    %c7_65 = arith.constant 7 : index
    %c0_66 = arith.constant 0 : index
    %c0_67 = arith.constant 0 : index
    %112 = vector.load %arg4[%c7_65, %c0_66, %c0_67] : memref<9x64x8xbf16, #tpu.memory_space<vmem>>, vector<1x64x8xbf16>
    %113 = vector.shape_cast %112 : vector<1x64x8xbf16> to vector<64x8xbf16>
    %cst_68 = arith.constant dense<0.000000e+00> : vector<100x8xf32>
    %114 = tpu.matmul %111, %113, %cst_68 {dimension_numbers = #tpu.dot_dimension_numbers<[1], [0], [0], [1], [0, 0, 1, 1], [], []>} : vector<100x64xbf16>, vector<64x8xbf16>, vector<100x8xf32> -> vector<100x8xf32>
    %115 = arith.addf %109, %114 : vector<100x8xf32>
    %116 = vector.extract_strided_slice %66 {offsets = [0, 2, 2, 0], sizes = [1, 10, 10, 64], strides = [1, 1, 1, 1]} : vector<1x12x12x64xbf16> to vector<1x10x10x64xbf16>
    %117 = vector.shape_cast %116 : vector<1x10x10x64xbf16> to vector<100x64xbf16>
    %c8_69 = arith.constant 8 : index
    %c0_70 = arith.constant 0 : index
    %c0_71 = arith.constant 0 : index
    %118 = vector.load %arg4[%c8_69, %c0_70, %c0_71] : memref<9x64x8xbf16, #tpu.memory_space<vmem>>, vector<1x64x8xbf16>
    %119 = vector.shape_cast %118 : vector<1x64x8xbf16> to vector<64x8xbf16>
    %cst_72 = arith.constant dense<0.000000e+00> : vector<100x8xf32>
    %120 = tpu.matmul %117, %119, %cst_72 {dimension_numbers = #tpu.dot_dimension_numbers<[1], [0], [0], [1], [0, 0, 1, 1], [], []>} : vector<100x64xbf16>, vector<64x8xbf16>, vector<100x8xf32> -> vector<100x8xf32>
    %121 = arith.addf %115, %120 : vector<100x8xf32>
    %cst_73 = arith.constant 0.000000e+00 : f32
    %122 = vector.broadcast %cst_73 : f32 to vector<100x8xf32>
    %123 = arith.maximumf %121, %122 : vector<100x8xf32>
    %124 = vector.shape_cast %123 : vector<100x8xf32> to vector<1x10x10x8xf32>
    %125 = vector.extract_strided_slice %124 {offsets = [0, 0, 0, 0], sizes = [1, 8, 8, 8], strides = [1, 1, 1, 1]} : vector<1x10x10x8xf32> to vector<1x8x8x8xf32>
    %cst_74 = arith.constant dense<0.000000e+00> : vector<1x8xf32>
    %126 = vector.multi_reduction <add>, %125, %cst_74 [1, 2] : vector<1x8x8x8xf32> to vector<1x8xf32>
    %cst_75 = arith.constant 6.400000e+01 : f32
    %127 = vector.broadcast %cst_75 : f32 to vector<1x8xf32>
    %128 = arith.divf %126, %127 : vector<1x8xf32>
    %129 = vector.extract_strided_slice %124 {offsets = [0, 0, 1, 0], sizes = [1, 8, 8, 8], strides = [1, 1, 1, 1]} : vector<1x10x10x8xf32> to vector<1x8x8x8xf32>
    %cst_76 = arith.constant dense<0.000000e+00> : vector<1x8xf32>
    %130 = vector.multi_reduction <add>, %129, %cst_76 [1, 2] : vector<1x8x8x8xf32> to vector<1x8xf32>
    %cst_77 = arith.constant 6.400000e+01 : f32
    %131 = vector.broadcast %cst_77 : f32 to vector<1x8xf32>
    %132 = arith.divf %130, %131 : vector<1x8xf32>
    %133 = vector.extract_strided_slice %124 {offsets = [0, 0, 2, 0], sizes = [1, 8, 8, 8], strides = [1, 1, 1, 1]} : vector<1x10x10x8xf32> to vector<1x8x8x8xf32>
    %cst_78 = arith.constant dense<0.000000e+00> : vector<1x8xf32>
    %134 = vector.multi_reduction <add>, %133, %cst_78 [1, 2] : vector<1x8x8x8xf32> to vector<1x8xf32>
    %cst_79 = arith.constant 6.400000e+01 : f32
    %135 = vector.broadcast %cst_79 : f32 to vector<1x8xf32>
    %136 = arith.divf %134, %135 : vector<1x8xf32>
    %137 = vector.extract_strided_slice %124 {offsets = [0, 1, 0, 0], sizes = [1, 8, 8, 8], strides = [1, 1, 1, 1]} : vector<1x10x10x8xf32> to vector<1x8x8x8xf32>
    %cst_80 = arith.constant dense<0.000000e+00> : vector<1x8xf32>
    %138 = vector.multi_reduction <add>, %137, %cst_80 [1, 2] : vector<1x8x8x8xf32> to vector<1x8xf32>
    %cst_81 = arith.constant 6.400000e+01 : f32
    %139 = vector.broadcast %cst_81 : f32 to vector<1x8xf32>
    %140 = arith.divf %138, %139 : vector<1x8xf32>
    %141 = vector.extract_strided_slice %124 {offsets = [0, 1, 1, 0], sizes = [1, 8, 8, 8], strides = [1, 1, 1, 1]} : vector<1x10x10x8xf32> to vector<1x8x8x8xf32>
    %cst_82 = arith.constant dense<0.000000e+00> : vector<1x8xf32>
    %142 = vector.multi_reduction <add>, %141, %cst_82 [1, 2] : vector<1x8x8x8xf32> to vector<1x8xf32>
    %cst_83 = arith.constant 6.400000e+01 : f32
    %143 = vector.broadcast %cst_83 : f32 to vector<1x8xf32>
    %144 = arith.divf %142, %143 : vector<1x8xf32>
    %145 = vector.extract_strided_slice %124 {offsets = [0, 1, 2, 0], sizes = [1, 8, 8, 8], strides = [1, 1, 1, 1]} : vector<1x10x10x8xf32> to vector<1x8x8x8xf32>
    %cst_84 = arith.constant dense<0.000000e+00> : vector<1x8xf32>
    %146 = vector.multi_reduction <add>, %145, %cst_84 [1, 2] : vector<1x8x8x8xf32> to vector<1x8xf32>
    %cst_85 = arith.constant 6.400000e+01 : f32
    %147 = vector.broadcast %cst_85 : f32 to vector<1x8xf32>
    %148 = arith.divf %146, %147 : vector<1x8xf32>
    %149 = vector.extract_strided_slice %124 {offsets = [0, 2, 0, 0], sizes = [1, 8, 8, 8], strides = [1, 1, 1, 1]} : vector<1x10x10x8xf32> to vector<1x8x8x8xf32>
    %cst_86 = arith.constant dense<0.000000e+00> : vector<1x8xf32>
    %150 = vector.multi_reduction <add>, %149, %cst_86 [1, 2] : vector<1x8x8x8xf32> to vector<1x8xf32>
    %cst_87 = arith.constant 6.400000e+01 : f32
    %151 = vector.broadcast %cst_87 : f32 to vector<1x8xf32>
    %152 = arith.divf %150, %151 : vector<1x8xf32>
    %153 = vector.extract_strided_slice %124 {offsets = [0, 2, 1, 0], sizes = [1, 8, 8, 8], strides = [1, 1, 1, 1]} : vector<1x10x10x8xf32> to vector<1x8x8x8xf32>
    %cst_88 = arith.constant dense<0.000000e+00> : vector<1x8xf32>
    %154 = vector.multi_reduction <add>, %153, %cst_88 [1, 2] : vector<1x8x8x8xf32> to vector<1x8xf32>
    %cst_89 = arith.constant 6.400000e+01 : f32
    %155 = vector.broadcast %cst_89 : f32 to vector<1x8xf32>
    %156 = arith.divf %154, %155 : vector<1x8xf32>
    %157 = vector.extract_strided_slice %124 {offsets = [0, 2, 2, 0], sizes = [1, 8, 8, 8], strides = [1, 1, 1, 1]} : vector<1x10x10x8xf32> to vector<1x8x8x8xf32>
    %cst_90 = arith.constant dense<0.000000e+00> : vector<1x8xf32>
    %158 = vector.multi_reduction <add>, %157, %cst_90 [1, 2] : vector<1x8x8x8xf32> to vector<1x8xf32>
    %cst_91 = arith.constant 6.400000e+01 : f32
    %159 = vector.broadcast %cst_91 : f32 to vector<1x8xf32>
    %160 = arith.divf %158, %159 : vector<1x8xf32>
    %161 = tpu.concatenate %128, %132, %136, %140, %144, %148, %152, %156, %160 in 1 : vector<1x8xf32>, vector<1x8xf32>, vector<1x8xf32>, vector<1x8xf32>, vector<1x8xf32>, vector<1x8xf32>, vector<1x8xf32>, vector<1x8xf32>, vector<1x8xf32> -> vector<1x72xf32>
    %c0_92 = arith.constant 0 : index
    %c0_93 = arith.constant 0 : index
    %162 = vector.load %arg5[%c0_92, %c0_93] : memref<1x72xf32, #tpu.memory_space<vmem>>, vector<1x72xf32>
    %163 = arith.mulf %161, %162 : vector<1x72xf32>
    %cst_94 = arith.constant dense<0.000000e+00> : vector<1xf32>
    %164 = vector.multi_reduction <add>, %163, %cst_94 [1] : vector<1x72xf32> to vector<1xf32>
    %165 = math.tanh %164 : vector<1xf32>
    %166 = vector.shape_cast %165 : vector<1xf32> to vector<1x1x1xf32>
    %c0_95 = arith.constant 0 : index
    %c0_96 = arith.constant 0 : index
    %c0_97 = arith.constant 0 : index
    %167 = vector.load %arg6[%c0_95, %c0_96, %c0_97] : memref<1x1x1xf32, #tpu.memory_space<vmem>>, vector<1x1x1xf32>
    tpu.vector_store %arg6[%c0_95, %c0_96, %c0_97], %166 {strides = array<i32>} : memref<1x1x1xf32, #tpu.memory_space<vmem>>, vector<1x1x1xf32>,
    return
  }
  func.func @transform_0(%arg0: i32) -> (i32, i32, i32, i32) {
    %c0_i32 = arith.constant 0 : i32
    %c0_i32_0 = arith.constant 0 : i32
    %c0_i32_1 = arith.constant 0 : i32
    %c0_i32_2 = arith.constant 0 : i32
    return %arg0, %c0_i32, %c0_i32_0, %c0_i32_1 : i32, i32, i32, i32
  }
  func.func @transform_1(%arg0: i32) -> (i32, i32) {
    %c0_i32 = arith.constant 0 : i32
    %c0_i32_0 = arith.constant 0 : i32
    %c0_i32_1 = arith.constant 0 : i32
    return %c0_i32, %c0_i32_0 : i32, i32
  }
  func.func @transform_2(%arg0: i32) -> (i32, i32, i32) {
    %c0_i32 = arith.constant 0 : i32
    %c0_i32_0 = arith.constant 0 : i32
    %c0_i32_1 = arith.constant 0 : i32
    %c0_i32_2 = arith.constant 0 : i32
    return %c0_i32, %c0_i32_0, %c0_i32_1 : i32, i32, i32
  }
  func.func @transform_3(%arg0: i32) -> (i32, i32, i32) {
    %c0_i32 = arith.constant 0 : i32
    %c0_i32_0 = arith.constant 0 : i32
    %c0_i32_1 = arith.constant 0 : i32
    %c0_i32_2 = arith.constant 0 : i32
    return %c0_i32, %c0_i32_0, %c0_i32_1 : i32, i32, i32
  }
  func.func @transform_4(%arg0: i32) -> (i32, i32) {
    %c0_i32 = arith.constant 0 : i32
    %c0_i32_0 = arith.constant 0 : i32
    %c0_i32_1 = arith.constant 0 : i32
    return %c0_i32, %c0_i32_0 : i32, i32
  }
  func.func @transform_5(%arg0: i32) -> (i32, i32, i32) {
    %c0_i32 = arith.constant 0 : i32
    %c0_i32_0 = arith.constant 0 : i32
    %c0_i32_1 = arith.constant 0 : i32
    return %arg0, %c0_i32, %c0_i32_0 : i32, i32, i32
  }
}

</mosaic_0001>

<llo_original>
// kernel: tpu_custom_call.1
$region0: #{tpu_custom_call.1}
  #allocation0 [shape = 'u32[]', space=smem, size = 0x4, offset = 0x4, fixed_abs, tag = 'smem constant byte address 0x4 - core index']
  #allocation1 [shape = 'u32[144,128]{1,0:T(1,128)}', space=vmem, size = 0x12000, scoped, tag = 'internal scratch']
  %s0 = inlined_call_operand.vmem [shape: bf16[2,14,14,36], index: 0, kind: input, shape index: {}]
  %s1 = inlined_call_operand.vmem [shape: bf16[36,256], index: 1, kind: input, shape index: {}]
  %s2 = inlined_call_operand.vmem [shape: bf16[9,256,64], index: 2, kind: input, shape index: {}]
  %s3 = inlined_call_operand.vmem [shape: bf16[9,64,8], index: 3, kind: input, shape index: {}]
  %s4 = inlined_call_operand.vmem [shape: f32[1,72], index: 4, kind: input, shape index: {}]
  %s5 = inlined_call_operand.vmem [shape: f32[2,1,1], index: 5, kind: output, shape index: {}]
  %s6 = sld [smem:[#allocation0]]
  $region53: #{tpu_custom_call.1} parent=0
    _
  %s8 = ssub.s32 1, %s6
  %s9 = scalar_select 0, %s8, %s6
  loop: start=0, step=1, limit=4
  $region2: #{tpu_custom_call.1} parent=0 // loop_pre_header
    _
  $region3: #{tpu_custom_call.1} parent=0 // loop_header
    %s11 = sphi 0, %s15
    %p12 = scmp.ge.s32.totalorder %s11, 4
    %s21 = sphi 0, %s23
    %s24 = sphi 0, %s21
    %s25 = sphi 0, %s24
    %s41 = sphi 0, %s25
    %s45 = sphi 0, %s45
    %s47 = sphi 0, %s45
    %s48 = sphi 0, %s47
    %s62 = sphi 0, %s48
    %s66 = sphi 0, %s66
    %s68 = sphi 0, %s66
    %s69 = sphi 0, %s68
    %s83 = sphi 0, %s69
    %s87 = sphi 0, %s87
    %s89 = sphi 0, %s87
    %s90 = sphi 0, %s89
    %s104 = sphi 0, %s90
    %s108 = sphi 0, %s108
    %s110 = sphi 0, %s108
    %s111 = sphi 0, %s110
    %s125 = sphi 0, %s111
    %s131 = sphi 0, %s133
    %s134 = sphi 0, %s131
    %s135 = sphi 0, %s134
    %s151 = sphi 0, %s135
  $region4: #{tpu_custom_call.1} parent=0 // loop_header_branch
    %14 = sbr.rel (%p12) target = $region8
  $region5: #{tpu_custom_call.1} parent=0 // loop_body
    %s16 = ssub.s32 %s11, 1
    %s17 = ssub.s32 %s11, 2
    %s18 = sadd.s32 %s11, 1
    %s19 = ssub.s32 %s11, %s18
    %p20 = scmp.eq.s32.totalorder %s19, 0
    %s22 = sadd.s32 %s21, 1
    %s23 = scalar_select %p20, %s21, %s22
    %p26 = pneg %p20
    %p27 = scmp.eq.s32.totalorder %s11, 1
    %p28 = por %p26, %p27
    %p29 = scmp.ne.s32.totalorder %s21, %s24
    %p30 = scmp.eq.s32.totalorder %s11, 0
    %p31 = por %p29, %p30
    %p32 = scmp.ne.s32.totalorder %s21, %s24
    %p33 = scmp.eq.s32.totalorder %s16, 1
    %p34 = por %p32, %p33
    %p35 = scmp.ne.s32.totalorder %s24, %s25
    %p36 = scmp.eq.s32.totalorder %s16, 0
    %p37 = por %p35, %p36
    %p38 = scmp.ne.s32.totalorder %s24, %s25
    %p39 = scmp.eq.s32.totalorder %s17, 1
    %p40 = por %p38, %p39
    %p42 = scmp.ne.s32.totalorder %s25, %s41
    %p43 = scmp.eq.s32.totalorder %s17, 0
    %p44 = por %p42, %p43
    %s46 = sadd.s32 %s45, 1
    %p49 = scmp.eq.s32.totalorder %s11, 1
    %p50 = scmp.ne.s32.totalorder %s45, %s47
    %p51 = scmp.eq.s32.totalorder %s11, 0
    %p52 = por %p50, %p51
    %p53 = scmp.ne.s32.totalorder %s45, %s47
    %p54 = scmp.eq.s32.totalorder %s16, 1
    %p55 = por %p53, %p54
    %p56 = scmp.ne.s32.totalorder %s47, %s48
    %p57 = scmp.eq.s32.totalorder %s16, 0
    %p58 = por %p56, %p57
    %p59 = scmp.ne.s32.totalorder %s47, %s48
    %p60 = scmp.eq.s32.totalorder %s17, 1
    %p61 = por %p59, %p60
    %p63 = scmp.ne.s32.totalorder %s48, %s62
    %p64 = scmp.eq.s32.totalorder %s17, 0
    %p65 = por %p63, %p64
    %s67 = sadd.s32 %s66, 1
    %p70 = scmp.eq.s32.totalorder %s11, 1
    %p71 = scmp.ne.s32.totalorder %s66, %s68
    %p72 = scmp.eq.s32.totalorder %s11, 0
    %p73 = por %p71, %p72
    %p74 = scmp.ne.s32.totalorder %s66, %s68
    %p75 = scmp.eq.s32.totalorder %s16, 1
    %p76 = por %p74, %p75
    %p77 = scmp.ne.s32.totalorder %s68, %s69
    %p78 = scmp.eq.s32.totalorder %s16, 0
    %p79 = por %p77, %p78
    %p80 = scmp.ne.s32.totalorder %s68, %s69
    %p81 = scmp.eq.s32.totalorder %s17, 1
    %p82 = por %p80, %p81
    %p84 = scmp.ne.s32.totalorder %s69, %s83
    %p85 = scmp.eq.s32.totalorder %s17, 0
    %p86 = por %p84, %p85
    %s88 = sadd.s32 %s87, 1
    %p91 = scmp.eq.s32.totalorder %s11, 1
    %p92 = scmp.ne.s32.totalorder %s87, %s89
    %p93 = scmp.eq.s32.totalorder %s11, 0
    %p94 = por %p92, %p93
    %p95 = scmp.ne.s32.totalorder %s87, %s89
    %p96 = scmp.eq.s32.totalorder %s16, 1
    %p97 = por %p95, %p96
    %p98 = scmp.ne.s32.totalorder %s89, %s90
    %p99 = scmp.eq.s32.totalorder %s16, 0
    %p100 = por %p98, %p99
    %p101 = scmp.ne.s32.totalorder %s89, %s90
    %p102 = scmp.eq.s32.totalorder %s17, 1
    %p103 = por %p101, %p102
    %p105 = scmp.ne.s32.totalorder %s90, %s104
    %p106 = scmp.eq.s32.totalorder %s17, 0
    %p107 = por %p105, %p106
    %s109 = sadd.s32 %s108, 1
    %p112 = scmp.eq.s32.totalorder %s11, 1
    %p113 = scmp.ne.s32.totalorder %s108, %s110
    %p114 = scmp.eq.s32.totalorder %s11, 0
    %p115 = por %p113, %p114
    %p116 = scmp.ne.s32.totalorder %s108, %s110
    %p117 = scmp.eq.s32.totalorder %s16, 1
    %p118 = por %p116, %p117
    %p119 = scmp.ne.s32.totalorder %s110, %s111
    %p120 = scmp.eq.s32.totalorder %s16, 0
    %p121 = por %p119, %p120
    %p122 = scmp.ne.s32.totalorder %s110, %s111
    %p123 = scmp.eq.s32.totalorder %s17, 1
    %p124 = por %p122, %p123
    %p126 = scmp.ne.s32.totalorder %s111, %s125
    %p127 = scmp.eq.s32.totalorder %s17, 0
    %p128 = por %p126, %p127
    %s129 = ssub.s32 %s11, %s18
    %p130 = scmp.eq.s32.totalorder %s129, 0
    %s132 = sadd.s32 %s131, 1
    %s133 = scalar_select %p130, %s131, %s132
    %p136 = pneg %p130
    %p137 = scmp.eq.s32.totalorder %s11, 1
    %p138 = por %p136, %p137
    %p139 = scmp.ne.s32.totalorder %s131, %s134
    %p140 = scmp.eq.s32.totalorder %s11, 0
    %p141 = por %p139, %p140
    %p142 = scmp.ne.s32.totalorder %s131, %s134
    %p143 = scmp.eq.s32.totalorder %s16, 1
    %p144 = por %p142, %p143
    %p145 = scmp.ne.s32.totalorder %s134, %s135
    %p146 = scmp.eq.s32.totalorder %s16, 0
    %p147 = por %p145, %p146
    %p148 = scmp.ne.s32.totalorder %s134, %s135
    %p149 = scmp.eq.s32.totalorder %s17, 1
    %p150 = por %p148, %p149
    %p152 = scmp.ne.s32.totalorder %s135, %s151
    %p153 = scmp.eq.s32.totalorder %s17, 0
    %p154 = por %p152, %p153
    %p155 = scmp.le.s32.totalorder 1, %s11
    %p156 = scmp.lt.s32.totalorder %s11, 3
    %p157 = pnand %p155, %p156
    %p158 = pneg %p157
    // Predicated region
    $region9: #{tpu_custom_call.1} parent=5 // pred_check
      _
    $region10: #{tpu_custom_call.1} parent=5 // pred_check_branch
      %160 = sbr.rel (%p157) target = $region12
    $region11: #{tpu_custom_call.1} parent=5 // pred_region
      %s161 = ssub.s32 %s11, 1
      // Predicated region
      $region13: #{tpu_custom_call.1} parent=11 // pred_check
        %p162 = pneg %p58
      $region14: #{tpu_custom_call.1} parent=11 // pred_check_branch
        %164 = sbr.rel (%p162) target = $region16
      $region15: #{tpu_custom_call.1} parent=11 // pred_region
        _
      $region16: #{tpu_custom_call.1} parent=11 // pred_fallthru
        _
      // Predicated region
      $region17: #{tpu_custom_call.1} parent=11 // pred_check
        %p165 = pneg %p79
      $region18: #{tpu_custom_call.1} parent=11 // pred_check_branch
        %167 = sbr.rel (%p165) target = $region20
      $region19: #{tpu_custom_call.1} parent=11 // pred_region
        _
      $region20: #{tpu_custom_call.1} parent=11 // pred_fallthru
        _
      // Predicated region
      $region21: #{tpu_custom_call.1} parent=11 // pred_check
        %p168 = pneg %p100
      $region22: #{tpu_custom_call.1} parent=11 // pred_check_branch
        %170 = sbr.rel (%p168) target = $region24
      $region23: #{tpu_custom_call.1} parent=11 // pred_region
        _
      $region24: #{tpu_custom_call.1} parent=11 // pred_fallthru
        _
      // Predicated region
      $region25: #{tpu_custom_call.1} parent=11 // pred_check
        %p171 = pneg %p121
      $region26: #{tpu_custom_call.1} parent=11 // pred_check_branch
        %173 = sbr.rel (%p171) target = $region28
      $region27: #{tpu_custom_call.1} parent=11 // pred_region
        _
      $region28: #{tpu_custom_call.1} parent=11 // pred_fallthru
        _
    $region12: #{tpu_custom_call.1} parent=5 // pred_fallthru
      _
    %p174 = scmp.lt.s32.totalorder %s11, 2
    // Predicated region
    $region29: #{tpu_custom_call.1} parent=5 // pred_check
      %p175 = pneg %p174
    $region30: #{tpu_custom_call.1} parent=5 // pred_check_branch
      %177 = sbr.rel (%p175) target = $region32
    $region31: #{tpu_custom_call.1} parent=5 // pred_region
      // Predicated region
      $region33: #{tpu_custom_call.1} parent=31 // pred_check
        %p178 = pneg %p31
      $region34: #{tpu_custom_call.1} parent=31 // pred_check_branch
        %180 = sbr.rel (%p178) target = $region36
      $region35: #{tpu_custom_call.1} parent=31 // pred_region
        %p181 = scmp.lt.s32.totalorder %s11, 1
        %s182 = scalar_select %p181, %s11, 1
        %s183 = smul.addr %s182, 28
        %s184 = smul.addr %s183, 4
        %s185 = scalar_lea.vmem %s0, %s184
      $region36: #{tpu_custom_call.1} parent=31 // pred_fallthru
        _
    $region32: #{tpu_custom_call.1} parent=5 // pred_fallthru
      _
    %p186 = scmp.le.s32.totalorder 1, %s11
    %p187 = scmp.lt.s32.totalorder %s11, 3
    %p188 = pnand %p186, %p187
    %p189 = pneg %p188
    // Predicated region
    $region37: #{tpu_custom_call.1} parent=5 // pred_check
      _
    $region38: #{tpu_custom_call.1} parent=5 // pred_check_branch
      %191 = sbr.rel (%p188) target = $region40
    $region39: #{tpu_custom_call.1} parent=5 // pred_region
      %s192 = ssub.s32 %s11, 1
      %p193 = scmp.lt.s32.totalorder %s16, 1
      %s194 = scalar_select %p193, %s16, 1
      %s195 = smul.addr %s194, 28
      %s196 = smul.addr %s195, 4
      %s197 = scalar_lea.vmem %s0, %s196
      %p198 = pneg %p37
      %p199 = pneg %p34
      %p200 = pneg %p58
      %p201 = pneg %p55
      %p202 = pneg %p79
      %p203 = pneg %p76
      %p204 = pneg %p100
      %p205 = pneg %p97
      %p206 = pneg %p121
      %p207 = pneg %p118
      %p208 = pneg %p147
      %p209 = pneg %p144
      %p210 = scmp.lt.s32.totalorder %s16, 1
      %s211 = scalar_select %p210, %s16, 1
      %s212 = scalar_lea.vmem %s5, %s211
      %p213 = scmp.lt.s32.totalorder %s16, 1
      %s214 = scalar_select %p213, %s16, 1
      %s215 = smul.addr %s214, 28
      %s216 = smul.addr %s215, 4
      %s217 = scalar_lea.vmem %s0, %s216
      %p218 = scmp.lt.s32.totalorder %s16, 1
      %s219 = scalar_select %p218, %s16, 1
      %s220 = scalar_lea.vmem %s5, %s219
      %v222 = vld [vmem:[%s217] sm:$0xf]
      %v223 = vld [vmem:[%s217 + $0x4] sm:$0x7]
      %v224 = vld [vmem:[%s217 + $0x8] sm:$0xf]
      %v225 = vld [vmem:[%s217 + $0xc] sm:$0x7]
      %v226 = vld [vmem:[%s217 + $0x10] sm:$0xf]
      %v227 = vld [vmem:[%s217 + $0x14] sm:$0x7]
      %v228 = vld [vmem:[%s217 + $0x18] sm:$0xf]
      %v229 = vld [vmem:[%s217 + $0x1c] sm:$0x7]
      %v230 = vld [vmem:[%s217 + $0x20] sm:$0xf]
      %v231 = vld [vmem:[%s217 + $0x24] sm:$0x7]
      %v232 = vld [vmem:[%s217 + $0x28] sm:$0xf]
      %v233 = vld [vmem:[%s217 + $0x2c] sm:$0x7]
      %v234 = vld [vmem:[%s217 + $0x30] sm:$0xf]
      %v235 = vld [vmem:[%s217 + $0x34] sm:$0x7]
      %v236 = vld [vmem:[%s217 + $0x38] sm:$0xf]
      %v237 = vld [vmem:[%s217 + $0x3c] sm:$0x7]
      %v238 = vld [vmem:[%s217 + $0x40] sm:$0xf]
      %v239 = vld [vmem:[%s217 + $0x44] sm:$0x7]
      %v240 = vld [vmem:[%s217 + $0x48] sm:$0xf]
      %v241 = vld [vmem:[%s217 + $0x4c] sm:$0x7]
      %v242 = vld [vmem:[%s217 + $0x50] sm:$0xf]
      %v243 = vld [vmem:[%s217 + $0x54] sm:$0x7]
      %v244 = vld [vmem:[%s217 + $0x58] sm:$0xf]
      %v245 = vld [vmem:[%s217 + $0x5c] sm:$0x7]
      %v246 = vld [vmem:[%s217 + $0x60] sm:$0xf]
      %v247 = vld [vmem:[%s217 + $0x64] sm:$0x7]
      %v248 = vld [vmem:[%s217 + $0x68] sm:$0xf]
      %v249 = vld [vmem:[%s217 + $0x6c] sm:$0x7]
      %v279 = vunpack.c.l.s4 1966171168
      %v280 = vunpack.c.0.s8 %v279
      %v281 = vlaneseq
      %v282 = vshrl.u32 %v281, 7
      %v283 = vsub.s32 %v280, %v282
      %v284 = vrot.slane %v222, %v283
      %v285 = vcombine.high %v284, %v284
      %v287 = vunpack.c.l.s4 1966171168
      %v288 = vunpack.c.0.s8 %v287
      %v289 = vlaneseq
      %v290 = vshrl.u32 %v289, 7
      %v291 = vsub.s32 %v288, %v290
      %v292 = vrot.slane %v284, %v291
      %v294 = vunpack.c.l.s4 1966171168
      %v295 = vunpack.c.0.s8 %v294
      %v296 = vlaneseq
      %v297 = vshrl.u32 %v296, 7
      %v298 = vsub.s32 %v295, %v297
      %v299 = vrot.slane %v285, %v298
      %v300 = vcombine.high %v292, %v292
      %v301 = vcombine.high %v299, %v299
      %v303 = vunpack.c.l.s4 1966171168
      %v304 = vunpack.c.0.s8 %v303
      %v305 = vlaneseq
      %v306 = vshrl.u32 %v305, 7
      %v307 = vsub.s32 %v304, %v306
      %v308 = vrot.slane %v223, %v307
      %v309 = vcombine.high %v308, %v308
      %v311 = vunpack.c.l.s4 1966171168
      %v312 = vunpack.c.0.s8 %v311
      %v313 = vlaneseq
      %v314 = vshrl.u32 %v313, 7
      %v315 = vsub.s32 %v312, %v314
      %v316 = vrot.slane %v308, %v315
      %v318 = vunpack.c.l.s4 1966171168
      %v319 = vunpack.c.0.s8 %v318
      %v320 = vlaneseq
      %v321 = vshrl.u32 %v320, 7
      %v322 = vsub.s32 %v319, %v321
      %v323 = vrot.slane %v309, %v322
      %v324 = vcombine.high %v316, %v316
      %v326 = vunpack.c.l.s4 1966171168
      %v327 = vunpack.c.0.s8 %v326
      %v328 = vlaneseq
      %v329 = vshrl.u32 %v328, 7
      %v330 = vsub.s32 %v327, %v329
      %v331 = vrot.slane %v224, %v330
      %v332 = vcombine.high %v331, %v331
      %v334 = vunpack.c.l.s4 1966171168
      %v335 = vunpack.c.0.s8 %v334
      %v336 = vlaneseq
      %v337 = vshrl.u32 %v336, 7
      %v338 = vsub.s32 %v335, %v337
      %v339 = vrot.slane %v331, %v338
      %v341 = vunpack.c.l.s4 1966171168
      %v342 = vunpack.c.0.s8 %v341
      %v343 = vlaneseq
      %v344 = vshrl.u32 %v343, 7
      %v345 = vsub.s32 %v342, %v344
      %v346 = vrot.slane %v332, %v345
      %v347 = vcombine.high %v339, %v339
      %v348 = vcombine.high %v346, %v346
      %v350 = vunpack.c.l.s4 1966171168
      %v351 = vunpack.c.0.s8 %v350
      %v352 = vlaneseq
      %v353 = vshrl.u32 %v352, 7
      %v354 = vsub.s32 %v351, %v353
      %v355 = vrot.slane %v225, %v354
      %v356 = vcombine.high %v355, %v355
      %v358 = vunpack.c.l.s4 1966171168
      %v359 = vunpack.c.0.s8 %v358
      %v360 = vlaneseq
      %v361 = vshrl.u32 %v360, 7
      %v362 = vsub.s32 %v359, %v361
      %v363 = vrot.slane %v355, %v362
      %v365 = vunpack.c.l.s4 1966171168
      %v366 = vunpack.c.0.s8 %v365
      %v367 = vlaneseq
      %v368 = vshrl.u32 %v367, 7
      %v369 = vsub.s32 %v366, %v368
      %v370 = vrot.slane %v356, %v369
      %v371 = vcombine.high %v363, %v363
      %v373 = vunpack.c.l.s4 1966171168
      %v374 = vunpack.c.0.s8 %v373
      %v375 = vlaneseq
      %v376 = vshrl.u32 %v375, 7
      %v377 = vsub.s32 %v374, %v376
      %v378 = vrot.slane %v226, %v377
      %v379 = vcombine.high %v378, %v378
      %v381 = vunpack.c.l.s4 1966171168
      %v382 = vunpack.c.0.s8 %v381
      %v383 = vlaneseq
      %v384 = vshrl.u32 %v383, 7
      %v385 = vsub.s32 %v382, %v384
      %v386 = vrot.slane %v378, %v385
      %v388 = vunpack.c.l.s4 1966171168
      %v389 = vunpack.c.0.s8 %v388
      %v390 = vlaneseq
      %v391 = vshrl.u32 %v390, 7
      %v392 = vsub.s32 %v389, %v391
      %v393 = vrot.slane %v379, %v392
      %v394 = vcombine.high %v386, %v386
      %v395 = vcombine.high %v393, %v393
      %v397 = vunpack.c.l.s4 1966171168
      %v398 = vunpack.c.0.s8 %v397
      %v399 = vlaneseq
      %v400 = vshrl.u32 %v399, 7
      %v401 = vsub.s32 %v398, %v400
      %v402 = vrot.slane %v227, %v401
      %v403 = vcombine.high %v402, %v402
      %v405 = vunpack.c.l.s4 1966171168
      %v406 = vunpack.c.0.s8 %v405
      %v407 = vlaneseq
      %v408 = vshrl.u32 %v407, 7
      %v409 = vsub.s32 %v406, %v408
      %v410 = vrot.slane %v402, %v409
      %v412 = vunpack.c.l.s4 1966171168
      %v413 = vunpack.c.0.s8 %v412
      %v414 = vlaneseq
      %v415 = vshrl.u32 %v414, 7
      %v416 = vsub.s32 %v413, %v415
      %v417 = vrot.slane %v403, %v416
      %v418 = vcombine.high %v410, %v410
      %v420 = vunpack.c.l.s4 1966171168
      %v421 = vunpack.c.0.s8 %v420
      %v422 = vlaneseq
      %v423 = vshrl.u32 %v422, 7
      %v424 = vsub.s32 %v421, %v423
      %v425 = vrot.slane %v228, %v424
      %v426 = vcombine.high %v425, %v425
      %v428 = vunpack.c.l.s4 1966171168
      %v429 = vunpack.c.0.s8 %v428
      %v430 = vlaneseq
      %v431 = vshrl.u32 %v430, 7
      %v432 = vsub.s32 %v429, %v431
      %v433 = vrot.slane %v425, %v432
      %v435 = vunpack.c.l.s4 1966171168
      %v436 = vunpack.c.0.s8 %v435
      %v437 = vlaneseq
      %v438 = vshrl.u32 %v437, 7
      %v439 = vsub.s32 %v436, %v438
      %v440 = vrot.slane %v426, %v439
      %v441 = vcombine.high %v433, %v433
      %v442 = vcombine.high %v440, %v440
      %v444 = vunpack.c.l.s4 1966171168
      %v445 = vunpack.c.0.s8 %v444
      %v446 = vlaneseq
      %v447 = vshrl.u32 %v446, 7
      %v448 = vsub.s32 %v445, %v447
      %v449 = vrot.slane %v229, %v448
      %v450 = vcombine.high %v449, %v449
      %v452 = vunpack.c.l.s4 1966171168
      %v453 = vunpack.c.0.s8 %v452
      %v454 = vlaneseq
      %v455 = vshrl.u32 %v454, 7
      %v456 = vsub.s32 %v453, %v455
      %v457 = vrot.slane %v449, %v456
      %v459 = vunpack.c.l.s4 1966171168
      %v460 = vunpack.c.0.s8 %v459
      %v461 = vlaneseq
      %v462 = vshrl.u32 %v461, 7
      %v463 = vsub.s32 %v460, %v462
      %v464 = vrot.slane %v450, %v463
      %v465 = vcombine.high %v457, %v457
      %v467 = vunpack.c.l.s4 1966171168
      %v468 = vunpack.c.0.s8 %v467
      %v469 = vlaneseq
      %v470 = vshrl.u32 %v469, 7
      %v471 = vsub.s32 %v468, %v470
      %v472 = vrot.slane %v230, %v471
      %v473 = vcombine.high %v472, %v472
      %v475 = vunpack.c.l.s4 1966171168
      %v476 = vunpack.c.0.s8 %v475
      %v477 = vlaneseq
      %v478 = vshrl.u32 %v477, 7
      %v479 = vsub.s32 %v476, %v478
      %v480 = vrot.slane %v472, %v479
      %v482 = vunpack.c.l.s4 1966171168
      %v483 = vunpack.c.0.s8 %v482
      %v484 = vlaneseq
      %v485 = vshrl.u32 %v484, 7
      %v486 = vsub.s32 %v483, %v485
      %v487 = vrot.slane %v473, %v486
      %v488 = vcombine.high %v480, %v480
      %v489 = vcombine.high %v487, %v487
      %v491 = vunpack.c.l.s4 1966171168
      %v492 = vunpack.c.0.s8 %v491
      %v493 = vlaneseq
      %v494 = vshrl.u32 %v493, 7
      %v495 = vsub.s32 %v492, %v494
      %v496 = vrot.slane %v231, %v495
      %v497 = vcombine.high %v496, %v496
      %v499 = vunpack.c.l.s4 1966171168
      %v500 = vunpack.c.0.s8 %v499
      %v501 = vlaneseq
      %v502 = vshrl.u32 %v501, 7
      %v503 = vsub.s32 %v500, %v502
      %v504 = vrot.slane %v496, %v503
      %v506 = vunpack.c.l.s4 1966171168
      %v507 = vunpack.c.0.s8 %v506
      %v508 = vlaneseq
      %v509 = vshrl.u32 %v508, 7
      %v510 = vsub.s32 %v507, %v509
      %v511 = vrot.slane %v497, %v510
      %v512 = vcombine.high %v504, %v504
      %v514 = vunpack.c.l.s4 1966171168
      %v515 = vunpack.c.0.s8 %v514
      %v516 = vlaneseq
      %v517 = vshrl.u32 %v516, 7
      %v518 = vsub.s32 %v515, %v517
      %v519 = vrot.slane %v232, %v518
      %v520 = vcombine.high %v519, %v519
      %v522 = vunpack.c.l.s4 1966171168
      %v523 = vunpack.c.0.s8 %v522
      %v524 = vlaneseq
      %v525 = vshrl.u32 %v524, 7
      %v526 = vsub.s32 %v523, %v525
      %v527 = vrot.slane %v519, %v526
      %v529 = vunpack.c.l.s4 1966171168
      %v530 = vunpack.c.0.s8 %v529
      %v531 = vlaneseq
      %v532 = vshrl.u32 %v531, 7
      %v533 = vsub.s32 %v530, %v532
      %v534 = vrot.slane %v520, %v533
      %v535 = vcombine.high %v527, %v527
      %v536 = vcombine.high %v534, %v534
      %v538 = vunpack.c.l.s4 1966171168
      %v539 = vunpack.c.0.s8 %v538
      %v540 = vlaneseq
      %v541 = vshrl.u32 %v540, 7
      %v542 = vsub.s32 %v539, %v541
      %v543 = vrot.slane %v233, %v542
      %v544 = vcombine.high %v543, %v543
      %v546 = vunpack.c.l.s4 1966171168
      %v547 = vunpack.c.0.s8 %v546
      %v548 = vlaneseq
      %v549 = vshrl.u32 %v548, 7
      %v550 = vsub.s32 %v547, %v549
      %v551 = vrot.slane %v543, %v550
      %v553 = vunpack.c.l.s4 1966171168
      %v554 = vunpack.c.0.s8 %v553
      %v555 = vlaneseq
      %v556 = vshrl.u32 %v555, 7
      %v557 = vsub.s32 %v554, %v556
      %v558 = vrot.slane %v544, %v557
      %v559 = vcombine.high %v551, %v551
      %v561 = vunpack.c.l.s4 1966171168
      %v562 = vunpack.c.0.s8 %v561
      %v563 = vlaneseq
      %v564 = vshrl.u32 %v563, 7
      %v565 = vsub.s32 %v562, %v564
      %v566 = vrot.slane %v234, %v565
      %v567 = vcombine.high %v566, %v566
      %v569 = vunpack.c.l.s4 1966171168
      %v570 = vunpack.c.0.s8 %v569
      %v571 = vlaneseq
      %v572 = vshrl.u32 %v571, 7
      %v573 = vsub.s32 %v570, %v572
      %v574 = vrot.slane %v566, %v573
      %v576 = vunpack.c.l.s4 1966171168
      %v577 = vunpack.c.0.s8 %v576
      %v578 = vlaneseq
      %v579 = vshrl.u32 %v578, 7
      %v580 = vsub.s32 %v577, %v579
      %v581 = vrot.slane %v567, %v580
      %v582 = vcombine.high %v574, %v574
      %v583 = vcombine.high %v581, %v581
      %v585 = vunpack.c.l.s4 1966171168
      %v586 = vunpack.c.0.s8 %v585
      %v587 = vlaneseq
      %v588 = vshrl.u32 %v587, 7
      %v589 = vsub.s32 %v586, %v588
      %v590 = vrot.slane %v235, %v589
      %v591 = vcombine.high %v590, %v590
      %v593 = vunpack.c.l.s4 1966171168
      %v594 = vunpack.c.0.s8 %v593
      %v595 = vlaneseq
      %v596 = vshrl.u32 %v595, 7
      %v597 = vsub.s32 %v594, %v596
      %v598 = vrot.slane %v590, %v597
      %v600 = vunpack.c.l.s4 1966171168
      %v601 = vunpack.c.0.s8 %v600
      %v602 = vlaneseq
      %v603 = vshrl.u32 %v602, 7
      %v604 = vsub.s32 %v601, %v603
      %v605 = vrot.slane %v591, %v604
      %v606 = vcombine.high %v598, %v598
      %v608 = vunpack.c.l.s4 1966171168
      %v609 = vunpack.c.0.s8 %v608
      %v610 = vlaneseq
      %v611 = vshrl.u32 %v610, 7
      %v612 = vsub.s32 %v609, %v611
      %v613 = vrot.slane %v236, %v612
      %v614 = vcombine.high %v613, %v613
      %v616 = vunpack.c.l.s4 1966171168
      %v617 = vunpack.c.0.s8 %v616
      %v618 = vlaneseq
      %v619 = vshrl.u32 %v618, 7
      %v620 = vsub.s32 %v617, %v619
      %v621 = vrot.slane %v613, %v620
      %v623 = vunpack.c.l.s4 1966171168
      %v624 = vunpack.c.0.s8 %v623
      %v625 = vlaneseq
      %v626 = vshrl.u32 %v625, 7
      %v627 = vsub.s32 %v624, %v626
      %v628 = vrot.slane %v614, %v627
      %v629 = vcombine.high %v621, %v621
      %v630 = vcombine.high %v628, %v628
      %v632 = vunpack.c.l.s4 1966171168
      %v633 = vunpack.c.0.s8 %v632
      %v634 = vlaneseq
      %v635 = vshrl.u32 %v634, 7
      %v636 = vsub.s32 %v633, %v635
      %v637 = vrot.slane %v237, %v636
      %v638 = vcombine.high %v637, %v637
      %v640 = vunpack.c.l.s4 1966171168
      %v641 = vunpack.c.0.s8 %v640
      %v642 = vlaneseq
      %v643 = vshrl.u32 %v642, 7
      %v644 = vsub.s32 %v641, %v643
      %v645 = vrot.slane %v637, %v644
      %v647 = vunpack.c.l.s4 1966171168
      %v648 = vunpack.c.0.s8 %v647
      %v649 = vlaneseq
      %v650 = vshrl.u32 %v649, 7
      %v651 = vsub.s32 %v648, %v650
      %v652 = vrot.slane %v638, %v651
      %v653 = vcombine.high %v645, %v645
      %v655 = vunpack.c.l.s4 1966171168
      %v656 = vunpack.c.0.s8 %v655
      %v657 = vlaneseq
      %v658 = vshrl.u32 %v657, 7
      %v659 = vsub.s32 %v656, %v658
      %v660 = vrot.slane %v238, %v659
      %v661 = vcombine.high %v660, %v660
      %v663 = vunpack.c.l.s4 1966171168
      %v664 = vunpack.c.0.s8 %v663
      %v665 = vlaneseq
      %v666 = vshrl.u32 %v665, 7
      %v667 = vsub.s32 %v664, %v666
      %v668 = vrot.slane %v660, %v667
      %v670 = vunpack.c.l.s4 1966171168
      %v671 = vunpack.c.0.s8 %v670
      %v672 = vlaneseq
      %v673 = vshrl.u32 %v672, 7
      %v674 = vsub.s32 %v671, %v673
      %v675 = vrot.slane %v661, %v674
      %v676 = vcombine.high %v668, %v668
      %v677 = vcombine.high %v675, %v675
      %v679 = vunpack.c.l.s4 1966171168
      %v680 = vunpack.c.0.s8 %v679
      %v681 = vlaneseq
      %v682 = vshrl.u32 %v681, 7
      %v683 = vsub.s32 %v680, %v682
      %v684 = vrot.slane %v239, %v683
      %v685 = vcombine.high %v684, %v684
      %v687 = vunpack.c.l.s4 1966171168
      %v688 = vunpack.c.0.s8 %v687
      %v689 = vlaneseq
      %v690 = vshrl.u32 %v689, 7
      %v691 = vsub.s32 %v688, %v690
      %v692 = vrot.slane %v684, %v691
      %v694 = vunpack.c.l.s4 1966171168
      %v695 = vunpack.c.0.s8 %v694
      %v696 = vlaneseq
      %v697 = vshrl.u32 %v696, 7
      %v698 = vsub.s32 %v695, %v697
      %v699 = vrot.slane %v685, %v698
      %v700 = vcombine.high %v692, %v692
      %v702 = vunpack.c.l.s4 1966171168
      %v703 = vunpack.c.0.s8 %v702
      %v704 = vlaneseq
      %v705 = vshrl.u32 %v704, 7
      %v706 = vsub.s32 %v703, %v705
      %v707 = vrot.slane %v240, %v706
      %v708 = vcombine.high %v707, %v707
      %v710 = vunpack.c.l.s4 1966171168
      %v711 = vunpack.c.0.s8 %v710
      %v712 = vlaneseq
      %v713 = vshrl.u32 %v712, 7
      %v714 = vsub.s32 %v711, %v713
      %v715 = vrot.slane %v707, %v714
      %v717 = vunpack.c.l.s4 1966171168
      %v718 = vunpack.c.0.s8 %v717
      %v719 = vlaneseq
      %v720 = vshrl.u32 %v719, 7
      %v721 = vsub.s32 %v718, %v720
      %v722 = vrot.slane %v708, %v721
      %v723 = vcombine.high %v715, %v715
      %v724 = vcombine.high %v722, %v722
      %v726 = vunpack.c.l.s4 1966171168
      %v727 = vunpack.c.0.s8 %v726
      %v728 = vlaneseq
      %v729 = vshrl.u32 %v728, 7
      %v730 = vsub.s32 %v727, %v729
      %v731 = vrot.slane %v241, %v730
      %v732 = vcombine.high %v731, %v731
      %v734 = vunpack.c.l.s4 1966171168
      %v735 = vunpack.c.0.s8 %v734
      %v736 = vlaneseq
      %v737 = vshrl.u32 %v736, 7
      %v738 = vsub.s32 %v735, %v737
      %v739 = vrot.slane %v731, %v738
      %v741 = vunpack.c.l.s4 1966171168
      %v742 = vunpack.c.0.s8 %v741
      %v743 = vlaneseq
      %v744 = vshrl.u32 %v743, 7
      %v745 = vsub.s32 %v742, %v744
      %v746 = vrot.slane %v732, %v745
      %v747 = vcombine.high %v739, %v739
      %v749 = vunpack.c.l.s4 1966171168
      %v750 = vunpack.c.0.s8 %v749
      %v751 = vlaneseq
      %v752 = vshrl.u32 %v751, 7
      %v753 = vsub.s32 %v750, %v752
      %v754 = vrot.slane %v242, %v753
      %v755 = vcombine.high %v754, %v754
      %v757 = vunpack.c.l.s4 1966171168
      %v758 = vunpack.c.0.s8 %v757
      %v759 = vlaneseq
      %v760 = vshrl.u32 %v759, 7
      %v761 = vsub.s32 %v758, %v760
      %v762 = vrot.slane %v754, %v761
      %v764 = vunpack.c.l.s4 1966171168
      %v765 = vunpack.c.0.s8 %v764
      %v766 = vlaneseq
      %v767 = vshrl.u32 %v766, 7
      %v768 = vsub.s32 %v765, %v767
      %v769 = vrot.slane %v755, %v768
      %v770 = vcombine.high %v762, %v762
      %v771 = vcombine.high %v769, %v769
      %v773 = vunpack.c.l.s4 1966171168
      %v774 = vunpack.c.0.s8 %v773
      %v775 = vlaneseq
      %v776 = vshrl.u32 %v775, 7
      %v777 = vsub.s32 %v774, %v776
      %v778 = vrot.slane %v243, %v777
      %v779 = vcombine.high %v778, %v778
      %v781 = vunpack.c.l.s4 1966171168
      %v782 = vunpack.c.0.s8 %v781
      %v783 = vlaneseq
      %v784 = vshrl.u32 %v783, 7
      %v785 = vsub.s32 %v782, %v784
      %v786 = vrot.slane %v778, %v785
      %v788 = vunpack.c.l.s4 1966171168
      %v789 = vunpack.c.0.s8 %v788
      %v790 = vlaneseq
      %v791 = vshrl.u32 %v790, 7
      %v792 = vsub.s32 %v789, %v791
      %v793 = vrot.slane %v779, %v792
      %v794 = vcombine.high %v786, %v786
      %v796 = vunpack.c.l.s4 1966171168
      %v797 = vunpack.c.0.s8 %v796
      %v798 = vlaneseq
      %v799 = vshrl.u32 %v798, 7
      %v800 = vsub.s32 %v797, %v799
      %v801 = vrot.slane %v244, %v800
      %v802 = vcombine.high %v801, %v801
      %v804 = vunpack.c.l.s4 1966171168
      %v805 = vunpack.c.0.s8 %v804
      %v806 = vlaneseq
      %v807 = vshrl.u32 %v806, 7
      %v808 = vsub.s32 %v805, %v807
      %v809 = vrot.slane %v801, %v808
      %v811 = vunpack.c.l.s4 1966171168
      %v812 = vunpack.c.0.s8 %v811
      %v813 = vlaneseq
      %v814 = vshrl.u32 %v813, 7
      %v815 = vsub.s32 %v812, %v814
      %v816 = vrot.slane %v802, %v815
      %v817 = vcombine.high %v809, %v809
      %v818 = vcombine.high %v816, %v816
      %v820 = vunpack.c.l.s4 1966171168
      %v821 = vunpack.c.0.s8 %v820
      %v822 = vlaneseq
      %v823 = vshrl.u32 %v822, 7
      %v824 = vsub.s32 %v821, %v823
      %v825 = vrot.slane %v245, %v824
      %v826 = vcombine.high %v825, %v825
      %v828 = vunpack.c.l.s4 1966171168
      %v829 = vunpack.c.0.s8 %v828
      %v830 = vlaneseq
      %v831 = vshrl.u32 %v830, 7
      %v832 = vsub.s32 %v829, %v831
      %v833 = vrot.slane %v825, %v832
      %v835 = vunpack.c.l.s4 1966171168
      %v836 = vunpack.c.0.s8 %v835
      %v837 = vlaneseq
      %v838 = vshrl.u32 %v837, 7
      %v839 = vsub.s32 %v836, %v838
      %v840 = vrot.slane %v826, %v839
      %v841 = vcombine.high %v833, %v833
      %v843 = vunpack.c.l.s4 1966171168
      %v844 = vunpack.c.0.s8 %v843
      %v845 = vlaneseq
      %v846 = vshrl.u32 %v845, 7
      %v847 = vsub.s32 %v844, %v846
      %v848 = vrot.slane %v246, %v847
      %v849 = vcombine.high %v848, %v848
      %v851 = vunpack.c.l.s4 1966171168
      %v852 = vunpack.c.0.s8 %v851
      %v853 = vlaneseq
      %v854 = vshrl.u32 %v853, 7
      %v855 = vsub.s32 %v852, %v854
      %v856 = vrot.slane %v848, %v855
      %v858 = vunpack.c.l.s4 1966171168
      %v859 = vunpack.c.0.s8 %v858
      %v860 = vlaneseq
      %v861 = vshrl.u32 %v860, 7
      %v862 = vsub.s32 %v859, %v861
      %v863 = vrot.slane %v849, %v862
      %v864 = vcombine.high %v856, %v856
      %v865 = vcombine.high %v863, %v863
      %v867 = vunpack.c.l.s4 1966171168
      %v868 = vunpack.c.0.s8 %v867
      %v869 = vlaneseq
      %v870 = vshrl.u32 %v869, 7
      %v871 = vsub.s32 %v868, %v870
      %v872 = vrot.slane %v247, %v871
      %v873 = vcombine.high %v872, %v872
      %v875 = vunpack.c.l.s4 1966171168
      %v876 = vunpack.c.0.s8 %v875
      %v877 = vlaneseq
      %v878 = vshrl.u32 %v877, 7
      %v879 = vsub.s32 %v876, %v878
      %v880 = vrot.slane %v872, %v879
      %v882 = vunpack.c.l.s4 1966171168
      %v883 = vunpack.c.0.s8 %v882
      %v884 = vlaneseq
      %v885 = vshrl.u32 %v884, 7
      %v886 = vsub.s32 %v883, %v885
      %v887 = vrot.slane %v873, %v886
      %v888 = vcombine.high %v880, %v880
      %v890 = vunpack.c.l.s4 1966171168
      %v891 = vunpack.c.0.s8 %v890
      %v892 = vlaneseq
      %v893 = vshrl.u32 %v892, 7
      %v894 = vsub.s32 %v891, %v893
      %v895 = vrot.slane %v248, %v894
      %v896 = vcombine.high %v895, %v895
      %v898 = vunpack.c.l.s4 1966171168
      %v899 = vunpack.c.0.s8 %v898
      %v900 = vlaneseq
      %v901 = vshrl.u32 %v900, 7
      %v902 = vsub.s32 %v899, %v901
      %v903 = vrot.slane %v895, %v902
      %v905 = vunpack.c.l.s4 1966171168
      %v906 = vunpack.c.0.s8 %v905
      %v907 = vlaneseq
      %v908 = vshrl.u32 %v907, 7
      %v909 = vsub.s32 %v906, %v908
      %v910 = vrot.slane %v896, %v909
      %v911 = vcombine.high %v903, %v903
      %v912 = vcombine.high %v910, %v910
      %v914 = vunpack.c.l.s4 1966171168
      %v915 = vunpack.c.0.s8 %v914
      %v916 = vlaneseq
      %v917 = vshrl.u32 %v916, 7
      %v918 = vsub.s32 %v915, %v917
      %v919 = vrot.slane %v249, %v918
      %v920 = vcombine.high %v919, %v919
      %v922 = vunpack.c.l.s4 1966171168
      %v923 = vunpack.c.0.s8 %v922
      %v924 = vlaneseq
      %v925 = vshrl.u32 %v924, 7
      %v926 = vsub.s32 %v923, %v925
      %v927 = vrot.slane %v919, %v926
      %v929 = vunpack.c.l.s4 1966171168
      %v930 = vunpack.c.0.s8 %v929
      %v931 = vlaneseq
      %v932 = vshrl.u32 %v931, 7
      %v933 = vsub.s32 %v930, %v932
      %v934 = vrot.slane %v920, %v933
      %v935 = vcombine.high %v927, %v927
      %v936 = vld [vmem:[%s1] sm:$0xff]
      %v937 = vld [vmem:[%s1 + $0x8] sm:$0xff]
      %v938 = vld [vmem:[%s1 + $0x10] sm:$0xff]
      %v939 = vld [vmem:[%s1 + $0x18] sm:$0xff]
      %v940 = vld [vmem:[%s1 + $0x20] sm:$0x33]
      %v941 = vcombine.low %v292, %v299
      %v942 = vcombine.low %v300, %v301
      %v943 = vcombine.low %v316, %v323
      %v944 = vcombine.low %v324, %v339
      %v946 = vunpack.c.l.s4 1966171168
      %v947 = vunpack.c.0.s8 %v946
      %v948 = vlaneseq
      %v949 = vshrl.u32 %v948, 7
      %v950 = vsub.s32 %v947, %v949
      %v951 = vrot.slane %v941, %v950
      %v953 = vunpack.c.l.s4 1966171168
      %v954 = vunpack.c.0.s8 %v953
      %v955 = vlaneseq
      %v956 = vshrl.u32 %v955, 7
      %v957 = vsub.s32 %v954, %v956
      %v958 = vrot.slane %v942, %v957
      %v960 = vunpack.c.l.s4 1966171168
      %v961 = vunpack.c.0.s8 %v960
      %v962 = vlaneseq
      %v963 = vshrl.u32 %v962, 7
      %v964 = vsub.s32 %v961, %v963
      %v965 = vrot.slane %v943, %v964
      %v967 = vunpack.c.l.s4 1966171168
      %v968 = vunpack.c.0.s8 %v967
      %v969 = vlaneseq
      %v970 = vshrl.u32 %v969, 7
      %v971 = vsub.s32 %v968, %v970
      %v972 = vrot.slane %v944, %v971
      %v973 = vcombine.low %v951, %v958
      %v974 = vcombine.low %v965, %v972
      %v976 = vunpack.c.l.s4 1966171168
      %v977 = vunpack.c.0.s8 %v976
      %v978 = vlaneseq
      %v979 = vshrl.u32 %v978, 7
      %v980 = vsub.s32 %v977, %v979
      %v981 = vrot.slane %v973, %v980
      %v983 = vunpack.c.l.s4 1966171168
      %v984 = vunpack.c.0.s8 %v983
      %v985 = vlaneseq
      %v986 = vshrl.u32 %v985, 7
      %v987 = vsub.s32 %v984, %v986
      %v988 = vrot.slane %v974, %v987
      %v989 = vcombine.low %v981, %v988
      %v990 = vcombine.low %v346, %v347
      %v991 = vcombine.low %v348, %v363
      %v992 = vcombine.low %v370, %v371
      %v993 = vcombine.low %v386, %v393
      %v995 = vunpack.c.l.s4 1966171168
      %v996 = vunpack.c.0.s8 %v995
      %v997 = vlaneseq
      %v998 = vshrl.u32 %v997, 7
      %v999 = vsub.s32 %v996, %v998
      %v1000 = vrot.slane %v990, %v999
      %v1002 = vunpack.c.l.s4 1966171168
      %v1003 = vunpack.c.0.s8 %v1002
      %v1004 = vlaneseq
      %v1005 = vshrl.u32 %v1004, 7
      %v1006 = vsub.s32 %v1003, %v1005
      %v1007 = vrot.slane %v991, %v1006
      %v1009 = vunpack.c.l.s4 1966171168
      %v1010 = vunpack.c.0.s8 %v1009
      %v1011 = vlaneseq
      %v1012 = vshrl.u32 %v1011, 7
      %v1013 = vsub.s32 %v1010, %v1012
      %v1014 = vrot.slane %v992, %v1013
      %v1016 = vunpack.c.l.s4 1966171168
      %v1017 = vunpack.c.0.s8 %v1016
      %v1018 = vlaneseq
      %v1019 = vshrl.u32 %v1018, 7
      %v1020 = vsub.s32 %v1017, %v1019
      %v1021 = vrot.slane %v993, %v1020
      %v1022 = vcombine.low %v1000, %v1007
      %v1023 = vcombine.low %v1014, %v1021
      %v1025 = vunpack.c.l.s4 1966171168
      %v1026 = vunpack.c.0.s8 %v1025
      %v1027 = vlaneseq
      %v1028 = vshrl.u32 %v1027, 7
      %v1029 = vsub.s32 %v1026, %v1028
      %v1030 = vrot.slane %v1022, %v1029
      %v1032 = vunpack.c.l.s4 1966171168
      %v1033 = vunpack.c.0.s8 %v1032
      %v1034 = vlaneseq
      %v1035 = vshrl.u32 %v1034, 7
      %v1036 = vsub.s32 %v1033, %v1035
      %v1037 = vrot.slane %v1023, %v1036
      %v1038 = vcombine.low %v1030, %v1037
      %v1039 = vcombine.low %v394, %v395
      %v1040 = vcombine.low %v410, %v417
      %v1041 = vcombine.low %v418, %v433
      %v1042 = vcombine.low %v440, %v441
      %v1044 = vunpack.c.l.s4 1966171168
      %v1045 = vunpack.c.0.s8 %v1044
      %v1046 = vlaneseq
      %v1047 = vshrl.u32 %v1046, 7
      %v1048 = vsub.s32 %v1045, %v1047
      %v1049 = vrot.slane %v1039, %v1048
      %v1051 = vunpack.c.l.s4 1966171168
      %v1052 = vunpack.c.0.s8 %v1051
      %v1053 = vlaneseq
      %v1054 = vshrl.u32 %v1053, 7
      %v1055 = vsub.s32 %v1052, %v1054
      %v1056 = vrot.slane %v1040, %v1055
      %v1058 = vunpack.c.l.s4 1966171168
      %v1059 = vunpack.c.0.s8 %v1058
      %v1060 = vlaneseq
      %v1061 = vshrl.u32 %v1060, 7
      %v1062 = vsub.s32 %v1059, %v1061
      %v1063 = vrot.slane %v1041, %v1062
      %v1065 = vunpack.c.l.s4 1966171168
      %v1066 = vunpack.c.0.s8 %v1065
      %v1067 = vlaneseq
      %v1068 = vshrl.u32 %v1067, 7
      %v1069 = vsub.s32 %v1066, %v1068
      %v1070 = vrot.slane %v1042, %v1069
      %v1071 = vcombine.low %v1049, %v1056
      %v1072 = vcombine.low %v1063, %v1070
      %v1074 = vunpack.c.l.s4 1966171168
      %v1075 = vunpack.c.0.s8 %v1074
      %v1076 = vlaneseq
      %v1077 = vshrl.u32 %v1076, 7
      %v1078 = vsub.s32 %v1075, %v1077
      %v1079 = vrot.slane %v1071, %v1078
      %v1081 = vunpack.c.l.s4 1966171168
      %v1082 = vunpack.c.0.s8 %v1081
      %v1083 = vlaneseq
      %v1084 = vshrl.u32 %v1083, 7
      %v1085 = vsub.s32 %v1082, %v1084
      %v1086 = vrot.slane %v1072, %v1085
      %v1087 = vcombine.low %v1079, %v1086
      %v1088 = vcombine.low %v442, %v457
      %v1089 = vcombine.low %v464, %v465
      %v1090 = vcombine.low %v480, %v487
      %v1091 = vcombine.low %v488, %v489
      %v1093 = vunpack.c.l.s4 1966171168
      %v1094 = vunpack.c.0.s8 %v1093
      %v1095 = vlaneseq
      %v1096 = vshrl.u32 %v1095, 7
      %v1097 = vsub.s32 %v1094, %v1096
      %v1098 = vrot.slane %v1088, %v1097
      %v1100 = vunpack.c.l.s4 1966171168
      %v1101 = vunpack.c.0.s8 %v1100
      %v1102 = vlaneseq
      %v1103 = vshrl.u32 %v1102, 7
      %v1104 = vsub.s32 %v1101, %v1103
      %v1105 = vrot.slane %v1089, %v1104
      %v1107 = vunpack.c.l.s4 1966171168
      %v1108 = vunpack.c.0.s8 %v1107
      %v1109 = vlaneseq
      %v1110 = vshrl.u32 %v1109, 7
      %v1111 = vsub.s32 %v1108, %v1110
      %v1112 = vrot.slane %v1090, %v1111
      %v1114 = vunpack.c.l.s4 1966171168
      %v1115 = vunpack.c.0.s8 %v1114
      %v1116 = vlaneseq
      %v1117 = vshrl.u32 %v1116, 7
      %v1118 = vsub.s32 %v1115, %v1117
      %v1119 = vrot.slane %v1091, %v1118
      %v1120 = vcombine.low %v1098, %v1105
      %v1121 = vcombine.low %v1112, %v1119
      %v1123 = vunpack.c.l.s4 1966171168
      %v1124 = vunpack.c.0.s8 %v1123
      %v1125 = vlaneseq
      %v1126 = vshrl.u32 %v1125, 7
      %v1127 = vsub.s32 %v1124, %v1126
      %v1128 = vrot.slane %v1120, %v1127
      %v1130 = vunpack.c.l.s4 1966171168
      %v1131 = vunpack.c.0.s8 %v1130
      %v1132 = vlaneseq
      %v1133 = vshrl.u32 %v1132, 7
      %v1134 = vsub.s32 %v1131, %v1133
      %v1135 = vrot.slane %v1121, %v1134
      %v1136 = vcombine.low %v1128, %v1135
      %v1137 = vcombine.low %v504, %v511
      %v1138 = vcombine.low %v512, %v527
      %v1139 = vcombine.low %v534, %v535
      %v1140 = vcombine.low %v536, %v551
      %v1142 = vunpack.c.l.s4 1966171168
      %v1143 = vunpack.c.0.s8 %v1142
      %v1144 = vlaneseq
      %v1145 = vshrl.u32 %v1144, 7
      %v1146 = vsub.s32 %v1143, %v1145
      %v1147 = vrot.slane %v1137, %v1146
      %v1149 = vunpack.c.l.s4 1966171168
      %v1150 = vunpack.c.0.s8 %v1149
      %v1151 = vlaneseq
      %v1152 = vshrl.u32 %v1151, 7
      %v1153 = vsub.s32 %v1150, %v1152
      %v1154 = vrot.slane %v1138, %v1153
      %v1156 = vunpack.c.l.s4 1966171168
      %v1157 = vunpack.c.0.s8 %v1156
      %v1158 = vlaneseq
      %v1159 = vshrl.u32 %v1158, 7
      %v1160 = vsub.s32 %v1157, %v1159
      %v1161 = vrot.slane %v1139, %v1160
      %v1163 = vunpack.c.l.s4 1966171168
      %v1164 = vunpack.c.0.s8 %v1163
      %v1165 = vlaneseq
      %v1166 = vshrl.u32 %v1165, 7
      %v1167 = vsub.s32 %v1164, %v1166
      %v1168 = vrot.slane %v1140, %v1167
      %v1169 = vcombine.low %v1147, %v1154
      %v1170 = vcombine.low %v1161, %v1168
      %v1172 = vunpack.c.l.s4 1966171168
      %v1173 = vunpack.c.0.s8 %v1172
      %v1174 = vlaneseq
      %v1175 = vshrl.u32 %v1174, 7
      %v1176 = vsub.s32 %v1173, %v1175
      %v1177 = vrot.slane %v1169, %v1176
      %v1179 = vunpack.c.l.s4 1966171168
      %v1180 = vunpack.c.0.s8 %v1179
      %v1181 = vlaneseq
      %v1182 = vshrl.u32 %v1181, 7
      %v1183 = vsub.s32 %v1180, %v1182
      %v1184 = vrot.slane %v1170, %v1183
      %v1185 = vcombine.low %v1177, %v1184
      %v1186 = vcombine.low %v558, %v559
      %v1187 = vcombine.low %v574, %v581
      %v1188 = vcombine.low %v582, %v583
      %v1189 = vcombine.low %v598, %v605
      %v1191 = vunpack.c.l.s4 1966171168
      %v1192 = vunpack.c.0.s8 %v1191
      %v1193 = vlaneseq
      %v1194 = vshrl.u32 %v1193, 7
      %v1195 = vsub.s32 %v1192, %v1194
      %v1196 = vrot.slane %v1186, %v1195
      %v1198 = vunpack.c.l.s4 1966171168
      %v1199 = vunpack.c.0.s8 %v1198
      %v1200 = vlaneseq
      %v1201 = vshrl.u32 %v1200, 7
      %v1202 = vsub.s32 %v1199, %v1201
      %v1203 = vrot.slane %v1187, %v1202
      %v1205 = vunpack.c.l.s4 1966171168
      %v1206 = vunpack.c.0.s8 %v1205
      %v1207 = vlaneseq
      %v1208 = vshrl.u32 %v1207, 7
      %v1209 = vsub.s32 %v1206, %v1208
      %v1210 = vrot.slane %v1188, %v1209
      %v1212 = vunpack.c.l.s4 1966171168
      %v1213 = vunpack.c.0.s8 %v1212
      %v1214 = vlaneseq
      %v1215 = vshrl.u32 %v1214, 7
      %v1216 = vsub.s32 %v1213, %v1215
      %v1217 = vrot.slane %v1189, %v1216
      %v1218 = vcombine.low %v1196, %v1203
      %v1219 = vcombine.low %v1210, %v1217
      %v1221 = vunpack.c.l.s4 1966171168
      %v1222 = vunpack.c.0.s8 %v1221
      %v1223 = vlaneseq
      %v1224 = vshrl.u32 %v1223, 7
      %v1225 = vsub.s32 %v1222, %v1224
      %v1226 = vrot.slane %v1218, %v1225
      %v1228 = vunpack.c.l.s4 1966171168
      %v1229 = vunpack.c.0.s8 %v1228
      %v1230 = vlaneseq
      %v1231 = vshrl.u32 %v1230, 7
      %v1232 = vsub.s32 %v1229, %v1231
      %v1233 = vrot.slane %v1219, %v1232
      %v1234 = vcombine.low %v1226, %v1233
      %v1235 = vcombine.low %v606, %v621
      %v1236 = vcombine.low %v628, %v629
      %v1237 = vcombine.low %v630, %v645
      %v1238 = vcombine.low %v652, %v653
      %v1240 = vunpack.c.l.s4 1966171168
      %v1241 = vunpack.c.0.s8 %v1240
      %v1242 = vlaneseq
      %v1243 = vshrl.u32 %v1242, 7
      %v1244 = vsub.s32 %v1241, %v1243
      %v1245 = vrot.slane %v1235, %v1244
      %v1247 = vunpack.c.l.s4 1966171168
      %v1248 = vunpack.c.0.s8 %v1247
      %v1249 = vlaneseq
      %v1250 = vshrl.u32 %v1249, 7
      %v1251 = vsub.s32 %v1248, %v1250
      %v1252 = vrot.slane %v1236, %v1251
      %v1254 = vunpack.c.l.s4 1966171168
      %v1255 = vunpack.c.0.s8 %v1254
      %v1256 = vlaneseq
      %v1257 = vshrl.u32 %v1256, 7
      %v1258 = vsub.s32 %v1255, %v1257
      %v1259 = vrot.slane %v1237, %v1258
      %v1261 = vunpack.c.l.s4 1966171168
      %v1262 = vunpack.c.0.s8 %v1261
      %v1263 = vlaneseq
      %v1264 = vshrl.u32 %v1263, 7
      %v1265 = vsub.s32 %v1262, %v1264
      %v1266 = vrot.slane %v1238, %v1265
      %v1267 = vcombine.low %v1245, %v1252
      %v1268 = vcombine.low %v1259, %v1266
      %v1270 = vunpack.c.l.s4 1966171168
      %v1271 = vunpack.c.0.s8 %v1270
      %v1272 = vlaneseq
      %v1273 = vshrl.u32 %v1272, 7
      %v1274 = vsub.s32 %v1271, %v1273
      %v1275 = vrot.slane %v1267, %v1274
      %v1277 = vunpack.c.l.s4 1966171168
      %v1278 = vunpack.c.0.s8 %v1277
      %v1279 = vlaneseq
      %v1280 = vshrl.u32 %v1279, 7
      %v1281 = vsub.s32 %v1278, %v1280
      %v1282 = vrot.slane %v1268, %v1281
      %v1283 = vcombine.low %v1275, %v1282
      %v1284 = vcombine.low %v668, %v675
      %v1285 = vcombine.low %v676, %v677
      %v1286 = vcombine.low %v692, %v699
      %v1287 = vcombine.low %v700, %v715
      %v1289 = vunpack.c.l.s4 1966171168
      %v1290 = vunpack.c.0.s8 %v1289
      %v1291 = vlaneseq
      %v1292 = vshrl.u32 %v1291, 7
      %v1293 = vsub.s32 %v1290, %v1292
      %v1294 = vrot.slane %v1284, %v1293
      %v1296 = vunpack.c.l.s4 1966171168
      %v1297 = vunpack.c.0.s8 %v1296
      %v1298 = vlaneseq
      %v1299 = vshrl.u32 %v1298, 7
      %v1300 = vsub.s32 %v1297, %v1299
      %v1301 = vrot.slane %v1285, %v1300
      %v1303 = vunpack.c.l.s4 1966171168
      %v1304 = vunpack.c.0.s8 %v1303
      %v1305 = vlaneseq
      %v1306 = vshrl.u32 %v1305, 7
      %v1307 = vsub.s32 %v1304, %v1306
      %v1308 = vrot.slane %v1286, %v1307
      %v1310 = vunpack.c.l.s4 1966171168
      %v1311 = vunpack.c.0.s8 %v1310
      %v1312 = vlaneseq
      %v1313 = vshrl.u32 %v1312, 7
      %v1314 = vsub.s32 %v1311, %v1313
      %v1315 = vrot.slane %v1287, %v1314
      %v1316 = vcombine.low %v1294, %v1301
      %v1317 = vcombine.low %v1308, %v1315
      %v1319 = vunpack.c.l.s4 1966171168
      %v1320 = vunpack.c.0.s8 %v1319
      %v1321 = vlaneseq
      %v1322 = vshrl.u32 %v1321, 7
      %v1323 = vsub.s32 %v1320, %v1322
      %v1324 = vrot.slane %v1316, %v1323
      %v1326 = vunpack.c.l.s4 1966171168
      %v1327 = vunpack.c.0.s8 %v1326
      %v1328 = vlaneseq
      %v1329 = vshrl.u32 %v1328, 7
      %v1330 = vsub.s32 %v1327, %v1329
      %v1331 = vrot.slane %v1317, %v1330
      %v1332 = vcombine.low %v1324, %v1331
      %v1333 = vcombine.low %v722, %v723
      %v1334 = vcombine.low %v724, %v739
      %v1335 = vcombine.low %v746, %v747
      %v1336 = vcombine.low %v762, %v769
      %v1338 = vunpack.c.l.s4 1966171168
      %v1339 = vunpack.c.0.s8 %v1338
      %v1340 = vlaneseq
      %v1341 = vshrl.u32 %v1340, 7
      %v1342 = vsub.s32 %v1339, %v1341
      %v1343 = vrot.slane %v1333, %v1342
      %v1345 = vunpack.c.l.s4 1966171168
      %v1346 = vunpack.c.0.s8 %v1345
      %v1347 = vlaneseq
      %v1348 = vshrl.u32 %v1347, 7
      %v1349 = vsub.s32 %v1346, %v1348
      %v1350 = vrot.slane %v1334, %v1349
      %v1352 = vunpack.c.l.s4 1966171168
      %v1353 = vunpack.c.0.s8 %v1352
      %v1354 = vlaneseq
      %v1355 = vshrl.u32 %v1354, 7
      %v1356 = vsub.s32 %v1353, %v1355
      %v1357 = vrot.slane %v1335, %v1356
      %v1359 = vunpack.c.l.s4 1966171168
      %v1360 = vunpack.c.0.s8 %v1359
      %v1361 = vlaneseq
      %v1362 = vshrl.u32 %v1361, 7
      %v1363 = vsub.s32 %v1360, %v1362
      %v1364 = vrot.slane %v1336, %v1363
      %v1365 = vcombine.low %v1343, %v1350
      %v1366 = vcombine.low %v1357, %v1364
      %v1368 = vunpack.c.l.s4 1966171168
      %v1369 = vunpack.c.0.s8 %v1368
      %v1370 = vlaneseq
      %v1371 = vshrl.u32 %v1370, 7
      %v1372 = vsub.s32 %v1369, %v1371
      %v1373 = vrot.slane %v1365, %v1372
      %v1375 = vunpack.c.l.s4 1966171168
      %v1376 = vunpack.c.0.s8 %v1375
      %v1377 = vlaneseq
      %v1378 = vshrl.u32 %v1377, 7
      %v1379 = vsub.s32 %v1376, %v1378
      %v1380 = vrot.slane %v1366, %v1379
      %v1381 = vcombine.low %v1373, %v1380
      %v1382 = vcombine.low %v770, %v771
      %v1383 = vcombine.low %v786, %v793
      %v1384 = vcombine.low %v794, %v809
      %v1385 = vcombine.low %v816, %v817
      %v1387 = vunpack.c.l.s4 1966171168
      %v1388 = vunpack.c.0.s8 %v1387
      %v1389 = vlaneseq
      %v1390 = vshrl.u32 %v1389, 7
      %v1391 = vsub.s32 %v1388, %v1390
      %v1392 = vrot.slane %v1382, %v1391
      %v1394 = vunpack.c.l.s4 1966171168
      %v1395 = vunpack.c.0.s8 %v1394
      %v1396 = vlaneseq
      %v1397 = vshrl.u32 %v1396, 7
      %v1398 = vsub.s32 %v1395, %v1397
      %v1399 = vrot.slane %v1383, %v1398
      %v1401 = vunpack.c.l.s4 1966171168
      %v1402 = vunpack.c.0.s8 %v1401
      %v1403 = vlaneseq
      %v1404 = vshrl.u32 %v1403, 7
      %v1405 = vsub.s32 %v1402, %v1404
      %v1406 = vrot.slane %v1384, %v1405
      %v1408 = vunpack.c.l.s4 1966171168
      %v1409 = vunpack.c.0.s8 %v1408
      %v1410 = vlaneseq
      %v1411 = vshrl.u32 %v1410, 7
      %v1412 = vsub.s32 %v1409, %v1411
      %v1413 = vrot.slane %v1385, %v1412
      %v1414 = vcombine.low %v1392, %v1399
      %v1415 = vcombine.low %v1406, %v1413
      %v1417 = vunpack.c.l.s4 1966171168
      %v1418 = vunpack.c.0.s8 %v1417
      %v1419 = vlaneseq
      %v1420 = vshrl.u32 %v1419, 7
      %v1421 = vsub.s32 %v1418, %v1420
      %v1422 = vrot.slane %v1414, %v1421
      %v1424 = vunpack.c.l.s4 1966171168
      %v1425 = vunpack.c.0.s8 %v1424
      %v1426 = vlaneseq
      %v1427 = vshrl.u32 %v1426, 7
      %v1428 = vsub.s32 %v1425, %v1427
      %v1429 = vrot.slane %v1415, %v1428
      %v1430 = vcombine.low %v1422, %v1429
      %v1431 = vcombine.low %v818, %v833
      %v1432 = vcombine.low %v840, %v841
      %v1433 = vcombine.low %v856, %v863
      %v1434 = vcombine.low %v864, %v865
      %v1436 = vunpack.c.l.s4 1966171168
      %v1437 = vunpack.c.0.s8 %v1436
      %v1438 = vlaneseq
      %v1439 = vshrl.u32 %v1438, 7
      %v1440 = vsub.s32 %v1437, %v1439
      %v1441 = vrot.slane %v1431, %v1440
      %v1443 = vunpack.c.l.s4 1966171168
      %v1444 = vunpack.c.0.s8 %v1443
      %v1445 = vlaneseq
      %v1446 = vshrl.u32 %v1445, 7
      %v1447 = vsub.s32 %v1444, %v1446
      %v1448 = vrot.slane %v1432, %v1447
      %v1450 = vunpack.c.l.s4 1966171168
      %v1451 = vunpack.c.0.s8 %v1450
      %v1452 = vlaneseq
      %v1453 = vshrl.u32 %v1452, 7
      %v1454 = vsub.s32 %v1451, %v1453
      %v1455 = vrot.slane %v1433, %v1454
      %v1457 = vunpack.c.l.s4 1966171168
      %v1458 = vunpack.c.0.s8 %v1457
      %v1459 = vlaneseq
      %v1460 = vshrl.u32 %v1459, 7
      %v1461 = vsub.s32 %v1458, %v1460
      %v1462 = vrot.slane %v1434, %v1461
      %v1463 = vcombine.low %v1441, %v1448
      %v1464 = vcombine.low %v1455, %v1462
      %v1466 = vunpack.c.l.s4 1966171168
      %v1467 = vunpack.c.0.s8 %v1466
      %v1468 = vlaneseq
      %v1469 = vshrl.u32 %v1468, 7
      %v1470 = vsub.s32 %v1467, %v1469
      %v1471 = vrot.slane %v1463, %v1470
      %v1473 = vunpack.c.l.s4 1966171168
      %v1474 = vunpack.c.0.s8 %v1473
      %v1475 = vlaneseq
      %v1476 = vshrl.u32 %v1475, 7
      %v1477 = vsub.s32 %v1474, %v1476
      %v1478 = vrot.slane %v1464, %v1477
      %v1479 = vcombine.low %v1471, %v1478
      %v1480 = vcombine.low %v880, %v887
      %v1481 = vcombine.low %v888, %v903
      %v1482 = vcombine.low %v910, %v911
      %v1483 = vcombine.low %v912, %v927
      %v1485 = vunpack.c.l.s4 1966171168
      %v1486 = vunpack.c.0.s8 %v1485
      %v1487 = vlaneseq
      %v1488 = vshrl.u32 %v1487, 7
      %v1489 = vsub.s32 %v1486, %v1488
      %v1490 = vrot.slane %v1480, %v1489
      %v1492 = vunpack.c.l.s4 1966171168
      %v1493 = vunpack.c.0.s8 %v1492
      %v1494 = vlaneseq
      %v1495 = vshrl.u32 %v1494, 7
      %v1496 = vsub.s32 %v1493, %v1495
      %v1497 = vrot.slane %v1481, %v1496
      %v1499 = vunpack.c.l.s4 1966171168
      %v1500 = vunpack.c.0.s8 %v1499
      %v1501 = vlaneseq
      %v1502 = vshrl.u32 %v1501, 7
      %v1503 = vsub.s32 %v1500, %v1502
      %v1504 = vrot.slane %v1482, %v1503
      %v1506 = vunpack.c.l.s4 1966171168
      %v1507 = vunpack.c.0.s8 %v1506
      %v1508 = vlaneseq
      %v1509 = vshrl.u32 %v1508, 7
      %v1510 = vsub.s32 %v1507, %v1509
      %v1511 = vrot.slane %v1483, %v1510
      %v1512 = vcombine.low %v1490, %v1497
      %v1513 = vcombine.low %v1504, %v1511
      %v1515 = vunpack.c.l.s4 1966171168
      %v1516 = vunpack.c.0.s8 %v1515
      %v1517 = vlaneseq
      %v1518 = vshrl.u32 %v1517, 7
      %v1519 = vsub.s32 %v1516, %v1518
      %v1520 = vrot.slane %v1512, %v1519
      %v1522 = vunpack.c.l.s4 1966171168
      %v1523 = vunpack.c.0.s8 %v1522
      %v1524 = vlaneseq
      %v1525 = vshrl.u32 %v1524, 7
      %v1526 = vsub.s32 %v1523, %v1525
      %v1527 = vrot.slane %v1513, %v1526
      %v1528 = vcombine.low %v1520, %v1527
      %v1529 = vcombine.low %v934, %v935
      %v1531 = vunpack.c.l.s4 1966171168
      %v1532 = vunpack.c.0.s8 %v1531
      %v1533 = vlaneseq
      %v1534 = vshrl.u32 %v1533, 7
      %v1535 = vsub.s32 %v1532, %v1534
      %v1536 = vrot.slane %v1529, %v1535
      %v1538 = vunpack.c.l.s4 1966171168
      %v1539 = vunpack.c.0.s8 %v1538
      %v1540 = vlaneseq
      %v1541 = vshrl.u32 %v1540, 7
      %v1542 = vsub.s32 %v1539, %v1541
      %v1543 = vrot.slane %v1536, %v1542
      %v1549 = vunpack.c.l.b16 %v936
      %v1550 = vunpack.c.h.b16 %v936
      %v1551 = vunpack.c.l.b16 %v937
      %v1552 = vunpack.c.h.b16 %v937
      %v1553 = vunpack.c.l.b16 %v938
      %v1554 = vunpack.c.h.b16 %v938
      %v1555 = vunpack.c.l.b16 %v939
      %v1556 = vunpack.c.h.b16 %v939
      %v1557 = vunpack.c.l.b16 %v940
      %v1558 = vunpack.c.h.b16 %v940
      %v1559 = vpack.c.b16 %v1551, %v1549
      %v1560 = vpack.c.b16 %v1552, %v1550
      %v1561 = vpack.c.b16 %v1555, %v1553
      %v1562 = vpack.c.b16 %v1556, %v1554
      %v1563 = vpack.c.b16 %v1557, %v1557
      %v1564 = vpack.c.b16 %v1558, %v1558
      %vm1569 = vcmask 293888
      %v1571 = vsel %vm1569, %v989, 0
      %v1574 = vsel %vm1569, %v1038, 0
      %v1577 = vsel %vm1569, %v1087, 0
      %v1580 = vsel %vm1569, %v1136, 0
      %v1583 = vsel %vm1569, %v1185, 0
      %v1586 = vsel %vm1569, %v1234, 0
      %v1589 = vsel %vm1569, %v1283, 0
      %v1592 = vsel %vm1569, %v1332, 0
      %v1595 = vsel %vm1569, %v1381, 0
      %v1598 = vsel %vm1569, %v1430, 0
      %v1601 = vsel %vm1569, %v1479, 0
      %v1604 = vsel %vm1569, %v1528, 0
      %v1607 = vsel %vm1569, %v1543, 0
      %vm1609 = vcmask 1041408
      %v1611 = vsel %vm1609, %v1563, 0
      %v1614 = vsel %vm1609, %v1564, 0
      %1616 = vmatprep.subr.bf16.mxu0 %v1560
      %1617 = vmatpush1.bf16.msra.mxu0 %v1559
      %1618 = vmatprep.subr.bf16.mxu0 %v1562
      %1619 = vmatpush1.bf16.msra.mxu0 %v1561
      %1620 = vmatprep.subr.bf16.mxu0 %v1614
      %1621 = vmatpush1.bf16.msra.mxu0 %v1611
      %1622 = vmatprep.subr.bf16.mxu0 0
      %1623 = vmatpush1.bf16.msra.mxu0 0
      %1624 = vmatprep.subr.bf16.mxu0 0
      %1625 = vmatpush1.bf16.msra.mxu0 0
      %1626 = vmatprep.subr.bf16.mxu0 0
      %1627 = vmatpush1.bf16.msra.mxu0 0
      %1628 = vmatprep.subr.bf16.mxu0 0
      %1629 = vmatpush1.bf16.msra.mxu0 0
      %1630 = vmatprep.subr.bf16.mxu0 0
      %1631 = vmatpush1.bf16.msra.mxu0 0
      %1632 = vmatprep.subr.bf16.mxu0 0
      %1633 = vmatpush1.bf16.msra.mxu0 0
      %1634 = vmatprep.subr.bf16.mxu0 0
      %1635 = vmatpush1.bf16.msra.mxu0 0
      %1636 = vmatprep.subr.bf16.mxu0 0
      %1637 = vmatpush1.bf16.msra.mxu0 0
      %1638 = vmatprep.subr.bf16.mxu0 0
      %1639 = vmatpush1.bf16.msra.mxu0 0
      %1640 = vmatprep.subr.bf16.mxu0 0
      %1641 = vmatpush1.bf16.msra.mxu0 0
      %1642 = vmatprep.subr.bf16.mxu0 0
      %1643 = vmatpush1.bf16.msra.mxu0 0
      %1644 = vmatprep.subr.bf16.mxu0 0
      %1645 = vmatpush1.bf16.msra.mxu0 0
      %1646 = vmatprep.subr.bf16.mxu0 0
      %1647 = vmatpush1.bf16.msra.mxu0 0
      %1648 = vmatprep.mubr.bf16.mxu0 0
      %1649 = vmatmul.mubr.bf16.gmra.mrb[0].mxu0 %v1571
      %v1650 = vpop.f32.mrb[0].mxu0
      %v1651 = vadd.f32 0.0, %v1650
      %v1652 = vpop.f32.mrb[0].mxu0
      %v1653 = vadd.f32 0.0, %v1652
      %v1654 = vpop.f32.mrb[0].mxu0
      %v1655 = vadd.f32 0.0, %v1654
      %v1656 = vpop.f32.mrb[0].mxu0
      %v1657 = vadd.f32 0.0, %v1656
      %1658 = vmatprep.mubr.bf16.mxu0 0
      %1659 = vmatmul.mubr.bf16.gmra.mrb[0].mxu0 %v1574
      %v1660 = vpop.f32.mrb[0].mxu0
      %v1661 = vadd.f32 0.0, %v1660
      %v1662 = vpop.f32.mrb[0].mxu0
      %v1663 = vadd.f32 0.0, %v1662
      %v1664 = vpop.f32.mrb[0].mxu0
      %v1665 = vadd.f32 0.0, %v1664
      %v1666 = vpop.f32.mrb[0].mxu0
      %v1667 = vadd.f32 0.0, %v1666
      %1668 = vmatprep.mubr.bf16.mxu0 0
      %1669 = vmatmul.mubr.bf16.gmra.mrb[0].mxu0 %v1577
      %v1670 = vpop.f32.mrb[0].mxu0
      %v1671 = vadd.f32 0.0, %v1670
      %v1672 = vpop.f32.mrb[0].mxu0
      %v1673 = vadd.f32 0.0, %v1672
      %v1674 = vpop.f32.mrb[0].mxu0
      %v1675 = vadd.f32 0.0, %v1674
      %v1676 = vpop.f32.mrb[0].mxu0
      %v1677 = vadd.f32 0.0, %v1676
      %1678 = vmatprep.mubr.bf16.mxu0 0
      %1679 = vmatmul.mubr.bf16.gmra.mrb[0].mxu0 %v1580
      %v1680 = vpop.f32.mrb[0].mxu0
      %v1681 = vadd.f32 0.0, %v1680
      %v1682 = vpop.f32.mrb[0].mxu0
      %v1683 = vadd.f32 0.0, %v1682
      %v1684 = vpop.f32.mrb[0].mxu0
      %v1685 = vadd.f32 0.0, %v1684
      %v1686 = vpop.f32.mrb[0].mxu0
      %v1687 = vadd.f32 0.0, %v1686
      %1688 = vmatprep.mubr.bf16.mxu0 0
      %1689 = vmatmul.mubr.bf16.gmra.mrb[0].mxu0 %v1583
      %v1690 = vpop.f32.mrb[0].mxu0
      %v1691 = vadd.f32 0.0, %v1690
      %v1692 = vpop.f32.mrb[0].mxu0
      %v1693 = vadd.f32 0.0, %v1692
      %v1694 = vpop.f32.mrb[0].mxu0
      %v1695 = vadd.f32 0.0, %v1694
      %v1696 = vpop.f32.mrb[0].mxu0
      %v1697 = vadd.f32 0.0, %v1696
      %1698 = vmatprep.mubr.bf16.mxu0 0
      %1699 = vmatmul.mubr.bf16.gmra.mrb[0].mxu0 %v1586
      %v1700 = vpop.f32.mrb[0].mxu0
      %v1701 = vadd.f32 0.0, %v1700
      %v1702 = vpop.f32.mrb[0].mxu0
      %v1703 = vadd.f32 0.0, %v1702
      %v1704 = vpop.f32.mrb[0].mxu0
      %v1705 = vadd.f32 0.0, %v1704
      %v1706 = vpop.f32.mrb[0].mxu0
      %v1707 = vadd.f32 0.0, %v1706
      %1708 = vmatprep.mubr.bf16.mxu0 0
      %1709 = vmatmul.mubr.bf16.gmra.mrb[0].mxu0 %v1589
      %v1710 = vpop.f32.mrb[0].mxu0
      %v1711 = vadd.f32 0.0, %v1710
      %v1712 = vpop.f32.mrb[0].mxu0
      %v1713 = vadd.f32 0.0, %v1712
      %v1714 = vpop.f32.mrb[0].mxu0
      %v1715 = vadd.f32 0.0, %v1714
      %v1716 = vpop.f32.mrb[0].mxu0
      %v1717 = vadd.f32 0.0, %v1716
      %1718 = vmatprep.mubr.bf16.mxu0 0
      %1719 = vmatmul.mubr.bf16.gmra.mrb[0].mxu0 %v1592
      %v1720 = vpop.f32.mrb[0].mxu0
      %v1721 = vadd.f32 0.0, %v1720
      %v1722 = vpop.f32.mrb[0].mxu0
      %v1723 = vadd.f32 0.0, %v1722
      %v1724 = vpop.f32.mrb[0].mxu0
      %v1725 = vadd.f32 0.0, %v1724
      %v1726 = vpop.f32.mrb[0].mxu0
      %v1727 = vadd.f32 0.0, %v1726
      %1728 = vmatprep.mubr.bf16.mxu0 0
      %1729 = vmatmul.mubr.bf16.gmra.mrb[0].mxu0 %v1595
      %v1730 = vpop.f32.mrb[0].mxu0
      %v1731 = vadd.f32 0.0, %v1730
      %v1732 = vpop.f32.mrb[0].mxu0
      %v1733 = vadd.f32 0.0, %v1732
      %v1734 = vpop.f32.mrb[0].mxu0
      %v1735 = vadd.f32 0.0, %v1734
      %v1736 = vpop.f32.mrb[0].mxu0
      %v1737 = vadd.f32 0.0, %v1736
      %1738 = vmatprep.mubr.bf16.mxu0 0
      %1739 = vmatmul.mubr.bf16.gmra.mrb[0].mxu0 %v1598
      %v1740 = vpop.f32.mrb[0].mxu0
      %v1741 = vadd.f32 0.0, %v1740
      %v1742 = vpop.f32.mrb[0].mxu0
      %v1743 = vadd.f32 0.0, %v1742
      %v1744 = vpop.f32.mrb[0].mxu0
      %v1745 = vadd.f32 0.0, %v1744
      %v1746 = vpop.f32.mrb[0].mxu0
      %v1747 = vadd.f32 0.0, %v1746
      %1748 = vmatprep.mubr.bf16.mxu0 0
      %1749 = vmatmul.mubr.bf16.gmra.mrb[0].mxu0 %v1601
      %v1750 = vpop.f32.mrb[0].mxu0
      %v1751 = vadd.f32 0.0, %v1750
      %v1752 = vpop.f32.mrb[0].mxu0
      %v1753 = vadd.f32 0.0, %v1752
      %v1754 = vpop.f32.mrb[0].mxu0
      %v1755 = vadd.f32 0.0, %v1754
      %v1756 = vpop.f32.mrb[0].mxu0
      %v1757 = vadd.f32 0.0, %v1756
      %1758 = vmatprep.mubr.bf16.mxu0 0
      %1759 = vmatmul.mubr.bf16.gmra.mrb[0].mxu0 %v1604
      %v1760 = vpop.f32.mrb[0].mxu0
      %v1761 = vadd.f32 0.0, %v1760
      %v1762 = vpop.f32.mrb[0].mxu0
      %v1763 = vadd.f32 0.0, %v1762
      %v1764 = vpop.f32.mrb[0].mxu0
      %v1765 = vadd.f32 0.0, %v1764
      %v1766 = vpop.f32.mrb[0].mxu0
      %v1767 = vadd.f32 0.0, %v1766
      %1768 = vmatprep.mubr.bf16.mxu0 0
      %1769 = vmatmul.mubr.bf16.gmra.mrb[0].mxu0 %v1607
      %v1770 = vpop.f32.mrb[0].mxu0
      %v1771 = vadd.f32 0.0, %v1770
      %v1772 = vpop.f32.mrb[0].mxu0
      %v1773 = vadd.f32 0.0, %v1772
      %v1774 = vpop.f32.mrb[0].mxu0
      %v1775 = vpop.f32.mrb[0].mxu0
      %1776 = vdwg.mxu0
      %v1777 = vmax.f32 %v1651, 0.0
      %v1778 = vmax.f32 %v1653, 0.0
      %v1779 = vmax.f32 %v1655, 0.0
      %v1780 = vmax.f32 %v1657, 0.0
      %v1781 = vmax.f32 %v1661, 0.0
      %v1782 = vmax.f32 %v1663, 0.0
      %v1783 = vmax.f32 %v1665, 0.0
      %v1784 = vmax.f32 %v1667, 0.0
      %v1785 = vmax.f32 %v1671, 0.0
      %v1786 = vmax.f32 %v1673, 0.0
      %v1787 = vmax.f32 %v1675, 0.0
      %v1788 = vmax.f32 %v1677, 0.0
      %v1789 = vmax.f32 %v1681, 0.0
      %v1790 = vmax.f32 %v1683, 0.0
      %v1791 = vmax.f32 %v1685, 0.0
      %v1792 = vmax.f32 %v1687, 0.0
      %v1793 = vmax.f32 %v1691, 0.0
      %v1794 = vmax.f32 %v1693, 0.0
      %v1795 = vmax.f32 %v1695, 0.0
      %v1796 = vmax.f32 %v1697, 0.0
      %v1797 = vmax.f32 %v1701, 0.0
      %v1798 = vmax.f32 %v1703, 0.0
      %v1799 = vmax.f32 %v1705, 0.0
      %v1800 = vmax.f32 %v1707, 0.0
      %v1801 = vmax.f32 %v1711, 0.0
      %v1802 = vmax.f32 %v1713, 0.0
      %v1803 = vmax.f32 %v1715, 0.0
      %v1804 = vmax.f32 %v1717, 0.0
      %v1805 = vmax.f32 %v1721, 0.0
      %v1806 = vmax.f32 %v1723, 0.0
      %v1807 = vmax.f32 %v1725, 0.0
      %v1808 = vmax.f32 %v1727, 0.0
      %v1809 = vmax.f32 %v1731, 0.0
      %v1810 = vmax.f32 %v1733, 0.0
      %v1811 = vmax.f32 %v1735, 0.0
      %v1812 = vmax.f32 %v1737, 0.0
      %v1813 = vmax.f32 %v1741, 0.0
      %v1814 = vmax.f32 %v1743, 0.0
      %v1815 = vmax.f32 %v1745, 0.0
      %v1816 = vmax.f32 %v1747, 0.0
      %v1817 = vmax.f32 %v1751, 0.0
      %v1818 = vmax.f32 %v1753, 0.0
      %v1819 = vmax.f32 %v1755, 0.0
      %v1820 = vmax.f32 %v1757, 0.0
      %v1821 = vmax.f32 %v1761, 0.0
      %v1822 = vmax.f32 %v1763, 0.0
      %v1823 = vmax.f32 %v1765, 0.0
      %v1824 = vmax.f32 %v1767, 0.0
      %v1825 = vmax.f32 %v1771, 0.0
      %v1826 = vmax.f32 %v1773, 0.0
      %v1827 = vpack.c.bf16 %v1779, %v1777
      %v1828 = vpack.c.bf16 %v1780, %v1778
      %v1829 = vpack.c.bf16 %v1783, %v1781
      %v1830 = vpack.c.bf16 %v1784, %v1782
      %v1831 = vpack.c.bf16 %v1787, %v1785
      %v1832 = vpack.c.bf16 %v1788, %v1786
      %v1833 = vpack.c.bf16 %v1791, %v1789
      %v1834 = vpack.c.bf16 %v1792, %v1790
      %v1835 = vpack.c.bf16 %v1795, %v1793
      %v1836 = vpack.c.bf16 %v1796, %v1794
      %v1837 = vpack.c.bf16 %v1799, %v1797
      %v1838 = vpack.c.bf16 %v1800, %v1798
      %v1839 = vpack.c.bf16 %v1803, %v1801
      %v1840 = vpack.c.bf16 %v1804, %v1802
      %v1841 = vpack.c.bf16 %v1807, %v1805
      %v1842 = vpack.c.bf16 %v1808, %v1806
      %v1843 = vpack.c.bf16 %v1811, %v1809
      %v1844 = vpack.c.bf16 %v1812, %v1810
      %v1845 = vpack.c.bf16 %v1815, %v1813
      %v1846 = vpack.c.bf16 %v1816, %v1814
      %v1847 = vpack.c.bf16 %v1819, %v1817
      %v1848 = vpack.c.bf16 %v1820, %v1818
      %v1849 = vpack.c.bf16 %v1823, %v1821
      %v1850 = vpack.c.bf16 %v1824, %v1822
      %v1851 = vpack.c.bf16 %v1825, %v1825
      %v1852 = vpack.c.bf16 %v1826, %v1826
      %v1879 = vcombine.low %v1827, %v1828
      %v1880 = vcombine.high %v1827, %v1828
      %v1882 = vunpack.c.l.s4 1966171168
      %v1883 = vunpack.c.0.s8 %v1882
      %v1884 = vlaneseq
      %v1885 = vshrl.u32 %v1884, 7
      %v1886 = vsub.s32 %v1883, %v1885
      %v1887 = vrot.slane %v1879, %v1886
      %v1889 = vunpack.c.l.s4 1966171168
      %v1890 = vunpack.c.0.s8 %v1889
      %v1891 = vlaneseq
      %v1892 = vshrl.u32 %v1891, 7
      %v1893 = vsub.s32 %v1890, %v1892
      %v1894 = vrot.slane %v1880, %v1893
      %v1895 = vcombine.high %v1887, %v1887
      %v1896 = vcombine.high %v1894, %v1894
      %v1898 = vunpack.c.l.s4 1966171168
      %v1899 = vunpack.c.0.s8 %v1898
      %v1900 = vlaneseq
      %v1901 = vshrl.u32 %v1900, 7
      %v1902 = vsub.s32 %v1899, %v1901
      %v1903 = vrot.slane %v1887, %v1902
      %v1905 = vunpack.c.l.s4 1966171168
      %v1906 = vunpack.c.0.s8 %v1905
      %v1907 = vlaneseq
      %v1908 = vshrl.u32 %v1907, 7
      %v1909 = vsub.s32 %v1906, %v1908
      %v1910 = vrot.slane %v1894, %v1909
      %v1912 = vunpack.c.l.s4 1966171168
      %v1913 = vunpack.c.0.s8 %v1912
      %v1914 = vlaneseq
      %v1915 = vshrl.u32 %v1914, 7
      %v1916 = vsub.s32 %v1913, %v1915
      %v1917 = vrot.slane %v1895, %v1916
      %v1919 = vunpack.c.l.s4 1966171168
      %v1920 = vunpack.c.0.s8 %v1919
      %v1921 = vlaneseq
      %v1922 = vshrl.u32 %v1921, 7
      %v1923 = vsub.s32 %v1920, %v1922
      %v1924 = vrot.slane %v1896, %v1923
      %v1925 = vcombine.high %v1903, %v1903
      %v1926 = vcombine.high %v1910, %v1910
      %v1927 = vcombine.high %v1917, %v1917
      %v1928 = vcombine.high %v1924, %v1924
      %v1929 = vcombine.low %v1829, %v1830
      %v1930 = vcombine.high %v1829, %v1830
      %v1932 = vunpack.c.l.s4 1966171168
      %v1933 = vunpack.c.0.s8 %v1932
      %v1934 = vlaneseq
      %v1935 = vshrl.u32 %v1934, 7
      %v1936 = vsub.s32 %v1933, %v1935
      %v1937 = vrot.slane %v1929, %v1936
      %v1939 = vunpack.c.l.s4 1966171168
      %v1940 = vunpack.c.0.s8 %v1939
      %v1941 = vlaneseq
      %v1942 = vshrl.u32 %v1941, 7
      %v1943 = vsub.s32 %v1940, %v1942
      %v1944 = vrot.slane %v1930, %v1943
      %v1945 = vcombine.high %v1937, %v1937
      %v1946 = vcombine.high %v1944, %v1944
      %v1948 = vunpack.c.l.s4 1966171168
      %v1949 = vunpack.c.0.s8 %v1948
      %v1950 = vlaneseq
      %v1951 = vshrl.u32 %v1950, 7
      %v1952 = vsub.s32 %v1949, %v1951
      %v1953 = vrot.slane %v1937, %v1952
      %v1955 = vunpack.c.l.s4 1966171168
      %v1956 = vunpack.c.0.s8 %v1955
      %v1957 = vlaneseq
      %v1958 = vshrl.u32 %v1957, 7
      %v1959 = vsub.s32 %v1956, %v1958
      %v1960 = vrot.slane %v1944, %v1959
      %v1962 = vunpack.c.l.s4 1966171168
      %v1963 = vunpack.c.0.s8 %v1962
      %v1964 = vlaneseq
      %v1965 = vshrl.u32 %v1964, 7
      %v1966 = vsub.s32 %v1963, %v1965
      %v1967 = vrot.slane %v1945, %v1966
      %v1969 = vunpack.c.l.s4 1966171168
      %v1970 = vunpack.c.0.s8 %v1969
      %v1971 = vlaneseq
      %v1972 = vshrl.u32 %v1971, 7
      %v1973 = vsub.s32 %v1970, %v1972
      %v1974 = vrot.slane %v1946, %v1973
      %v1975 = vcombine.high %v1953, %v1953
      %v1976 = vcombine.high %v1960, %v1960
      %v1977 = vcombine.high %v1967, %v1967
      %v1978 = vcombine.high %v1974, %v1974
      %v1979 = vcombine.low %v1831, %v1832
      %v1980 = vcombine.high %v1831, %v1832
      %v1982 = vunpack.c.l.s4 1966171168
      %v1983 = vunpack.c.0.s8 %v1982
      %v1984 = vlaneseq
      %v1985 = vshrl.u32 %v1984, 7
      %v1986 = vsub.s32 %v1983, %v1985
      %v1987 = vrot.slane %v1979, %v1986
      %v1989 = vunpack.c.l.s4 1966171168
      %v1990 = vunpack.c.0.s8 %v1989
      %v1991 = vlaneseq
      %v1992 = vshrl.u32 %v1991, 7
      %v1993 = vsub.s32 %v1990, %v1992
      %v1994 = vrot.slane %v1980, %v1993
      %v1995 = vcombine.high %v1987, %v1987
      %v1996 = vcombine.high %v1994, %v1994
      %v1998 = vunpack.c.l.s4 1966171168
      %v1999 = vunpack.c.0.s8 %v1998
      %v2000 = vlaneseq
      %v2001 = vshrl.u32 %v2000, 7
      %v2002 = vsub.s32 %v1999, %v2001
      %v2003 = vrot.slane %v1987, %v2002
      %v2005 = vunpack.c.l.s4 1966171168
      %v2006 = vunpack.c.0.s8 %v2005
      %v2007 = vlaneseq
      %v2008 = vshrl.u32 %v2007, 7
      %v2009 = vsub.s32 %v2006, %v2008
      %v2010 = vrot.slane %v1994, %v2009
      %v2012 = vunpack.c.l.s4 1966171168
      %v2013 = vunpack.c.0.s8 %v2012
      %v2014 = vlaneseq
      %v2015 = vshrl.u32 %v2014, 7
      %v2016 = vsub.s32 %v2013, %v2015
      %v2017 = vrot.slane %v1995, %v2016
      %v2019 = vunpack.c.l.s4 1966171168
      %v2020 = vunpack.c.0.s8 %v2019
      %v2021 = vlaneseq
      %v2022 = vshrl.u32 %v2021, 7
      %v2023 = vsub.s32 %v2020, %v2022
      %v2024 = vrot.slane %v1996, %v2023
      %v2025 = vcombine.high %v2003, %v2003
      %v2026 = vcombine.high %v2010, %v2010
      %v2027 = vcombine.high %v2017, %v2017
      %v2028 = vcombine.high %v2024, %v2024
      %v2029 = vcombine.low %v1833, %v1834
      %v2030 = vcombine.high %v1833, %v1834
      %v2032 = vunpack.c.l.s4 1966171168
      %v2033 = vunpack.c.0.s8 %v2032
      %v2034 = vlaneseq
      %v2035 = vshrl.u32 %v2034, 7
      %v2036 = vsub.s32 %v2033, %v2035
      %v2037 = vrot.slane %v2029, %v2036
      %v2039 = vunpack.c.l.s4 1966171168
      %v2040 = vunpack.c.0.s8 %v2039
      %v2041 = vlaneseq
      %v2042 = vshrl.u32 %v2041, 7
      %v2043 = vsub.s32 %v2040, %v2042
      %v2044 = vrot.slane %v2030, %v2043
      %v2045 = vcombine.high %v2037, %v2037
      %v2046 = vcombine.high %v2044, %v2044
      %v2048 = vunpack.c.l.s4 1966171168
      %v2049 = vunpack.c.0.s8 %v2048
      %v2050 = vlaneseq
      %v2051 = vshrl.u32 %v2050, 7
      %v2052 = vsub.s32 %v2049, %v2051
      %v2053 = vrot.slane %v2037, %v2052
      %v2055 = vunpack.c.l.s4 1966171168
      %v2056 = vunpack.c.0.s8 %v2055
      %v2057 = vlaneseq
      %v2058 = vshrl.u32 %v2057, 7
      %v2059 = vsub.s32 %v2056, %v2058
      %v2060 = vrot.slane %v2044, %v2059
      %v2062 = vunpack.c.l.s4 1966171168
      %v2063 = vunpack.c.0.s8 %v2062
      %v2064 = vlaneseq
      %v2065 = vshrl.u32 %v2064, 7
      %v2066 = vsub.s32 %v2063, %v2065
      %v2067 = vrot.slane %v2045, %v2066
      %v2069 = vunpack.c.l.s4 1966171168
      %v2070 = vunpack.c.0.s8 %v2069
      %v2071 = vlaneseq
      %v2072 = vshrl.u32 %v2071, 7
      %v2073 = vsub.s32 %v2070, %v2072
      %v2074 = vrot.slane %v2046, %v2073
      %v2075 = vcombine.high %v2053, %v2053
      %v2076 = vcombine.high %v2060, %v2060
      %v2077 = vcombine.high %v2067, %v2067
      %v2078 = vcombine.high %v2074, %v2074
      %v2079 = vcombine.low %v1835, %v1836
      %v2080 = vcombine.high %v1835, %v1836
      %v2082 = vunpack.c.l.s4 1966171168
      %v2083 = vunpack.c.0.s8 %v2082
      %v2084 = vlaneseq
      %v2085 = vshrl.u32 %v2084, 7
      %v2086 = vsub.s32 %v2083, %v2085
      %v2087 = vrot.slane %v2079, %v2086
      %v2089 = vunpack.c.l.s4 1966171168
      %v2090 = vunpack.c.0.s8 %v2089
      %v2091 = vlaneseq
      %v2092 = vshrl.u32 %v2091, 7
      %v2093 = vsub.s32 %v2090, %v2092
      %v2094 = vrot.slane %v2080, %v2093
      %v2095 = vcombine.high %v2087, %v2087
      %v2096 = vcombine.high %v2094, %v2094
      %v2098 = vunpack.c.l.s4 1966171168
      %v2099 = vunpack.c.0.s8 %v2098
      %v2100 = vlaneseq
      %v2101 = vshrl.u32 %v2100, 7
      %v2102 = vsub.s32 %v2099, %v2101
      %v2103 = vrot.slane %v2087, %v2102
      %v2105 = vunpack.c.l.s4 1966171168
      %v2106 = vunpack.c.0.s8 %v2105
      %v2107 = vlaneseq
      %v2108 = vshrl.u32 %v2107, 7
      %v2109 = vsub.s32 %v2106, %v2108
      %v2110 = vrot.slane %v2094, %v2109
      %v2112 = vunpack.c.l.s4 1966171168
      %v2113 = vunpack.c.0.s8 %v2112
      %v2114 = vlaneseq
      %v2115 = vshrl.u32 %v2114, 7
      %v2116 = vsub.s32 %v2113, %v2115
      %v2117 = vrot.slane %v2095, %v2116
      %v2119 = vunpack.c.l.s4 1966171168
      %v2120 = vunpack.c.0.s8 %v2119
      %v2121 = vlaneseq
      %v2122 = vshrl.u32 %v2121, 7
      %v2123 = vsub.s32 %v2120, %v2122
      %v2124 = vrot.slane %v2096, %v2123
      %v2125 = vcombine.high %v2103, %v2103
      %v2126 = vcombine.high %v2110, %v2110
      %v2127 = vcombine.high %v2117, %v2117
      %v2128 = vcombine.high %v2124, %v2124
      %v2129 = vcombine.low %v1837, %v1838
      %v2130 = vcombine.high %v1837, %v1838
      %v2132 = vunpack.c.l.s4 1966171168
      %v2133 = vunpack.c.0.s8 %v2132
      %v2134 = vlaneseq
      %v2135 = vshrl.u32 %v2134, 7
      %v2136 = vsub.s32 %v2133, %v2135
      %v2137 = vrot.slane %v2129, %v2136
      %v2139 = vunpack.c.l.s4 1966171168
      %v2140 = vunpack.c.0.s8 %v2139
      %v2141 = vlaneseq
      %v2142 = vshrl.u32 %v2141, 7
      %v2143 = vsub.s32 %v2140, %v2142
      %v2144 = vrot.slane %v2130, %v2143
      %v2145 = vcombine.high %v2137, %v2137
      %v2146 = vcombine.high %v2144, %v2144
      %v2148 = vunpack.c.l.s4 1966171168
      %v2149 = vunpack.c.0.s8 %v2148
      %v2150 = vlaneseq
      %v2151 = vshrl.u32 %v2150, 7
      %v2152 = vsub.s32 %v2149, %v2151
      %v2153 = vrot.slane %v2137, %v2152
      %v2155 = vunpack.c.l.s4 1966171168
      %v2156 = vunpack.c.0.s8 %v2155
      %v2157 = vlaneseq
      %v2158 = vshrl.u32 %v2157, 7
      %v2159 = vsub.s32 %v2156, %v2158
      %v2160 = vrot.slane %v2144, %v2159
      %v2162 = vunpack.c.l.s4 1966171168
      %v2163 = vunpack.c.0.s8 %v2162
      %v2164 = vlaneseq
      %v2165 = vshrl.u32 %v2164, 7
      %v2166 = vsub.s32 %v2163, %v2165
      %v2167 = vrot.slane %v2145, %v2166
      %v2169 = vunpack.c.l.s4 1966171168
      %v2170 = vunpack.c.0.s8 %v2169
      %v2171 = vlaneseq
      %v2172 = vshrl.u32 %v2171, 7
      %v2173 = vsub.s32 %v2170, %v2172
      %v2174 = vrot.slane %v2146, %v2173
      %v2175 = vcombine.high %v2153, %v2153
      %v2176 = vcombine.high %v2160, %v2160
      %v2177 = vcombine.high %v2167, %v2167
      %v2178 = vcombine.high %v2174, %v2174
      %v2179 = vcombine.low %v1839, %v1840
      %v2180 = vcombine.high %v1839, %v1840
      %v2182 = vunpack.c.l.s4 1966171168
      %v2183 = vunpack.c.0.s8 %v2182
      %v2184 = vlaneseq
      %v2185 = vshrl.u32 %v2184, 7
      %v2186 = vsub.s32 %v2183, %v2185
      %v2187 = vrot.slane %v2179, %v2186
      %v2189 = vunpack.c.l.s4 1966171168
      %v2190 = vunpack.c.0.s8 %v2189
      %v2191 = vlaneseq
      %v2192 = vshrl.u32 %v2191, 7
      %v2193 = vsub.s32 %v2190, %v2192
      %v2194 = vrot.slane %v2180, %v2193
      %v2195 = vcombine.high %v2187, %v2187
      %v2196 = vcombine.high %v2194, %v2194
      %v2198 = vunpack.c.l.s4 1966171168
      %v2199 = vunpack.c.0.s8 %v2198
      %v2200 = vlaneseq
      %v2201 = vshrl.u32 %v2200, 7
      %v2202 = vsub.s32 %v2199, %v2201
      %v2203 = vrot.slane %v2187, %v2202
      %v2205 = vunpack.c.l.s4 1966171168
      %v2206 = vunpack.c.0.s8 %v2205
      %v2207 = vlaneseq
      %v2208 = vshrl.u32 %v2207, 7
      %v2209 = vsub.s32 %v2206, %v2208
      %v2210 = vrot.slane %v2194, %v2209
      %v2212 = vunpack.c.l.s4 1966171168
      %v2213 = vunpack.c.0.s8 %v2212
      %v2214 = vlaneseq
      %v2215 = vshrl.u32 %v2214, 7
      %v2216 = vsub.s32 %v2213, %v2215
      %v2217 = vrot.slane %v2195, %v2216
      %v2219 = vunpack.c.l.s4 1966171168
      %v2220 = vunpack.c.0.s8 %v2219
      %v2221 = vlaneseq
      %v2222 = vshrl.u32 %v2221, 7
      %v2223 = vsub.s32 %v2220, %v2222
      %v2224 = vrot.slane %v2196, %v2223
      %v2225 = vcombine.high %v2203, %v2203
      %v2226 = vcombine.high %v2210, %v2210
      %v2227 = vcombine.high %v2217, %v2217
      %v2228 = vcombine.high %v2224, %v2224
      %v2229 = vcombine.low %v1841, %v1842
      %v2230 = vcombine.high %v1841, %v1842
      %v2232 = vunpack.c.l.s4 1966171168
      %v2233 = vunpack.c.0.s8 %v2232
      %v2234 = vlaneseq
      %v2235 = vshrl.u32 %v2234, 7
      %v2236 = vsub.s32 %v2233, %v2235
      %v2237 = vrot.slane %v2229, %v2236
      %v2239 = vunpack.c.l.s4 1966171168
      %v2240 = vunpack.c.0.s8 %v2239
      %v2241 = vlaneseq
      %v2242 = vshrl.u32 %v2241, 7
      %v2243 = vsub.s32 %v2240, %v2242
      %v2244 = vrot.slane %v2230, %v2243
      %v2245 = vcombine.high %v2237, %v2237
      %v2246 = vcombine.high %v2244, %v2244
      %v2248 = vunpack.c.l.s4 1966171168
      %v2249 = vunpack.c.0.s8 %v2248
      %v2250 = vlaneseq
      %v2251 = vshrl.u32 %v2250, 7
      %v2252 = vsub.s32 %v2249, %v2251
      %v2253 = vrot.slane %v2237, %v2252
      %v2255 = vunpack.c.l.s4 1966171168
      %v2256 = vunpack.c.0.s8 %v2255
      %v2257 = vlaneseq
      %v2258 = vshrl.u32 %v2257, 7
      %v2259 = vsub.s32 %v2256, %v2258
      %v2260 = vrot.slane %v2244, %v2259
      %v2262 = vunpack.c.l.s4 1966171168
      %v2263 = vunpack.c.0.s8 %v2262
      %v2264 = vlaneseq
      %v2265 = vshrl.u32 %v2264, 7
      %v2266 = vsub.s32 %v2263, %v2265
      %v2267 = vrot.slane %v2245, %v2266
      %v2269 = vunpack.c.l.s4 1966171168
      %v2270 = vunpack.c.0.s8 %v2269
      %v2271 = vlaneseq
      %v2272 = vshrl.u32 %v2271, 7
      %v2273 = vsub.s32 %v2270, %v2272
      %v2274 = vrot.slane %v2246, %v2273
      %v2275 = vcombine.high %v2253, %v2253
      %v2276 = vcombine.high %v2260, %v2260
      %v2277 = vcombine.high %v2267, %v2267
      %v2278 = vcombine.high %v2274, %v2274
      %v2279 = vcombine.low %v1843, %v1844
      %v2280 = vcombine.high %v1843, %v1844
      %v2282 = vunpack.c.l.s4 1966171168
      %v2283 = vunpack.c.0.s8 %v2282
      %v2284 = vlaneseq
      %v2285 = vshrl.u32 %v2284, 7
      %v2286 = vsub.s32 %v2283, %v2285
      %v2287 = vrot.slane %v2279, %v2286
      %v2289 = vunpack.c.l.s4 1966171168
      %v2290 = vunpack.c.0.s8 %v2289
      %v2291 = vlaneseq
      %v2292 = vshrl.u32 %v2291, 7
      %v2293 = vsub.s32 %v2290, %v2292
      %v2294 = vrot.slane %v2280, %v2293
      %v2295 = vcombine.high %v2287, %v2287
      %v2296 = vcombine.high %v2294, %v2294
      %v2298 = vunpack.c.l.s4 1966171168
      %v2299 = vunpack.c.0.s8 %v2298
      %v2300 = vlaneseq
      %v2301 = vshrl.u32 %v2300, 7
      %v2302 = vsub.s32 %v2299, %v2301
      %v2303 = vrot.slane %v2287, %v2302
      %v2305 = vunpack.c.l.s4 1966171168
      %v2306 = vunpack.c.0.s8 %v2305
      %v2307 = vlaneseq
      %v2308 = vshrl.u32 %v2307, 7
      %v2309 = vsub.s32 %v2306, %v2308
      %v2310 = vrot.slane %v2294, %v2309
      %v2312 = vunpack.c.l.s4 1966171168
      %v2313 = vunpack.c.0.s8 %v2312
      %v2314 = vlaneseq
      %v2315 = vshrl.u32 %v2314, 7
      %v2316 = vsub.s32 %v2313, %v2315
      %v2317 = vrot.slane %v2295, %v2316
      %v2319 = vunpack.c.l.s4 1966171168
      %v2320 = vunpack.c.0.s8 %v2319
      %v2321 = vlaneseq
      %v2322 = vshrl.u32 %v2321, 7
      %v2323 = vsub.s32 %v2320, %v2322
      %v2324 = vrot.slane %v2296, %v2323
      %v2325 = vcombine.high %v2303, %v2303
      %v2326 = vcombine.high %v2310, %v2310
      %v2327 = vcombine.high %v2317, %v2317
      %v2328 = vcombine.high %v2324, %v2324
      %v2329 = vcombine.low %v1845, %v1846
      %v2330 = vcombine.high %v1845, %v1846
      %v2332 = vunpack.c.l.s4 1966171168
      %v2333 = vunpack.c.0.s8 %v2332
      %v2334 = vlaneseq
      %v2335 = vshrl.u32 %v2334, 7
      %v2336 = vsub.s32 %v2333, %v2335
      %v2337 = vrot.slane %v2329, %v2336
      %v2339 = vunpack.c.l.s4 1966171168
      %v2340 = vunpack.c.0.s8 %v2339
      %v2341 = vlaneseq
      %v2342 = vshrl.u32 %v2341, 7
      %v2343 = vsub.s32 %v2340, %v2342
      %v2344 = vrot.slane %v2330, %v2343
      %v2345 = vcombine.high %v2337, %v2337
      %v2346 = vcombine.high %v2344, %v2344
      %v2348 = vunpack.c.l.s4 1966171168
      %v2349 = vunpack.c.0.s8 %v2348
      %v2350 = vlaneseq
      %v2351 = vshrl.u32 %v2350, 7
      %v2352 = vsub.s32 %v2349, %v2351
      %v2353 = vrot.slane %v2337, %v2352
      %v2355 = vunpack.c.l.s4 1966171168
      %v2356 = vunpack.c.0.s8 %v2355
      %v2357 = vlaneseq
      %v2358 = vshrl.u32 %v2357, 7
      %v2359 = vsub.s32 %v2356, %v2358
      %v2360 = vrot.slane %v2344, %v2359
      %v2362 = vunpack.c.l.s4 1966171168
      %v2363 = vunpack.c.0.s8 %v2362
      %v2364 = vlaneseq
      %v2365 = vshrl.u32 %v2364, 7
      %v2366 = vsub.s32 %v2363, %v2365
      %v2367 = vrot.slane %v2345, %v2366
      %v2369 = vunpack.c.l.s4 1966171168
      %v2370 = vunpack.c.0.s8 %v2369
      %v2371 = vlaneseq
      %v2372 = vshrl.u32 %v2371, 7
      %v2373 = vsub.s32 %v2370, %v2372
      %v2374 = vrot.slane %v2346, %v2373
      %v2375 = vcombine.high %v2353, %v2353
      %v2376 = vcombine.high %v2360, %v2360
      %v2377 = vcombine.high %v2367, %v2367
      %v2378 = vcombine.high %v2374, %v2374
      %v2379 = vcombine.low %v1847, %v1848
      %v2380 = vcombine.high %v1847, %v1848
      %v2382 = vunpack.c.l.s4 1966171168
      %v2383 = vunpack.c.0.s8 %v2382
      %v2384 = vlaneseq
      %v2385 = vshrl.u32 %v2384, 7
      %v2386 = vsub.s32 %v2383, %v2385
      %v2387 = vrot.slane %v2379, %v2386
      %v2389 = vunpack.c.l.s4 1966171168
      %v2390 = vunpack.c.0.s8 %v2389
      %v2391 = vlaneseq
      %v2392 = vshrl.u32 %v2391, 7
      %v2393 = vsub.s32 %v2390, %v2392
      %v2394 = vrot.slane %v2380, %v2393
      %v2395 = vcombine.high %v2387, %v2387
      %v2396 = vcombine.high %v2394, %v2394
      %v2398 = vunpack.c.l.s4 1966171168
      %v2399 = vunpack.c.0.s8 %v2398
      %v2400 = vlaneseq
      %v2401 = vshrl.u32 %v2400, 7
      %v2402 = vsub.s32 %v2399, %v2401
      %v2403 = vrot.slane %v2387, %v2402
      %v2405 = vunpack.c.l.s4 1966171168
      %v2406 = vunpack.c.0.s8 %v2405
      %v2407 = vlaneseq
      %v2408 = vshrl.u32 %v2407, 7
      %v2409 = vsub.s32 %v2406, %v2408
      %v2410 = vrot.slane %v2394, %v2409
      %v2412 = vunpack.c.l.s4 1966171168
      %v2413 = vunpack.c.0.s8 %v2412
      %v2414 = vlaneseq
      %v2415 = vshrl.u32 %v2414, 7
      %v2416 = vsub.s32 %v2413, %v2415
      %v2417 = vrot.slane %v2395, %v2416
      %v2419 = vunpack.c.l.s4 1966171168
      %v2420 = vunpack.c.0.s8 %v2419
      %v2421 = vlaneseq
      %v2422 = vshrl.u32 %v2421, 7
      %v2423 = vsub.s32 %v2420, %v2422
      %v2424 = vrot.slane %v2396, %v2423
      %v2425 = vcombine.high %v2403, %v2403
      %v2426 = vcombine.high %v2410, %v2410
      %v2427 = vcombine.high %v2417, %v2417
      %v2428 = vcombine.high %v2424, %v2424
      %v2429 = vcombine.low %v1849, %v1850
      %v2430 = vcombine.high %v1849, %v1850
      %v2432 = vunpack.c.l.s4 1966171168
      %v2433 = vunpack.c.0.s8 %v2432
      %v2434 = vlaneseq
      %v2435 = vshrl.u32 %v2434, 7
      %v2436 = vsub.s32 %v2433, %v2435
      %v2437 = vrot.slane %v2429, %v2436
      %v2439 = vunpack.c.l.s4 1966171168
      %v2440 = vunpack.c.0.s8 %v2439
      %v2441 = vlaneseq
      %v2442 = vshrl.u32 %v2441, 7
      %v2443 = vsub.s32 %v2440, %v2442
      %v2444 = vrot.slane %v2430, %v2443
      %v2445 = vcombine.high %v2437, %v2437
      %v2446 = vcombine.high %v2444, %v2444
      %v2448 = vunpack.c.l.s4 1966171168
      %v2449 = vunpack.c.0.s8 %v2448
      %v2450 = vlaneseq
      %v2451 = vshrl.u32 %v2450, 7
      %v2452 = vsub.s32 %v2449, %v2451
      %v2453 = vrot.slane %v2437, %v2452
      %v2455 = vunpack.c.l.s4 1966171168
      %v2456 = vunpack.c.0.s8 %v2455
      %v2457 = vlaneseq
      %v2458 = vshrl.u32 %v2457, 7
      %v2459 = vsub.s32 %v2456, %v2458
      %v2460 = vrot.slane %v2444, %v2459
      %v2462 = vunpack.c.l.s4 1966171168
      %v2463 = vunpack.c.0.s8 %v2462
      %v2464 = vlaneseq
      %v2465 = vshrl.u32 %v2464, 7
      %v2466 = vsub.s32 %v2463, %v2465
      %v2467 = vrot.slane %v2445, %v2466
      %v2469 = vunpack.c.l.s4 1966171168
      %v2470 = vunpack.c.0.s8 %v2469
      %v2471 = vlaneseq
      %v2472 = vshrl.u32 %v2471, 7
      %v2473 = vsub.s32 %v2470, %v2472
      %v2474 = vrot.slane %v2446, %v2473
      %v2475 = vcombine.high %v2453, %v2453
      %v2476 = vcombine.high %v2460, %v2460
      %v2477 = vcombine.high %v2467, %v2467
      %v2478 = vcombine.high %v2474, %v2474
      %v2479 = vcombine.low %v1851, %v1852
      %v2481 = vunpack.c.l.s4 1966171168
      %v2482 = vunpack.c.0.s8 %v2481
      %v2483 = vlaneseq
      %v2484 = vshrl.u32 %v2483, 7
      %v2485 = vsub.s32 %v2482, %v2484
      %v2486 = vrot.slane %v2479, %v2485
      %v2487 = vcombine.high %v2486, %v2486
      %v2489 = vunpack.c.l.s4 1966171168
      %v2490 = vunpack.c.0.s8 %v2489
      %v2491 = vlaneseq
      %v2492 = vshrl.u32 %v2491, 7
      %v2493 = vsub.s32 %v2490, %v2492
      %v2494 = vrot.slane %v2486, %v2493
      %v2496 = vunpack.c.l.s4 1966171168
      %v2497 = vunpack.c.0.s8 %v2496
      %v2498 = vlaneseq
      %v2499 = vshrl.u32 %v2498, 7
      %v2500 = vsub.s32 %v2497, %v2499
      %v2501 = vrot.slane %v2487, %v2500
      %v2502 = vld [vmem:[%s2] sm:$0xf]
      %v2503 = vld [vmem:[%s2 + $0x4] sm:$0xf]
      %v2504 = vld [vmem:[%s2 + $0x8] sm:$0xf]
      %v2505 = vld [vmem:[%s2 + $0xc] sm:$0xf]
      %v2506 = vld [vmem:[%s2 + $0x10] sm:$0xf]
      %v2507 = vld [vmem:[%s2 + $0x14] sm:$0xf]
      %v2508 = vld [vmem:[%s2 + $0x18] sm:$0xf]
      %v2509 = vld [vmem:[%s2 + $0x1c] sm:$0xf]
      %v2510 = vld [vmem:[%s2 + $0x20] sm:$0xf]
      %v2511 = vld [vmem:[%s2 + $0x24] sm:$0xf]
      %v2512 = vld [vmem:[%s2 + $0x28] sm:$0xf]
      %v2513 = vld [vmem:[%s2 + $0x2c] sm:$0xf]
      %v2514 = vld [vmem:[%s2 + $0x30] sm:$0xf]
      %v2515 = vld [vmem:[%s2 + $0x34] sm:$0xf]
      %v2516 = vld [vmem:[%s2 + $0x38] sm:$0xf]
      %v2517 = vld [vmem:[%s2 + $0x3c] sm:$0xf]
      %v2518 = vld [vmem:[%s2 + $0x40] sm:$0xf]
      %v2519 = vld [vmem:[%s2 + $0x44] sm:$0xf]
      %v2520 = vld [vmem:[%s2 + $0x48] sm:$0xf]
      %v2521 = vld [vmem:[%s2 + $0x4c] sm:$0xf]
      %v2522 = vld [vmem:[%s2 + $0x50] sm:$0xf]
      %v2523 = vld [vmem:[%s2 + $0x54] sm:$0xf]
      %v2524 = vld [vmem:[%s2 + $0x58] sm:$0xf]
      %v2525 = vld [vmem:[%s2 + $0x5c] sm:$0xf]
      %v2526 = vld [vmem:[%s2 + $0x60] sm:$0xf]
      %v2527 = vld [vmem:[%s2 + $0x64] sm:$0xf]
      %v2528 = vld [vmem:[%s2 + $0x68] sm:$0xf]
      %v2529 = vld [vmem:[%s2 + $0x6c] sm:$0xf]
      %v2530 = vld [vmem:[%s2 + $0x70] sm:$0xf]
      %v2531 = vld [vmem:[%s2 + $0x74] sm:$0xf]
      %v2532 = vld [vmem:[%s2 + $0x78] sm:$0xf]
      %v2533 = vld [vmem:[%s2 + $0x7c] sm:$0xf]
      %vm2534 = vsmask.f32 256
      %vm2535 = vsmask.f32 1284
      %vm2536 = vmor %vm2534, %vm2535
      %vm2537 = vsmask.f32 2312
      %vm2538 = vmor %vm2536, %vm2537
      %vm2539 = vsmask.f32 3340
      %vm2540 = vmor %vm2538, %vm2539
      %vm2541 = vsmask.f32 4368
      %vm2542 = vmor %vm2540, %vm2541
      %vm2543 = vsmask.f32 5396
      %vm2544 = vmor %vm2542, %vm2543
      %vm2545 = vsmask.f32 6424
      %vm2546 = vmor %vm2544, %vm2545
      %vm2547 = vsmask.f32 7452
      %vm2548 = vmor %vm2546, %vm2547
      %v2550 = vshrl.u32 %v1903, 16
      %v2552 = vrot.slane %v2550, 7
      %v2553 = vrot.slane %v2552, 1
      %v2555 = vshll.u32 %v1917, 16
      %v2557 = vsel %vm2548, %v2553, %v2555
      %v2558 = vshrl.u32 %v1917, 16
      %v2560 = vrot.slane %v2558, 7
      %v2561 = vrot.slane %v2560, 1
      %v2563 = vshll.u32 %v1925, 16
      %v2565 = vsel %vm2548, %v2561, %v2563
      %v2566 = vshrl.u32 %v1925, 16
      %v2568 = vrot.slane %v2566, 7
      %v2569 = vrot.slane %v2568, 1
      %v2571 = vshll.u32 %v1927, 16
      %v2573 = vsel %vm2548, %v2569, %v2571
      %v2574 = vshrl.u32 %v1927, 16
      %v2576 = vrot.slane %v2574, 7
      %v2577 = vrot.slane %v2576, 1
      %v2579 = vshll.u32 %v1910, 16
      %v2581 = vsel %vm2548, %v2577, %v2579
      %v2582 = vshrl.u32 %v1910, 16
      %v2584 = vrot.slane %v2582, 7
      %v2585 = vrot.slane %v2584, 1
      %v2587 = vshll.u32 %v1924, 16
      %v2589 = vsel %vm2548, %v2585, %v2587
      %v2590 = vshrl.u32 %v1924, 16
      %v2592 = vrot.slane %v2590, 7
      %v2593 = vrot.slane %v2592, 1
      %v2595 = vshll.u32 %v1926, 16
      %v2597 = vsel %vm2548, %v2593, %v2595
      %v2599 = vshrl.u32 %v1928, 16
      %v2601 = vrot.slane %v2599, 7
      %v2602 = vrot.slane %v2601, 1
      %v2604 = vshll.u32 %v1953, 16
      %v2606 = vsel %vm2548, %v2602, %v2604
      %v2607 = vshrl.u32 %v1953, 16
      %v2609 = vrot.slane %v2607, 7
      %v2610 = vrot.slane %v2609, 1
      %v2612 = vshll.u32 %v1967, 16
      %v2614 = vsel %vm2548, %v2610, %v2612
      %v2615 = vshrl.u32 %v1967, 16
      %v2617 = vrot.slane %v2615, 7
      %v2618 = vrot.slane %v2617, 1
      %v2620 = vshll.u32 %v1975, 16
      %v2622 = vsel %vm2548, %v2618, %v2620
      %v2623 = vshrl.u32 %v1975, 16
      %v2625 = vrot.slane %v2623, 7
      %v2626 = vrot.slane %v2625, 1
      %v2628 = vshll.u32 %v1977, 16
      %v2630 = vsel %vm2548, %v2626, %v2628
      %v2631 = vshrl.u32 %v1977, 16
      %v2633 = vrot.slane %v2631, 7
      %v2634 = vrot.slane %v2633, 1
      %v2636 = vshll.u32 %v1960, 16
      %v2638 = vsel %vm2548, %v2634, %v2636
      %v2639 = vshrl.u32 %v1960, 16
      %v2641 = vrot.slane %v2639, 7
      %v2642 = vrot.slane %v2641, 1
      %v2644 = vshll.u32 %v1974, 16
      %v2646 = vsel %vm2548, %v2642, %v2644
      %v2648 = vshrl.u32 %v1976, 16
      %v2650 = vrot.slane %v2648, 7
      %v2651 = vrot.slane %v2650, 1
      %v2653 = vshll.u32 %v1978, 16
      %v2655 = vsel %vm2548, %v2651, %v2653
      %v2656 = vshrl.u32 %v1978, 16
      %v2658 = vrot.slane %v2656, 7
      %v2659 = vrot.slane %v2658, 1
      %v2661 = vshll.u32 %v2003, 16
      %v2663 = vsel %vm2548, %v2659, %v2661
      %v2664 = vshrl.u32 %v2003, 16
      %v2666 = vrot.slane %v2664, 7
      %v2667 = vrot.slane %v2666, 1
      %v2669 = vshll.u32 %v2017, 16
      %v2671 = vsel %vm2548, %v2667, %v2669
      %v2672 = vshrl.u32 %v2017, 16
      %v2674 = vrot.slane %v2672, 7
      %v2675 = vrot.slane %v2674, 1
      %v2677 = vshll.u32 %v2025, 16
      %v2679 = vsel %vm2548, %v2675, %v2677
      %v2680 = vshrl.u32 %v2025, 16
      %v2682 = vrot.slane %v2680, 7
      %v2683 = vrot.slane %v2682, 1
      %v2685 = vshll.u32 %v2027, 16
      %v2687 = vsel %vm2548, %v2683, %v2685
      %v2688 = vshrl.u32 %v2027, 16
      %v2690 = vrot.slane %v2688, 7
      %v2691 = vrot.slane %v2690, 1
      %v2693 = vshll.u32 %v2010, 16
      %v2695 = vsel %vm2548, %v2691, %v2693
      %v2697 = vshrl.u32 %v2024, 16
      %v2699 = vrot.slane %v2697, 7
      %v2700 = vrot.slane %v2699, 1
      %v2702 = vshll.u32 %v2026, 16
      %v2704 = vsel %vm2548, %v2700, %v2702
      %v2705 = vshrl.u32 %v2026, 16
      %v2707 = vrot.slane %v2705, 7
      %v2708 = vrot.slane %v2707, 1
      %v2710 = vshll.u32 %v2028, 16
      %v2712 = vsel %vm2548, %v2708, %v2710
      %v2713 = vshrl.u32 %v2028, 16
      %v2715 = vrot.slane %v2713, 7
      %v2716 = vrot.slane %v2715, 1
      %v2718 = vshll.u32 %v2053, 16
      %v2720 = vsel %vm2548, %v2716, %v2718
      %v2721 = vshrl.u32 %v2053, 16
      %v2723 = vrot.slane %v2721, 7
      %v2724 = vrot.slane %v2723, 1
      %v2726 = vshll.u32 %v2067, 16
      %v2728 = vsel %vm2548, %v2724, %v2726
      %v2729 = vshrl.u32 %v2067, 16
      %v2731 = vrot.slane %v2729, 7
      %v2732 = vrot.slane %v2731, 1
      %v2734 = vshll.u32 %v2075, 16
      %v2736 = vsel %vm2548, %v2732, %v2734
      %v2737 = vshrl.u32 %v2075, 16
      %v2739 = vrot.slane %v2737, 7
      %v2740 = vrot.slane %v2739, 1
      %v2742 = vshll.u32 %v2077, 16
      %v2744 = vsel %vm2548, %v2740, %v2742
      %v2746 = vshrl.u32 %v2060, 16
      %v2748 = vrot.slane %v2746, 7
      %v2749 = vrot.slane %v2748, 1
      %v2751 = vshll.u32 %v2074, 16
      %v2753 = vsel %vm2548, %v2749, %v2751
      %v2754 = vshrl.u32 %v2074, 16
      %v2756 = vrot.slane %v2754, 7
      %v2757 = vrot.slane %v2756, 1
      %v2759 = vshll.u32 %v2076, 16
      %v2761 = vsel %vm2548, %v2757, %v2759
      %v2762 = vshrl.u32 %v2076, 16
      %v2764 = vrot.slane %v2762, 7
      %v2765 = vrot.slane %v2764, 1
      %v2767 = vshll.u32 %v2078, 16
      %v2769 = vsel %vm2548, %v2765, %v2767
      %v2770 = vshrl.u32 %v2078, 16
      %v2772 = vrot.slane %v2770, 7
      %v2773 = vrot.slane %v2772, 1
      %v2775 = vshll.u32 %v2103, 16
      %v2777 = vsel %vm2548, %v2773, %v2775
      %v2778 = vshrl.u32 %v2103, 16
      %v2780 = vrot.slane %v2778, 7
      %v2781 = vrot.slane %v2780, 1
      %v2783 = vshll.u32 %v2117, 16
      %v2785 = vsel %vm2548, %v2781, %v2783
      %v2786 = vshrl.u32 %v2117, 16
      %v2788 = vrot.slane %v2786, 7
      %v2789 = vrot.slane %v2788, 1
      %v2791 = vshll.u32 %v2125, 16
      %v2793 = vsel %vm2548, %v2789, %v2791
      %v2795 = vshrl.u32 %v2127, 16
      %v2797 = vrot.slane %v2795, 7
      %v2798 = vrot.slane %v2797, 1
      %v2800 = vshll.u32 %v2110, 16
      %v2802 = vsel %vm2548, %v2798, %v2800
      %v2803 = vshrl.u32 %v2110, 16
      %v2805 = vrot.slane %v2803, 7
      %v2806 = vrot.slane %v2805, 1
      %v2808 = vshll.u32 %v2124, 16
      %v2810 = vsel %vm2548, %v2806, %v2808
      %v2811 = vshrl.u32 %v2124, 16
      %v2813 = vrot.slane %v2811, 7
      %v2814 = vrot.slane %v2813, 1
      %v2816 = vshll.u32 %v2126, 16
      %v2818 = vsel %vm2548, %v2814, %v2816
      %v2819 = vshrl.u32 %v2126, 16
      %v2821 = vrot.slane %v2819, 7
      %v2822 = vrot.slane %v2821, 1
      %v2824 = vshll.u32 %v2128, 16
      %v2826 = vsel %vm2548, %v2822, %v2824
      %v2827 = vshrl.u32 %v2128, 16
      %v2829 = vrot.slane %v2827, 7
      %v2830 = vrot.slane %v2829, 1
      %v2832 = vshll.u32 %v2153, 16
      %v2834 = vsel %vm2548, %v2830, %v2832
      %v2835 = vshrl.u32 %v2153, 16
      %v2837 = vrot.slane %v2835, 7
      %v2838 = vrot.slane %v2837, 1
      %v2840 = vshll.u32 %v2167, 16
      %v2842 = vsel %vm2548, %v2838, %v2840
      %v2844 = vshrl.u32 %v2175, 16
      %v2846 = vrot.slane %v2844, 7
      %v2847 = vrot.slane %v2846, 1
      %v2849 = vshll.u32 %v2177, 16
      %v2851 = vsel %vm2548, %v2847, %v2849
      %v2852 = vshrl.u32 %v2177, 16
      %v2854 = vrot.slane %v2852, 7
      %v2855 = vrot.slane %v2854, 1
      %v2857 = vshll.u32 %v2160, 16
      %v2859 = vsel %vm2548, %v2855, %v2857
      %v2860 = vshrl.u32 %v2160, 16
      %v2862 = vrot.slane %v2860, 7
      %v2863 = vrot.slane %v2862, 1
      %v2865 = vshll.u32 %v2174, 16
      %v2867 = vsel %vm2548, %v2863, %v2865
      %v2868 = vshrl.u32 %v2174, 16
      %v2870 = vrot.slane %v2868, 7
      %v2871 = vrot.slane %v2870, 1
      %v2873 = vshll.u32 %v2176, 16
      %v2875 = vsel %vm2548, %v2871, %v2873
      %v2876 = vshrl.u32 %v2176, 16
      %v2878 = vrot.slane %v2876, 7
      %v2879 = vrot.slane %v2878, 1
      %v2881 = vshll.u32 %v2178, 16
      %v2883 = vsel %vm2548, %v2879, %v2881
      %v2884 = vshrl.u32 %v2178, 16
      %v2886 = vrot.slane %v2884, 7
      %v2887 = vrot.slane %v2886, 1
      %v2889 = vshll.u32 %v2203, 16
      %v2891 = vsel %vm2548, %v2887, %v2889
      %v2893 = vshrl.u32 %v2217, 16
      %v2895 = vrot.slane %v2893, 7
      %v2896 = vrot.slane %v2895, 1
      %v2898 = vshll.u32 %v2225, 16
      %v2900 = vsel %vm2548, %v2896, %v2898
      %v2901 = vshrl.u32 %v2225, 16
      %v2903 = vrot.slane %v2901, 7
      %v2904 = vrot.slane %v2903, 1
      %v2906 = vshll.u32 %v2227, 16
      %v2908 = vsel %vm2548, %v2904, %v2906
      %v2909 = vshrl.u32 %v2227, 16
      %v2911 = vrot.slane %v2909, 7
      %v2912 = vrot.slane %v2911, 1
      %v2914 = vshll.u32 %v2210, 16
      %v2916 = vsel %vm2548, %v2912, %v2914
      %v2917 = vshrl.u32 %v2210, 16
      %v2919 = vrot.slane %v2917, 7
      %v2920 = vrot.slane %v2919, 1
      %v2922 = vshll.u32 %v2224, 16
      %v2924 = vsel %vm2548, %v2920, %v2922
      %v2925 = vshrl.u32 %v2224, 16
      %v2927 = vrot.slane %v2925, 7
      %v2928 = vrot.slane %v2927, 1
      %v2930 = vshll.u32 %v2226, 16
      %v2932 = vsel %vm2548, %v2928, %v2930
      %v2933 = vshrl.u32 %v2226, 16
      %v2935 = vrot.slane %v2933, 7
      %v2936 = vrot.slane %v2935, 1
      %v2938 = vshll.u32 %v2228, 16
      %v2940 = vsel %vm2548, %v2936, %v2938
      %v2942 = vshrl.u32 %v2253, 16
      %v2944 = vrot.slane %v2942, 7
      %v2945 = vrot.slane %v2944, 1
      %v2947 = vshll.u32 %v2267, 16
      %v2949 = vsel %vm2548, %v2945, %v2947
      %v2950 = vshrl.u32 %v2267, 16
      %v2952 = vrot.slane %v2950, 7
      %v2953 = vrot.slane %v2952, 1
      %v2955 = vshll.u32 %v2275, 16
      %v2957 = vsel %vm2548, %v2953, %v2955
      %v2958 = vshrl.u32 %v2275, 16
      %v2960 = vrot.slane %v2958, 7
      %v2961 = vrot.slane %v2960, 1
      %v2963 = vshll.u32 %v2277, 16
      %v2965 = vsel %vm2548, %v2961, %v2963
      %v2966 = vshrl.u32 %v2277, 16
      %v2968 = vrot.slane %v2966, 7
      %v2969 = vrot.slane %v2968, 1
      %v2971 = vshll.u32 %v2260, 16
      %v2973 = vsel %vm2548, %v2969, %v2971
      %v2974 = vshrl.u32 %v2260, 16
      %v2976 = vrot.slane %v2974, 7
      %v2977 = vrot.slane %v2976, 1
      %v2979 = vshll.u32 %v2274, 16
      %v2981 = vsel %vm2548, %v2977, %v2979
      %v2982 = vshrl.u32 %v2274, 16
      %v2984 = vrot.slane %v2982, 7
      %v2985 = vrot.slane %v2984, 1
      %v2987 = vshll.u32 %v2276, 16
      %v2989 = vsel %vm2548, %v2985, %v2987
      %v2991 = vshrl.u32 %v2278, 16
      %v2993 = vrot.slane %v2991, 7
      %v2994 = vrot.slane %v2993, 1
      %v2996 = vshll.u32 %v2303, 16
      %v2998 = vsel %vm2548, %v2994, %v2996
      %v2999 = vshrl.u32 %v2303, 16
      %v3001 = vrot.slane %v2999, 7
      %v3002 = vrot.slane %v3001, 1
      %v3004 = vshll.u32 %v2317, 16
      %v3006 = vsel %vm2548, %v3002, %v3004
      %v3007 = vshrl.u32 %v2317, 16
      %v3009 = vrot.slane %v3007, 7
      %v3010 = vrot.slane %v3009, 1
      %v3012 = vshll.u32 %v2325, 16
      %v3014 = vsel %vm2548, %v3010, %v3012
      %v3015 = vshrl.u32 %v2325, 16
      %v3017 = vrot.slane %v3015, 7
      %v3018 = vrot.slane %v3017, 1
      %v3020 = vshll.u32 %v2327, 16
      %v3022 = vsel %vm2548, %v3018, %v3020
      %v3023 = vshrl.u32 %v2327, 16
      %v3025 = vrot.slane %v3023, 7
      %v3026 = vrot.slane %v3025, 1
      %v3028 = vshll.u32 %v2310, 16
      %v3030 = vsel %vm2548, %v3026, %v3028
      %v3031 = vshrl.u32 %v2310, 16
      %v3033 = vrot.slane %v3031, 7
      %v3034 = vrot.slane %v3033, 1
      %v3036 = vshll.u32 %v2324, 16
      %v3038 = vsel %vm2548, %v3034, %v3036
      %v3040 = vshrl.u32 %v2326, 16
      %v3042 = vrot.slane %v3040, 7
      %v3043 = vrot.slane %v3042, 1
      %v3045 = vshll.u32 %v2328, 16
      %v3047 = vsel %vm2548, %v3043, %v3045
      %v3048 = vshrl.u32 %v2328, 16
      %v3050 = vrot.slane %v3048, 7
      %v3051 = vrot.slane %v3050, 1
      %v3053 = vshll.u32 %v2353, 16
      %v3055 = vsel %vm2548, %v3051, %v3053
      %v3056 = vshrl.u32 %v2353, 16
      %v3058 = vrot.slane %v3056, 7
      %v3059 = vrot.slane %v3058, 1
      %v3061 = vshll.u32 %v2367, 16
      %v3063 = vsel %vm2548, %v3059, %v3061
      %v3064 = vshrl.u32 %v2367, 16
      %v3066 = vrot.slane %v3064, 7
      %v3067 = vrot.slane %v3066, 1
      %v3069 = vshll.u32 %v2375, 16
      %v3071 = vsel %vm2548, %v3067, %v3069
      %v3072 = vshrl.u32 %v2375, 16
      %v3074 = vrot.slane %v3072, 7
      %v3075 = vrot.slane %v3074, 1
      %v3077 = vshll.u32 %v2377, 16
      %v3079 = vsel %vm2548, %v3075, %v3077
      %v3080 = vshrl.u32 %v2377, 16
      %v3082 = vrot.slane %v3080, 7
      %v3083 = vrot.slane %v3082, 1
      %v3085 = vshll.u32 %v2360, 16
      %v3087 = vsel %vm2548, %v3083, %v3085
      %v3089 = vshrl.u32 %v2374, 16
      %v3091 = vrot.slane %v3089, 7
      %v3092 = vrot.slane %v3091, 1
      %v3094 = vshll.u32 %v2376, 16
      %v3096 = vsel %vm2548, %v3092, %v3094
      %v3097 = vshrl.u32 %v2376, 16
      %v3099 = vrot.slane %v3097, 7
      %v3100 = vrot.slane %v3099, 1
      %v3102 = vshll.u32 %v2378, 16
      %v3104 = vsel %vm2548, %v3100, %v3102
      %v3105 = vshrl.u32 %v2378, 16
      %v3107 = vrot.slane %v3105, 7
      %v3108 = vrot.slane %v3107, 1
      %v3110 = vshll.u32 %v2403, 16
      %v3112 = vsel %vm2548, %v3108, %v3110
      %v3113 = vshrl.u32 %v2403, 16
      %v3115 = vrot.slane %v3113, 7
      %v3116 = vrot.slane %v3115, 1
      %v3118 = vshll.u32 %v2417, 16
      %v3120 = vsel %vm2548, %v3116, %v3118
      %v3121 = vshrl.u32 %v2417, 16
      %v3123 = vrot.slane %v3121, 7
      %v3124 = vrot.slane %v3123, 1
      %v3126 = vshll.u32 %v2425, 16
      %v3128 = vsel %vm2548, %v3124, %v3126
      %v3129 = vshrl.u32 %v2425, 16
      %v3131 = vrot.slane %v3129, 7
      %v3132 = vrot.slane %v3131, 1
      %v3134 = vshll.u32 %v2427, 16
      %v3136 = vsel %vm2548, %v3132, %v3134
      %s3137 = scalar_lea.vmem %s2, 128
      %v3138 = vld [vmem:[%s3137] sm:$0xf]
      %v3139 = vld [vmem:[%s3137 + $0x4] sm:$0xf]
      %v3140 = vld [vmem:[%s3137 + $0x8] sm:$0xf]
      %v3141 = vld [vmem:[%s3137 + $0xc] sm:$0xf]
      %v3142 = vld [vmem:[%s3137 + $0x10] sm:$0xf]
      %v3143 = vld [vmem:[%s3137 + $0x14] sm:$0xf]
      %v3144 = vld [vmem:[%s3137 + $0x18] sm:$0xf]
      %v3145 = vld [vmem:[%s3137 + $0x1c] sm:$0xf]
      %v3146 = vld [vmem:[%s3137 + $0x20] sm:$0xf]
      %v3147 = vld [vmem:[%s3137 + $0x24] sm:$0xf]
      %v3148 = vld [vmem:[%s3137 + $0x28] sm:$0xf]
      %v3149 = vld [vmem:[%s3137 + $0x2c] sm:$0xf]
      %v3150 = vld [vmem:[%s3137 + $0x30] sm:$0xf]
      %v3151 = vld [vmem:[%s3137 + $0x34] sm:$0xf]
      %v3152 = vld [vmem:[%s3137 + $0x38] sm:$0xf]
      %v3153 = vld [vmem:[%s3137 + $0x3c] sm:$0xf]
      %v3154 = vld [vmem:[%s3137 + $0x40] sm:$0xf]
      %v3155 = vld [vmem:[%s3137 + $0x44] sm:$0xf]
      %v3156 = vld [vmem:[%s3137 + $0x48] sm:$0xf]
      %v3157 = vld [vmem:[%s3137 + $0x4c] sm:$0xf]
      %v3158 = vld [vmem:[%s3137 + $0x50] sm:$0xf]
      %v3159 = vld [vmem:[%s3137 + $0x54] sm:$0xf]
      %v3160 = vld [vmem:[%s3137 + $0x58] sm:$0xf]
      %v3161 = vld [vmem:[%s3137 + $0x5c] sm:$0xf]
      %v3162 = vld [vmem:[%s3137 + $0x60] sm:$0xf]
      %v3163 = vld [vmem:[%s3137 + $0x64] sm:$0xf]
      %v3164 = vld [vmem:[%s3137 + $0x68] sm:$0xf]
      %v3165 = vld [vmem:[%s3137 + $0x6c] sm:$0xf]
      %v3166 = vld [vmem:[%s3137 + $0x70] sm:$0xf]
      %v3167 = vld [vmem:[%s3137 + $0x74] sm:$0xf]
      %v3168 = vld [vmem:[%s3137 + $0x78] sm:$0xf]
      %v3169 = vld [vmem:[%s3137 + $0x7c] sm:$0xf]
      %v3170 = vcombine.low %v2557, %v2565
      %v3171 = vcombine.low %v2573, %v2581
      %v3172 = vcombine.low %v2589, %v2597
      %v3173 = vcombine.low %v2606, %v2614
      %v3175 = vunpack.c.l.s4 1966171168
      %v3176 = vunpack.c.0.s8 %v3175
      %v3177 = vlaneseq
      %v3178 = vshrl.u32 %v3177, 7
      %v3179 = vsub.s32 %v3176, %v3178
      %v3180 = vrot.slane %v3170, %v3179
      %v3182 = vunpack.c.l.s4 1966171168
      %v3183 = vunpack.c.0.s8 %v3182
      %v3184 = vlaneseq
      %v3185 = vshrl.u32 %v3184, 7
      %v3186 = vsub.s32 %v3183, %v3185
      %v3187 = vrot.slane %v3171, %v3186
      %v3189 = vunpack.c.l.s4 1966171168
      %v3190 = vunpack.c.0.s8 %v3189
      %v3191 = vlaneseq
      %v3192 = vshrl.u32 %v3191, 7
      %v3193 = vsub.s32 %v3190, %v3192
      %v3194 = vrot.slane %v3172, %v3193
      %v3196 = vunpack.c.l.s4 1966171168
      %v3197 = vunpack.c.0.s8 %v3196
      %v3198 = vlaneseq
      %v3199 = vshrl.u32 %v3198, 7
      %v3200 = vsub.s32 %v3197, %v3199
      %v3201 = vrot.slane %v3173, %v3200
      %v3202 = vcombine.low %v3180, %v3187
      %v3203 = vcombine.high %v3180, %v3187
      %v3204 = vcombine.low %v3194, %v3201
      %v3205 = vcombine.high %v3194, %v3201
      %v3207 = vunpack.c.l.s4 1966171168
      %v3208 = vunpack.c.0.s8 %v3207
      %v3209 = vlaneseq
      %v3210 = vshrl.u32 %v3209, 7
      %v3211 = vsub.s32 %v3208, %v3210
      %v3212 = vrot.slane %v3202, %v3211
      %v3214 = vunpack.c.l.s4 1966171168
      %v3215 = vunpack.c.0.s8 %v3214
      %v3216 = vlaneseq
      %v3217 = vshrl.u32 %v3216, 7
      %v3218 = vsub.s32 %v3215, %v3217
      %v3219 = vrot.slane %v3203, %v3218
      %v3221 = vunpack.c.l.s4 1966171168
      %v3222 = vunpack.c.0.s8 %v3221
      %v3223 = vlaneseq
      %v3224 = vshrl.u32 %v3223, 7
      %v3225 = vsub.s32 %v3222, %v3224
      %v3226 = vrot.slane %v3204, %v3225
      %v3228 = vunpack.c.l.s4 1966171168
      %v3229 = vunpack.c.0.s8 %v3228
      %v3230 = vlaneseq
      %v3231 = vshrl.u32 %v3230, 7
      %v3232 = vsub.s32 %v3229, %v3231
      %v3233 = vrot.slane %v3205, %v3232
      %v3234 = vcombine.low %v3212, %v3226
      %v3235 = vcombine.low %v3219, %v3233
      %v3236 = vcombine.low %v2622, %v2630
      %v3237 = vcombine.low %v2638, %v2646
      %v3238 = vcombine.low %v2655, %v2663
      %v3239 = vcombine.low %v2671, %v2679
      %v3241 = vunpack.c.l.s4 1966171168
      %v3242 = vunpack.c.0.s8 %v3241
      %v3243 = vlaneseq
      %v3244 = vshrl.u32 %v3243, 7
      %v3245 = vsub.s32 %v3242, %v3244
      %v3246 = vrot.slane %v3236, %v3245
      %v3248 = vunpack.c.l.s4 1966171168
      %v3249 = vunpack.c.0.s8 %v3248
      %v3250 = vlaneseq
      %v3251 = vshrl.u32 %v3250, 7
      %v3252 = vsub.s32 %v3249, %v3251
      %v3253 = vrot.slane %v3237, %v3252
      %v3255 = vunpack.c.l.s4 1966171168
      %v3256 = vunpack.c.0.s8 %v3255
      %v3257 = vlaneseq
      %v3258 = vshrl.u32 %v3257, 7
      %v3259 = vsub.s32 %v3256, %v3258
      %v3260 = vrot.slane %v3238, %v3259
      %v3262 = vunpack.c.l.s4 1966171168
      %v3263 = vunpack.c.0.s8 %v3262
      %v3264 = vlaneseq
      %v3265 = vshrl.u32 %v3264, 7
      %v3266 = vsub.s32 %v3263, %v3265
      %v3267 = vrot.slane %v3239, %v3266
      %v3268 = vcombine.low %v3246, %v3253
      %v3269 = vcombine.high %v3246, %v3253
      %v3270 = vcombine.low %v3260, %v3267
      %v3271 = vcombine.high %v3260, %v3267
      %v3273 = vunpack.c.l.s4 1966171168
      %v3274 = vunpack.c.0.s8 %v3273
      %v3275 = vlaneseq
      %v3276 = vshrl.u32 %v3275, 7
      %v3277 = vsub.s32 %v3274, %v3276
      %v3278 = vrot.slane %v3268, %v3277
      %v3280 = vunpack.c.l.s4 1966171168
      %v3281 = vunpack.c.0.s8 %v3280
      %v3282 = vlaneseq
      %v3283 = vshrl.u32 %v3282, 7
      %v3284 = vsub.s32 %v3281, %v3283
      %v3285 = vrot.slane %v3269, %v3284
      %v3287 = vunpack.c.l.s4 1966171168
      %v3288 = vunpack.c.0.s8 %v3287
      %v3289 = vlaneseq
      %v3290 = vshrl.u32 %v3289, 7
      %v3291 = vsub.s32 %v3288, %v3290
      %v3292 = vrot.slane %v3270, %v3291
      %v3294 = vunpack.c.l.s4 1966171168
      %v3295 = vunpack.c.0.s8 %v3294
      %v3296 = vlaneseq
      %v3297 = vshrl.u32 %v3296, 7
      %v3298 = vsub.s32 %v3295, %v3297
      %v3299 = vrot.slane %v3271, %v3298
      %v3300 = vcombine.low %v3278, %v3292
      %v3301 = vcombine.low %v3285, %v3299
      %v3302 = vcombine.low %v2687, %v2695
      %v3303 = vcombine.low %v2704, %v2712
      %v3304 = vcombine.low %v2720, %v2728
      %v3305 = vcombine.low %v2736, %v2744
      %v3307 = vunpack.c.l.s4 1966171168
      %v3308 = vunpack.c.0.s8 %v3307
      %v3309 = vlaneseq
      %v3310 = vshrl.u32 %v3309, 7
      %v3311 = vsub.s32 %v3308, %v3310
      %v3312 = vrot.slane %v3302, %v3311
      %v3314 = vunpack.c.l.s4 1966171168
      %v3315 = vunpack.c.0.s8 %v3314
      %v3316 = vlaneseq
      %v3317 = vshrl.u32 %v3316, 7
      %v3318 = vsub.s32 %v3315, %v3317
      %v3319 = vrot.slane %v3303, %v3318
      %v3321 = vunpack.c.l.s4 1966171168
      %v3322 = vunpack.c.0.s8 %v3321
      %v3323 = vlaneseq
      %v3324 = vshrl.u32 %v3323, 7
      %v3325 = vsub.s32 %v3322, %v3324
      %v3326 = vrot.slane %v3304, %v3325
      %v3328 = vunpack.c.l.s4 1966171168
      %v3329 = vunpack.c.0.s8 %v3328
      %v3330 = vlaneseq
      %v3331 = vshrl.u32 %v3330, 7
      %v3332 = vsub.s32 %v3329, %v3331
      %v3333 = vrot.slane %v3305, %v3332
      %v3334 = vcombine.low %v3312, %v3319
      %v3335 = vcombine.high %v3312, %v3319
      %v3336 = vcombine.low %v3326, %v3333
      %v3337 = vcombine.high %v3326, %v3333
      %v3339 = vunpack.c.l.s4 1966171168
      %v3340 = vunpack.c.0.s8 %v3339
      %v3341 = vlaneseq
      %v3342 = vshrl.u32 %v3341, 7
      %v3343 = vsub.s32 %v3340, %v3342
      %v3344 = vrot.slane %v3334, %v3343
      %v3346 = vunpack.c.l.s4 1966171168
      %v3347 = vunpack.c.0.s8 %v3346
      %v3348 = vlaneseq
      %v3349 = vshrl.u32 %v3348, 7
      %v3350 = vsub.s32 %v3347, %v3349
      %v3351 = vrot.slane %v3335, %v3350
      %v3353 = vunpack.c.l.s4 1966171168
      %v3354 = vunpack.c.0.s8 %v3353
      %v3355 = vlaneseq
      %v3356 = vshrl.u32 %v3355, 7
      %v3357 = vsub.s32 %v3354, %v3356
      %v3358 = vrot.slane %v3336, %v3357
      %v3360 = vunpack.c.l.s4 1966171168
      %v3361 = vunpack.c.0.s8 %v3360
      %v3362 = vlaneseq
      %v3363 = vshrl.u32 %v3362, 7
      %v3364 = vsub.s32 %v3361, %v3363
      %v3365 = vrot.slane %v3337, %v3364
      %v3366 = vcombine.low %v3344, %v3358
      %v3367 = vcombine.low %v3351, %v3365
      %v3368 = vcombine.low %v2753, %v2761
      %v3369 = vcombine.low %v2769, %v2777
      %v3370 = vcombine.low %v2785, %v2793
      %v3371 = vcombine.low %v2802, %v2810
      %v3373 = vunpack.c.l.s4 1966171168
      %v3374 = vunpack.c.0.s8 %v3373
      %v3375 = vlaneseq
      %v3376 = vshrl.u32 %v3375, 7
      %v3377 = vsub.s32 %v3374, %v3376
      %v3378 = vrot.slane %v3368, %v3377
      %v3380 = vunpack.c.l.s4 1966171168
      %v3381 = vunpack.c.0.s8 %v3380
      %v3382 = vlaneseq
      %v3383 = vshrl.u32 %v3382, 7
      %v3384 = vsub.s32 %v3381, %v3383
      %v3385 = vrot.slane %v3369, %v3384
      %v3387 = vunpack.c.l.s4 1966171168
      %v3388 = vunpack.c.0.s8 %v3387
      %v3389 = vlaneseq
      %v3390 = vshrl.u32 %v3389, 7
      %v3391 = vsub.s32 %v3388, %v3390
      %v3392 = vrot.slane %v3370, %v3391
      %v3394 = vunpack.c.l.s4 1966171168
      %v3395 = vunpack.c.0.s8 %v3394
      %v3396 = vlaneseq
      %v3397 = vshrl.u32 %v3396, 7
      %v3398 = vsub.s32 %v3395, %v3397
      %v3399 = vrot.slane %v3371, %v3398
      %v3400 = vcombine.low %v3378, %v3385
      %v3401 = vcombine.high %v3378, %v3385
      %v3402 = vcombine.low %v3392, %v3399
      %v3403 = vcombine.high %v3392, %v3399
      %v3405 = vunpack.c.l.s4 1966171168
      %v3406 = vunpack.c.0.s8 %v3405
      %v3407 = vlaneseq
      %v3408 = vshrl.u32 %v3407, 7
      %v3409 = vsub.s32 %v3406, %v3408
      %v3410 = vrot.slane %v3400, %v3409
      %v3412 = vunpack.c.l.s4 1966171168
      %v3413 = vunpack.c.0.s8 %v3412
      %v3414 = vlaneseq
      %v3415 = vshrl.u32 %v3414, 7
      %v3416 = vsub.s32 %v3413, %v3415
      %v3417 = vrot.slane %v3401, %v3416
      %v3419 = vunpack.c.l.s4 1966171168
      %v3420 = vunpack.c.0.s8 %v3419
      %v3421 = vlaneseq
      %v3422 = vshrl.u32 %v3421, 7
      %v3423 = vsub.s32 %v3420, %v3422
      %v3424 = vrot.slane %v3402, %v3423
      %v3426 = vunpack.c.l.s4 1966171168
      %v3427 = vunpack.c.0.s8 %v3426
      %v3428 = vlaneseq
      %v3429 = vshrl.u32 %v3428, 7
      %v3430 = vsub.s32 %v3427, %v3429
      %v3431 = vrot.slane %v3403, %v3430
      %v3432 = vcombine.low %v3410, %v3424
      %v3433 = vcombine.low %v3417, %v3431
      %v3434 = vcombine.low %v2818, %v2826
      %v3435 = vcombine.low %v2834, %v2842
      %v3436 = vcombine.low %v2851, %v2859
      %v3437 = vcombine.low %v2867, %v2875
      %v3439 = vunpack.c.l.s4 1966171168
      %v3440 = vunpack.c.0.s8 %v3439
      %v3441 = vlaneseq
      %v3442 = vshrl.u32 %v3441, 7
      %v3443 = vsub.s32 %v3440, %v3442
      %v3444 = vrot.slane %v3434, %v3443
      %v3446 = vunpack.c.l.s4 1966171168
      %v3447 = vunpack.c.0.s8 %v3446
      %v3448 = vlaneseq
      %v3449 = vshrl.u32 %v3448, 7
      %v3450 = vsub.s32 %v3447, %v3449
      %v3451 = vrot.slane %v3435, %v3450
      %v3453 = vunpack.c.l.s4 1966171168
      %v3454 = vunpack.c.0.s8 %v3453
      %v3455 = vlaneseq
      %v3456 = vshrl.u32 %v3455, 7
      %v3457 = vsub.s32 %v3454, %v3456
      %v3458 = vrot.slane %v3436, %v3457
      %v3460 = vunpack.c.l.s4 1966171168
      %v3461 = vunpack.c.0.s8 %v3460
      %v3462 = vlaneseq
      %v3463 = vshrl.u32 %v3462, 7
      %v3464 = vsub.s32 %v3461, %v3463
      %v3465 = vrot.slane %v3437, %v3464
      %v3466 = vcombine.low %v3444, %v3451
      %v3467 = vcombine.high %v3444, %v3451
      %v3468 = vcombine.low %v3458, %v3465
      %v3469 = vcombine.high %v3458, %v3465
      %v3471 = vunpack.c.l.s4 1966171168
      %v3472 = vunpack.c.0.s8 %v3471
      %v3473 = vlaneseq
      %v3474 = vshrl.u32 %v3473, 7
      %v3475 = vsub.s32 %v3472, %v3474
      %v3476 = vrot.slane %v3466, %v3475
      %v3478 = vunpack.c.l.s4 1966171168
      %v3479 = vunpack.c.0.s8 %v3478
      %v3480 = vlaneseq
      %v3481 = vshrl.u32 %v3480, 7
      %v3482 = vsub.s32 %v3479, %v3481
      %v3483 = vrot.slane %v3467, %v3482
      %v3485 = vunpack.c.l.s4 1966171168
      %v3486 = vunpack.c.0.s8 %v3485
      %v3487 = vlaneseq
      %v3488 = vshrl.u32 %v3487, 7
      %v3489 = vsub.s32 %v3486, %v3488
      %v3490 = vrot.slane %v3468, %v3489
      %v3492 = vunpack.c.l.s4 1966171168
      %v3493 = vunpack.c.0.s8 %v3492
      %v3494 = vlaneseq
      %v3495 = vshrl.u32 %v3494, 7
      %v3496 = vsub.s32 %v3493, %v3495
      %v3497 = vrot.slane %v3469, %v3496
      %v3498 = vcombine.low %v3476, %v3490
      %v3499 = vcombine.low %v3483, %v3497
      %v3500 = vcombine.low %v2883, %v2891
      %v3501 = vcombine.low %v2900, %v2908
      %v3502 = vcombine.low %v2916, %v2924
      %v3503 = vcombine.low %v2932, %v2940
      %v3505 = vunpack.c.l.s4 1966171168
      %v3506 = vunpack.c.0.s8 %v3505
      %v3507 = vlaneseq
      %v3508 = vshrl.u32 %v3507, 7
      %v3509 = vsub.s32 %v3506, %v3508
      %v3510 = vrot.slane %v3500, %v3509
      %v3512 = vunpack.c.l.s4 1966171168
      %v3513 = vunpack.c.0.s8 %v3512
      %v3514 = vlaneseq
      %v3515 = vshrl.u32 %v3514, 7
      %v3516 = vsub.s32 %v3513, %v3515
      %v3517 = vrot.slane %v3501, %v3516
      %v3519 = vunpack.c.l.s4 1966171168
      %v3520 = vunpack.c.0.s8 %v3519
      %v3521 = vlaneseq
      %v3522 = vshrl.u32 %v3521, 7
      %v3523 = vsub.s32 %v3520, %v3522
      %v3524 = vrot.slane %v3502, %v3523
      %v3526 = vunpack.c.l.s4 1966171168
      %v3527 = vunpack.c.0.s8 %v3526
      %v3528 = vlaneseq
      %v3529 = vshrl.u32 %v3528, 7
      %v3530 = vsub.s32 %v3527, %v3529
      %v3531 = vrot.slane %v3503, %v3530
      %v3532 = vcombine.low %v3510, %v3517
      %v3533 = vcombine.high %v3510, %v3517
      %v3534 = vcombine.low %v3524, %v3531
      %v3535 = vcombine.high %v3524, %v3531
      %v3537 = vunpack.c.l.s4 1966171168
      %v3538 = vunpack.c.0.s8 %v3537
      %v3539 = vlaneseq
      %v3540 = vshrl.u32 %v3539, 7
      %v3541 = vsub.s32 %v3538, %v3540
      %v3542 = vrot.slane %v3532, %v3541
      %v3544 = vunpack.c.l.s4 1966171168
      %v3545 = vunpack.c.0.s8 %v3544
      %v3546 = vlaneseq
      %v3547 = vshrl.u32 %v3546, 7
      %v3548 = vsub.s32 %v3545, %v3547
      %v3549 = vrot.slane %v3533, %v3548
      %v3551 = vunpack.c.l.s4 1966171168
      %v3552 = vunpack.c.0.s8 %v3551
      %v3553 = vlaneseq
      %v3554 = vshrl.u32 %v3553, 7
      %v3555 = vsub.s32 %v3552, %v3554
      %v3556 = vrot.slane %v3534, %v3555
      %v3558 = vunpack.c.l.s4 1966171168
      %v3559 = vunpack.c.0.s8 %v3558
      %v3560 = vlaneseq
      %v3561 = vshrl.u32 %v3560, 7
      %v3562 = vsub.s32 %v3559, %v3561
      %v3563 = vrot.slane %v3535, %v3562
      %v3564 = vcombine.low %v3542, %v3556
      %v3565 = vcombine.low %v3549, %v3563
      %v3566 = vcombine.low %v2949, %v2957
      %v3567 = vcombine.low %v2965, %v2973
      %v3568 = vcombine.low %v2981, %v2989
      %v3569 = vcombine.low %v2998, %v3006
      %v3571 = vunpack.c.l.s4 1966171168
      %v3572 = vunpack.c.0.s8 %v3571
      %v3573 = vlaneseq
      %v3574 = vshrl.u32 %v3573, 7
      %v3575 = vsub.s32 %v3572, %v3574
      %v3576 = vrot.slane %v3566, %v3575
      %v3578 = vunpack.c.l.s4 1966171168
      %v3579 = vunpack.c.0.s8 %v3578
      %v3580 = vlaneseq
      %v3581 = vshrl.u32 %v3580, 7
      %v3582 = vsub.s32 %v3579, %v3581
      %v3583 = vrot.slane %v3567, %v3582
      %v3585 = vunpack.c.l.s4 1966171168
      %v3586 = vunpack.c.0.s8 %v3585
      %v3587 = vlaneseq
      %v3588 = vshrl.u32 %v3587, 7
      %v3589 = vsub.s32 %v3586, %v3588
      %v3590 = vrot.slane %v3568, %v3589
      %v3592 = vunpack.c.l.s4 1966171168
      %v3593 = vunpack.c.0.s8 %v3592
      %v3594 = vlaneseq
      %v3595 = vshrl.u32 %v3594, 7
      %v3596 = vsub.s32 %v3593, %v3595
      %v3597 = vrot.slane %v3569, %v3596
      %v3598 = vcombine.low %v3576, %v3583
      %v3599 = vcombine.high %v3576, %v3583
      %v3600 = vcombine.low %v3590, %v3597
      %v3601 = vcombine.high %v3590, %v3597
      %v3603 = vunpack.c.l.s4 1966171168
      %v3604 = vunpack.c.0.s8 %v3603
      %v3605 = vlaneseq
      %v3606 = vshrl.u32 %v3605, 7
      %v3607 = vsub.s32 %v3604, %v3606
      %v3608 = vrot.slane %v3598, %v3607
      %v3610 = vunpack.c.l.s4 1966171168
      %v3611 = vunpack.c.0.s8 %v3610
      %v3612 = vlaneseq
      %v3613 = vshrl.u32 %v3612, 7
      %v3614 = vsub.s32 %v3611, %v3613
      %v3615 = vrot.slane %v3599, %v3614
      %v3617 = vunpack.c.l.s4 1966171168
      %v3618 = vunpack.c.0.s8 %v3617
      %v3619 = vlaneseq
      %v3620 = vshrl.u32 %v3619, 7
      %v3621 = vsub.s32 %v3618, %v3620
      %v3622 = vrot.slane %v3600, %v3621
      %v3624 = vunpack.c.l.s4 1966171168
      %v3625 = vunpack.c.0.s8 %v3624
      %v3626 = vlaneseq
      %v3627 = vshrl.u32 %v3626, 7
      %v3628 = vsub.s32 %v3625, %v3627
      %v3629 = vrot.slane %v3601, %v3628
      %v3630 = vcombine.low %v3608, %v3622
      %v3631 = vcombine.low %v3615, %v3629
      %v3632 = vcombine.low %v3014, %v3022
      %v3633 = vcombine.low %v3030, %v3038
      %v3634 = vcombine.low %v3047, %v3055
      %v3635 = vcombine.low %v3063, %v3071
      %v3637 = vunpack.c.l.s4 1966171168
      %v3638 = vunpack.c.0.s8 %v3637
      %v3639 = vlaneseq
      %v3640 = vshrl.u32 %v3639, 7
      %v3641 = vsub.s32 %v3638, %v3640
      %v3642 = vrot.slane %v3632, %v3641
      %v3644 = vunpack.c.l.s4 1966171168
      %v3645 = vunpack.c.0.s8 %v3644
      %v3646 = vlaneseq
      %v3647 = vshrl.u32 %v3646, 7
      %v3648 = vsub.s32 %v3645, %v3647
      %v3649 = vrot.slane %v3633, %v3648
      %v3651 = vunpack.c.l.s4 1966171168
      %v3652 = vunpack.c.0.s8 %v3651
      %v3653 = vlaneseq
      %v3654 = vshrl.u32 %v3653, 7
      %v3655 = vsub.s32 %v3652, %v3654
      %v3656 = vrot.slane %v3634, %v3655
      %v3658 = vunpack.c.l.s4 1966171168
      %v3659 = vunpack.c.0.s8 %v3658
      %v3660 = vlaneseq
      %v3661 = vshrl.u32 %v3660, 7
      %v3662 = vsub.s32 %v3659, %v3661
      %v3663 = vrot.slane %v3635, %v3662
      %v3664 = vcombine.low %v3642, %v3649
      %v3665 = vcombine.high %v3642, %v3649
      %v3666 = vcombine.low %v3656, %v3663
      %v3667 = vcombine.high %v3656, %v3663
      %v3669 = vunpack.c.l.s4 1966171168
      %v3670 = vunpack.c.0.s8 %v3669
      %v3671 = vlaneseq
      %v3672 = vshrl.u32 %v3671, 7
      %v3673 = vsub.s32 %v3670, %v3672
      %v3674 = vrot.slane %v3664, %v3673
      %v3676 = vunpack.c.l.s4 1966171168
      %v3677 = vunpack.c.0.s8 %v3676
      %v3678 = vlaneseq
      %v3679 = vshrl.u32 %v3678, 7
      %v3680 = vsub.s32 %v3677, %v3679
      %v3681 = vrot.slane %v3665, %v3680
      %v3683 = vunpack.c.l.s4 1966171168
      %v3684 = vunpack.c.0.s8 %v3683
      %v3685 = vlaneseq
      %v3686 = vshrl.u32 %v3685, 7
      %v3687 = vsub.s32 %v3684, %v3686
      %v3688 = vrot.slane %v3666, %v3687
      %v3690 = vunpack.c.l.s4 1966171168
      %v3691 = vunpack.c.0.s8 %v3690
      %v3692 = vlaneseq
      %v3693 = vshrl.u32 %v3692, 7
      %v3694 = vsub.s32 %v3691, %v3693
      %v3695 = vrot.slane %v3667, %v3694
      %v3696 = vcombine.low %v3674, %v3688
      %v3697 = vcombine.low %v3681, %v3695
      %v3698 = vcombine.low %v3079, %v3087
      %v3699 = vcombine.low %v3096, %v3104
      %v3700 = vcombine.low %v3112, %v3120
      %v3701 = vcombine.low %v3128, %v3136
      %v3703 = vunpack.c.l.s4 1966171168
      %v3704 = vunpack.c.0.s8 %v3703
      %v3705 = vlaneseq
      %v3706 = vshrl.u32 %v3705, 7
      %v3707 = vsub.s32 %v3704, %v3706
      %v3708 = vrot.slane %v3698, %v3707
      %v3710 = vunpack.c.l.s4 1966171168
      %v3711 = vunpack.c.0.s8 %v3710
      %v3712 = vlaneseq
      %v3713 = vshrl.u32 %v3712, 7
      %v3714 = vsub.s32 %v3711, %v3713
      %v3715 = vrot.slane %v3699, %v3714
      %v3717 = vunpack.c.l.s4 1966171168
      %v3718 = vunpack.c.0.s8 %v3717
      %v3719 = vlaneseq
      %v3720 = vshrl.u32 %v3719, 7
      %v3721 = vsub.s32 %v3718, %v3720
      %v3722 = vrot.slane %v3700, %v3721
      %v3724 = vunpack.c.l.s4 1966171168
      %v3725 = vunpack.c.0.s8 %v3724
      %v3726 = vlaneseq
      %v3727 = vshrl.u32 %v3726, 7
      %v3728 = vsub.s32 %v3725, %v3727
      %v3729 = vrot.slane %v3701, %v3728
      %v3730 = vcombine.low %v3708, %v3715
      %v3731 = vcombine.high %v3708, %v3715
      %v3732 = vcombine.low %v3722, %v3729
      %v3733 = vcombine.high %v3722, %v3729
      %v3735 = vunpack.c.l.s4 1966171168
      %v3736 = vunpack.c.0.s8 %v3735
      %v3737 = vlaneseq
      %v3738 = vshrl.u32 %v3737, 7
      %v3739 = vsub.s32 %v3736, %v3738
      %v3740 = vrot.slane %v3730, %v3739
      %v3742 = vunpack.c.l.s4 1966171168
      %v3743 = vunpack.c.0.s8 %v3742
      %v3744 = vlaneseq
      %v3745 = vshrl.u32 %v3744, 7
      %v3746 = vsub.s32 %v3743, %v3745
      %v3747 = vrot.slane %v3731, %v3746
      %v3749 = vunpack.c.l.s4 1966171168
      %v3750 = vunpack.c.0.s8 %v3749
      %v3751 = vlaneseq
      %v3752 = vshrl.u32 %v3751, 7
      %v3753 = vsub.s32 %v3750, %v3752
      %v3754 = vrot.slane %v3732, %v3753
      %v3756 = vunpack.c.l.s4 1966171168
      %v3757 = vunpack.c.0.s8 %v3756
      %v3758 = vlaneseq
      %v3759 = vshrl.u32 %v3758, 7
      %v3760 = vsub.s32 %v3757, %v3759
      %v3761 = vrot.slane %v3733, %v3760
      %v3762 = vcombine.low %v3740, %v3754
      %v3763 = vcombine.low %v3747, %v3761
      %v3814 = vunpack.c.l.b16 %v3138
      %v3815 = vunpack.c.l.b16 %v3139
      %v3816 = vunpack.c.l.b16 %v3140
      %v3817 = vunpack.c.l.b16 %v3141
      %v3818 = vunpack.c.l.b16 %v3142
      %v3819 = vunpack.c.l.b16 %v3143
      %v3820 = vunpack.c.l.b16 %v3144
      %v3821 = vunpack.c.l.b16 %v3145
      %v3822 = vunpack.c.l.b16 %v3146
      %v3823 = vunpack.c.l.b16 %v3147
      %v3824 = vunpack.c.l.b16 %v3148
      %v3825 = vunpack.c.l.b16 %v3149
      %v3826 = vunpack.c.l.b16 %v3150
      %v3827 = vunpack.c.l.b16 %v3151
      %v3828 = vunpack.c.l.b16 %v3152
      %v3829 = vunpack.c.l.b16 %v3153
      %v3830 = vunpack.c.l.b16 %v3154
      %v3831 = vunpack.c.l.b16 %v3155
      %v3832 = vunpack.c.l.b16 %v3156
      %v3833 = vunpack.c.l.b16 %v3157
      %v3834 = vunpack.c.l.b16 %v3158
      %v3835 = vunpack.c.l.b16 %v3159
      %v3836 = vunpack.c.l.b16 %v3160
      %v3837 = vunpack.c.l.b16 %v3161
      %v3838 = vunpack.c.l.b16 %v3162
      %v3839 = vunpack.c.l.b16 %v3163
      %v3840 = vunpack.c.l.b16 %v3164
      %v3841 = vunpack.c.l.b16 %v3165
      %v3842 = vunpack.c.l.b16 %v3166
      %v3843 = vunpack.c.l.b16 %v3167
      %v3844 = vunpack.c.l.b16 %v3168
      %v3845 = vunpack.c.l.b16 %v3169
      %v3846 = vpack.c.b16 %v3815, %v3814
      %v3847 = vpack.c.b16 %v3817, %v3816
      %v3848 = vpack.c.b16 %v3819, %v3818
      %v3849 = vpack.c.b16 %v3821, %v3820
      %v3850 = vpack.c.b16 %v3823, %v3822
      %v3851 = vpack.c.b16 %v3825, %v3824
      %v3852 = vpack.c.b16 %v3827, %v3826
      %v3853 = vpack.c.b16 %v3829, %v3828
      %v3854 = vpack.c.b16 %v3831, %v3830
      %v3855 = vpack.c.b16 %v3833, %v3832
      %v3856 = vpack.c.b16 %v3835, %v3834
      %v3857 = vpack.c.b16 %v3837, %v3836
      %v3858 = vpack.c.b16 %v3839, %v3838
      %v3859 = vpack.c.b16 %v3841, %v3840
      %v3860 = vpack.c.b16 %v3843, %v3842
      %v3861 = vpack.c.b16 %v3845, %v3844
      %3878 = vmatprep.subr.bf16.mxu0 0
      %3879 = vmatpush1.bf16.msra.mxu0 %v3846
      %3880 = vmatprep.subr.bf16.mxu0 0
      %3881 = vmatpush1.bf16.msra.mxu0 %v3847
      %3882 = vmatprep.subr.bf16.mxu0 0
      %3883 = vmatpush1.bf16.msra.mxu0 %v3848
      %3884 = vmatprep.subr.bf16.mxu0 0
      %3885 = vmatpush1.bf16.msra.mxu0 %v3849
      %3886 = vmatprep.subr.bf16.mxu0 0
      %3887 = vmatpush1.bf16.msra.mxu0 %v3850
      %3888 = vmatprep.subr.bf16.mxu0 0
      %3889 = vmatpush1.bf16.msra.mxu0 %v3851
      %3890 = vmatprep.subr.bf16.mxu0 0
      %3891 = vmatpush1.bf16.msra.mxu0 %v3852
      %3892 = vmatprep.subr.bf16.mxu0 0
      %3893 = vmatpush1.bf16.msra.mxu0 %v3853
      %3894 = vmatprep.subr.bf16.mxu0 0
      %3895 = vmatpush1.bf16.msra.mxu0 %v3854
      %3896 = vmatprep.subr.bf16.mxu0 0
      %3897 = vmatpush1.bf16.msra.mxu0 %v3855
      %3898 = vmatprep.subr.bf16.mxu0 0
      %3899 = vmatpush1.bf16.msra.mxu0 %v3856
      %3900 = vmatprep.subr.bf16.mxu0 0
      %3901 = vmatpush1.bf16.msra.mxu0 %v3857
      %3902 = vmatprep.subr.bf16.mxu0 0
      %3903 = vmatpush1.bf16.msra.mxu0 %v3858
      %3904 = vmatprep.subr.bf16.mxu0 0
      %3905 = vmatpush1.bf16.msra.mxu0 %v3859
      %3906 = vmatprep.subr.bf16.mxu0 0
      %3907 = vmatpush1.bf16.msra.mxu0 %v3860
      %3908 = vmatprep.subr.bf16.mxu0 0
      %3909 = vmatpush1.bf16.msra.mxu0 %v3861
      %3910 = vmatprep.mubr.bf16.mxu0 %v3235
      %3911 = vmatmul.mubr.bf16.gmra.mrb[0].mxu0 %v3234
      %v3912 = vpop.f32.mrb[0].mxu0
      %v3913 = vadd.f32 0.0, %v3912
      %v3914 = vpop.f32.mrb[0].mxu0
      %v3915 = vpop.f32.mrb[0].mxu0
      %v3916 = vadd.f32 0.0, %v3915
      %v3917 = vpop.f32.mrb[0].mxu0
      %3918 = vmatprep.mubr.bf16.mxu0 %v3301
      %3919 = vmatmul.mubr.bf16.gmra.mrb[0].mxu0 %v3300
      %v3920 = vpop.f32.mrb[0].mxu0
      %v3921 = vadd.f32 0.0, %v3920
      %v3922 = vpop.f32.mrb[0].mxu0
      %v3923 = vpop.f32.mrb[0].mxu0
      %v3924 = vadd.f32 0.0, %v3923
      %v3925 = vpop.f32.mrb[0].mxu0
      %3926 = vmatprep.mubr.bf16.mxu0 %v3367
      %3927 = vmatmul.mubr.bf16.gmra.mrb[0].mxu0 %v3366
      %v3928 = vpop.f32.mrb[0].mxu0
      %v3929 = vadd.f32 0.0, %v3928
      %v3930 = vpop.f32.mrb[0].mxu0
      %v3931 = vpop.f32.mrb[0].mxu0
      %v3932 = vadd.f32 0.0, %v3931
      %v3933 = vpop.f32.mrb[0].mxu0
      %3934 = vmatprep.mubr.bf16.mxu0 %v3433
      %3935 = vmatmul.mubr.bf16.gmra.mrb[0].mxu0 %v3432
      %v3936 = vpop.f32.mrb[0].mxu0
      %v3937 = vadd.f32 0.0, %v3936
      %v3938 = vpop.f32.mrb[0].mxu0
      %v3939 = vpop.f32.mrb[0].mxu0
      %v3940 = vadd.f32 0.0, %v3939
      %v3941 = vpop.f32.mrb[0].mxu0
      %3942 = vmatprep.mubr.bf16.mxu0 %v3499
      %3943 = vmatmul.mubr.bf16.gmra.mrb[0].mxu0 %v3498
      %v3944 = vpop.f32.mrb[0].mxu0
      %v3945 = vadd.f32 0.0, %v3944
      %v3946 = vpop.f32.mrb[0].mxu0
      %v3947 = vpop.f32.mrb[0].mxu0
      %v3948 = vadd.f32 0.0, %v3947
      %v3949 = vpop.f32.mrb[0].mxu0
      %3950 = vmatprep.mubr.bf16.mxu0 %v3565
      %3951 = vmatmul.mubr.bf16.gmra.mrb[0].mxu0 %v3564
      %v3952 = vpop.f32.mrb[0].mxu0
      %v3953 = vadd.f32 0.0, %v3952
      %v3954 = vpop.f32.mrb[0].mxu0
      %v3955 = vpop.f32.mrb[0].mxu0
      %v3956 = vadd.f32 0.0, %v3955
      %v3957 = vpop.f32.mrb[0].mxu0
      %3958 = vmatprep.mubr.bf16.mxu0 %v3631
      %3959 = vmatmul.mubr.bf16.gmra.mrb[0].mxu0 %v3630
      %v3960 = vpop.f32.mrb[0].mxu0
      %v3961 = vadd.f32 0.0, %v3960
      %v3962 = vpop.f32.mrb[0].mxu0
      %v3963 = vpop.f32.mrb[0].mxu0
      %v3964 = vadd.f32 0.0, %v3963
      %v3965 = vpop.f32.mrb[0].mxu0
      %3966 = vmatprep.mubr.bf16.mxu0 %v3697
      %3967 = vmatmul.mubr.bf16.gmra.mrb[0].mxu0 %v3696
      %v3968 = vpop.f32.mrb[0].mxu0
      %v3969 = vadd.f32 0.0, %v3968
      %v3970 = vpop.f32.mrb[0].mxu0
      %v3971 = vpop.f32.mrb[0].mxu0
      %v3972 = vadd.f32 0.0, %v3971
      %v3973 = vpop.f32.mrb[0].mxu0
      %3974 = vmatprep.mubr.bf16.mxu0 %v3763
      %3975 = vmatmul.mubr.bf16.gmra.mrb[0].mxu0 %v3762
      %v3976 = vpop.f32.mrb[0].mxu0
      %v3977 = vadd.f32 0.0, %v3976
      %v3978 = vpop.f32.mrb[0].mxu0
      %v3979 = vpop.f32.mrb[0].mxu0
      %v3980 = vadd.f32 0.0, %v3979
      %v3981 = vpop.f32.mrb[0].mxu0
      %3982 = vdwg.mxu0
      %v3983 = vcombine.low %v1903, %v1917
      %v3984 = vcombine.low %v1925, %v1927
      %v3985 = vcombine.low %v1910, %v1924
      %v3986 = vcombine.low %v1928, %v1953
      %v3988 = vunpack.c.l.s4 1966171168
      %v3989 = vunpack.c.0.s8 %v3988
      %v3990 = vlaneseq
      %v3991 = vshrl.u32 %v3990, 7
      %v3992 = vsub.s32 %v3989, %v3991
      %v3993 = vrot.slane %v3983, %v3992
      %v3995 = vunpack.c.l.s4 1966171168
      %v3996 = vunpack.c.0.s8 %v3995
      %v3997 = vlaneseq
      %v3998 = vshrl.u32 %v3997, 7
      %v3999 = vsub.s32 %v3996, %v3998
      %v4000 = vrot.slane %v3984, %v3999
      %v4002 = vunpack.c.l.s4 1966171168
      %v4003 = vunpack.c.0.s8 %v4002
      %v4004 = vlaneseq
      %v4005 = vshrl.u32 %v4004, 7
      %v4006 = vsub.s32 %v4003, %v4005
      %v4007 = vrot.slane %v3985, %v4006
      %v4009 = vunpack.c.l.s4 1966171168
      %v4010 = vunpack.c.0.s8 %v4009
      %v4011 = vlaneseq
      %v4012 = vshrl.u32 %v4011, 7
      %v4013 = vsub.s32 %v4010, %v4012
      %v4014 = vrot.slane %v3986, %v4013
      %v4015 = vcombine.low %v3993, %v4000
      %v4016 = vcombine.high %v3993, %v4000
      %v4017 = vcombine.low %v4007, %v4014
      %v4018 = vcombine.high %v4007, %v4014
      %v4020 = vunpack.c.l.s4 1966171168
      %v4021 = vunpack.c.0.s8 %v4020
      %v4022 = vlaneseq
      %v4023 = vshrl.u32 %v4022, 7
      %v4024 = vsub.s32 %v4021, %v4023
      %v4025 = vrot.slane %v4015, %v4024
      %v4027 = vunpack.c.l.s4 1966171168
      %v4028 = vunpack.c.0.s8 %v4027
      %v4029 = vlaneseq
      %v4030 = vshrl.u32 %v4029, 7
      %v4031 = vsub.s32 %v4028, %v4030
      %v4032 = vrot.slane %v4016, %v4031
      %v4034 = vunpack.c.l.s4 1966171168
      %v4035 = vunpack.c.0.s8 %v4034
      %v4036 = vlaneseq
      %v4037 = vshrl.u32 %v4036, 7
      %v4038 = vsub.s32 %v4035, %v4037
      %v4039 = vrot.slane %v4017, %v4038
      %v4041 = vunpack.c.l.s4 1966171168
      %v4042 = vunpack.c.0.s8 %v4041
      %v4043 = vlaneseq
      %v4044 = vshrl.u32 %v4043, 7
      %v4045 = vsub.s32 %v4042, %v4044
      %v4046 = vrot.slane %v4018, %v4045
      %v4047 = vcombine.low %v4025, %v4039
      %v4048 = vcombine.low %v4032, %v4046
      %v4049 = vcombine.low %v1967, %v1975
      %v4050 = vcombine.low %v1977, %v1960
      %v4051 = vcombine.low %v1976, %v1978
      %v4052 = vcombine.low %v2003, %v2017
      %v4054 = vunpack.c.l.s4 1966171168
      %v4055 = vunpack.c.0.s8 %v4054
      %v4056 = vlaneseq
      %v4057 = vshrl.u32 %v4056, 7
      %v4058 = vsub.s32 %v4055, %v4057
      %v4059 = vrot.slane %v4049, %v4058
      %v4061 = vunpack.c.l.s4 1966171168
      %v4062 = vunpack.c.0.s8 %v4061
      %v4063 = vlaneseq
      %v4064 = vshrl.u32 %v4063, 7
      %v4065 = vsub.s32 %v4062, %v4064
      %v4066 = vrot.slane %v4050, %v4065
      %v4068 = vunpack.c.l.s4 1966171168
      %v4069 = vunpack.c.0.s8 %v4068
      %v4070 = vlaneseq
      %v4071 = vshrl.u32 %v4070, 7
      %v4072 = vsub.s32 %v4069, %v4071
      %v4073 = vrot.slane %v4051, %v4072
      %v4075 = vunpack.c.l.s4 1966171168
      %v4076 = vunpack.c.0.s8 %v4075
      %v4077 = vlaneseq
      %v4078 = vshrl.u32 %v4077, 7
      %v4079 = vsub.s32 %v4076, %v4078
      %v4080 = vrot.slane %v4052, %v4079
      %v4081 = vcombine.low %v4059, %v4066
      %v4082 = vcombine.high %v4059, %v4066
      %v4083 = vcombine.low %v4073, %v4080
      %v4084 = vcombine.high %v4073, %v4080
      %v4086 = vunpack.c.l.s4 1966171168
      %v4087 = vunpack.c.0.s8 %v4086
      %v4088 = vlaneseq
      %v4089 = vshrl.u32 %v4088, 7
      %v4090 = vsub.s32 %v4087, %v4089
      %v4091 = vrot.slane %v4081, %v4090
      %v4093 = vunpack.c.l.s4 1966171168
      %v4094 = vunpack.c.0.s8 %v4093
      %v4095 = vlaneseq
      %v4096 = vshrl.u32 %v4095, 7
      %v4097 = vsub.s32 %v4094, %v4096
      %v4098 = vrot.slane %v4082, %v4097
      %v4100 = vunpack.c.l.s4 1966171168
      %v4101 = vunpack.c.0.s8 %v4100
      %v4102 = vlaneseq
      %v4103 = vshrl.u32 %v4102, 7
      %v4104 = vsub.s32 %v4101, %v4103
      %v4105 = vrot.slane %v4083, %v4104
      %v4107 = vunpack.c.l.s4 1966171168
      %v4108 = vunpack.c.0.s8 %v4107
      %v4109 = vlaneseq
      %v4110 = vshrl.u32 %v4109, 7
      %v4111 = vsub.s32 %v4108, %v4110
      %v4112 = vrot.slane %v4084, %v4111
      %v4113 = vcombine.low %v4091, %v4105
      %v4114 = vcombine.low %v4098, %v4112
      %v4115 = vcombine.low %v2025, %v2027
      %v4116 = vcombine.low %v2024, %v2026
      %v4117 = vcombine.low %v2028, %v2053
      %v4118 = vcombine.low %v2067, %v2075
      %v4120 = vunpack.c.l.s4 1966171168
      %v4121 = vunpack.c.0.s8 %v4120
      %v4122 = vlaneseq
      %v4123 = vshrl.u32 %v4122, 7
      %v4124 = vsub.s32 %v4121, %v4123
      %v4125 = vrot.slane %v4115, %v4124
      %v4127 = vunpack.c.l.s4 1966171168
      %v4128 = vunpack.c.0.s8 %v4127
      %v4129 = vlaneseq
      %v4130 = vshrl.u32 %v4129, 7
      %v4131 = vsub.s32 %v4128, %v4130
      %v4132 = vrot.slane %v4116, %v4131
      %v4134 = vunpack.c.l.s4 1966171168
      %v4135 = vunpack.c.0.s8 %v4134
      %v4136 = vlaneseq
      %v4137 = vshrl.u32 %v4136, 7
      %v4138 = vsub.s32 %v4135, %v4137
      %v4139 = vrot.slane %v4117, %v4138
      %v4141 = vunpack.c.l.s4 1966171168
      %v4142 = vunpack.c.0.s8 %v4141
      %v4143 = vlaneseq
      %v4144 = vshrl.u32 %v4143, 7
      %v4145 = vsub.s32 %v4142, %v4144
      %v4146 = vrot.slane %v4118, %v4145
      %v4147 = vcombine.low %v4125, %v4132
      %v4148 = vcombine.high %v4125, %v4132
      %v4149 = vcombine.low %v4139, %v4146
      %v4150 = vcombine.high %v4139, %v4146
      %v4152 = vunpack.c.l.s4 1966171168
      %v4153 = vunpack.c.0.s8 %v4152
      %v4154 = vlaneseq
      %v4155 = vshrl.u32 %v4154, 7
      %v4156 = vsub.s32 %v4153, %v4155
      %v4157 = vrot.slane %v4147, %v4156
      %v4159 = vunpack.c.l.s4 1966171168
      %v4160 = vunpack.c.0.s8 %v4159
      %v4161 = vlaneseq
      %v4162 = vshrl.u32 %v4161, 7
      %v4163 = vsub.s32 %v4160, %v4162
      %v4164 = vrot.slane %v4148, %v4163
      %v4166 = vunpack.c.l.s4 1966171168
      %v4167 = vunpack.c.0.s8 %v4166
      %v4168 = vlaneseq
      %v4169 = vshrl.u32 %v4168, 7
      %v4170 = vsub.s32 %v4167, %v4169
      %v4171 = vrot.slane %v4149, %v4170
      %v4173 = vunpack.c.l.s4 1966171168
      %v4174 = vunpack.c.0.s8 %v4173
      %v4175 = vlaneseq
      %v4176 = vshrl.u32 %v4175, 7
      %v4177 = vsub.s32 %v4174, %v4176
      %v4178 = vrot.slane %v4150, %v4177
      %v4179 = vcombine.low %v4157, %v4171
      %v4180 = vcombine.low %v4164, %v4178
      %v4181 = vcombine.low %v2060, %v2074
      %v4182 = vcombine.low %v2076, %v2078
      %v4183 = vcombine.low %v2103, %v2117
      %v4184 = vcombine.low %v2127, %v2110
      %v4186 = vunpack.c.l.s4 1966171168
      %v4187 = vunpack.c.0.s8 %v4186
      %v4188 = vlaneseq
      %v4189 = vshrl.u32 %v4188, 7
      %v4190 = vsub.s32 %v4187, %v4189
      %v4191 = vrot.slane %v4181, %v4190
      %v4193 = vunpack.c.l.s4 1966171168
      %v4194 = vunpack.c.0.s8 %v4193
      %v4195 = vlaneseq
      %v4196 = vshrl.u32 %v4195, 7
      %v4197 = vsub.s32 %v4194, %v4196
      %v4198 = vrot.slane %v4182, %v4197
      %v4200 = vunpack.c.l.s4 1966171168
      %v4201 = vunpack.c.0.s8 %v4200
      %v4202 = vlaneseq
      %v4203 = vshrl.u32 %v4202, 7
      %v4204 = vsub.s32 %v4201, %v4203
      %v4205 = vrot.slane %v4183, %v4204
      %v4207 = vunpack.c.l.s4 1966171168
      %v4208 = vunpack.c.0.s8 %v4207
      %v4209 = vlaneseq
      %v4210 = vshrl.u32 %v4209, 7
      %v4211 = vsub.s32 %v4208, %v4210
      %v4212 = vrot.slane %v4184, %v4211
      %v4213 = vcombine.low %v4191, %v4198
      %v4214 = vcombine.high %v4191, %v4198
      %v4215 = vcombine.low %v4205, %v4212
      %v4216 = vcombine.high %v4205, %v4212
      %v4218 = vunpack.c.l.s4 1966171168
      %v4219 = vunpack.c.0.s8 %v4218
      %v4220 = vlaneseq
      %v4221 = vshrl.u32 %v4220, 7
      %v4222 = vsub.s32 %v4219, %v4221
      %v4223 = vrot.slane %v4213, %v4222
      %v4225 = vunpack.c.l.s4 1966171168
      %v4226 = vunpack.c.0.s8 %v4225
      %v4227 = vlaneseq
      %v4228 = vshrl.u32 %v4227, 7
      %v4229 = vsub.s32 %v4226, %v4228
      %v4230 = vrot.slane %v4214, %v4229
      %v4232 = vunpack.c.l.s4 1966171168
      %v4233 = vunpack.c.0.s8 %v4232
      %v4234 = vlaneseq
      %v4235 = vshrl.u32 %v4234, 7
      %v4236 = vsub.s32 %v4233, %v4235
      %v4237 = vrot.slane %v4215, %v4236
      %v4239 = vunpack.c.l.s4 1966171168
      %v4240 = vunpack.c.0.s8 %v4239
      %v4241 = vlaneseq
      %v4242 = vshrl.u32 %v4241, 7
      %v4243 = vsub.s32 %v4240, %v4242
      %v4244 = vrot.slane %v4216, %v4243
      %v4245 = vcombine.low %v4223, %v4237
      %v4246 = vcombine.low %v4230, %v4244
      %v4247 = vcombine.low %v2124, %v2126
      %v4248 = vcombine.low %v2128, %v2153
      %v4249 = vcombine.low %v2175, %v2177
      %v4250 = vcombine.low %v2160, %v2174
      %v4252 = vunpack.c.l.s4 1966171168
      %v4253 = vunpack.c.0.s8 %v4252
      %v4254 = vlaneseq
      %v4255 = vshrl.u32 %v4254, 7
      %v4256 = vsub.s32 %v4253, %v4255
      %v4257 = vrot.slane %v4247, %v4256
      %v4259 = vunpack.c.l.s4 1966171168
      %v4260 = vunpack.c.0.s8 %v4259
      %v4261 = vlaneseq
      %v4262 = vshrl.u32 %v4261, 7
      %v4263 = vsub.s32 %v4260, %v4262
      %v4264 = vrot.slane %v4248, %v4263
      %v4266 = vunpack.c.l.s4 1966171168
      %v4267 = vunpack.c.0.s8 %v4266
      %v4268 = vlaneseq
      %v4269 = vshrl.u32 %v4268, 7
      %v4270 = vsub.s32 %v4267, %v4269
      %v4271 = vrot.slane %v4249, %v4270
      %v4273 = vunpack.c.l.s4 1966171168
      %v4274 = vunpack.c.0.s8 %v4273
      %v4275 = vlaneseq
      %v4276 = vshrl.u32 %v4275, 7
      %v4277 = vsub.s32 %v4274, %v4276
      %v4278 = vrot.slane %v4250, %v4277
      %v4279 = vcombine.low %v4257, %v4264
      %v4280 = vcombine.high %v4257, %v4264
      %v4281 = vcombine.low %v4271, %v4278
      %v4282 = vcombine.high %v4271, %v4278
      %v4284 = vunpack.c.l.s4 1966171168
      %v4285 = vunpack.c.0.s8 %v4284
      %v4286 = vlaneseq
      %v4287 = vshrl.u32 %v4286, 7
      %v4288 = vsub.s32 %v4285, %v4287
      %v4289 = vrot.slane %v4279, %v4288
      %v4291 = vunpack.c.l.s4 1966171168
      %v4292 = vunpack.c.0.s8 %v4291
      %v4293 = vlaneseq
      %v4294 = vshrl.u32 %v4293, 7
      %v4295 = vsub.s32 %v4292, %v4294
      %v4296 = vrot.slane %v4280, %v4295
      %v4298 = vunpack.c.l.s4 1966171168
      %v4299 = vunpack.c.0.s8 %v4298
      %v4300 = vlaneseq
      %v4301 = vshrl.u32 %v4300, 7
      %v4302 = vsub.s32 %v4299, %v4301
      %v4303 = vrot.slane %v4281, %v4302
      %v4305 = vunpack.c.l.s4 1966171168
      %v4306 = vunpack.c.0.s8 %v4305
      %v4307 = vlaneseq
      %v4308 = vshrl.u32 %v4307, 7
      %v4309 = vsub.s32 %v4306, %v4308
      %v4310 = vrot.slane %v4282, %v4309
      %v4311 = vcombine.low %v4289, %v4303
      %v4312 = vcombine.low %v4296, %v4310
      %v4313 = vcombine.low %v2176, %v2178
      %v4314 = vcombine.low %v2217, %v2225
      %v4315 = vcombine.low %v2227, %v2210
      %v4316 = vcombine.low %v2224, %v2226
      %v4318 = vunpack.c.l.s4 1966171168
      %v4319 = vunpack.c.0.s8 %v4318
      %v4320 = vlaneseq
      %v4321 = vshrl.u32 %v4320, 7
      %v4322 = vsub.s32 %v4319, %v4321
      %v4323 = vrot.slane %v4313, %v4322
      %v4325 = vunpack.c.l.s4 1966171168
      %v4326 = vunpack.c.0.s8 %v4325
      %v4327 = vlaneseq
      %v4328 = vshrl.u32 %v4327, 7
      %v4329 = vsub.s32 %v4326, %v4328
      %v4330 = vrot.slane %v4314, %v4329
      %v4332 = vunpack.c.l.s4 1966171168
      %v4333 = vunpack.c.0.s8 %v4332
      %v4334 = vlaneseq
      %v4335 = vshrl.u32 %v4334, 7
      %v4336 = vsub.s32 %v4333, %v4335
      %v4337 = vrot.slane %v4315, %v4336
      %v4339 = vunpack.c.l.s4 1966171168
      %v4340 = vunpack.c.0.s8 %v4339
      %v4341 = vlaneseq
      %v4342 = vshrl.u32 %v4341, 7
      %v4343 = vsub.s32 %v4340, %v4342
      %v4344 = vrot.slane %v4316, %v4343
      %v4345 = vcombine.low %v4323, %v4330
      %v4346 = vcombine.high %v4323, %v4330
      %v4347 = vcombine.low %v4337, %v4344
      %v4348 = vcombine.high %v4337, %v4344
      %v4350 = vunpack.c.l.s4 1966171168
      %v4351 = vunpack.c.0.s8 %v4350
      %v4352 = vlaneseq
      %v4353 = vshrl.u32 %v4352, 7
      %v4354 = vsub.s32 %v4351, %v4353
      %v4355 = vrot.slane %v4345, %v4354
      %v4357 = vunpack.c.l.s4 1966171168
      %v4358 = vunpack.c.0.s8 %v4357
      %v4359 = vlaneseq
      %v4360 = vshrl.u32 %v4359, 7
      %v4361 = vsub.s32 %v4358, %v4360
      %v4362 = vrot.slane %v4346, %v4361
      %v4364 = vunpack.c.l.s4 1966171168
      %v4365 = vunpack.c.0.s8 %v4364
      %v4366 = vlaneseq
      %v4367 = vshrl.u32 %v4366, 7
      %v4368 = vsub.s32 %v4365, %v4367
      %v4369 = vrot.slane %v4347, %v4368
      %v4371 = vunpack.c.l.s4 1966171168
      %v4372 = vunpack.c.0.s8 %v4371
      %v4373 = vlaneseq
      %v4374 = vshrl.u32 %v4373, 7
      %v4375 = vsub.s32 %v4372, %v4374
      %v4376 = vrot.slane %v4348, %v4375
      %v4377 = vcombine.low %v4355, %v4369
      %v4378 = vcombine.low %v4362, %v4376
      %v4379 = vcombine.low %v2253, %v2267
      %v4380 = vcombine.low %v2275, %v2277
      %v4381 = vcombine.low %v2260, %v2274
      %v4382 = vcombine.low %v2278, %v2303
      %v4384 = vunpack.c.l.s4 1966171168
      %v4385 = vunpack.c.0.s8 %v4384
      %v4386 = vlaneseq
      %v4387 = vshrl.u32 %v4386, 7
      %v4388 = vsub.s32 %v4385, %v4387
      %v4389 = vrot.slane %v4379, %v4388
      %v4391 = vunpack.c.l.s4 1966171168
      %v4392 = vunpack.c.0.s8 %v4391
      %v4393 = vlaneseq
      %v4394 = vshrl.u32 %v4393, 7
      %v4395 = vsub.s32 %v4392, %v4394
      %v4396 = vrot.slane %v4380, %v4395
      %v4398 = vunpack.c.l.s4 1966171168
      %v4399 = vunpack.c.0.s8 %v4398
      %v4400 = vlaneseq
      %v4401 = vshrl.u32 %v4400, 7
      %v4402 = vsub.s32 %v4399, %v4401
      %v4403 = vrot.slane %v4381, %v4402
      %v4405 = vunpack.c.l.s4 1966171168
      %v4406 = vunpack.c.0.s8 %v4405
      %v4407 = vlaneseq
      %v4408 = vshrl.u32 %v4407, 7
      %v4409 = vsub.s32 %v4406, %v4408
      %v4410 = vrot.slane %v4382, %v4409
      %v4411 = vcombine.low %v4389, %v4396
      %v4412 = vcombine.high %v4389, %v4396
      %v4413 = vcombine.low %v4403, %v4410
      %v4414 = vcombine.high %v4403, %v4410
      %v4416 = vunpack.c.l.s4 1966171168
      %v4417 = vunpack.c.0.s8 %v4416
      %v4418 = vlaneseq
      %v4419 = vshrl.u32 %v4418, 7
      %v4420 = vsub.s32 %v4417, %v4419
      %v4421 = vrot.slane %v4411, %v4420
      %v4423 = vunpack.c.l.s4 1966171168
      %v4424 = vunpack.c.0.s8 %v4423
      %v4425 = vlaneseq
      %v4426 = vshrl.u32 %v4425, 7
      %v4427 = vsub.s32 %v4424, %v4426
      %v4428 = vrot.slane %v4412, %v4427
      %v4430 = vunpack.c.l.s4 1966171168
      %v4431 = vunpack.c.0.s8 %v4430
      %v4432 = vlaneseq
      %v4433 = vshrl.u32 %v4432, 7
      %v4434 = vsub.s32 %v4431, %v4433
      %v4435 = vrot.slane %v4413, %v4434
      %v4437 = vunpack.c.l.s4 1966171168
      %v4438 = vunpack.c.0.s8 %v4437
      %v4439 = vlaneseq
      %v4440 = vshrl.u32 %v4439, 7
      %v4441 = vsub.s32 %v4438, %v4440
      %v4442 = vrot.slane %v4414, %v4441
      %v4443 = vcombine.low %v4421, %v4435
      %v4444 = vcombine.low %v4428, %v4442
      %v4445 = vcombine.low %v2317, %v2325
      %v4446 = vcombine.low %v2327, %v2310
      %v4447 = vcombine.low %v2326, %v2328
      %v4448 = vcombine.low %v2353, %v2367
      %v4450 = vunpack.c.l.s4 1966171168
      %v4451 = vunpack.c.0.s8 %v4450
      %v4452 = vlaneseq
      %v4453 = vshrl.u32 %v4452, 7
      %v4454 = vsub.s32 %v4451, %v4453
      %v4455 = vrot.slane %v4445, %v4454
      %v4457 = vunpack.c.l.s4 1966171168
      %v4458 = vunpack.c.0.s8 %v4457
      %v4459 = vlaneseq
      %v4460 = vshrl.u32 %v4459, 7
      %v4461 = vsub.s32 %v4458, %v4460
      %v4462 = vrot.slane %v4446, %v4461
      %v4464 = vunpack.c.l.s4 1966171168
      %v4465 = vunpack.c.0.s8 %v4464
      %v4466 = vlaneseq
      %v4467 = vshrl.u32 %v4466, 7
      %v4468 = vsub.s32 %v4465, %v4467
      %v4469 = vrot.slane %v4447, %v4468
      %v4471 = vunpack.c.l.s4 1966171168
      %v4472 = vunpack.c.0.s8 %v4471
      %v4473 = vlaneseq
      %v4474 = vshrl.u32 %v4473, 7
      %v4475 = vsub.s32 %v4472, %v4474
      %v4476 = vrot.slane %v4448, %v4475
      %v4477 = vcombine.low %v4455, %v4462
      %v4478 = vcombine.high %v4455, %v4462
      %v4479 = vcombine.low %v4469, %v4476
      %v4480 = vcombine.high %v4469, %v4476
      %v4482 = vunpack.c.l.s4 1966171168
      %v4483 = vunpack.c.0.s8 %v4482
      %v4484 = vlaneseq
      %v4485 = vshrl.u32 %v4484, 7
      %v4486 = vsub.s32 %v4483, %v4485
      %v4487 = vrot.slane %v4477, %v4486
      %v4489 = vunpack.c.l.s4 1966171168
      %v4490 = vunpack.c.0.s8 %v4489
      %v4491 = vlaneseq
      %v4492 = vshrl.u32 %v4491, 7
      %v4493 = vsub.s32 %v4490, %v4492
      %v4494 = vrot.slane %v4478, %v4493
      %v4496 = vunpack.c.l.s4 1966171168
      %v4497 = vunpack.c.0.s8 %v4496
      %v4498 = vlaneseq
      %v4499 = vshrl.u32 %v4498, 7
      %v4500 = vsub.s32 %v4497, %v4499
      %v4501 = vrot.slane %v4479, %v4500
      %v4503 = vunpack.c.l.s4 1966171168
      %v4504 = vunpack.c.0.s8 %v4503
      %v4505 = vlaneseq
      %v4506 = vshrl.u32 %v4505, 7
      %v4507 = vsub.s32 %v4504, %v4506
      %v4508 = vrot.slane %v4480, %v4507
      %v4509 = vcombine.low %v4487, %v4501
      %v4510 = vcombine.low %v4494, %v4508
      %v4511 = vcombine.low %v2375, %v2377
      %v4512 = vcombine.low %v2374, %v2376
      %v4513 = vcombine.low %v2378, %v2403
      %v4514 = vcombine.low %v2417, %v2425
      %v4516 = vunpack.c.l.s4 1966171168
      %v4517 = vunpack.c.0.s8 %v4516
      %v4518 = vlaneseq
      %v4519 = vshrl.u32 %v4518, 7
      %v4520 = vsub.s32 %v4517, %v4519
      %v4521 = vrot.slane %v4511, %v4520
      %v4523 = vunpack.c.l.s4 1966171168
      %v4524 = vunpack.c.0.s8 %v4523
      %v4525 = vlaneseq
      %v4526 = vshrl.u32 %v4525, 7
      %v4527 = vsub.s32 %v4524, %v4526
      %v4528 = vrot.slane %v4512, %v4527
      %v4530 = vunpack.c.l.s4 1966171168
      %v4531 = vunpack.c.0.s8 %v4530
      %v4532 = vlaneseq
      %v4533 = vshrl.u32 %v4532, 7
      %v4534 = vsub.s32 %v4531, %v4533
      %v4535 = vrot.slane %v4513, %v4534
      %v4537 = vunpack.c.l.s4 1966171168
      %v4538 = vunpack.c.0.s8 %v4537
      %v4539 = vlaneseq
      %v4540 = vshrl.u32 %v4539, 7
      %v4541 = vsub.s32 %v4538, %v4540
      %v4542 = vrot.slane %v4514, %v4541
      %v4543 = vcombine.low %v4521, %v4528
      %v4544 = vcombine.high %v4521, %v4528
      %v4545 = vcombine.low %v4535, %v4542
      %v4546 = vcombine.high %v4535, %v4542
      %v4548 = vunpack.c.l.s4 1966171168
      %v4549 = vunpack.c.0.s8 %v4548
      %v4550 = vlaneseq
      %v4551 = vshrl.u32 %v4550, 7
      %v4552 = vsub.s32 %v4549, %v4551
      %v4553 = vrot.slane %v4543, %v4552
      %v4555 = vunpack.c.l.s4 1966171168
      %v4556 = vunpack.c.0.s8 %v4555
      %v4557 = vlaneseq
      %v4558 = vshrl.u32 %v4557, 7
      %v4559 = vsub.s32 %v4556, %v4558
      %v4560 = vrot.slane %v4544, %v4559
      %v4562 = vunpack.c.l.s4 1966171168
      %v4563 = vunpack.c.0.s8 %v4562
      %v4564 = vlaneseq
      %v4565 = vshrl.u32 %v4564, 7
      %v4566 = vsub.s32 %v4563, %v4565
      %v4567 = vrot.slane %v4545, %v4566
      %v4569 = vunpack.c.l.s4 1966171168
      %v4570 = vunpack.c.0.s8 %v4569
      %v4571 = vlaneseq
      %v4572 = vshrl.u32 %v4571, 7
      %v4573 = vsub.s32 %v4570, %v4572
      %v4574 = vrot.slane %v4546, %v4573
      %v4575 = vcombine.low %v4553, %v4567
      %v4576 = vcombine.low %v4560, %v4574
      %v4627 = vunpack.c.l.b16 %v2502
      %v4628 = vunpack.c.l.b16 %v2503
      %v4629 = vunpack.c.l.b16 %v2504
      %v4630 = vunpack.c.l.b16 %v2505
      %v4631 = vunpack.c.l.b16 %v2506
      %v4632 = vunpack.c.l.b16 %v2507
      %v4633 = vunpack.c.l.b16 %v2508
      %v4634 = vunpack.c.l.b16 %v2509
      %v4635 = vunpack.c.l.b16 %v2510
      %v4636 = vunpack.c.l.b16 %v2511
      %v4637 = vunpack.c.l.b16 %v2512
      %v4638 = vunpack.c.l.b16 %v2513
      %v4639 = vunpack.c.l.b16 %v2514
      %v4640 = vunpack.c.l.b16 %v2515
      %v4641 = vunpack.c.l.b16 %v2516
      %v4642 = vunpack.c.l.b16 %v2517
      %v4643 = vunpack.c.l.b16 %v2518
      %v4644 = vunpack.c.l.b16 %v2519
      %v4645 = vunpack.c.l.b16 %v2520
      %v4646 = vunpack.c.l.b16 %v2521
      %v4647 = vunpack.c.l.b16 %v2522
      %v4648 = vunpack.c.l.b16 %v2523
      %v4649 = vunpack.c.l.b16 %v2524
      %v4650 = vunpack.c.l.b16 %v2525
      %v4651 = vunpack.c.l.b16 %v2526
      %v4652 = vunpack.c.l.b16 %v2527
      %v4653 = vunpack.c.l.b16 %v2528
      %v4654 = vunpack.c.l.b16 %v2529
      %v4655 = vunpack.c.l.b16 %v2530
      %v4656 = vunpack.c.l.b16 %v2531
      %v4657 = vunpack.c.l.b16 %v2532
      %v4658 = vunpack.c.l.b16 %v2533
      %v4659 = vpack.c.b16 %v4628, %v4627
      %v4660 = vpack.c.b16 %v4630, %v4629
      %v4661 = vpack.c.b16 %v4632, %v4631
      %v4662 = vpack.c.b16 %v4634, %v4633
      %v4663 = vpack.c.b16 %v4636, %v4635
      %v4664 = vpack.c.b16 %v4638, %v4637
      %v4665 = vpack.c.b16 %v4640, %v4639
      %v4666 = vpack.c.b16 %v4642, %v4641
      %v4667 = vpack.c.b16 %v4644, %v4643
      %v4668 = vpack.c.b16 %v4646, %v4645
      %v4669 = vpack.c.b16 %v4648, %v4647
      %v4670 = vpack.c.b16 %v4650, %v4649
      %v4671 = vpack.c.b16 %v4652, %v4651
      %v4672 = vpack.c.b16 %v4654, %v4653
      %v4673 = vpack.c.b16 %v4656, %v4655
      %v4674 = vpack.c.b16 %v4658, %v4657
      %4691 = vmatprep.subr.bf16.mxu0 0
      %4692 = vmatpush1.bf16.msra.mxu0 %v4659
      %4693 = vmatprep.subr.bf16.mxu0 0
      %4694 = vmatpush1.bf16.msra.mxu0 %v4660
      %4695 = vmatprep.subr.bf16.mxu0 0
      %4696 = vmatpush1.bf16.msra.mxu0 %v4661
      %4697 = vmatprep.subr.bf16.mxu0 0
      %4698 = vmatpush1.bf16.msra.mxu0 %v4662
      %4699 = vmatprep.subr.bf16.mxu0 0
      %4700 = vmatpush1.bf16.msra.mxu0 %v4663
      %4701 = vmatprep.subr.bf16.mxu0 0
      %4702 = vmatpush1.bf16.msra.mxu0 %v4664
      %4703 = vmatprep.subr.bf16.mxu0 0
      %4704 = vmatpush1.bf16.msra.mxu0 %v4665
      %4705 = vmatprep.subr.bf16.mxu0 0
      %4706 = vmatpush1.bf16.msra.mxu0 %v4666
      %4707 = vmatprep.subr.bf16.mxu0 0
      %4708 = vmatpush1.bf16.msra.mxu0 %v4667
      %4709 = vmatprep.subr.bf16.mxu0 0
      %4710 = vmatpush1.bf16.msra.mxu0 %v4668
      %4711 = vmatprep.subr.bf16.mxu0 0
      %4712 = vmatpush1.bf16.msra.mxu0 %v4669
      %4713 = vmatprep.subr.bf16.mxu0 0
      %4714 = vmatpush1.bf16.msra.mxu0 %v4670
      %4715 = vmatprep.subr.bf16.mxu0 0
      %4716 = vmatpush1.bf16.msra.mxu0 %v4671
      %4717 = vmatprep.subr.bf16.mxu0 0
      %4718 = vmatpush1.bf16.msra.mxu0 %v4672
      %4719 = vmatprep.subr.bf16.mxu0 0
      %4720 = vmatpush1.bf16.msra.mxu0 %v4673
      %4721 = vmatprep.subr.bf16.mxu0 0
      %4722 = vmatpush1.bf16.msra.mxu0 %v4674
      %4723 = vmatprep.mubr.bf16.mxu0 %v4048
      %4724 = vmatmul.mubr.bf16.gmra.mrb[0].mxu0 %v4047
      %v4725 = vpop.f32.mrb[0].mxu0
      %v4726 = vadd.f32 %v3913, %v4725
      %v4727 = vpop.f32.mrb[0].mxu0
      %v4728 = vpop.f32.mrb[0].mxu0
      %v4729 = vadd.f32 %v3916, %v4728
      %v4730 = vpop.f32.mrb[0].mxu0
      %4731 = vmatprep.mubr.bf16.mxu0 %v4114
      %4732 = vmatmul.mubr.bf16.gmra.mrb[0].mxu0 %v4113
      %v4733 = vpop.f32.mrb[0].mxu0
      %v4734 = vadd.f32 %v3921, %v4733
      %v4735 = vpop.f32.mrb[0].mxu0
      %v4736 = vpop.f32.mrb[0].mxu0
      %v4737 = vadd.f32 %v3924, %v4736
      %v4738 = vpop.f32.mrb[0].mxu0
      %4739 = vmatprep.mubr.bf16.mxu0 %v4180
      %4740 = vmatmul.mubr.bf16.gmra.mrb[0].mxu0 %v4179
      %v4741 = vpop.f32.mrb[0].mxu0
      %v4742 = vadd.f32 %v3929, %v4741
      %v4743 = vpop.f32.mrb[0].mxu0
      %v4744 = vpop.f32.mrb[0].mxu0
      %v4745 = vadd.f32 %v3932, %v4744
      %v4746 = vpop.f32.mrb[0].mxu0
      %4747 = vmatprep.mubr.bf16.mxu0 %v4246
      %4748 = vmatmul.mubr.bf16.gmra.mrb[0].mxu0 %v4245
      %v4749 = vpop.f32.mrb[0].mxu0
      %v4750 = vadd.f32 %v3937, %v4749
      %v4751 = vpop.f32.mrb[0].mxu0
      %v4752 = vpop.f32.mrb[0].mxu0
      %v4753 = vadd.f32 %v3940, %v4752
      %v4754 = vpop.f32.mrb[0].mxu0
      %4755 = vmatprep.mubr.bf16.mxu0 %v4312
      %4756 = vmatmul.mubr.bf16.gmra.mrb[0].mxu0 %v4311
      %v4757 = vpop.f32.mrb[0].mxu0
      %v4758 = vadd.f32 %v3945, %v4757
      %v4759 = vpop.f32.mrb[0].mxu0
      %v4760 = vpop.f32.mrb[0].mxu0
      %v4761 = vadd.f32 %v3948, %v4760
      %v4762 = vpop.f32.mrb[0].mxu0
      %4763 = vmatprep.mubr.bf16.mxu0 %v4378
      %4764 = vmatmul.mubr.bf16.gmra.mrb[0].mxu0 %v4377
      %v4765 = vpop.f32.mrb[0].mxu0
      %v4766 = vadd.f32 %v3953, %v4765
      %v4767 = vpop.f32.mrb[0].mxu0
      %v4768 = vpop.f32.mrb[0].mxu0
      %v4769 = vadd.f32 %v3956, %v4768
      %v4770 = vpop.f32.mrb[0].mxu0
      %4771 = vmatprep.mubr.bf16.mxu0 %v4444
      %4772 = vmatmul.mubr.bf16.gmra.mrb[0].mxu0 %v4443
      %v4773 = vpop.f32.mrb[0].mxu0
      %v4774 = vadd.f32 %v3961, %v4773
      %v4775 = vpop.f32.mrb[0].mxu0
      %v4776 = vpop.f32.mrb[0].mxu0
      %v4777 = vadd.f32 %v3964, %v4776
      %v4778 = vpop.f32.mrb[0].mxu0
      %4779 = vmatprep.mubr.bf16.mxu0 %v4510
      %4780 = vmatmul.mubr.bf16.gmra.mrb[0].mxu0 %v4509
      %v4781 = vpop.f32.mrb[0].mxu0
      %v4782 = vadd.f32 %v3969, %v4781
      %v4783 = vpop.f32.mrb[0].mxu0
      %v4784 = vpop.f32.mrb[0].mxu0
      %v4785 = vadd.f32 %v3972, %v4784
      %v4786 = vpop.f32.mrb[0].mxu0
      %4787 = vmatprep.mubr.bf16.mxu0 %v4576
      %4788 = vmatmul.mubr.bf16.gmra.mrb[0].mxu0 %v4575
      %v4789 = vpop.f32.mrb[0].mxu0
      %v4790 = vadd.f32 %v3977, %v4789
      %v4791 = vpop.f32.mrb[0].mxu0
      %v4792 = vpop.f32.mrb[0].mxu0
      %v4793 = vadd.f32 %v3980, %v4792
      %v4794 = vpop.f32.mrb[0].mxu0
      %4795 = vdwg.mxu0
      %s4796 = scalar_lea.vmem %s2, 256
      %v4797 = vld [vmem:[%s4796] sm:$0xf]
      %v4798 = vld [vmem:[%s4796 + $0x4] sm:$0xf]
      %v4799 = vld [vmem:[%s4796 + $0x8] sm:$0xf]
      %v4800 = vld [vmem:[%s4796 + $0xc] sm:$0xf]
      %v4801 = vld [vmem:[%s4796 + $0x10] sm:$0xf]
      %v4802 = vld [vmem:[%s4796 + $0x14] sm:$0xf]
      %v4803 = vld [vmem:[%s4796 + $0x18] sm:$0xf]
      %v4804 = vld [vmem:[%s4796 + $0x1c] sm:$0xf]
      %v4805 = vld [vmem:[%s4796 + $0x20] sm:$0xf]
      %v4806 = vld [vmem:[%s4796 + $0x24] sm:$0xf]
      %v4807 = vld [vmem:[%s4796 + $0x28] sm:$0xf]
      %v4808 = vld [vmem:[%s4796 + $0x2c] sm:$0xf]
      %v4809 = vld [vmem:[%s4796 + $0x30] sm:$0xf]
      %v4810 = vld [vmem:[%s4796 + $0x34] sm:$0xf]
      %v4811 = vld [vmem:[%s4796 + $0x38] sm:$0xf]
      %v4812 = vld [vmem:[%s4796 + $0x3c] sm:$0xf]
      %v4813 = vld [vmem:[%s4796 + $0x40] sm:$0xf]
      %v4814 = vld [vmem:[%s4796 + $0x44] sm:$0xf]
      %v4815 = vld [vmem:[%s4796 + $0x48] sm:$0xf]
      %v4816 = vld [vmem:[%s4796 + $0x4c] sm:$0xf]
      %v4817 = vld [vmem:[%s4796 + $0x50] sm:$0xf]
      %v4818 = vld [vmem:[%s4796 + $0x54] sm:$0xf]
      %v4819 = vld [vmem:[%s4796 + $0x58] sm:$0xf]
      %v4820 = vld [vmem:[%s4796 + $0x5c] sm:$0xf]
      %v4821 = vld [vmem:[%s4796 + $0x60] sm:$0xf]
      %v4822 = vld [vmem:[%s4796 + $0x64] sm:$0xf]
      %v4823 = vld [vmem:[%s4796 + $0x68] sm:$0xf]
      %v4824 = vld [vmem:[%s4796 + $0x6c] sm:$0xf]
      %v4825 = vld [vmem:[%s4796 + $0x70] sm:$0xf]
      %v4826 = vld [vmem:[%s4796 + $0x74] sm:$0xf]
      %v4827 = vld [vmem:[%s4796 + $0x78] sm:$0xf]
      %v4828 = vld [vmem:[%s4796 + $0x7c] sm:$0xf]
      %v4829 = vcombine.low %v1917, %v1925
      %v4830 = vcombine.low %v1927, %v1910
      %v4831 = vcombine.low %v1924, %v1926
      %v4832 = vcombine.low %v1953, %v1967
      %v4834 = vunpack.c.l.s4 1966171168
      %v4835 = vunpack.c.0.s8 %v4834
      %v4836 = vlaneseq
      %v4837 = vshrl.u32 %v4836, 7
      %v4838 = vsub.s32 %v4835, %v4837
      %v4839 = vrot.slane %v4829, %v4838
      %v4841 = vunpack.c.l.s4 1966171168
      %v4842 = vunpack.c.0.s8 %v4841
      %v4843 = vlaneseq
      %v4844 = vshrl.u32 %v4843, 7
      %v4845 = vsub.s32 %v4842, %v4844
      %v4846 = vrot.slane %v4830, %v4845
      %v4848 = vunpack.c.l.s4 1966171168
      %v4849 = vunpack.c.0.s8 %v4848
      %v4850 = vlaneseq
      %v4851 = vshrl.u32 %v4850, 7
      %v4852 = vsub.s32 %v4849, %v4851
      %v4853 = vrot.slane %v4831, %v4852
      %v4855 = vunpack.c.l.s4 1966171168
      %v4856 = vunpack.c.0.s8 %v4855
      %v4857 = vlaneseq
      %v4858 = vshrl.u32 %v4857, 7
      %v4859 = vsub.s32 %v4856, %v4858
      %v4860 = vrot.slane %v4832, %v4859
      %v4861 = vcombine.low %v4839, %v4846
      %v4862 = vcombine.high %v4839, %v4846
      %v4863 = vcombine.low %v4853, %v4860
      %v4864 = vcombine.high %v4853, %v4860
      %v4866 = vunpack.c.l.s4 1966171168
      %v4867 = vunpack.c.0.s8 %v4866
      %v4868 = vlaneseq
      %v4869 = vshrl.u32 %v4868, 7
      %v4870 = vsub.s32 %v4867, %v4869
      %v4871 = vrot.slane %v4861, %v4870
      %v4873 = vunpack.c.l.s4 1966171168
      %v4874 = vunpack.c.0.s8 %v4873
      %v4875 = vlaneseq
      %v4876 = vshrl.u32 %v4875, 7
      %v4877 = vsub.s32 %v4874, %v4876
      %v4878 = vrot.slane %v4862, %v4877
      %v4880 = vunpack.c.l.s4 1966171168
      %v4881 = vunpack.c.0.s8 %v4880
      %v4882 = vlaneseq
      %v4883 = vshrl.u32 %v4882, 7
      %v4884 = vsub.s32 %v4881, %v4883
      %v4885 = vrot.slane %v4863, %v4884
      %v4887 = vunpack.c.l.s4 1966171168
      %v4888 = vunpack.c.0.s8 %v4887
      %v4889 = vlaneseq
      %v4890 = vshrl.u32 %v4889, 7
      %v4891 = vsub.s32 %v4888, %v4890
      %v4892 = vrot.slane %v4864, %v4891
      %v4893 = vcombine.low %v4871, %v4885
      %v4894 = vcombine.low %v4878, %v4892
      %v4895 = vcombine.low %v1975, %v1977
      %v4896 = vcombine.low %v1960, %v1974
      %v4897 = vcombine.low %v1978, %v2003
      %v4898 = vcombine.low %v2017, %v2025
      %v4900 = vunpack.c.l.s4 1966171168
      %v4901 = vunpack.c.0.s8 %v4900
      %v4902 = vlaneseq
      %v4903 = vshrl.u32 %v4902, 7
      %v4904 = vsub.s32 %v4901, %v4903
      %v4905 = vrot.slane %v4895, %v4904
      %v4907 = vunpack.c.l.s4 1966171168
      %v4908 = vunpack.c.0.s8 %v4907
      %v4909 = vlaneseq
      %v4910 = vshrl.u32 %v4909, 7
      %v4911 = vsub.s32 %v4908, %v4910
      %v4912 = vrot.slane %v4896, %v4911
      %v4914 = vunpack.c.l.s4 1966171168
      %v4915 = vunpack.c.0.s8 %v4914
      %v4916 = vlaneseq
      %v4917 = vshrl.u32 %v4916, 7
      %v4918 = vsub.s32 %v4915, %v4917
      %v4919 = vrot.slane %v4897, %v4918
      %v4921 = vunpack.c.l.s4 1966171168
      %v4922 = vunpack.c.0.s8 %v4921
      %v4923 = vlaneseq
      %v4924 = vshrl.u32 %v4923, 7
      %v4925 = vsub.s32 %v4922, %v4924
      %v4926 = vrot.slane %v4898, %v4925
      %v4927 = vcombine.low %v4905, %v4912
      %v4928 = vcombine.high %v4905, %v4912
      %v4929 = vcombine.low %v4919, %v4926
      %v4930 = vcombine.high %v4919, %v4926
      %v4932 = vunpack.c.l.s4 1966171168
      %v4933 = vunpack.c.0.s8 %v4932
      %v4934 = vlaneseq
      %v4935 = vshrl.u32 %v4934, 7
      %v4936 = vsub.s32 %v4933, %v4935
      %v4937 = vrot.slane %v4927, %v4936
      %v4939 = vunpack.c.l.s4 1966171168
      %v4940 = vunpack.c.0.s8 %v4939
      %v4941 = vlaneseq
      %v4942 = vshrl.u32 %v4941, 7
      %v4943 = vsub.s32 %v4940, %v4942
      %v4944 = vrot.slane %v4928, %v4943
      %v4946 = vunpack.c.l.s4 1966171168
      %v4947 = vunpack.c.0.s8 %v4946
      %v4948 = vlaneseq
      %v4949 = vshrl.u32 %v4948, 7
      %v4950 = vsub.s32 %v4947, %v4949
      %v4951 = vrot.slane %v4929, %v4950
      %v4953 = vunpack.c.l.s4 1966171168
      %v4954 = vunpack.c.0.s8 %v4953
      %v4955 = vlaneseq
      %v4956 = vshrl.u32 %v4955, 7
      %v4957 = vsub.s32 %v4954, %v4956
      %v4958 = vrot.slane %v4930, %v4957
      %v4959 = vcombine.low %v4937, %v4951
      %v4960 = vcombine.low %v4944, %v4958
      %v4961 = vcombine.low %v2027, %v2010
      %v4962 = vcombine.low %v2026, %v2028
      %v4963 = vcombine.low %v2053, %v2067
      %v4964 = vcombine.low %v2075, %v2077
      %v4966 = vunpack.c.l.s4 1966171168
      %v4967 = vunpack.c.0.s8 %v4966
      %v4968 = vlaneseq
      %v4969 = vshrl.u32 %v4968, 7
      %v4970 = vsub.s32 %v4967, %v4969
      %v4971 = vrot.slane %v4961, %v4970
      %v4973 = vunpack.c.l.s4 1966171168
      %v4974 = vunpack.c.0.s8 %v4973
      %v4975 = vlaneseq
      %v4976 = vshrl.u32 %v4975, 7
      %v4977 = vsub.s32 %v4974, %v4976
      %v4978 = vrot.slane %v4962, %v4977
      %v4980 = vunpack.c.l.s4 1966171168
      %v4981 = vunpack.c.0.s8 %v4980
      %v4982 = vlaneseq
      %v4983 = vshrl.u32 %v4982, 7
      %v4984 = vsub.s32 %v4981, %v4983
      %v4985 = vrot.slane %v4963, %v4984
      %v4987 = vunpack.c.l.s4 1966171168
      %v4988 = vunpack.c.0.s8 %v4987
      %v4989 = vlaneseq
      %v4990 = vshrl.u32 %v4989, 7
      %v4991 = vsub.s32 %v4988, %v4990
      %v4992 = vrot.slane %v4964, %v4991
      %v4993 = vcombine.low %v4971, %v4978
      %v4994 = vcombine.high %v4971, %v4978
      %v4995 = vcombine.low %v4985, %v4992
      %v4996 = vcombine.high %v4985, %v4992
      %v4998 = vunpack.c.l.s4 1966171168
      %v4999 = vunpack.c.0.s8 %v4998
      %v5000 = vlaneseq
      %v5001 = vshrl.u32 %v5000, 7
      %v5002 = vsub.s32 %v4999, %v5001
      %v5003 = vrot.slane %v4993, %v5002
      %v5005 = vunpack.c.l.s4 1966171168
      %v5006 = vunpack.c.0.s8 %v5005
      %v5007 = vlaneseq
      %v5008 = vshrl.u32 %v5007, 7
      %v5009 = vsub.s32 %v5006, %v5008
      %v5010 = vrot.slane %v4994, %v5009
      %v5012 = vunpack.c.l.s4 1966171168
      %v5013 = vunpack.c.0.s8 %v5012
      %v5014 = vlaneseq
      %v5015 = vshrl.u32 %v5014, 7
      %v5016 = vsub.s32 %v5013, %v5015
      %v5017 = vrot.slane %v4995, %v5016
      %v5019 = vunpack.c.l.s4 1966171168
      %v5020 = vunpack.c.0.s8 %v5019
      %v5021 = vlaneseq
      %v5022 = vshrl.u32 %v5021, 7
      %v5023 = vsub.s32 %v5020, %v5022
      %v5024 = vrot.slane %v4996, %v5023
      %v5025 = vcombine.low %v5003, %v5017
      %v5026 = vcombine.low %v5010, %v5024
      %v5027 = vcombine.low %v2074, %v2076
      %v5028 = vcombine.low %v2078, %v2103
      %v5029 = vcombine.low %v2117, %v2125
      %v5030 = vcombine.low %v2110, %v2124
      %v5032 = vunpack.c.l.s4 1966171168
      %v5033 = vunpack.c.0.s8 %v5032
      %v5034 = vlaneseq
      %v5035 = vshrl.u32 %v5034, 7
      %v5036 = vsub.s32 %v5033, %v5035
      %v5037 = vrot.slane %v5027, %v5036
      %v5039 = vunpack.c.l.s4 1966171168
      %v5040 = vunpack.c.0.s8 %v5039
      %v5041 = vlaneseq
      %v5042 = vshrl.u32 %v5041, 7
      %v5043 = vsub.s32 %v5040, %v5042
      %v5044 = vrot.slane %v5028, %v5043
      %v5046 = vunpack.c.l.s4 1966171168
      %v5047 = vunpack.c.0.s8 %v5046
      %v5048 = vlaneseq
      %v5049 = vshrl.u32 %v5048, 7
      %v5050 = vsub.s32 %v5047, %v5049
      %v5051 = vrot.slane %v5029, %v5050
      %v5053 = vunpack.c.l.s4 1966171168
      %v5054 = vunpack.c.0.s8 %v5053
      %v5055 = vlaneseq
      %v5056 = vshrl.u32 %v5055, 7
      %v5057 = vsub.s32 %v5054, %v5056
      %v5058 = vrot.slane %v5030, %v5057
      %v5059 = vcombine.low %v5037, %v5044
      %v5060 = vcombine.high %v5037, %v5044
      %v5061 = vcombine.low %v5051, %v5058
      %v5062 = vcombine.high %v5051, %v5058
      %v5064 = vunpack.c.l.s4 1966171168
      %v5065 = vunpack.c.0.s8 %v5064
      %v5066 = vlaneseq
      %v5067 = vshrl.u32 %v5066, 7
      %v5068 = vsub.s32 %v5065, %v5067
      %v5069 = vrot.slane %v5059, %v5068
      %v5071 = vunpack.c.l.s4 1966171168
      %v5072 = vunpack.c.0.s8 %v5071
      %v5073 = vlaneseq
      %v5074 = vshrl.u32 %v5073, 7
      %v5075 = vsub.s32 %v5072, %v5074
      %v5076 = vrot.slane %v5060, %v5075
      %v5078 = vunpack.c.l.s4 1966171168
      %v5079 = vunpack.c.0.s8 %v5078
      %v5080 = vlaneseq
      %v5081 = vshrl.u32 %v5080, 7
      %v5082 = vsub.s32 %v5079, %v5081
      %v5083 = vrot.slane %v5061, %v5082
      %v5085 = vunpack.c.l.s4 1966171168
      %v5086 = vunpack.c.0.s8 %v5085
      %v5087 = vlaneseq
      %v5088 = vshrl.u32 %v5087, 7
      %v5089 = vsub.s32 %v5086, %v5088
      %v5090 = vrot.slane %v5062, %v5089
      %v5091 = vcombine.low %v5069, %v5083
      %v5092 = vcombine.low %v5076, %v5090
      %v5093 = vcombine.low %v2126, %v2128
      %v5094 = vcombine.low %v2153, %v2167
      %v5095 = vcombine.low %v2177, %v2160
      %v5096 = vcombine.low %v2174, %v2176
      %v5098 = vunpack.c.l.s4 1966171168
      %v5099 = vunpack.c.0.s8 %v5098
      %v5100 = vlaneseq
      %v5101 = vshrl.u32 %v5100, 7
      %v5102 = vsub.s32 %v5099, %v5101
      %v5103 = vrot.slane %v5093, %v5102
      %v5105 = vunpack.c.l.s4 1966171168
      %v5106 = vunpack.c.0.s8 %v5105
      %v5107 = vlaneseq
      %v5108 = vshrl.u32 %v5107, 7
      %v5109 = vsub.s32 %v5106, %v5108
      %v5110 = vrot.slane %v5094, %v5109
      %v5112 = vunpack.c.l.s4 1966171168
      %v5113 = vunpack.c.0.s8 %v5112
      %v5114 = vlaneseq
      %v5115 = vshrl.u32 %v5114, 7
      %v5116 = vsub.s32 %v5113, %v5115
      %v5117 = vrot.slane %v5095, %v5116
      %v5119 = vunpack.c.l.s4 1966171168
      %v5120 = vunpack.c.0.s8 %v5119
      %v5121 = vlaneseq
      %v5122 = vshrl.u32 %v5121, 7
      %v5123 = vsub.s32 %v5120, %v5122
      %v5124 = vrot.slane %v5096, %v5123
      %v5125 = vcombine.low %v5103, %v5110
      %v5126 = vcombine.high %v5103, %v5110
      %v5127 = vcombine.low %v5117, %v5124
      %v5128 = vcombine.high %v5117, %v5124
      %v5130 = vunpack.c.l.s4 1966171168
      %v5131 = vunpack.c.0.s8 %v5130
      %v5132 = vlaneseq
      %v5133 = vshrl.u32 %v5132, 7
      %v5134 = vsub.s32 %v5131, %v5133
      %v5135 = vrot.slane %v5125, %v5134
      %v5137 = vunpack.c.l.s4 1966171168
      %v5138 = vunpack.c.0.s8 %v5137
      %v5139 = vlaneseq
      %v5140 = vshrl.u32 %v5139, 7
      %v5141 = vsub.s32 %v5138, %v5140
      %v5142 = vrot.slane %v5126, %v5141
      %v5144 = vunpack.c.l.s4 1966171168
      %v5145 = vunpack.c.0.s8 %v5144
      %v5146 = vlaneseq
      %v5147 = vshrl.u32 %v5146, 7
      %v5148 = vsub.s32 %v5145, %v5147
      %v5149 = vrot.slane %v5127, %v5148
      %v5151 = vunpack.c.l.s4 1966171168
      %v5152 = vunpack.c.0.s8 %v5151
      %v5153 = vlaneseq
      %v5154 = vshrl.u32 %v5153, 7
      %v5155 = vsub.s32 %v5152, %v5154
      %v5156 = vrot.slane %v5128, %v5155
      %v5157 = vcombine.low %v5135, %v5149
      %v5158 = vcombine.low %v5142, %v5156
      %v5159 = vcombine.low %v2178, %v2203
      %v5160 = vcombine.low %v2225, %v2227
      %v5161 = vcombine.low %v2210, %v2224
      %v5162 = vcombine.low %v2226, %v2228
      %v5164 = vunpack.c.l.s4 1966171168
      %v5165 = vunpack.c.0.s8 %v5164
      %v5166 = vlaneseq
      %v5167 = vshrl.u32 %v5166, 7
      %v5168 = vsub.s32 %v5165, %v5167
      %v5169 = vrot.slane %v5159, %v5168
      %v5171 = vunpack.c.l.s4 1966171168
      %v5172 = vunpack.c.0.s8 %v5171
      %v5173 = vlaneseq
      %v5174 = vshrl.u32 %v5173, 7
      %v5175 = vsub.s32 %v5172, %v5174
      %v5176 = vrot.slane %v5160, %v5175
      %v5178 = vunpack.c.l.s4 1966171168
      %v5179 = vunpack.c.0.s8 %v5178
      %v5180 = vlaneseq
      %v5181 = vshrl.u32 %v5180, 7
      %v5182 = vsub.s32 %v5179, %v5181
      %v5183 = vrot.slane %v5161, %v5182
      %v5185 = vunpack.c.l.s4 1966171168
      %v5186 = vunpack.c.0.s8 %v5185
      %v5187 = vlaneseq
      %v5188 = vshrl.u32 %v5187, 7
      %v5189 = vsub.s32 %v5186, %v5188
      %v5190 = vrot.slane %v5162, %v5189
      %v5191 = vcombine.low %v5169, %v5176
      %v5192 = vcombine.high %v5169, %v5176
      %v5193 = vcombine.low %v5183, %v5190
      %v5194 = vcombine.high %v5183, %v5190
      %v5196 = vunpack.c.l.s4 1966171168
      %v5197 = vunpack.c.0.s8 %v5196
      %v5198 = vlaneseq
      %v5199 = vshrl.u32 %v5198, 7
      %v5200 = vsub.s32 %v5197, %v5199
      %v5201 = vrot.slane %v5191, %v5200
      %v5203 = vunpack.c.l.s4 1966171168
      %v5204 = vunpack.c.0.s8 %v5203
      %v5205 = vlaneseq
      %v5206 = vshrl.u32 %v5205, 7
      %v5207 = vsub.s32 %v5204, %v5206
      %v5208 = vrot.slane %v5192, %v5207
      %v5210 = vunpack.c.l.s4 1966171168
      %v5211 = vunpack.c.0.s8 %v5210
      %v5212 = vlaneseq
      %v5213 = vshrl.u32 %v5212, 7
      %v5214 = vsub.s32 %v5211, %v5213
      %v5215 = vrot.slane %v5193, %v5214
      %v5217 = vunpack.c.l.s4 1966171168
      %v5218 = vunpack.c.0.s8 %v5217
      %v5219 = vlaneseq
      %v5220 = vshrl.u32 %v5219, 7
      %v5221 = vsub.s32 %v5218, %v5220
      %v5222 = vrot.slane %v5194, %v5221
      %v5223 = vcombine.low %v5201, %v5215
      %v5224 = vcombine.low %v5208, %v5222
      %v5225 = vcombine.low %v2267, %v2275
      %v5226 = vcombine.low %v2277, %v2260
      %v5227 = vcombine.low %v2274, %v2276
      %v5228 = vcombine.low %v2303, %v2317
      %v5230 = vunpack.c.l.s4 1966171168
      %v5231 = vunpack.c.0.s8 %v5230
      %v5232 = vlaneseq
      %v5233 = vshrl.u32 %v5232, 7
      %v5234 = vsub.s32 %v5231, %v5233
      %v5235 = vrot.slane %v5225, %v5234
      %v5237 = vunpack.c.l.s4 1966171168
      %v5238 = vunpack.c.0.s8 %v5237
      %v5239 = vlaneseq
      %v5240 = vshrl.u32 %v5239, 7
      %v5241 = vsub.s32 %v5238, %v5240
      %v5242 = vrot.slane %v5226, %v5241
      %v5244 = vunpack.c.l.s4 1966171168
      %v5245 = vunpack.c.0.s8 %v5244
      %v5246 = vlaneseq
      %v5247 = vshrl.u32 %v5246, 7
      %v5248 = vsub.s32 %v5245, %v5247
      %v5249 = vrot.slane %v5227, %v5248
      %v5251 = vunpack.c.l.s4 1966171168
      %v5252 = vunpack.c.0.s8 %v5251
      %v5253 = vlaneseq
      %v5254 = vshrl.u32 %v5253, 7
      %v5255 = vsub.s32 %v5252, %v5254
      %v5256 = vrot.slane %v5228, %v5255
      %v5257 = vcombine.low %v5235, %v5242
      %v5258 = vcombine.high %v5235, %v5242
      %v5259 = vcombine.low %v5249, %v5256
      %v5260 = vcombine.high %v5249, %v5256
      %v5262 = vunpack.c.l.s4 1966171168
      %v5263 = vunpack.c.0.s8 %v5262
      %v5264 = vlaneseq
      %v5265 = vshrl.u32 %v5264, 7
      %v5266 = vsub.s32 %v5263, %v5265
      %v5267 = vrot.slane %v5257, %v5266
      %v5269 = vunpack.c.l.s4 1966171168
      %v5270 = vunpack.c.0.s8 %v5269
      %v5271 = vlaneseq
      %v5272 = vshrl.u32 %v5271, 7
      %v5273 = vsub.s32 %v5270, %v5272
      %v5274 = vrot.slane %v5258, %v5273
      %v5276 = vunpack.c.l.s4 1966171168
      %v5277 = vunpack.c.0.s8 %v5276
      %v5278 = vlaneseq
      %v5279 = vshrl.u32 %v5278, 7
      %v5280 = vsub.s32 %v5277, %v5279
      %v5281 = vrot.slane %v5259, %v5280
      %v5283 = vunpack.c.l.s4 1966171168
      %v5284 = vunpack.c.0.s8 %v5283
      %v5285 = vlaneseq
      %v5286 = vshrl.u32 %v5285, 7
      %v5287 = vsub.s32 %v5284, %v5286
      %v5288 = vrot.slane %v5260, %v5287
      %v5289 = vcombine.low %v5267, %v5281
      %v5290 = vcombine.low %v5274, %v5288
      %v5291 = vcombine.low %v2325, %v2327
      %v5292 = vcombine.low %v2310, %v2324
      %v5293 = vcombine.low %v2328, %v2353
      %v5294 = vcombine.low %v2367, %v2375
      %v5296 = vunpack.c.l.s4 1966171168
      %v5297 = vunpack.c.0.s8 %v5296
      %v5298 = vlaneseq
      %v5299 = vshrl.u32 %v5298, 7
      %v5300 = vsub.s32 %v5297, %v5299
      %v5301 = vrot.slane %v5291, %v5300
      %v5303 = vunpack.c.l.s4 1966171168
      %v5304 = vunpack.c.0.s8 %v5303
      %v5305 = vlaneseq
      %v5306 = vshrl.u32 %v5305, 7
      %v5307 = vsub.s32 %v5304, %v5306
      %v5308 = vrot.slane %v5292, %v5307
      %v5310 = vunpack.c.l.s4 1966171168
      %v5311 = vunpack.c.0.s8 %v5310
      %v5312 = vlaneseq
      %v5313 = vshrl.u32 %v5312, 7
      %v5314 = vsub.s32 %v5311, %v5313
      %v5315 = vrot.slane %v5293, %v5314
      %v5317 = vunpack.c.l.s4 1966171168
      %v5318 = vunpack.c.0.s8 %v5317
      %v5319 = vlaneseq
      %v5320 = vshrl.u32 %v5319, 7
      %v5321 = vsub.s32 %v5318, %v5320
      %v5322 = vrot.slane %v5294, %v5321
      %v5323 = vcombine.low %v5301, %v5308
      %v5324 = vcombine.high %v5301, %v5308
      %v5325 = vcombine.low %v5315, %v5322
      %v5326 = vcombine.high %v5315, %v5322
      %v5328 = vunpack.c.l.s4 1966171168
      %v5329 = vunpack.c.0.s8 %v5328
      %v5330 = vlaneseq
      %v5331 = vshrl.u32 %v5330, 7
      %v5332 = vsub.s32 %v5329, %v5331
      %v5333 = vrot.slane %v5323, %v5332
      %v5335 = vunpack.c.l.s4 1966171168
      %v5336 = vunpack.c.0.s8 %v5335
      %v5337 = vlaneseq
      %v5338 = vshrl.u32 %v5337, 7
      %v5339 = vsub.s32 %v5336, %v5338
      %v5340 = vrot.slane %v5324, %v5339
      %v5342 = vunpack.c.l.s4 1966171168
      %v5343 = vunpack.c.0.s8 %v5342
      %v5344 = vlaneseq
      %v5345 = vshrl.u32 %v5344, 7
      %v5346 = vsub.s32 %v5343, %v5345
      %v5347 = vrot.slane %v5325, %v5346
      %v5349 = vunpack.c.l.s4 1966171168
      %v5350 = vunpack.c.0.s8 %v5349
      %v5351 = vlaneseq
      %v5352 = vshrl.u32 %v5351, 7
      %v5353 = vsub.s32 %v5350, %v5352
      %v5354 = vrot.slane %v5326, %v5353
      %v5355 = vcombine.low %v5333, %v5347
      %v5356 = vcombine.low %v5340, %v5354
      %v5357 = vcombine.low %v2377, %v2360
      %v5358 = vcombine.low %v2376, %v2378
      %v5359 = vcombine.low %v2403, %v2417
      %v5360 = vcombine.low %v2425, %v2427
      %v5362 = vunpack.c.l.s4 1966171168
      %v5363 = vunpack.c.0.s8 %v5362
      %v5364 = vlaneseq
      %v5365 = vshrl.u32 %v5364, 7
      %v5366 = vsub.s32 %v5363, %v5365
      %v5367 = vrot.slane %v5357, %v5366
      %v5369 = vunpack.c.l.s4 1966171168
      %v5370 = vunpack.c.0.s8 %v5369
      %v5371 = vlaneseq
      %v5372 = vshrl.u32 %v5371, 7
      %v5373 = vsub.s32 %v5370, %v5372
      %v5374 = vrot.slane %v5358, %v5373
      %v5376 = vunpack.c.l.s4 1966171168
      %v5377 = vunpack.c.0.s8 %v5376
      %v5378 = vlaneseq
      %v5379 = vshrl.u32 %v5378, 7
      %v5380 = vsub.s32 %v5377, %v5379
      %v5381 = vrot.slane %v5359, %v5380
      %v5383 = vunpack.c.l.s4 1966171168
      %v5384 = vunpack.c.0.s8 %v5383
      %v5385 = vlaneseq
      %v5386 = vshrl.u32 %v5385, 7
      %v5387 = vsub.s32 %v5384, %v5386
      %v5388 = vrot.slane %v5360, %v5387
      %v5389 = vcombine.low %v5367, %v5374
      %v5390 = vcombine.high %v5367, %v5374
      %v5391 = vcombine.low %v5381, %v5388
      %v5392 = vcombine.high %v5381, %v5388
      %v5394 = vunpack.c.l.s4 1966171168
      %v5395 = vunpack.c.0.s8 %v5394
      %v5396 = vlaneseq
      %v5397 = vshrl.u32 %v5396, 7
      %v5398 = vsub.s32 %v5395, %v5397
      %v5399 = vrot.slane %v5389, %v5398
      %v5401 = vunpack.c.l.s4 1966171168
      %v5402 = vunpack.c.0.s8 %v5401
      %v5403 = vlaneseq
      %v5404 = vshrl.u32 %v5403, 7
      %v5405 = vsub.s32 %v5402, %v5404
      %v5406 = vrot.slane %v5390, %v5405
      %v5408 = vunpack.c.l.s4 1966171168
      %v5409 = vunpack.c.0.s8 %v5408
      %v5410 = vlaneseq
      %v5411 = vshrl.u32 %v5410, 7
      %v5412 = vsub.s32 %v5409, %v5411
      %v5413 = vrot.slane %v5391, %v5412
      %v5415 = vunpack.c.l.s4 1966171168
      %v5416 = vunpack.c.0.s8 %v5415
      %v5417 = vlaneseq
      %v5418 = vshrl.u32 %v5417, 7
      %v5419 = vsub.s32 %v5416, %v5418
      %v5420 = vrot.slane %v5392, %v5419
      %v5421 = vcombine.low %v5399, %v5413
      %v5422 = vcombine.low %v5406, %v5420
      %v5473 = vunpack.c.l.b16 %v4797
      %v5474 = vunpack.c.l.b16 %v4798
      %v5475 = vunpack.c.l.b16 %v4799
      %v5476 = vunpack.c.l.b16 %v4800
      %v5477 = vunpack.c.l.b16 %v4801
      %v5478 = vunpack.c.l.b16 %v4802
      %v5479 = vunpack.c.l.b16 %v4803
      %v5480 = vunpack.c.l.b16 %v4804
      %v5481 = vunpack.c.l.b16 %v4805
      %v5482 = vunpack.c.l.b16 %v4806
      %v5483 = vunpack.c.l.b16 %v4807
      %v5484 = vunpack.c.l.b16 %v4808
      %v5485 = vunpack.c.l.b16 %v4809
      %v5486 = vunpack.c.l.b16 %v4810
      %v5487 = vunpack.c.l.b16 %v4811
      %v5488 = vunpack.c.l.b16 %v4812
      %v5489 = vunpack.c.l.b16 %v4813
      %v5490 = vunpack.c.l.b16 %v4814
      %v5491 = vunpack.c.l.b16 %v4815
      %v5492 = vunpack.c.l.b16 %v4816
      %v5493 = vunpack.c.l.b16 %v4817
      %v5494 = vunpack.c.l.b16 %v4818
      %v5495 = vunpack.c.l.b16 %v4819
      %v5496 = vunpack.c.l.b16 %v4820
      %v5497 = vunpack.c.l.b16 %v4821
      %v5498 = vunpack.c.l.b16 %v4822
      %v5499 = vunpack.c.l.b16 %v4823
      %v5500 = vunpack.c.l.b16 %v4824
      %v5501 = vunpack.c.l.b16 %v4825
      %v5502 = vunpack.c.l.b16 %v4826
      %v5503 = vunpack.c.l.b16 %v4827
      %v5504 = vunpack.c.l.b16 %v4828
      %v5505 = vpack.c.b16 %v5474, %v5473
      %v5506 = vpack.c.b16 %v5476, %v5475
      %v5507 = vpack.c.b16 %v5478, %v5477
      %v5508 = vpack.c.b16 %v5480, %v5479
      %v5509 = vpack.c.b16 %v5482, %v5481
      %v5510 = vpack.c.b16 %v5484, %v5483
      %v5511 = vpack.c.b16 %v5486, %v5485
      %v5512 = vpack.c.b16 %v5488, %v5487
      %v5513 = vpack.c.b16 %v5490, %v5489
      %v5514 = vpack.c.b16 %v5492, %v5491
      %v5515 = vpack.c.b16 %v5494, %v5493
      %v5516 = vpack.c.b16 %v5496, %v5495
      %v5517 = vpack.c.b16 %v5498, %v5497
      %v5518 = vpack.c.b16 %v5500, %v5499
      %v5519 = vpack.c.b16 %v5502, %v5501
      %v5520 = vpack.c.b16 %v5504, %v5503
      %5537 = vmatprep.subr.bf16.mxu0 0
      %5538 = vmatpush1.bf16.msra.mxu0 %v5505
      %5539 = vmatprep.subr.bf16.mxu0 0
      %5540 = vmatpush1.bf16.msra.mxu0 %v5506
      %5541 = vmatprep.subr.bf16.mxu0 0
      %5542 = vmatpush1.bf16.msra.mxu0 %v5507
      %5543 = vmatprep.subr.bf16.mxu0 0
      %5544 = vmatpush1.bf16.msra.mxu0 %v5508
      %5545 = vmatprep.subr.bf16.mxu0 0
      %5546 = vmatpush1.bf16.msra.mxu0 %v5509
      %5547 = vmatprep.subr.bf16.mxu0 0
      %5548 = vmatpush1.bf16.msra.mxu0 %v5510
      %5549 = vmatprep.subr.bf16.mxu0 0
      %5550 = vmatpush1.bf16.msra.mxu0 %v5511
      %5551 = vmatprep.subr.bf16.mxu0 0
      %5552 = vmatpush1.bf16.msra.mxu0 %v5512
      %5553 = vmatprep.subr.bf16.mxu0 0
      %5554 = vmatpush1.bf16.msra.mxu0 %v5513
      %5555 = vmatprep.subr.bf16.mxu0 0
      %5556 = vmatpush1.bf16.msra.mxu0 %v5514
      %5557 = vmatprep.subr.bf16.mxu0 0
      %5558 = vmatpush1.bf16.msra.mxu0 %v5515
      %5559 = vmatprep.subr.bf16.mxu0 0
      %5560 = vmatpush1.bf16.msra.mxu0 %v5516
      %5561 = vmatprep.subr.bf16.mxu0 0
      %5562 = vmatpush1.bf16.msra.mxu0 %v5517
      %5563 = vmatprep.subr.bf16.mxu0 0
      %5564 = vmatpush1.bf16.msra.mxu0 %v5518
      %5565 = vmatprep.subr.bf16.mxu0 0
      %5566 = vmatpush1.bf16.msra.mxu0 %v5519
      %5567 = vmatprep.subr.bf16.mxu0 0
      %5568 = vmatpush1.bf16.msra.mxu0 %v5520
      %5569 = vmatprep.mubr.bf16.mxu0 %v4894
      %5570 = vmatmul.mubr.bf16.gmra.mrb[0].mxu0 %v4893
      %v5571 = vpop.f32.mrb[0].mxu0
      %v5572 = vadd.f32 0.0, %v5571
      %v5573 = vpop.f32.mrb[0].mxu0
      %v5574 = vpop.f32.mrb[0].mxu0
      %v5575 = vadd.f32 0.0, %v5574
      %v5576 = vpop.f32.mrb[0].mxu0
      %5577 = vmatprep.mubr.bf16.mxu0 %v4960
      %5578 = vmatmul.mubr.bf16.gmra.mrb[0].mxu0 %v4959
      %v5579 = vpop.f32.mrb[0].mxu0
      %v5580 = vadd.f32 0.0, %v5579
      %v5581 = vpop.f32.mrb[0].mxu0
      %v5582 = vpop.f32.mrb[0].mxu0
      %v5583 = vadd.f32 0.0, %v5582
      %v5584 = vpop.f32.mrb[0].mxu0
      %5585 = vmatprep.mubr.bf16.mxu0 %v5026
      %5586 = vmatmul.mubr.bf16.gmra.mrb[0].mxu0 %v5025
      %v5587 = vpop.f32.mrb[0].mxu0
      %v5588 = vadd.f32 0.0, %v5587
      %v5589 = vpop.f32.mrb[0].mxu0
      %v5590 = vpop.f32.mrb[0].mxu0
      %v5591 = vadd.f32 0.0, %v5590
      %v5592 = vpop.f32.mrb[0].mxu0
      %5593 = vmatprep.mubr.bf16.mxu0 %v5092
      %5594 = vmatmul.mubr.bf16.gmra.mrb[0].mxu0 %v5091
      %v5595 = vpop.f32.mrb[0].mxu0
      %v5596 = vadd.f32 0.0, %v5595
      %v5597 = vpop.f32.mrb[0].mxu0
      %v5598 = vpop.f32.mrb[0].mxu0
      %v5599 = vadd.f32 0.0, %v5598
      %v5600 = vpop.f32.mrb[0].mxu0
      %5601 = vmatprep.mubr.bf16.mxu0 %v5158
      %5602 = vmatmul.mubr.bf16.gmra.mrb[0].mxu0 %v5157
      %v5603 = vpop.f32.mrb[0].mxu0
      %v5604 = vadd.f32 0.0, %v5603
      %v5605 = vpop.f32.mrb[0].mxu0
      %v5606 = vpop.f32.mrb[0].mxu0
      %v5607 = vadd.f32 0.0, %v5606
      %v5608 = vpop.f32.mrb[0].mxu0
      %5609 = vmatprep.mubr.bf16.mxu0 %v5224
      %5610 = vmatmul.mubr.bf16.gmra.mrb[0].mxu0 %v5223
      %v5611 = vpop.f32.mrb[0].mxu0
      %v5612 = vadd.f32 0.0, %v5611
      %v5613 = vpop.f32.mrb[0].mxu0
      %v5614 = vpop.f32.mrb[0].mxu0
      %v5615 = vadd.f32 0.0, %v5614
      %v5616 = vpop.f32.mrb[0].mxu0
      %5617 = vmatprep.mubr.bf16.mxu0 %v5290
      %5618 = vmatmul.mubr.bf16.gmra.mrb[0].mxu0 %v5289
      %v5619 = vpop.f32.mrb[0].mxu0
      %v5620 = vadd.f32 0.0, %v5619
      %v5621 = vpop.f32.mrb[0].mxu0
      %v5622 = vpop.f32.mrb[0].mxu0
      %v5623 = vadd.f32 0.0, %v5622
      %v5624 = vpop.f32.mrb[0].mxu0
      %5625 = vmatprep.mubr.bf16.mxu0 %v5356
      %5626 = vmatmul.mubr.bf16.gmra.mrb[0].mxu0 %v5355
      %v5627 = vpop.f32.mrb[0].mxu0
      %v5628 = vadd.f32 0.0, %v5627
      %v5629 = vpop.f32.mrb[0].mxu0
      %v5630 = vpop.f32.mrb[0].mxu0
      %v5631 = vadd.f32 0.0, %v5630
      %v5632 = vpop.f32.mrb[0].mxu0
      %5633 = vmatprep.mubr.bf16.mxu0 %v5422
      %5634 = vmatmul.mubr.bf16.gmra.mrb[0].mxu0 %v5421
      %v5635 = vpop.f32.mrb[0].mxu0
      %v5636 = vadd.f32 0.0, %v5635
      %v5637 = vpop.f32.mrb[0].mxu0
      %v5638 = vpop.f32.mrb[0].mxu0
      %v5639 = vadd.f32 0.0, %v5638
      %v5640 = vpop.f32.mrb[0].mxu0
      %5641 = vdwg.mxu0
      %v5642 = vadd.f32 %v4726, %v5572
      %v5643 = vadd.f32 %v4729, %v5575
      %v5644 = vadd.f32 %v4734, %v5580
      %v5645 = vadd.f32 %v4737, %v5583
      %v5646 = vadd.f32 %v4742, %v5588
      %v5647 = vadd.f32 %v4745, %v5591
      %v5648 = vadd.f32 %v4750, %v5596
      %v5649 = vadd.f32 %v4753, %v5599
      %v5650 = vadd.f32 %v4758, %v5604
      %v5651 = vadd.f32 %v4761, %v5607
      %v5652 = vadd.f32 %v4766, %v5612
      %v5653 = vadd.f32 %v4769, %v5615
      %v5654 = vadd.f32 %v4774, %v5620
      %v5655 = vadd.f32 %v4777, %v5623
      %v5656 = vadd.f32 %v4782, %v5628
      %v5657 = vadd.f32 %v4785, %v5631
      %v5658 = vadd.f32 %v4790, %v5636
      %v5659 = vadd.f32 %v4793, %v5639
      %s5660 = scalar_lea.vmem %s2, 384
      %v5661 = vld [vmem:[%s5660] sm:$0xf]
      %v5662 = vld [vmem:[%s5660 + $0x4] sm:$0xf]
      %v5663 = vld [vmem:[%s5660 + $0x8] sm:$0xf]
      %v5664 = vld [vmem:[%s5660 + $0xc] sm:$0xf]
      %v5665 = vld [vmem:[%s5660 + $0x10] sm:$0xf]
      %v5666 = vld [vmem:[%s5660 + $0x14] sm:$0xf]
      %v5667 = vld [vmem:[%s5660 + $0x18] sm:$0xf]
      %v5668 = vld [vmem:[%s5660 + $0x1c] sm:$0xf]
      %v5669 = vld [vmem:[%s5660 + $0x20] sm:$0xf]
      %v5670 = vld [vmem:[%s5660 + $0x24] sm:$0xf]
      %v5671 = vld [vmem:[%s5660 + $0x28] sm:$0xf]
      %v5672 = vld [vmem:[%s5660 + $0x2c] sm:$0xf]
      %v5673 = vld [vmem:[%s5660 + $0x30] sm:$0xf]
      %v5674 = vld [vmem:[%s5660 + $0x34] sm:$0xf]
      %v5675 = vld [vmem:[%s5660 + $0x38] sm:$0xf]
      %v5676 = vld [vmem:[%s5660 + $0x3c] sm:$0xf]
      %v5677 = vld [vmem:[%s5660 + $0x40] sm:$0xf]
      %v5678 = vld [vmem:[%s5660 + $0x44] sm:$0xf]
      %v5679 = vld [vmem:[%s5660 + $0x48] sm:$0xf]
      %v5680 = vld [vmem:[%s5660 + $0x4c] sm:$0xf]
      %v5681 = vld [vmem:[%s5660 + $0x50] sm:$0xf]
      %v5682 = vld [vmem:[%s5660 + $0x54] sm:$0xf]
      %v5683 = vld [vmem:[%s5660 + $0x58] sm:$0xf]
      %v5684 = vld [vmem:[%s5660 + $0x5c] sm:$0xf]
      %v5685 = vld [vmem:[%s5660 + $0x60] sm:$0xf]
      %v5686 = vld [vmem:[%s5660 + $0x64] sm:$0xf]
      %v5687 = vld [vmem:[%s5660 + $0x68] sm:$0xf]
      %v5688 = vld [vmem:[%s5660 + $0x6c] sm:$0xf]
      %v5689 = vld [vmem:[%s5660 + $0x70] sm:$0xf]
      %v5690 = vld [vmem:[%s5660 + $0x74] sm:$0xf]
      %v5691 = vld [vmem:[%s5660 + $0x78] sm:$0xf]
      %v5692 = vld [vmem:[%s5660 + $0x7c] sm:$0xf]
      %v5693 = vcombine.low %v4014, %v4059
      %v5694 = vcombine.high %v4014, %v4059
      %v5695 = vcombine.low %v4066, %v4073
      %v5696 = vcombine.high %v4066, %v4073
      %v5698 = vunpack.c.l.s4 1966171168
      %v5699 = vunpack.c.0.s8 %v5698
      %v5700 = vlaneseq
      %v5701 = vshrl.u32 %v5700, 7
      %v5702 = vsub.s32 %v5699, %v5701
      %v5703 = vrot.slane %v5693, %v5702
      %v5705 = vunpack.c.l.s4 1966171168
      %v5706 = vunpack.c.0.s8 %v5705
      %v5707 = vlaneseq
      %v5708 = vshrl.u32 %v5707, 7
      %v5709 = vsub.s32 %v5706, %v5708
      %v5710 = vrot.slane %v5694, %v5709
      %v5712 = vunpack.c.l.s4 1966171168
      %v5713 = vunpack.c.0.s8 %v5712
      %v5714 = vlaneseq
      %v5715 = vshrl.u32 %v5714, 7
      %v5716 = vsub.s32 %v5713, %v5715
      %v5717 = vrot.slane %v5695, %v5716
      %v5719 = vunpack.c.l.s4 1966171168
      %v5720 = vunpack.c.0.s8 %v5719
      %v5721 = vlaneseq
      %v5722 = vshrl.u32 %v5721, 7
      %v5723 = vsub.s32 %v5720, %v5722
      %v5724 = vrot.slane %v5696, %v5723
      %v5725 = vcombine.low %v5703, %v5717
      %v5726 = vcombine.low %v5710, %v5724
      %v5727 = vcombine.low %v4080, %v4125
      %v5728 = vcombine.high %v4080, %v4125
      %v5729 = vcombine.low %v4132, %v4139
      %v5730 = vcombine.high %v4132, %v4139
      %v5732 = vunpack.c.l.s4 1966171168
      %v5733 = vunpack.c.0.s8 %v5732
      %v5734 = vlaneseq
      %v5735 = vshrl.u32 %v5734, 7
      %v5736 = vsub.s32 %v5733, %v5735
      %v5737 = vrot.slane %v5727, %v5736
      %v5739 = vunpack.c.l.s4 1966171168
      %v5740 = vunpack.c.0.s8 %v5739
      %v5741 = vlaneseq
      %v5742 = vshrl.u32 %v5741, 7
      %v5743 = vsub.s32 %v5740, %v5742
      %v5744 = vrot.slane %v5728, %v5743
      %v5746 = vunpack.c.l.s4 1966171168
      %v5747 = vunpack.c.0.s8 %v5746
      %v5748 = vlaneseq
      %v5749 = vshrl.u32 %v5748, 7
      %v5750 = vsub.s32 %v5747, %v5749
      %v5751 = vrot.slane %v5729, %v5750
      %v5753 = vunpack.c.l.s4 1966171168
      %v5754 = vunpack.c.0.s8 %v5753
      %v5755 = vlaneseq
      %v5756 = vshrl.u32 %v5755, 7
      %v5757 = vsub.s32 %v5754, %v5756
      %v5758 = vrot.slane %v5730, %v5757
      %v5759 = vcombine.low %v5737, %v5751
      %v5760 = vcombine.low %v5744, %v5758
      %v5761 = vcombine.low %v4146, %v4191
      %v5762 = vcombine.high %v4146, %v4191
      %v5763 = vcombine.low %v4198, %v4205
      %v5764 = vcombine.high %v4198, %v4205
      %v5766 = vunpack.c.l.s4 1966171168
      %v5767 = vunpack.c.0.s8 %v5766
      %v5768 = vlaneseq
      %v5769 = vshrl.u32 %v5768, 7
      %v5770 = vsub.s32 %v5767, %v5769
      %v5771 = vrot.slane %v5761, %v5770
      %v5773 = vunpack.c.l.s4 1966171168
      %v5774 = vunpack.c.0.s8 %v5773
      %v5775 = vlaneseq
      %v5776 = vshrl.u32 %v5775, 7
      %v5777 = vsub.s32 %v5774, %v5776
      %v5778 = vrot.slane %v5762, %v5777
      %v5780 = vunpack.c.l.s4 1966171168
      %v5781 = vunpack.c.0.s8 %v5780
      %v5782 = vlaneseq
      %v5783 = vshrl.u32 %v5782, 7
      %v5784 = vsub.s32 %v5781, %v5783
      %v5785 = vrot.slane %v5763, %v5784
      %v5787 = vunpack.c.l.s4 1966171168
      %v5788 = vunpack.c.0.s8 %v5787
      %v5789 = vlaneseq
      %v5790 = vshrl.u32 %v5789, 7
      %v5791 = vsub.s32 %v5788, %v5790
      %v5792 = vrot.slane %v5764, %v5791
      %v5793 = vcombine.low %v5771, %v5785
      %v5794 = vcombine.low %v5778, %v5792
      %v5795 = vcombine.low %v4212, %v4257
      %v5796 = vcombine.high %v4212, %v4257
      %v5797 = vcombine.low %v4264, %v4271
      %v5798 = vcombine.high %v4264, %v4271
      %v5800 = vunpack.c.l.s4 1966171168
      %v5801 = vunpack.c.0.s8 %v5800
      %v5802 = vlaneseq
      %v5803 = vshrl.u32 %v5802, 7
      %v5804 = vsub.s32 %v5801, %v5803
      %v5805 = vrot.slane %v5795, %v5804
      %v5807 = vunpack.c.l.s4 1966171168
      %v5808 = vunpack.c.0.s8 %v5807
      %v5809 = vlaneseq
      %v5810 = vshrl.u32 %v5809, 7
      %v5811 = vsub.s32 %v5808, %v5810
      %v5812 = vrot.slane %v5796, %v5811
      %v5814 = vunpack.c.l.s4 1966171168
      %v5815 = vunpack.c.0.s8 %v5814
      %v5816 = vlaneseq
      %v5817 = vshrl.u32 %v5816, 7
      %v5818 = vsub.s32 %v5815, %v5817
      %v5819 = vrot.slane %v5797, %v5818
      %v5821 = vunpack.c.l.s4 1966171168
      %v5822 = vunpack.c.0.s8 %v5821
      %v5823 = vlaneseq
      %v5824 = vshrl.u32 %v5823, 7
      %v5825 = vsub.s32 %v5822, %v5824
      %v5826 = vrot.slane %v5798, %v5825
      %v5827 = vcombine.low %v5805, %v5819
      %v5828 = vcombine.low %v5812, %v5826
      %v5829 = vcombine.low %v4278, %v4323
      %v5830 = vcombine.high %v4278, %v4323
      %v5831 = vcombine.low %v4330, %v4337
      %v5832 = vcombine.high %v4330, %v4337
      %v5834 = vunpack.c.l.s4 1966171168
      %v5835 = vunpack.c.0.s8 %v5834
      %v5836 = vlaneseq
      %v5837 = vshrl.u32 %v5836, 7
      %v5838 = vsub.s32 %v5835, %v5837
      %v5839 = vrot.slane %v5829, %v5838
      %v5841 = vunpack.c.l.s4 1966171168
      %v5842 = vunpack.c.0.s8 %v5841
      %v5843 = vlaneseq
      %v5844 = vshrl.u32 %v5843, 7
      %v5845 = vsub.s32 %v5842, %v5844
      %v5846 = vrot.slane %v5830, %v5845
      %v5848 = vunpack.c.l.s4 1966171168
      %v5849 = vunpack.c.0.s8 %v5848
      %v5850 = vlaneseq
      %v5851 = vshrl.u32 %v5850, 7
      %v5852 = vsub.s32 %v5849, %v5851
      %v5853 = vrot.slane %v5831, %v5852
      %v5855 = vunpack.c.l.s4 1966171168
      %v5856 = vunpack.c.0.s8 %v5855
      %v5857 = vlaneseq
      %v5858 = vshrl.u32 %v5857, 7
      %v5859 = vsub.s32 %v5856, %v5858
      %v5860 = vrot.slane %v5832, %v5859
      %v5861 = vcombine.low %v5839, %v5853
      %v5862 = vcombine.low %v5846, %v5860
      %v5863 = vcombine.low %v4344, %v4389
      %v5864 = vcombine.high %v4344, %v4389
      %v5865 = vcombine.low %v4396, %v4403
      %v5866 = vcombine.high %v4396, %v4403
      %v5868 = vunpack.c.l.s4 1966171168
      %v5869 = vunpack.c.0.s8 %v5868
      %v5870 = vlaneseq
      %v5871 = vshrl.u32 %v5870, 7
      %v5872 = vsub.s32 %v5869, %v5871
      %v5873 = vrot.slane %v5863, %v5872
      %v5875 = vunpack.c.l.s4 1966171168
      %v5876 = vunpack.c.0.s8 %v5875
      %v5877 = vlaneseq
      %v5878 = vshrl.u32 %v5877, 7
      %v5879 = vsub.s32 %v5876, %v5878
      %v5880 = vrot.slane %v5864, %v5879
      %v5882 = vunpack.c.l.s4 1966171168
      %v5883 = vunpack.c.0.s8 %v5882
      %v5884 = vlaneseq
      %v5885 = vshrl.u32 %v5884, 7
      %v5886 = vsub.s32 %v5883, %v5885
      %v5887 = vrot.slane %v5865, %v5886
      %v5889 = vunpack.c.l.s4 1966171168
      %v5890 = vunpack.c.0.s8 %v5889
      %v5891 = vlaneseq
      %v5892 = vshrl.u32 %v5891, 7
      %v5893 = vsub.s32 %v5890, %v5892
      %v5894 = vrot.slane %v5866, %v5893
      %v5895 = vcombine.low %v5873, %v5887
      %v5896 = vcombine.low %v5880, %v5894
      %v5897 = vcombine.low %v4410, %v4455
      %v5898 = vcombine.high %v4410, %v4455
      %v5899 = vcombine.low %v4462, %v4469
      %v5900 = vcombine.high %v4462, %v4469
      %v5902 = vunpack.c.l.s4 1966171168
      %v5903 = vunpack.c.0.s8 %v5902
      %v5904 = vlaneseq
      %v5905 = vshrl.u32 %v5904, 7
      %v5906 = vsub.s32 %v5903, %v5905
      %v5907 = vrot.slane %v5897, %v5906
      %v5909 = vunpack.c.l.s4 1966171168
      %v5910 = vunpack.c.0.s8 %v5909
      %v5911 = vlaneseq
      %v5912 = vshrl.u32 %v5911, 7
      %v5913 = vsub.s32 %v5910, %v5912
      %v5914 = vrot.slane %v5898, %v5913
      %v5916 = vunpack.c.l.s4 1966171168
      %v5917 = vunpack.c.0.s8 %v5916
      %v5918 = vlaneseq
      %v5919 = vshrl.u32 %v5918, 7
      %v5920 = vsub.s32 %v5917, %v5919
      %v5921 = vrot.slane %v5899, %v5920
      %v5923 = vunpack.c.l.s4 1966171168
      %v5924 = vunpack.c.0.s8 %v5923
      %v5925 = vlaneseq
      %v5926 = vshrl.u32 %v5925, 7
      %v5927 = vsub.s32 %v5924, %v5926
      %v5928 = vrot.slane %v5900, %v5927
      %v5929 = vcombine.low %v5907, %v5921
      %v5930 = vcombine.low %v5914, %v5928
      %v5931 = vcombine.low %v4476, %v4521
      %v5932 = vcombine.high %v4476, %v4521
      %v5933 = vcombine.low %v4528, %v4535
      %v5934 = vcombine.high %v4528, %v4535
      %v5936 = vunpack.c.l.s4 1966171168
      %v5937 = vunpack.c.0.s8 %v5936
      %v5938 = vlaneseq
      %v5939 = vshrl.u32 %v5938, 7
      %v5940 = vsub.s32 %v5937, %v5939
      %v5941 = vrot.slane %v5931, %v5940
      %v5943 = vunpack.c.l.s4 1966171168
      %v5944 = vunpack.c.0.s8 %v5943
      %v5945 = vlaneseq
      %v5946 = vshrl.u32 %v5945, 7
      %v5947 = vsub.s32 %v5944, %v5946
      %v5948 = vrot.slane %v5932, %v5947
      %v5950 = vunpack.c.l.s4 1966171168
      %v5951 = vunpack.c.0.s8 %v5950
      %v5952 = vlaneseq
      %v5953 = vshrl.u32 %v5952, 7
      %v5954 = vsub.s32 %v5951, %v5953
      %v5955 = vrot.slane %v5933, %v5954
      %v5957 = vunpack.c.l.s4 1966171168
      %v5958 = vunpack.c.0.s8 %v5957
      %v5959 = vlaneseq
      %v5960 = vshrl.u32 %v5959, 7
      %v5961 = vsub.s32 %v5958, %v5960
      %v5962 = vrot.slane %v5934, %v5961
      %v5963 = vcombine.low %v5941, %v5955
      %v5964 = vcombine.low %v5948, %v5962
      %v5965 = vcombine.low %v2410, %v2424
      %v5966 = vcombine.low %v2426, %v2428
      %v5967 = vcombine.low %v2453, %v2467
      %v5969 = vunpack.c.l.s4 1966171168
      %v5970 = vunpack.c.0.s8 %v5969
      %v5971 = vlaneseq
      %v5972 = vshrl.u32 %v5971, 7
      %v5973 = vsub.s32 %v5970, %v5972
      %v5974 = vrot.slane %v5965, %v5973
      %v5976 = vunpack.c.l.s4 1966171168
      %v5977 = vunpack.c.0.s8 %v5976
      %v5978 = vlaneseq
      %v5979 = vshrl.u32 %v5978, 7
      %v5980 = vsub.s32 %v5977, %v5979
      %v5981 = vrot.slane %v5966, %v5980
      %v5983 = vunpack.c.l.s4 1966171168
      %v5984 = vunpack.c.0.s8 %v5983
      %v5985 = vlaneseq
      %v5986 = vshrl.u32 %v5985, 7
      %v5987 = vsub.s32 %v5984, %v5986
      %v5988 = vrot.slane %v5967, %v5987
      %v5989 = vcombine.low %v4542, %v5974
      %v5990 = vcombine.high %v4542, %v5974
      %v5991 = vcombine.low %v5981, %v5988
      %v5992 = vcombine.high %v5981, %v5988
      %v5994 = vunpack.c.l.s4 1966171168
      %v5995 = vunpack.c.0.s8 %v5994
      %v5996 = vlaneseq
      %v5997 = vshrl.u32 %v5996, 7
      %v5998 = vsub.s32 %v5995, %v5997
      %v5999 = vrot.slane %v5989, %v5998
      %v6001 = vunpack.c.l.s4 1966171168
      %v6002 = vunpack.c.0.s8 %v6001
      %v6003 = vlaneseq
      %v6004 = vshrl.u32 %v6003, 7
      %v6005 = vsub.s32 %v6002, %v6004
      %v6006 = vrot.slane %v5990, %v6005
      %v6008 = vunpack.c.l.s4 1966171168
      %v6009 = vunpack.c.0.s8 %v6008
      %v6010 = vlaneseq
      %v6011 = vshrl.u32 %v6010, 7
      %v6012 = vsub.s32 %v6009, %v6011
      %v6013 = vrot.slane %v5991, %v6012
      %v6015 = vunpack.c.l.s4 1966171168
      %v6016 = vunpack.c.0.s8 %v6015
      %v6017 = vlaneseq
      %v6018 = vshrl.u32 %v6017, 7
      %v6019 = vsub.s32 %v6016, %v6018
      %v6020 = vrot.slane %v5992, %v6019
      %v6021 = vcombine.low %v5999, %v6013
      %v6022 = vcombine.low %v6006, %v6020
      %v6073 = vunpack.c.l.b16 %v5661
      %v6074 = vunpack.c.l.b16 %v5662
      %v6075 = vunpack.c.l.b16 %v5663
      %v6076 = vunpack.c.l.b16 %v5664
      %v6077 = vunpack.c.l.b16 %v5665
      %v6078 = vunpack.c.l.b16 %v5666
      %v6079 = vunpack.c.l.b16 %v5667
      %v6080 = vunpack.c.l.b16 %v5668
      %v6081 = vunpack.c.l.b16 %v5669
      %v6082 = vunpack.c.l.b16 %v5670
      %v6083 = vunpack.c.l.b16 %v5671
      %v6084 = vunpack.c.l.b16 %v5672
      %v6085 = vunpack.c.l.b16 %v5673
      %v6086 = vunpack.c.l.b16 %v5674
      %v6087 = vunpack.c.l.b16 %v5675
      %v6088 = vunpack.c.l.b16 %v5676
      %v6089 = vunpack.c.l.b16 %v5677
      %v6090 = vunpack.c.l.b16 %v5678
      %v6091 = vunpack.c.l.b16 %v5679
      %v6092 = vunpack.c.l.b16 %v5680
      %v6093 = vunpack.c.l.b16 %v5681
      %v6094 = vunpack.c.l.b16 %v5682
      %v6095 = vunpack.c.l.b16 %v5683
      %v6096 = vunpack.c.l.b16 %v5684
      %v6097 = vunpack.c.l.b16 %v5685
      %v6098 = vunpack.c.l.b16 %v5686
      %v6099 = vunpack.c.l.b16 %v5687
      %v6100 = vunpack.c.l.b16 %v5688
      %v6101 = vunpack.c.l.b16 %v5689
      %v6102 = vunpack.c.l.b16 %v5690
      %v6103 = vunpack.c.l.b16 %v5691
      %v6104 = vunpack.c.l.b16 %v5692
      %v6105 = vpack.c.b16 %v6074, %v6073
      %v6106 = vpack.c.b16 %v6076, %v6075
      %v6107 = vpack.c.b16 %v6078, %v6077
      %v6108 = vpack.c.b16 %v6080, %v6079
      %v6109 = vpack.c.b16 %v6082, %v6081
      %v6110 = vpack.c.b16 %v6084, %v6083
      %v6111 = vpack.c.b16 %v6086, %v6085
      %v6112 = vpack.c.b16 %v6088, %v6087
      %v6113 = vpack.c.b16 %v6090, %v6089
      %v6114 = vpack.c.b16 %v6092, %v6091
      %v6115 = vpack.c.b16 %v6094, %v6093
      %v6116 = vpack.c.b16 %v6096, %v6095
      %v6117 = vpack.c.b16 %v6098, %v6097
      %v6118 = vpack.c.b16 %v6100, %v6099
      %v6119 = vpack.c.b16 %v6102, %v6101
      %v6120 = vpack.c.b16 %v6104, %v6103
      %6137 = vmatprep.subr.bf16.mxu0 0
      %6138 = vmatpush1.bf16.msra.mxu0 %v6105
      %6139 = vmatprep.subr.bf16.mxu0 0
      %6140 = vmatpush1.bf16.msra.mxu0 %v6106
      %6141 = vmatprep.subr.bf16.mxu0 0
      %6142 = vmatpush1.bf16.msra.mxu0 %v6107
      %6143 = vmatprep.subr.bf16.mxu0 0
      %6144 = vmatpush1.bf16.msra.mxu0 %v6108
      %6145 = vmatprep.subr.bf16.mxu0 0
      %6146 = vmatpush1.bf16.msra.mxu0 %v6109
      %6147 = vmatprep.subr.bf16.mxu0 0
      %6148 = vmatpush1.bf16.msra.mxu0 %v6110
      %6149 = vmatprep.subr.bf16.mxu0 0
      %6150 = vmatpush1.bf16.msra.mxu0 %v6111
      %6151 = vmatprep.subr.bf16.mxu0 0
      %6152 = vmatpush1.bf16.msra.mxu0 %v6112
      %6153 = vmatprep.subr.bf16.mxu0 0
      %6154 = vmatpush1.bf16.msra.mxu0 %v6113
      %6155 = vmatprep.subr.bf16.mxu0 0
      %6156 = vmatpush1.bf16.msra.mxu0 %v6114
      %6157 = vmatprep.subr.bf16.mxu0 0
      %6158 = vmatpush1.bf16.msra.mxu0 %v6115
      %6159 = vmatprep.subr.bf16.mxu0 0
      %6160 = vmatpush1.bf16.msra.mxu0 %v6116
      %6161 = vmatprep.subr.bf16.mxu0 0
      %6162 = vmatpush1.bf16.msra.mxu0 %v6117
      %6163 = vmatprep.subr.bf16.mxu0 0
      %6164 = vmatpush1.bf16.msra.mxu0 %v6118
      %6165 = vmatprep.subr.bf16.mxu0 0
      %6166 = vmatpush1.bf16.msra.mxu0 %v6119
      %6167 = vmatprep.subr.bf16.mxu0 0
      %6168 = vmatpush1.bf16.msra.mxu0 %v6120
      %6169 = vmatprep.mubr.bf16.mxu0 %v5726
      %6170 = vmatmul.mubr.bf16.gmra.mrb[0].mxu0 %v5725
      %v6171 = vpop.f32.mrb[0].mxu0
      %v6172 = vadd.f32 0.0, %v6171
      %v6173 = vpop.f32.mrb[0].mxu0
      %v6174 = vpop.f32.mrb[0].mxu0
      %v6175 = vadd.f32 0.0, %v6174
      %v6176 = vpop.f32.mrb[0].mxu0
      %6177 = vmatprep.mubr.bf16.mxu0 %v5760
      %6178 = vmatmul.mubr.bf16.gmra.mrb[0].mxu0 %v5759
      %v6179 = vpop.f32.mrb[0].mxu0
      %v6180 = vadd.f32 0.0, %v6179
      %v6181 = vpop.f32.mrb[0].mxu0
      %v6182 = vpop.f32.mrb[0].mxu0
      %v6183 = vadd.f32 0.0, %v6182
      %v6184 = vpop.f32.mrb[0].mxu0
      %6185 = vmatprep.mubr.bf16.mxu0 %v5794
      %6186 = vmatmul.mubr.bf16.gmra.mrb[0].mxu0 %v5793
      %v6187 = vpop.f32.mrb[0].mxu0
      %v6188 = vadd.f32 0.0, %v6187
      %v6189 = vpop.f32.mrb[0].mxu0
      %v6190 = vpop.f32.mrb[0].mxu0
      %v6191 = vadd.f32 0.0, %v6190
      %v6192 = vpop.f32.mrb[0].mxu0
      %6193 = vmatprep.mubr.bf16.mxu0 %v5828
      %6194 = vmatmul.mubr.bf16.gmra.mrb[0].mxu0 %v5827
      %v6195 = vpop.f32.mrb[0].mxu0
      %v6196 = vadd.f32 0.0, %v6195
      %v6197 = vpop.f32.mrb[0].mxu0
      %v6198 = vpop.f32.mrb[0].mxu0
      %v6199 = vadd.f32 0.0, %v6198
      %v6200 = vpop.f32.mrb[0].mxu0
      %6201 = vmatprep.mubr.bf16.mxu0 %v5862
      %6202 = vmatmul.mubr.bf16.gmra.mrb[0].mxu0 %v5861
      %v6203 = vpop.f32.mrb[0].mxu0
      %v6204 = vadd.f32 0.0, %v6203
      %v6205 = vpop.f32.mrb[0].mxu0
      %v6206 = vpop.f32.mrb[0].mxu0
      %v6207 = vadd.f32 0.0, %v6206
      %v6208 = vpop.f32.mrb[0].mxu0
      %6209 = vmatprep.mubr.bf16.mxu0 %v5896
      %6210 = vmatmul.mubr.bf16.gmra.mrb[0].mxu0 %v5895
      %v6211 = vpop.f32.mrb[0].mxu0
      %v6212 = vadd.f32 0.0, %v6211
      %v6213 = vpop.f32.mrb[0].mxu0
      %v6214 = vpop.f32.mrb[0].mxu0
      %v6215 = vadd.f32 0.0, %v6214
      %v6216 = vpop.f32.mrb[0].mxu0
      %6217 = vmatprep.mubr.bf16.mxu0 %v5930
      %6218 = vmatmul.mubr.bf16.gmra.mrb[0].mxu0 %v5929
      %v6219 = vpop.f32.mrb[0].mxu0
      %v6220 = vadd.f32 0.0, %v6219
      %v6221 = vpop.f32.mrb[0].mxu0
      %v6222 = vpop.f32.mrb[0].mxu0
      %v6223 = vadd.f32 0.0, %v6222
      %v6224 = vpop.f32.mrb[0].mxu0
      %6225 = vmatprep.mubr.bf16.mxu0 %v5964
      %6226 = vmatmul.mubr.bf16.gmra.mrb[0].mxu0 %v5963
      %v6227 = vpop.f32.mrb[0].mxu0
      %v6228 = vadd.f32 0.0, %v6227
      %v6229 = vpop.f32.mrb[0].mxu0
      %v6230 = vpop.f32.mrb[0].mxu0
      %v6231 = vadd.f32 0.0, %v6230
      %v6232 = vpop.f32.mrb[0].mxu0
      %6233 = vmatprep.mubr.bf16.mxu0 %v6022
      %6234 = vmatmul.mubr.bf16.gmra.mrb[0].mxu0 %v6021
      %v6235 = vpop.f32.mrb[0].mxu0
      %v6236 = vadd.f32 0.0, %v6235
      %v6237 = vpop.f32.mrb[0].mxu0
      %v6238 = vpop.f32.mrb[0].mxu0
      %v6239 = vadd.f32 0.0, %v6238
      %v6240 = vpop.f32.mrb[0].mxu0
      %6241 = vdwg.mxu0
      %v6242 = vadd.f32 %v5642, %v6172
      %v6243 = vadd.f32 %v5643, %v6175
      %v6244 = vadd.f32 %v5644, %v6180
      %v6245 = vadd.f32 %v5645, %v6183
      %v6246 = vadd.f32 %v5646, %v6188
      %v6247 = vadd.f32 %v5647, %v6191
      %v6248 = vadd.f32 %v5648, %v6196
      %v6249 = vadd.f32 %v5649, %v6199
      %v6250 = vadd.f32 %v5650, %v6204
      %v6251 = vadd.f32 %v5651, %v6207
      %v6252 = vadd.f32 %v5652, %v6212
      %v6253 = vadd.f32 %v5653, %v6215
      %v6254 = vadd.f32 %v5654, %v6220
      %v6255 = vadd.f32 %v5655, %v6223
      %v6256 = vadd.f32 %v5656, %v6228
      %v6257 = vadd.f32 %v5657, %v6231
      %v6258 = vadd.f32 %v5658, %v6236
      %v6259 = vadd.f32 %v5659, %v6239
      %v6261 = vshrl.u32 %v2410, 16
      %v6263 = vrot.slane %v6261, 7
      %v6264 = vrot.slane %v6263, 1
      %v6266 = vshll.u32 %v2424, 16
      %v6268 = vsel %vm2548, %v6264, %v6266
      %v6269 = vshrl.u32 %v2424, 16
      %v6271 = vrot.slane %v6269, 7
      %v6272 = vrot.slane %v6271, 1
      %v6274 = vshll.u32 %v2426, 16
      %v6276 = vsel %vm2548, %v6272, %v6274
      %v6277 = vshrl.u32 %v2426, 16
      %v6279 = vrot.slane %v6277, 7
      %v6280 = vrot.slane %v6279, 1
      %v6282 = vshll.u32 %v2428, 16
      %v6284 = vsel %vm2548, %v6280, %v6282
      %v6285 = vshrl.u32 %v2428, 16
      %v6287 = vrot.slane %v6285, 7
      %v6288 = vrot.slane %v6287, 1
      %v6290 = vshll.u32 %v2453, 16
      %v6292 = vsel %vm2548, %v6288, %v6290
      %v6293 = vshrl.u32 %v2453, 16
      %v6295 = vrot.slane %v6293, 7
      %v6296 = vrot.slane %v6295, 1
      %v6298 = vshll.u32 %v2467, 16
      %v6300 = vsel %vm2548, %v6296, %v6298
      %v6301 = vshrl.u32 %v2467, 16
      %v6303 = vrot.slane %v6301, 7
      %v6304 = vrot.slane %v6303, 1
      %v6306 = vshll.u32 %v2475, 16
      %v6308 = vsel %vm2548, %v6304, %v6306
      %s6309 = scalar_lea.vmem %s2, 512
      %v6310 = vld [vmem:[%s6309] sm:$0xf]
      %v6311 = vld [vmem:[%s6309 + $0x4] sm:$0xf]
      %v6312 = vld [vmem:[%s6309 + $0x8] sm:$0xf]
      %v6313 = vld [vmem:[%s6309 + $0xc] sm:$0xf]
      %v6314 = vld [vmem:[%s6309 + $0x10] sm:$0xf]
      %v6315 = vld [vmem:[%s6309 + $0x14] sm:$0xf]
      %v6316 = vld [vmem:[%s6309 + $0x18] sm:$0xf]
      %v6317 = vld [vmem:[%s6309 + $0x1c] sm:$0xf]
      %v6318 = vld [vmem:[%s6309 + $0x20] sm:$0xf]
      %v6319 = vld [vmem:[%s6309 + $0x24] sm:$0xf]
      %v6320 = vld [vmem:[%s6309 + $0x28] sm:$0xf]
      %v6321 = vld [vmem:[%s6309 + $0x2c] sm:$0xf]
      %v6322 = vld [vmem:[%s6309 + $0x30] sm:$0xf]
      %v6323 = vld [vmem:[%s6309 + $0x34] sm:$0xf]
      %v6324 = vld [vmem:[%s6309 + $0x38] sm:$0xf]
      %v6325 = vld [vmem:[%s6309 + $0x3c] sm:$0xf]
      %v6326 = vld [vmem:[%s6309 + $0x40] sm:$0xf]
      %v6327 = vld [vmem:[%s6309 + $0x44] sm:$0xf]
      %v6328 = vld [vmem:[%s6309 + $0x48] sm:$0xf]
      %v6329 = vld [vmem:[%s6309 + $0x4c] sm:$0xf]
      %v6330 = vld [vmem:[%s6309 + $0x50] sm:$0xf]
      %v6331 = vld [vmem:[%s6309 + $0x54] sm:$0xf]
      %v6332 = vld [vmem:[%s6309 + $0x58] sm:$0xf]
      %v6333 = vld [vmem:[%s6309 + $0x5c] sm:$0xf]
      %v6334 = vld [vmem:[%s6309 + $0x60] sm:$0xf]
      %v6335 = vld [vmem:[%s6309 + $0x64] sm:$0xf]
      %v6336 = vld [vmem:[%s6309 + $0x68] sm:$0xf]
      %v6337 = vld [vmem:[%s6309 + $0x6c] sm:$0xf]
      %v6338 = vld [vmem:[%s6309 + $0x70] sm:$0xf]
      %v6339 = vld [vmem:[%s6309 + $0x74] sm:$0xf]
      %v6340 = vld [vmem:[%s6309 + $0x78] sm:$0xf]
      %v6341 = vld [vmem:[%s6309 + $0x7c] sm:$0xf]
      %v6342 = vcombine.low %v3201, %v3246
      %v6343 = vcombine.high %v3201, %v3246
      %v6344 = vcombine.low %v3253, %v3260
      %v6345 = vcombine.high %v3253, %v3260
      %v6347 = vunpack.c.l.s4 1966171168
      %v6348 = vunpack.c.0.s8 %v6347
      %v6349 = vlaneseq
      %v6350 = vshrl.u32 %v6349, 7
      %v6351 = vsub.s32 %v6348, %v6350
      %v6352 = vrot.slane %v6342, %v6351
      %v6354 = vunpack.c.l.s4 1966171168
      %v6355 = vunpack.c.0.s8 %v6354
      %v6356 = vlaneseq
      %v6357 = vshrl.u32 %v6356, 7
      %v6358 = vsub.s32 %v6355, %v6357
      %v6359 = vrot.slane %v6343, %v6358
      %v6361 = vunpack.c.l.s4 1966171168
      %v6362 = vunpack.c.0.s8 %v6361
      %v6363 = vlaneseq
      %v6364 = vshrl.u32 %v6363, 7
      %v6365 = vsub.s32 %v6362, %v6364
      %v6366 = vrot.slane %v6344, %v6365
      %v6368 = vunpack.c.l.s4 1966171168
      %v6369 = vunpack.c.0.s8 %v6368
      %v6370 = vlaneseq
      %v6371 = vshrl.u32 %v6370, 7
      %v6372 = vsub.s32 %v6369, %v6371
      %v6373 = vrot.slane %v6345, %v6372
      %v6374 = vcombine.low %v6352, %v6366
      %v6375 = vcombine.low %v6359, %v6373
      %v6376 = vcombine.low %v3267, %v3312
      %v6377 = vcombine.high %v3267, %v3312
      %v6378 = vcombine.low %v3319, %v3326
      %v6379 = vcombine.high %v3319, %v3326
      %v6381 = vunpack.c.l.s4 1966171168
      %v6382 = vunpack.c.0.s8 %v6381
      %v6383 = vlaneseq
      %v6384 = vshrl.u32 %v6383, 7
      %v6385 = vsub.s32 %v6382, %v6384
      %v6386 = vrot.slane %v6376, %v6385
      %v6388 = vunpack.c.l.s4 1966171168
      %v6389 = vunpack.c.0.s8 %v6388
      %v6390 = vlaneseq
      %v6391 = vshrl.u32 %v6390, 7
      %v6392 = vsub.s32 %v6389, %v6391
      %v6393 = vrot.slane %v6377, %v6392
      %v6395 = vunpack.c.l.s4 1966171168
      %v6396 = vunpack.c.0.s8 %v6395
      %v6397 = vlaneseq
      %v6398 = vshrl.u32 %v6397, 7
      %v6399 = vsub.s32 %v6396, %v6398
      %v6400 = vrot.slane %v6378, %v6399
      %v6402 = vunpack.c.l.s4 1966171168
      %v6403 = vunpack.c.0.s8 %v6402
      %v6404 = vlaneseq
      %v6405 = vshrl.u32 %v6404, 7
      %v6406 = vsub.s32 %v6403, %v6405
      %v6407 = vrot.slane %v6379, %v6406
      %v6408 = vcombine.low %v6386, %v6400
      %v6409 = vcombine.low %v6393, %v6407
      %v6410 = vcombine.low %v3333, %v3378
      %v6411 = vcombine.high %v3333, %v3378
      %v6412 = vcombine.low %v3385, %v3392
      %v6413 = vcombine.high %v3385, %v3392
      %v6415 = vunpack.c.l.s4 1966171168
      %v6416 = vunpack.c.0.s8 %v6415
      %v6417 = vlaneseq
      %v6418 = vshrl.u32 %v6417, 7
      %v6419 = vsub.s32 %v6416, %v6418
      %v6420 = vrot.slane %v6410, %v6419
      %v6422 = vunpack.c.l.s4 1966171168
      %v6423 = vunpack.c.0.s8 %v6422
      %v6424 = vlaneseq
      %v6425 = vshrl.u32 %v6424, 7
      %v6426 = vsub.s32 %v6423, %v6425
      %v6427 = vrot.slane %v6411, %v6426
      %v6429 = vunpack.c.l.s4 1966171168
      %v6430 = vunpack.c.0.s8 %v6429
      %v6431 = vlaneseq
      %v6432 = vshrl.u32 %v6431, 7
      %v6433 = vsub.s32 %v6430, %v6432
      %v6434 = vrot.slane %v6412, %v6433
      %v6436 = vunpack.c.l.s4 1966171168
      %v6437 = vunpack.c.0.s8 %v6436
      %v6438 = vlaneseq
      %v6439 = vshrl.u32 %v6438, 7
      %v6440 = vsub.s32 %v6437, %v6439
      %v6441 = vrot.slane %v6413, %v6440
      %v6442 = vcombine.low %v6420, %v6434
      %v6443 = vcombine.low %v6427, %v6441
      %v6444 = vcombine.low %v3399, %v3444
      %v6445 = vcombine.high %v3399, %v3444
      %v6446 = vcombine.low %v3451, %v3458
      %v6447 = vcombine.high %v3451, %v3458
      %v6449 = vunpack.c.l.s4 1966171168
      %v6450 = vunpack.c.0.s8 %v6449
      %v6451 = vlaneseq
      %v6452 = vshrl.u32 %v6451, 7
      %v6453 = vsub.s32 %v6450, %v6452
      %v6454 = vrot.slane %v6444, %v6453
      %v6456 = vunpack.c.l.s4 1966171168
      %v6457 = vunpack.c.0.s8 %v6456
      %v6458 = vlaneseq
      %v6459 = vshrl.u32 %v6458, 7
      %v6460 = vsub.s32 %v6457, %v6459
      %v6461 = vrot.slane %v6445, %v6460
      %v6463 = vunpack.c.l.s4 1966171168
      %v6464 = vunpack.c.0.s8 %v6463
      %v6465 = vlaneseq
      %v6466 = vshrl.u32 %v6465, 7
      %v6467 = vsub.s32 %v6464, %v6466
      %v6468 = vrot.slane %v6446, %v6467
      %v6470 = vunpack.c.l.s4 1966171168
      %v6471 = vunpack.c.0.s8 %v6470
      %v6472 = vlaneseq
      %v6473 = vshrl.u32 %v6472, 7
      %v6474 = vsub.s32 %v6471, %v6473
      %v6475 = vrot.slane %v6447, %v6474
      %v6476 = vcombine.low %v6454, %v6468
      %v6477 = vcombine.low %v6461, %v6475
      %v6478 = vcombine.low %v3465, %v3510
      %v6479 = vcombine.high %v3465, %v3510
      %v6480 = vcombine.low %v3517, %v3524
      %v6481 = vcombine.high %v3517, %v3524
      %v6483 = vunpack.c.l.s4 1966171168
      %v6484 = vunpack.c.0.s8 %v6483
      %v6485 = vlaneseq
      %v6486 = vshrl.u32 %v6485, 7
      %v6487 = vsub.s32 %v6484, %v6486
      %v6488 = vrot.slane %v6478, %v6487
      %v6490 = vunpack.c.l.s4 1966171168
      %v6491 = vunpack.c.0.s8 %v6490
      %v6492 = vlaneseq
      %v6493 = vshrl.u32 %v6492, 7
      %v6494 = vsub.s32 %v6491, %v6493
      %v6495 = vrot.slane %v6479, %v6494
      %v6497 = vunpack.c.l.s4 1966171168
      %v6498 = vunpack.c.0.s8 %v6497
      %v6499 = vlaneseq
      %v6500 = vshrl.u32 %v6499, 7
      %v6501 = vsub.s32 %v6498, %v6500
      %v6502 = vrot.slane %v6480, %v6501
      %v6504 = vunpack.c.l.s4 1966171168
      %v6505 = vunpack.c.0.s8 %v6504
      %v6506 = vlaneseq
      %v6507 = vshrl.u32 %v6506, 7
      %v6508 = vsub.s32 %v6505, %v6507
      %v6509 = vrot.slane %v6481, %v6508
      %v6510 = vcombine.low %v6488, %v6502
      %v6511 = vcombine.low %v6495, %v6509
      %v6512 = vcombine.low %v3531, %v3576
      %v6513 = vcombine.high %v3531, %v3576
      %v6514 = vcombine.low %v3583, %v3590
      %v6515 = vcombine.high %v3583, %v3590
      %v6517 = vunpack.c.l.s4 1966171168
      %v6518 = vunpack.c.0.s8 %v6517
      %v6519 = vlaneseq
      %v6520 = vshrl.u32 %v6519, 7
      %v6521 = vsub.s32 %v6518, %v6520
      %v6522 = vrot.slane %v6512, %v6521
      %v6524 = vunpack.c.l.s4 1966171168
      %v6525 = vunpack.c.0.s8 %v6524
      %v6526 = vlaneseq
      %v6527 = vshrl.u32 %v6526, 7
      %v6528 = vsub.s32 %v6525, %v6527
      %v6529 = vrot.slane %v6513, %v6528
      %v6531 = vunpack.c.l.s4 1966171168
      %v6532 = vunpack.c.0.s8 %v6531
      %v6533 = vlaneseq
      %v6534 = vshrl.u32 %v6533, 7
      %v6535 = vsub.s32 %v6532, %v6534
      %v6536 = vrot.slane %v6514, %v6535
      %v6538 = vunpack.c.l.s4 1966171168
      %v6539 = vunpack.c.0.s8 %v6538
      %v6540 = vlaneseq
      %v6541 = vshrl.u32 %v6540, 7
      %v6542 = vsub.s32 %v6539, %v6541
      %v6543 = vrot.slane %v6515, %v6542
      %v6544 = vcombine.low %v6522, %v6536
      %v6545 = vcombine.low %v6529, %v6543
      %v6546 = vcombine.low %v3597, %v3642
      %v6547 = vcombine.high %v3597, %v3642
      %v6548 = vcombine.low %v3649, %v3656
      %v6549 = vcombine.high %v3649, %v3656
      %v6551 = vunpack.c.l.s4 1966171168
      %v6552 = vunpack.c.0.s8 %v6551
      %v6553 = vlaneseq
      %v6554 = vshrl.u32 %v6553, 7
      %v6555 = vsub.s32 %v6552, %v6554
      %v6556 = vrot.slane %v6546, %v6555
      %v6558 = vunpack.c.l.s4 1966171168
      %v6559 = vunpack.c.0.s8 %v6558
      %v6560 = vlaneseq
      %v6561 = vshrl.u32 %v6560, 7
      %v6562 = vsub.s32 %v6559, %v6561
      %v6563 = vrot.slane %v6547, %v6562
      %v6565 = vunpack.c.l.s4 1966171168
      %v6566 = vunpack.c.0.s8 %v6565
      %v6567 = vlaneseq
      %v6568 = vshrl.u32 %v6567, 7
      %v6569 = vsub.s32 %v6566, %v6568
      %v6570 = vrot.slane %v6548, %v6569
      %v6572 = vunpack.c.l.s4 1966171168
      %v6573 = vunpack.c.0.s8 %v6572
      %v6574 = vlaneseq
      %v6575 = vshrl.u32 %v6574, 7
      %v6576 = vsub.s32 %v6573, %v6575
      %v6577 = vrot.slane %v6549, %v6576
      %v6578 = vcombine.low %v6556, %v6570
      %v6579 = vcombine.low %v6563, %v6577
      %v6580 = vcombine.low %v3663, %v3708
      %v6581 = vcombine.high %v3663, %v3708
      %v6582 = vcombine.low %v3715, %v3722
      %v6583 = vcombine.high %v3715, %v3722
      %v6585 = vunpack.c.l.s4 1966171168
      %v6586 = vunpack.c.0.s8 %v6585
      %v6587 = vlaneseq
      %v6588 = vshrl.u32 %v6587, 7
      %v6589 = vsub.s32 %v6586, %v6588
      %v6590 = vrot.slane %v6580, %v6589
      %v6592 = vunpack.c.l.s4 1966171168
      %v6593 = vunpack.c.0.s8 %v6592
      %v6594 = vlaneseq
      %v6595 = vshrl.u32 %v6594, 7
      %v6596 = vsub.s32 %v6593, %v6595
      %v6597 = vrot.slane %v6581, %v6596
      %v6599 = vunpack.c.l.s4 1966171168
      %v6600 = vunpack.c.0.s8 %v6599
      %v6601 = vlaneseq
      %v6602 = vshrl.u32 %v6601, 7
      %v6603 = vsub.s32 %v6600, %v6602
      %v6604 = vrot.slane %v6582, %v6603
      %v6606 = vunpack.c.l.s4 1966171168
      %v6607 = vunpack.c.0.s8 %v6606
      %v6608 = vlaneseq
      %v6609 = vshrl.u32 %v6608, 7
      %v6610 = vsub.s32 %v6607, %v6609
      %v6611 = vrot.slane %v6583, %v6610
      %v6612 = vcombine.low %v6590, %v6604
      %v6613 = vcombine.low %v6597, %v6611
      %v6614 = vcombine.low %v6268, %v6276
      %v6615 = vcombine.low %v6284, %v6292
      %v6616 = vcombine.low %v6300, %v6308
      %v6618 = vunpack.c.l.s4 1966171168
      %v6619 = vunpack.c.0.s8 %v6618
      %v6620 = vlaneseq
      %v6621 = vshrl.u32 %v6620, 7
      %v6622 = vsub.s32 %v6619, %v6621
      %v6623 = vrot.slane %v6614, %v6622
      %v6625 = vunpack.c.l.s4 1966171168
      %v6626 = vunpack.c.0.s8 %v6625
      %v6627 = vlaneseq
      %v6628 = vshrl.u32 %v6627, 7
      %v6629 = vsub.s32 %v6626, %v6628
      %v6630 = vrot.slane %v6615, %v6629
      %v6632 = vunpack.c.l.s4 1966171168
      %v6633 = vunpack.c.0.s8 %v6632
      %v6634 = vlaneseq
      %v6635 = vshrl.u32 %v6634, 7
      %v6636 = vsub.s32 %v6633, %v6635
      %v6637 = vrot.slane %v6616, %v6636
      %v6638 = vcombine.low %v3729, %v6623
      %v6639 = vcombine.high %v3729, %v6623
      %v6640 = vcombine.low %v6630, %v6637
      %v6641 = vcombine.high %v6630, %v6637
      %v6643 = vunpack.c.l.s4 1966171168
      %v6644 = vunpack.c.0.s8 %v6643
      %v6645 = vlaneseq
      %v6646 = vshrl.u32 %v6645, 7
      %v6647 = vsub.s32 %v6644, %v6646
      %v6648 = vrot.slane %v6638, %v6647
      %v6650 = vunpack.c.l.s4 1966171168
      %v6651 = vunpack.c.0.s8 %v6650
      %v6652 = vlaneseq
      %v6653 = vshrl.u32 %v6652, 7
      %v6654 = vsub.s32 %v6651, %v6653
      %v6655 = vrot.slane %v6639, %v6654
      %v6657 = vunpack.c.l.s4 1966171168
      %v6658 = vunpack.c.0.s8 %v6657
      %v6659 = vlaneseq
      %v6660 = vshrl.u32 %v6659, 7
      %v6661 = vsub.s32 %v6658, %v6660
      %v6662 = vrot.slane %v6640, %v6661
      %v6664 = vunpack.c.l.s4 1966171168
      %v6665 = vunpack.c.0.s8 %v6664
      %v6666 = vlaneseq
      %v6667 = vshrl.u32 %v6666, 7
      %v6668 = vsub.s32 %v6665, %v6667
      %v6669 = vrot.slane %v6641, %v6668
      %v6670 = vcombine.low %v6648, %v6662
      %v6671 = vcombine.low %v6655, %v6669
      %v6722 = vunpack.c.l.b16 %v6310
      %v6723 = vunpack.c.l.b16 %v6311
      %v6724 = vunpack.c.l.b16 %v6312
      %v6725 = vunpack.c.l.b16 %v6313
      %v6726 = vunpack.c.l.b16 %v6314
      %v6727 = vunpack.c.l.b16 %v6315
      %v6728 = vunpack.c.l.b16 %v6316
      %v6729 = vunpack.c.l.b16 %v6317
      %v6730 = vunpack.c.l.b16 %v6318
      %v6731 = vunpack.c.l.b16 %v6319
      %v6732 = vunpack.c.l.b16 %v6320
      %v6733 = vunpack.c.l.b16 %v6321
      %v6734 = vunpack.c.l.b16 %v6322
      %v6735 = vunpack.c.l.b16 %v6323
      %v6736 = vunpack.c.l.b16 %v6324
      %v6737 = vunpack.c.l.b16 %v6325
      %v6738 = vunpack.c.l.b16 %v6326
      %v6739 = vunpack.c.l.b16 %v6327
      %v6740 = vunpack.c.l.b16 %v6328
      %v6741 = vunpack.c.l.b16 %v6329
      %v6742 = vunpack.c.l.b16 %v6330
      %v6743 = vunpack.c.l.b16 %v6331
      %v6744 = vunpack.c.l.b16 %v6332
      %v6745 = vunpack.c.l.b16 %v6333
      %v6746 = vunpack.c.l.b16 %v6334
      %v6747 = vunpack.c.l.b16 %v6335
      %v6748 = vunpack.c.l.b16 %v6336
      %v6749 = vunpack.c.l.b16 %v6337
      %v6750 = vunpack.c.l.b16 %v6338
      %v6751 = vunpack.c.l.b16 %v6339
      %v6752 = vunpack.c.l.b16 %v6340
      %v6753 = vunpack.c.l.b16 %v6341
      %v6754 = vpack.c.b16 %v6723, %v6722
      %v6755 = vpack.c.b16 %v6725, %v6724
      %v6756 = vpack.c.b16 %v6727, %v6726
      %v6757 = vpack.c.b16 %v6729, %v6728
      %v6758 = vpack.c.b16 %v6731, %v6730
      %v6759 = vpack.c.b16 %v6733, %v6732
      %v6760 = vpack.c.b16 %v6735, %v6734
      %v6761 = vpack.c.b16 %v6737, %v6736
      %v6762 = vpack.c.b16 %v6739, %v6738
      %v6763 = vpack.c.b16 %v6741, %v6740
      %v6764 = vpack.c.b16 %v6743, %v6742
      %v6765 = vpack.c.b16 %v6745, %v6744
      %v6766 = vpack.c.b16 %v6747, %v6746
      %v6767 = vpack.c.b16 %v6749, %v6748
      %v6768 = vpack.c.b16 %v6751, %v6750
      %v6769 = vpack.c.b16 %v6753, %v6752
      %6786 = vmatprep.subr.bf16.mxu0 0
      %6787 = vmatpush1.bf16.msra.mxu0 %v6754
      %6788 = vmatprep.subr.bf16.mxu0 0
      %6789 = vmatpush1.bf16.msra.mxu0 %v6755
      %6790 = vmatprep.subr.bf16.mxu0 0
      %6791 = vmatpush1.bf16.msra.mxu0 %v6756
      %6792 = vmatprep.subr.bf16.mxu0 0
      %6793 = vmatpush1.bf16.msra.mxu0 %v6757
      %6794 = vmatprep.subr.bf16.mxu0 0
      %6795 = vmatpush1.bf16.msra.mxu0 %v6758
      %6796 = vmatprep.subr.bf16.mxu0 0
      %6797 = vmatpush1.bf16.msra.mxu0 %v6759
      %6798 = vmatprep.subr.bf16.mxu0 0
      %6799 = vmatpush1.bf16.msra.mxu0 %v6760
      %6800 = vmatprep.subr.bf16.mxu0 0
      %6801 = vmatpush1.bf16.msra.mxu0 %v6761
      %6802 = vmatprep.subr.bf16.mxu0 0
      %6803 = vmatpush1.bf16.msra.mxu0 %v6762
      %6804 = vmatprep.subr.bf16.mxu0 0
      %6805 = vmatpush1.bf16.msra.mxu0 %v6763
      %6806 = vmatprep.subr.bf16.mxu0 0
      %6807 = vmatpush1.bf16.msra.mxu0 %v6764
      %6808 = vmatprep.subr.bf16.mxu0 0
      %6809 = vmatpush1.bf16.msra.mxu0 %v6765
      %6810 = vmatprep.subr.bf16.mxu0 0
      %6811 = vmatpush1.bf16.msra.mxu0 %v6766
      %6812 = vmatprep.subr.bf16.mxu0 0
      %6813 = vmatpush1.bf16.msra.mxu0 %v6767
      %6814 = vmatprep.subr.bf16.mxu0 0
      %6815 = vmatpush1.bf16.msra.mxu0 %v6768
      %6816 = vmatprep.subr.bf16.mxu0 0
      %6817 = vmatpush1.bf16.msra.mxu0 %v6769
      %6818 = vmatprep.mubr.bf16.mxu0 %v6375
      %6819 = vmatmul.mubr.bf16.gmra.mrb[0].mxu0 %v6374
      %v6820 = vpop.f32.mrb[0].mxu0
      %v6821 = vadd.f32 0.0, %v6820
      %v6822 = vpop.f32.mrb[0].mxu0
      %v6823 = vpop.f32.mrb[0].mxu0
      %v6824 = vadd.f32 0.0, %v6823
      %v6825 = vpop.f32.mrb[0].mxu0
      %6826 = vmatprep.mubr.bf16.mxu0 %v6409
      %6827 = vmatmul.mubr.bf16.gmra.mrb[0].mxu0 %v6408
      %v6828 = vpop.f32.mrb[0].mxu0
      %v6829 = vadd.f32 0.0, %v6828
      %v6830 = vpop.f32.mrb[0].mxu0
      %v6831 = vpop.f32.mrb[0].mxu0
      %v6832 = vadd.f32 0.0, %v6831
      %v6833 = vpop.f32.mrb[0].mxu0
      %6834 = vmatprep.mubr.bf16.mxu0 %v6443
      %6835 = vmatmul.mubr.bf16.gmra.mrb[0].mxu0 %v6442
      %v6836 = vpop.f32.mrb[0].mxu0
      %v6837 = vadd.f32 0.0, %v6836
      %v6838 = vpop.f32.mrb[0].mxu0
      %v6839 = vpop.f32.mrb[0].mxu0
      %v6840 = vadd.f32 0.0, %v6839
      %v6841 = vpop.f32.mrb[0].mxu0
      %6842 = vmatprep.mubr.bf16.mxu0 %v6477
      %6843 = vmatmul.mubr.bf16.gmra.mrb[0].mxu0 %v6476
      %v6844 = vpop.f32.mrb[0].mxu0
      %v6845 = vadd.f32 0.0, %v6844
      %v6846 = vpop.f32.mrb[0].mxu0
      %v6847 = vpop.f32.mrb[0].mxu0
      %v6848 = vadd.f32 0.0, %v6847
      %v6849 = vpop.f32.mrb[0].mxu0
      %6850 = vmatprep.mubr.bf16.mxu0 %v6511
      %6851 = vmatmul.mubr.bf16.gmra.mrb[0].mxu0 %v6510
      %v6852 = vpop.f32.mrb[0].mxu0
      %v6853 = vadd.f32 0.0, %v6852
      %v6854 = vpop.f32.mrb[0].mxu0
      %v6855 = vpop.f32.mrb[0].mxu0
      %v6856 = vadd.f32 0.0, %v6855
      %v6857 = vpop.f32.mrb[0].mxu0
      %6858 = vmatprep.mubr.bf16.mxu0 %v6545
      %6859 = vmatmul.mubr.bf16.gmra.mrb[0].mxu0 %v6544
      %v6860 = vpop.f32.mrb[0].mxu0
      %v6861 = vadd.f32 0.0, %v6860
      %v6862 = vpop.f32.mrb[0].mxu0
      %v6863 = vpop.f32.mrb[0].mxu0
      %v6864 = vadd.f32 0.0, %v6863
      %v6865 = vpop.f32.mrb[0].mxu0
      %6866 = vmatprep.mubr.bf16.mxu0 %v6579
      %6867 = vmatmul.mubr.bf16.gmra.mrb[0].mxu0 %v6578
      %v6868 = vpop.f32.mrb[0].mxu0
      %v6869 = vadd.f32 0.0, %v6868
      %v6870 = vpop.f32.mrb[0].mxu0
      %v6871 = vpop.f32.mrb[0].mxu0
      %v6872 = vadd.f32 0.0, %v6871
      %v6873 = vpop.f32.mrb[0].mxu0
      %6874 = vmatprep.mubr.bf16.mxu0 %v6613
      %6875 = vmatmul.mubr.bf16.gmra.mrb[0].mxu0 %v6612
      %v6876 = vpop.f32.mrb[0].mxu0
      %v6877 = vadd.f32 0.0, %v6876
      %v6878 = vpop.f32.mrb[0].mxu0
      %v6879 = vpop.f32.mrb[0].mxu0
      %v6880 = vadd.f32 0.0, %v6879
      %v6881 = vpop.f32.mrb[0].mxu0
      %6882 = vmatprep.mubr.bf16.mxu0 %v6671
      %6883 = vmatmul.mubr.bf16.gmra.mrb[0].mxu0 %v6670
      %v6884 = vpop.f32.mrb[0].mxu0
      %v6885 = vadd.f32 0.0, %v6884
      %v6886 = vpop.f32.mrb[0].mxu0
      %v6887 = vpop.f32.mrb[0].mxu0
      %v6888 = vadd.f32 0.0, %v6887
      %v6889 = vpop.f32.mrb[0].mxu0
      %6890 = vdwg.mxu0
      %v6891 = vadd.f32 %v6242, %v6821
      %v6892 = vadd.f32 %v6243, %v6824
      %v6893 = vadd.f32 %v6244, %v6829
      %v6894 = vadd.f32 %v6245, %v6832
      %v6895 = vadd.f32 %v6246, %v6837
      %v6896 = vadd.f32 %v6247, %v6840
      %v6897 = vadd.f32 %v6248, %v6845
      %v6898 = vadd.f32 %v6249, %v6848
      %v6899 = vadd.f32 %v6250, %v6853
      %v6900 = vadd.f32 %v6251, %v6856
      %v6901 = vadd.f32 %v6252, %v6861
      %v6902 = vadd.f32 %v6253, %v6864
      %v6903 = vadd.f32 %v6254, %v6869
      %v6904 = vadd.f32 %v6255, %v6872
      %v6905 = vadd.f32 %v6256, %v6877
      %v6906 = vadd.f32 %v6257, %v6880
      %v6907 = vadd.f32 %v6258, %v6885
      %v6908 = vadd.f32 %v6259, %v6888
      %s6909 = scalar_lea.vmem %s2, 640
      %v6910 = vld [vmem:[%s6909] sm:$0xf]
      %v6911 = vld [vmem:[%s6909 + $0x4] sm:$0xf]
      %v6912 = vld [vmem:[%s6909 + $0x8] sm:$0xf]
      %v6913 = vld [vmem:[%s6909 + $0xc] sm:$0xf]
      %v6914 = vld [vmem:[%s6909 + $0x10] sm:$0xf]
      %v6915 = vld [vmem:[%s6909 + $0x14] sm:$0xf]
      %v6916 = vld [vmem:[%s6909 + $0x18] sm:$0xf]
      %v6917 = vld [vmem:[%s6909 + $0x1c] sm:$0xf]
      %v6918 = vld [vmem:[%s6909 + $0x20] sm:$0xf]
      %v6919 = vld [vmem:[%s6909 + $0x24] sm:$0xf]
      %v6920 = vld [vmem:[%s6909 + $0x28] sm:$0xf]
      %v6921 = vld [vmem:[%s6909 + $0x2c] sm:$0xf]
      %v6922 = vld [vmem:[%s6909 + $0x30] sm:$0xf]
      %v6923 = vld [vmem:[%s6909 + $0x34] sm:$0xf]
      %v6924 = vld [vmem:[%s6909 + $0x38] sm:$0xf]
      %v6925 = vld [vmem:[%s6909 + $0x3c] sm:$0xf]
      %v6926 = vld [vmem:[%s6909 + $0x40] sm:$0xf]
      %v6927 = vld [vmem:[%s6909 + $0x44] sm:$0xf]
      %v6928 = vld [vmem:[%s6909 + $0x48] sm:$0xf]
      %v6929 = vld [vmem:[%s6909 + $0x4c] sm:$0xf]
      %v6930 = vld [vmem:[%s6909 + $0x50] sm:$0xf]
      %v6931 = vld [vmem:[%s6909 + $0x54] sm:$0xf]
      %v6932 = vld [vmem:[%s6909 + $0x58] sm:$0xf]
      %v6933 = vld [vmem:[%s6909 + $0x5c] sm:$0xf]
      %v6934 = vld [vmem:[%s6909 + $0x60] sm:$0xf]
      %v6935 = vld [vmem:[%s6909 + $0x64] sm:$0xf]
      %v6936 = vld [vmem:[%s6909 + $0x68] sm:$0xf]
      %v6937 = vld [vmem:[%s6909 + $0x6c] sm:$0xf]
      %v6938 = vld [vmem:[%s6909 + $0x70] sm:$0xf]
      %v6939 = vld [vmem:[%s6909 + $0x74] sm:$0xf]
      %v6940 = vld [vmem:[%s6909 + $0x78] sm:$0xf]
      %v6941 = vld [vmem:[%s6909 + $0x7c] sm:$0xf]
      %v6942 = vcombine.low %v4860, %v4905
      %v6943 = vcombine.high %v4860, %v4905
      %v6944 = vcombine.low %v4912, %v4919
      %v6945 = vcombine.high %v4912, %v4919
      %v6947 = vunpack.c.l.s4 1966171168
      %v6948 = vunpack.c.0.s8 %v6947
      %v6949 = vlaneseq
      %v6950 = vshrl.u32 %v6949, 7
      %v6951 = vsub.s32 %v6948, %v6950
      %v6952 = vrot.slane %v6942, %v6951
      %v6954 = vunpack.c.l.s4 1966171168
      %v6955 = vunpack.c.0.s8 %v6954
      %v6956 = vlaneseq
      %v6957 = vshrl.u32 %v6956, 7
      %v6958 = vsub.s32 %v6955, %v6957
      %v6959 = vrot.slane %v6943, %v6958
      %v6961 = vunpack.c.l.s4 1966171168
      %v6962 = vunpack.c.0.s8 %v6961
      %v6963 = vlaneseq
      %v6964 = vshrl.u32 %v6963, 7
      %v6965 = vsub.s32 %v6962, %v6964
      %v6966 = vrot.slane %v6944, %v6965
      %v6968 = vunpack.c.l.s4 1966171168
      %v6969 = vunpack.c.0.s8 %v6968
      %v6970 = vlaneseq
      %v6971 = vshrl.u32 %v6970, 7
      %v6972 = vsub.s32 %v6969, %v6971
      %v6973 = vrot.slane %v6945, %v6972
      %v6974 = vcombine.low %v6952, %v6966
      %v6975 = vcombine.low %v6959, %v6973
      %v6976 = vcombine.low %v4926, %v4971
      %v6977 = vcombine.high %v4926, %v4971
      %v6978 = vcombine.low %v4978, %v4985
      %v6979 = vcombine.high %v4978, %v4985
      %v6981 = vunpack.c.l.s4 1966171168
      %v6982 = vunpack.c.0.s8 %v6981
      %v6983 = vlaneseq
      %v6984 = vshrl.u32 %v6983, 7
      %v6985 = vsub.s32 %v6982, %v6984
      %v6986 = vrot.slane %v6976, %v6985
      %v6988 = vunpack.c.l.s4 1966171168
      %v6989 = vunpack.c.0.s8 %v6988
      %v6990 = vlaneseq
      %v6991 = vshrl.u32 %v6990, 7
      %v6992 = vsub.s32 %v6989, %v6991
      %v6993 = vrot.slane %v6977, %v6992
      %v6995 = vunpack.c.l.s4 1966171168
      %v6996 = vunpack.c.0.s8 %v6995
      %v6997 = vlaneseq
      %v6998 = vshrl.u32 %v6997, 7
      %v6999 = vsub.s32 %v6996, %v6998
      %v7000 = vrot.slane %v6978, %v6999
      %v7002 = vunpack.c.l.s4 1966171168
      %v7003 = vunpack.c.0.s8 %v7002
      %v7004 = vlaneseq
      %v7005 = vshrl.u32 %v7004, 7
      %v7006 = vsub.s32 %v7003, %v7005
      %v7007 = vrot.slane %v6979, %v7006
      %v7008 = vcombine.low %v6986, %v7000
      %v7009 = vcombine.low %v6993, %v7007
      %v7010 = vcombine.low %v4992, %v5037
      %v7011 = vcombine.high %v4992, %v5037
      %v7012 = vcombine.low %v5044, %v5051
      %v7013 = vcombine.high %v5044, %v5051
      %v7015 = vunpack.c.l.s4 1966171168
      %v7016 = vunpack.c.0.s8 %v7015
      %v7017 = vlaneseq
      %v7018 = vshrl.u32 %v7017, 7
      %v7019 = vsub.s32 %v7016, %v7018
      %v7020 = vrot.slane %v7010, %v7019
      %v7022 = vunpack.c.l.s4 1966171168
      %v7023 = vunpack.c.0.s8 %v7022
      %v7024 = vlaneseq
      %v7025 = vshrl.u32 %v7024, 7
      %v7026 = vsub.s32 %v7023, %v7025
      %v7027 = vrot.slane %v7011, %v7026
      %v7029 = vunpack.c.l.s4 1966171168
      %v7030 = vunpack.c.0.s8 %v7029
      %v7031 = vlaneseq
      %v7032 = vshrl.u32 %v7031, 7
      %v7033 = vsub.s32 %v7030, %v7032
      %v7034 = vrot.slane %v7012, %v7033
      %v7036 = vunpack.c.l.s4 1966171168
      %v7037 = vunpack.c.0.s8 %v7036
      %v7038 = vlaneseq
      %v7039 = vshrl.u32 %v7038, 7
      %v7040 = vsub.s32 %v7037, %v7039
      %v7041 = vrot.slane %v7013, %v7040
      %v7042 = vcombine.low %v7020, %v7034
      %v7043 = vcombine.low %v7027, %v7041
      %v7044 = vcombine.low %v5058, %v5103
      %v7045 = vcombine.high %v5058, %v5103
      %v7046 = vcombine.low %v5110, %v5117
      %v7047 = vcombine.high %v5110, %v5117
      %v7049 = vunpack.c.l.s4 1966171168
      %v7050 = vunpack.c.0.s8 %v7049
      %v7051 = vlaneseq
      %v7052 = vshrl.u32 %v7051, 7
      %v7053 = vsub.s32 %v7050, %v7052
      %v7054 = vrot.slane %v7044, %v7053
      %v7056 = vunpack.c.l.s4 1966171168
      %v7057 = vunpack.c.0.s8 %v7056
      %v7058 = vlaneseq
      %v7059 = vshrl.u32 %v7058, 7
      %v7060 = vsub.s32 %v7057, %v7059
      %v7061 = vrot.slane %v7045, %v7060
      %v7063 = vunpack.c.l.s4 1966171168
      %v7064 = vunpack.c.0.s8 %v7063
      %v7065 = vlaneseq
      %v7066 = vshrl.u32 %v7065, 7
      %v7067 = vsub.s32 %v7064, %v7066
      %v7068 = vrot.slane %v7046, %v7067
      %v7070 = vunpack.c.l.s4 1966171168
      %v7071 = vunpack.c.0.s8 %v7070
      %v7072 = vlaneseq
      %v7073 = vshrl.u32 %v7072, 7
      %v7074 = vsub.s32 %v7071, %v7073
      %v7075 = vrot.slane %v7047, %v7074
      %v7076 = vcombine.low %v7054, %v7068
      %v7077 = vcombine.low %v7061, %v7075
      %v7078 = vcombine.low %v5124, %v5169
      %v7079 = vcombine.high %v5124, %v5169
      %v7080 = vcombine.low %v5176, %v5183
      %v7081 = vcombine.high %v5176, %v5183
      %v7083 = vunpack.c.l.s4 1966171168
      %v7084 = vunpack.c.0.s8 %v7083
      %v7085 = vlaneseq
      %v7086 = vshrl.u32 %v7085, 7
      %v7087 = vsub.s32 %v7084, %v7086
      %v7088 = vrot.slane %v7078, %v7087
      %v7090 = vunpack.c.l.s4 1966171168
      %v7091 = vunpack.c.0.s8 %v7090
      %v7092 = vlaneseq
      %v7093 = vshrl.u32 %v7092, 7
      %v7094 = vsub.s32 %v7091, %v7093
      %v7095 = vrot.slane %v7079, %v7094
      %v7097 = vunpack.c.l.s4 1966171168
      %v7098 = vunpack.c.0.s8 %v7097
      %v7099 = vlaneseq
      %v7100 = vshrl.u32 %v7099, 7
      %v7101 = vsub.s32 %v7098, %v7100
      %v7102 = vrot.slane %v7080, %v7101
      %v7104 = vunpack.c.l.s4 1966171168
      %v7105 = vunpack.c.0.s8 %v7104
      %v7106 = vlaneseq
      %v7107 = vshrl.u32 %v7106, 7
      %v7108 = vsub.s32 %v7105, %v7107
      %v7109 = vrot.slane %v7081, %v7108
      %v7110 = vcombine.low %v7088, %v7102
      %v7111 = vcombine.low %v7095, %v7109
      %v7112 = vcombine.low %v5190, %v5235
      %v7113 = vcombine.high %v5190, %v5235
      %v7114 = vcombine.low %v5242, %v5249
      %v7115 = vcombine.high %v5242, %v5249
      %v7117 = vunpack.c.l.s4 1966171168
      %v7118 = vunpack.c.0.s8 %v7117
      %v7119 = vlaneseq
      %v7120 = vshrl.u32 %v7119, 7
      %v7121 = vsub.s32 %v7118, %v7120
      %v7122 = vrot.slane %v7112, %v7121
      %v7124 = vunpack.c.l.s4 1966171168
      %v7125 = vunpack.c.0.s8 %v7124
      %v7126 = vlaneseq
      %v7127 = vshrl.u32 %v7126, 7
      %v7128 = vsub.s32 %v7125, %v7127
      %v7129 = vrot.slane %v7113, %v7128
      %v7131 = vunpack.c.l.s4 1966171168
      %v7132 = vunpack.c.0.s8 %v7131
      %v7133 = vlaneseq
      %v7134 = vshrl.u32 %v7133, 7
      %v7135 = vsub.s32 %v7132, %v7134
      %v7136 = vrot.slane %v7114, %v7135
      %v7138 = vunpack.c.l.s4 1966171168
      %v7139 = vunpack.c.0.s8 %v7138
      %v7140 = vlaneseq
      %v7141 = vshrl.u32 %v7140, 7
      %v7142 = vsub.s32 %v7139, %v7141
      %v7143 = vrot.slane %v7115, %v7142
      %v7144 = vcombine.low %v7122, %v7136
      %v7145 = vcombine.low %v7129, %v7143
      %v7146 = vcombine.low %v5256, %v5301
      %v7147 = vcombine.high %v5256, %v5301
      %v7148 = vcombine.low %v5308, %v5315
      %v7149 = vcombine.high %v5308, %v5315
      %v7151 = vunpack.c.l.s4 1966171168
      %v7152 = vunpack.c.0.s8 %v7151
      %v7153 = vlaneseq
      %v7154 = vshrl.u32 %v7153, 7
      %v7155 = vsub.s32 %v7152, %v7154
      %v7156 = vrot.slane %v7146, %v7155
      %v7158 = vunpack.c.l.s4 1966171168
      %v7159 = vunpack.c.0.s8 %v7158
      %v7160 = vlaneseq
      %v7161 = vshrl.u32 %v7160, 7
      %v7162 = vsub.s32 %v7159, %v7161
      %v7163 = vrot.slane %v7147, %v7162
      %v7165 = vunpack.c.l.s4 1966171168
      %v7166 = vunpack.c.0.s8 %v7165
      %v7167 = vlaneseq
      %v7168 = vshrl.u32 %v7167, 7
      %v7169 = vsub.s32 %v7166, %v7168
      %v7170 = vrot.slane %v7148, %v7169
      %v7172 = vunpack.c.l.s4 1966171168
      %v7173 = vunpack.c.0.s8 %v7172
      %v7174 = vlaneseq
      %v7175 = vshrl.u32 %v7174, 7
      %v7176 = vsub.s32 %v7173, %v7175
      %v7177 = vrot.slane %v7149, %v7176
      %v7178 = vcombine.low %v7156, %v7170
      %v7179 = vcombine.low %v7163, %v7177
      %v7180 = vcombine.low %v5322, %v5367
      %v7181 = vcombine.high %v5322, %v5367
      %v7182 = vcombine.low %v5374, %v5381
      %v7183 = vcombine.high %v5374, %v5381
      %v7185 = vunpack.c.l.s4 1966171168
      %v7186 = vunpack.c.0.s8 %v7185
      %v7187 = vlaneseq
      %v7188 = vshrl.u32 %v7187, 7
      %v7189 = vsub.s32 %v7186, %v7188
      %v7190 = vrot.slane %v7180, %v7189
      %v7192 = vunpack.c.l.s4 1966171168
      %v7193 = vunpack.c.0.s8 %v7192
      %v7194 = vlaneseq
      %v7195 = vshrl.u32 %v7194, 7
      %v7196 = vsub.s32 %v7193, %v7195
      %v7197 = vrot.slane %v7181, %v7196
      %v7199 = vunpack.c.l.s4 1966171168
      %v7200 = vunpack.c.0.s8 %v7199
      %v7201 = vlaneseq
      %v7202 = vshrl.u32 %v7201, 7
      %v7203 = vsub.s32 %v7200, %v7202
      %v7204 = vrot.slane %v7182, %v7203
      %v7206 = vunpack.c.l.s4 1966171168
      %v7207 = vunpack.c.0.s8 %v7206
      %v7208 = vlaneseq
      %v7209 = vshrl.u32 %v7208, 7
      %v7210 = vsub.s32 %v7207, %v7209
      %v7211 = vrot.slane %v7183, %v7210
      %v7212 = vcombine.low %v7190, %v7204
      %v7213 = vcombine.low %v7197, %v7211
      %v7214 = vcombine.low %v2424, %v2426
      %v7215 = vcombine.low %v2428, %v2453
      %v7216 = vcombine.low %v2467, %v2475
      %v7218 = vunpack.c.l.s4 1966171168
      %v7219 = vunpack.c.0.s8 %v7218
      %v7220 = vlaneseq
      %v7221 = vshrl.u32 %v7220, 7
      %v7222 = vsub.s32 %v7219, %v7221
      %v7223 = vrot.slane %v7214, %v7222
      %v7225 = vunpack.c.l.s4 1966171168
      %v7226 = vunpack.c.0.s8 %v7225
      %v7227 = vlaneseq
      %v7228 = vshrl.u32 %v7227, 7
      %v7229 = vsub.s32 %v7226, %v7228
      %v7230 = vrot.slane %v7215, %v7229
      %v7232 = vunpack.c.l.s4 1966171168
      %v7233 = vunpack.c.0.s8 %v7232
      %v7234 = vlaneseq
      %v7235 = vshrl.u32 %v7234, 7
      %v7236 = vsub.s32 %v7233, %v7235
      %v7237 = vrot.slane %v7216, %v7236
      %v7238 = vcombine.low %v5388, %v7223
      %v7239 = vcombine.high %v5388, %v7223
      %v7240 = vcombine.low %v7230, %v7237
      %v7241 = vcombine.high %v7230, %v7237
      %v7243 = vunpack.c.l.s4 1966171168
      %v7244 = vunpack.c.0.s8 %v7243
      %v7245 = vlaneseq
      %v7246 = vshrl.u32 %v7245, 7
      %v7247 = vsub.s32 %v7244, %v7246
      %v7248 = vrot.slane %v7238, %v7247
      %v7250 = vunpack.c.l.s4 1966171168
      %v7251 = vunpack.c.0.s8 %v7250
      %v7252 = vlaneseq
      %v7253 = vshrl.u32 %v7252, 7
      %v7254 = vsub.s32 %v7251, %v7253
      %v7255 = vrot.slane %v7239, %v7254
      %v7257 = vunpack.c.l.s4 1966171168
      %v7258 = vunpack.c.0.s8 %v7257
      %v7259 = vlaneseq
      %v7260 = vshrl.u32 %v7259, 7
      %v7261 = vsub.s32 %v7258, %v7260
      %v7262 = vrot.slane %v7240, %v7261
      %v7264 = vunpack.c.l.s4 1966171168
      %v7265 = vunpack.c.0.s8 %v7264
      %v7266 = vlaneseq
      %v7267 = vshrl.u32 %v7266, 7
      %v7268 = vsub.s32 %v7265, %v7267
      %v7269 = vrot.slane %v7241, %v7268
      %v7270 = vcombine.low %v7248, %v7262
      %v7271 = vcombine.low %v7255, %v7269
      %v7322 = vunpack.c.l.b16 %v6910
      %v7323 = vunpack.c.l.b16 %v6911
      %v7324 = vunpack.c.l.b16 %v6912
      %v7325 = vunpack.c.l.b16 %v6913
      %v7326 = vunpack.c.l.b16 %v6914
      %v7327 = vunpack.c.l.b16 %v6915
      %v7328 = vunpack.c.l.b16 %v6916
      %v7329 = vunpack.c.l.b16 %v6917
      %v7330 = vunpack.c.l.b16 %v6918
      %v7331 = vunpack.c.l.b16 %v6919
      %v7332 = vunpack.c.l.b16 %v6920
      %v7333 = vunpack.c.l.b16 %v6921
      %v7334 = vunpack.c.l.b16 %v6922
      %v7335 = vunpack.c.l.b16 %v6923
      %v7336 = vunpack.c.l.b16 %v6924
      %v7337 = vunpack.c.l.b16 %v6925
      %v7338 = vunpack.c.l.b16 %v6926
      %v7339 = vunpack.c.l.b16 %v6927
      %v7340 = vunpack.c.l.b16 %v6928
      %v7341 = vunpack.c.l.b16 %v6929
      %v7342 = vunpack.c.l.b16 %v6930
      %v7343 = vunpack.c.l.b16 %v6931
      %v7344 = vunpack.c.l.b16 %v6932
      %v7345 = vunpack.c.l.b16 %v6933
      %v7346 = vunpack.c.l.b16 %v6934
      %v7347 = vunpack.c.l.b16 %v6935
      %v7348 = vunpack.c.l.b16 %v6936
      %v7349 = vunpack.c.l.b16 %v6937
      %v7350 = vunpack.c.l.b16 %v6938
      %v7351 = vunpack.c.l.b16 %v6939
      %v7352 = vunpack.c.l.b16 %v6940
      %v7353 = vunpack.c.l.b16 %v6941
      %v7354 = vpack.c.b16 %v7323, %v7322
      %v7355 = vpack.c.b16 %v7325, %v7324
      %v7356 = vpack.c.b16 %v7327, %v7326
      %v7357 = vpack.c.b16 %v7329, %v7328
      %v7358 = vpack.c.b16 %v7331, %v7330
      %v7359 = vpack.c.b16 %v7333, %v7332
      %v7360 = vpack.c.b16 %v7335, %v7334
      %v7361 = vpack.c.b16 %v7337, %v7336
      %v7362 = vpack.c.b16 %v7339, %v7338
      %v7363 = vpack.c.b16 %v7341, %v7340
      %v7364 = vpack.c.b16 %v7343, %v7342
      %v7365 = vpack.c.b16 %v7345, %v7344
      %v7366 = vpack.c.b16 %v7347, %v7346
      %v7367 = vpack.c.b16 %v7349, %v7348
      %v7368 = vpack.c.b16 %v7351, %v7350
      %v7369 = vpack.c.b16 %v7353, %v7352
      %7386 = vmatprep.subr.bf16.mxu0 0
      %7387 = vmatpush1.bf16.msra.mxu0 %v7354
      %7388 = vmatprep.subr.bf16.mxu0 0
      %7389 = vmatpush1.bf16.msra.mxu0 %v7355
      %7390 = vmatprep.subr.bf16.mxu0 0
      %7391 = vmatpush1.bf16.msra.mxu0 %v7356
      %7392 = vmatprep.subr.bf16.mxu0 0
      %7393 = vmatpush1.bf16.msra.mxu0 %v7357
      %7394 = vmatprep.subr.bf16.mxu0 0
      %7395 = vmatpush1.bf16.msra.mxu0 %v7358
      %7396 = vmatprep.subr.bf16.mxu0 0
      %7397 = vmatpush1.bf16.msra.mxu0 %v7359
      %7398 = vmatprep.subr.bf16.mxu0 0
      %7399 = vmatpush1.bf16.msra.mxu0 %v7360
      %7400 = vmatprep.subr.bf16.mxu0 0
      %7401 = vmatpush1.bf16.msra.mxu0 %v7361
      %7402 = vmatprep.subr.bf16.mxu0 0
      %7403 = vmatpush1.bf16.msra.mxu0 %v7362
      %7404 = vmatprep.subr.bf16.mxu0 0
      %7405 = vmatpush1.bf16.msra.mxu0 %v7363
      %7406 = vmatprep.subr.bf16.mxu0 0
      %7407 = vmatpush1.bf16.msra.mxu0 %v7364
      %7408 = vmatprep.subr.bf16.mxu0 0
      %7409 = vmatpush1.bf16.msra.mxu0 %v7365
      %7410 = vmatprep.subr.bf16.mxu0 0
      %7411 = vmatpush1.bf16.msra.mxu0 %v7366
      %7412 = vmatprep.subr.bf16.mxu0 0
      %7413 = vmatpush1.bf16.msra.mxu0 %v7367
      %7414 = vmatprep.subr.bf16.mxu0 0
      %7415 = vmatpush1.bf16.msra.mxu0 %v7368
      %7416 = vmatprep.subr.bf16.mxu0 0
      %7417 = vmatpush1.bf16.msra.mxu0 %v7369
      %7418 = vmatprep.mubr.bf16.mxu0 %v6975
      %7419 = vmatmul.mubr.bf16.gmra.mrb[0].mxu0 %v6974
      %v7420 = vpop.f32.mrb[0].mxu0
      %v7421 = vadd.f32 0.0, %v7420
      %v7422 = vpop.f32.mrb[0].mxu0
      %v7423 = vpop.f32.mrb[0].mxu0
      %v7424 = vadd.f32 0.0, %v7423
      %v7425 = vpop.f32.mrb[0].mxu0
      %7426 = vmatprep.mubr.bf16.mxu0 %v7009
      %7427 = vmatmul.mubr.bf16.gmra.mrb[0].mxu0 %v7008
      %v7428 = vpop.f32.mrb[0].mxu0
      %v7429 = vadd.f32 0.0, %v7428
      %v7430 = vpop.f32.mrb[0].mxu0
      %v7431 = vpop.f32.mrb[0].mxu0
      %v7432 = vadd.f32 0.0, %v7431
      %v7433 = vpop.f32.mrb[0].mxu0
      %7434 = vmatprep.mubr.bf16.mxu0 %v7043
      %7435 = vmatmul.mubr.bf16.gmra.mrb[0].mxu0 %v7042
      %v7436 = vpop.f32.mrb[0].mxu0
      %v7437 = vadd.f32 0.0, %v7436
      %v7438 = vpop.f32.mrb[0].mxu0
      %v7439 = vpop.f32.mrb[0].mxu0
      %v7440 = vadd.f32 0.0, %v7439
      %v7441 = vpop.f32.mrb[0].mxu0
      %7442 = vmatprep.mubr.bf16.mxu0 %v7077
      %7443 = vmatmul.mubr.bf16.gmra.mrb[0].mxu0 %v7076
      %v7444 = vpop.f32.mrb[0].mxu0
      %v7445 = vadd.f32 0.0, %v7444
      %v7446 = vpop.f32.mrb[0].mxu0
      %v7447 = vpop.f32.mrb[0].mxu0
      %v7448 = vadd.f32 0.0, %v7447
      %v7449 = vpop.f32.mrb[0].mxu0
      %7450 = vmatprep.mubr.bf16.mxu0 %v7111
      %7451 = vmatmul.mubr.bf16.gmra.mrb[0].mxu0 %v7110
      %v7452 = vpop.f32.mrb[0].mxu0
      %v7453 = vadd.f32 0.0, %v7452
      %v7454 = vpop.f32.mrb[0].mxu0
      %v7455 = vpop.f32.mrb[0].mxu0
      %v7456 = vadd.f32 0.0, %v7455
      %v7457 = vpop.f32.mrb[0].mxu0
      %7458 = vmatprep.mubr.bf16.mxu0 %v7145
      %7459 = vmatmul.mubr.bf16.gmra.mrb[0].mxu0 %v7144
      %v7460 = vpop.f32.mrb[0].mxu0
      %v7461 = vadd.f32 0.0, %v7460
      %v7462 = vpop.f32.mrb[0].mxu0
      %v7463 = vpop.f32.mrb[0].mxu0
      %v7464 = vadd.f32 0.0, %v7463
      %v7465 = vpop.f32.mrb[0].mxu0
      %7466 = vmatprep.mubr.bf16.mxu0 %v7179
      %7467 = vmatmul.mubr.bf16.gmra.mrb[0].mxu0 %v7178
      %v7468 = vpop.f32.mrb[0].mxu0
      %v7469 = vadd.f32 0.0, %v7468
      %v7470 = vpop.f32.mrb[0].mxu0
      %v7471 = vpop.f32.mrb[0].mxu0
      %v7472 = vadd.f32 0.0, %v7471
      %v7473 = vpop.f32.mrb[0].mxu0
      %7474 = vmatprep.mubr.bf16.mxu0 %v7213
      %7475 = vmatmul.mubr.bf16.gmra.mrb[0].mxu0 %v7212
      %v7476 = vpop.f32.mrb[0].mxu0
      %v7477 = vadd.f32 0.0, %v7476
      %v7478 = vpop.f32.mrb[0].mxu0
      %v7479 = vpop.f32.mrb[0].mxu0
      %v7480 = vadd.f32 0.0, %v7479
      %v7481 = vpop.f32.mrb[0].mxu0
      %7482 = vmatprep.mubr.bf16.mxu0 %v7271
      %7483 = vmatmul.mubr.bf16.gmra.mrb[0].mxu0 %v7270
      %v7484 = vpop.f32.mrb[0].mxu0
      %v7485 = vadd.f32 0.0, %v7484
      %v7486 = vpop.f32.mrb[0].mxu0
      %v7487 = vpop.f32.mrb[0].mxu0
      %v7488 = vadd.f32 0.0, %v7487
      %v7489 = vpop.f32.mrb[0].mxu0
      %7490 = vdwg.mxu0
      %v7491 = vadd.f32 %v6891, %v7421
      %v7492 = vadd.f32 %v6892, %v7424
      %v7493 = vadd.f32 %v6893, %v7429
      %v7494 = vadd.f32 %v6894, %v7432
      %v7495 = vadd.f32 %v6895, %v7437
      %v7496 = vadd.f32 %v6896, %v7440
      %v7497 = vadd.f32 %v6897, %v7445
      %v7498 = vadd.f32 %v6898, %v7448
      %v7499 = vadd.f32 %v6899, %v7453
      %v7500 = vadd.f32 %v6900, %v7456
      %v7501 = vadd.f32 %v6901, %v7461
      %v7502 = vadd.f32 %v6902, %v7464
      %v7503 = vadd.f32 %v6903, %v7469
      %v7504 = vadd.f32 %v6904, %v7472
      %v7505 = vadd.f32 %v6905, %v7477
      %v7506 = vadd.f32 %v6906, %v7480
      %v7507 = vadd.f32 %v6907, %v7485
      %v7508 = vadd.f32 %v6908, %v7488
      %s7509 = scalar_lea.vmem %s2, 768
      %v7510 = vld [vmem:[%s7509] sm:$0xf]
      %v7511 = vld [vmem:[%s7509 + $0x4] sm:$0xf]
      %v7512 = vld [vmem:[%s7509 + $0x8] sm:$0xf]
      %v7513 = vld [vmem:[%s7509 + $0xc] sm:$0xf]
      %v7514 = vld [vmem:[%s7509 + $0x10] sm:$0xf]
      %v7515 = vld [vmem:[%s7509 + $0x14] sm:$0xf]
      %v7516 = vld [vmem:[%s7509 + $0x18] sm:$0xf]
      %v7517 = vld [vmem:[%s7509 + $0x1c] sm:$0xf]
      %v7518 = vld [vmem:[%s7509 + $0x20] sm:$0xf]
      %v7519 = vld [vmem:[%s7509 + $0x24] sm:$0xf]
      %v7520 = vld [vmem:[%s7509 + $0x28] sm:$0xf]
      %v7521 = vld [vmem:[%s7509 + $0x2c] sm:$0xf]
      %v7522 = vld [vmem:[%s7509 + $0x30] sm:$0xf]
      %v7523 = vld [vmem:[%s7509 + $0x34] sm:$0xf]
      %v7524 = vld [vmem:[%s7509 + $0x38] sm:$0xf]
      %v7525 = vld [vmem:[%s7509 + $0x3c] sm:$0xf]
      %v7526 = vld [vmem:[%s7509 + $0x40] sm:$0xf]
      %v7527 = vld [vmem:[%s7509 + $0x44] sm:$0xf]
      %v7528 = vld [vmem:[%s7509 + $0x48] sm:$0xf]
      %v7529 = vld [vmem:[%s7509 + $0x4c] sm:$0xf]
      %v7530 = vld [vmem:[%s7509 + $0x50] sm:$0xf]
      %v7531 = vld [vmem:[%s7509 + $0x54] sm:$0xf]
      %v7532 = vld [vmem:[%s7509 + $0x58] sm:$0xf]
      %v7533 = vld [vmem:[%s7509 + $0x5c] sm:$0xf]
      %v7534 = vld [vmem:[%s7509 + $0x60] sm:$0xf]
      %v7535 = vld [vmem:[%s7509 + $0x64] sm:$0xf]
      %v7536 = vld [vmem:[%s7509 + $0x68] sm:$0xf]
      %v7537 = vld [vmem:[%s7509 + $0x6c] sm:$0xf]
      %v7538 = vld [vmem:[%s7509 + $0x70] sm:$0xf]
      %v7539 = vld [vmem:[%s7509 + $0x74] sm:$0xf]
      %v7540 = vld [vmem:[%s7509 + $0x78] sm:$0xf]
      %v7541 = vld [vmem:[%s7509 + $0x7c] sm:$0xf]
      %v7542 = vcombine.low %v4105, %v4157
      %v7543 = vcombine.low %v4112, %v4164
      %v7544 = vcombine.low %v4171, %v4223
      %v7545 = vcombine.low %v4178, %v4230
      %v7546 = vcombine.low %v4237, %v4289
      %v7547 = vcombine.low %v4244, %v4296
      %v7548 = vcombine.low %v4303, %v4355
      %v7549 = vcombine.low %v4310, %v4362
      %v7550 = vcombine.low %v4369, %v4421
      %v7551 = vcombine.low %v4376, %v4428
      %v7552 = vcombine.low %v4435, %v4487
      %v7553 = vcombine.low %v4442, %v4494
      %v7554 = vcombine.low %v4501, %v4553
      %v7555 = vcombine.low %v4508, %v4560
      %v7556 = vcombine.low %v5974, %v5981
      %v7557 = vcombine.high %v5974, %v5981
      %v7559 = vunpack.c.l.s4 1966171168
      %v7560 = vunpack.c.0.s8 %v7559
      %v7561 = vlaneseq
      %v7562 = vshrl.u32 %v7561, 7
      %v7563 = vsub.s32 %v7560, %v7562
      %v7564 = vrot.slane %v7556, %v7563
      %v7566 = vunpack.c.l.s4 1966171168
      %v7567 = vunpack.c.0.s8 %v7566
      %v7568 = vlaneseq
      %v7569 = vshrl.u32 %v7568, 7
      %v7570 = vsub.s32 %v7567, %v7569
      %v7571 = vrot.slane %v7557, %v7570
      %v7572 = vcombine.low %v4567, %v7564
      %v7573 = vcombine.low %v4574, %v7571
      %v7574 = vcombine.low %v2477, %v2460
      %v7575 = vcombine.low %v2474, %v2476
      %v7576 = vcombine.low %v2478, %v2494
      %v7578 = vunpack.c.l.s4 1966171168
      %v7579 = vunpack.c.0.s8 %v7578
      %v7580 = vlaneseq
      %v7581 = vshrl.u32 %v7580, 7
      %v7582 = vsub.s32 %v7579, %v7581
      %v7583 = vrot.slane %v7574, %v7582
      %v7585 = vunpack.c.l.s4 1966171168
      %v7586 = vunpack.c.0.s8 %v7585
      %v7587 = vlaneseq
      %v7588 = vshrl.u32 %v7587, 7
      %v7589 = vsub.s32 %v7586, %v7588
      %v7590 = vrot.slane %v7575, %v7589
      %v7592 = vunpack.c.l.s4 1966171168
      %v7593 = vunpack.c.0.s8 %v7592
      %v7594 = vlaneseq
      %v7595 = vshrl.u32 %v7594, 7
      %v7596 = vsub.s32 %v7593, %v7595
      %v7597 = vrot.slane %v7576, %v7596
      %v7598 = vcombine.low %v5988, %v7583
      %v7599 = vcombine.high %v5988, %v7583
      %v7600 = vcombine.low %v7590, %v7597
      %v7601 = vcombine.high %v7590, %v7597
      %v7603 = vunpack.c.l.s4 1966171168
      %v7604 = vunpack.c.0.s8 %v7603
      %v7605 = vlaneseq
      %v7606 = vshrl.u32 %v7605, 7
      %v7607 = vsub.s32 %v7604, %v7606
      %v7608 = vrot.slane %v7598, %v7607
      %v7610 = vunpack.c.l.s4 1966171168
      %v7611 = vunpack.c.0.s8 %v7610
      %v7612 = vlaneseq
      %v7613 = vshrl.u32 %v7612, 7
      %v7614 = vsub.s32 %v7611, %v7613
      %v7615 = vrot.slane %v7599, %v7614
      %v7617 = vunpack.c.l.s4 1966171168
      %v7618 = vunpack.c.0.s8 %v7617
      %v7619 = vlaneseq
      %v7620 = vshrl.u32 %v7619, 7
      %v7621 = vsub.s32 %v7618, %v7620
      %v7622 = vrot.slane %v7600, %v7621
      %v7624 = vunpack.c.l.s4 1966171168
      %v7625 = vunpack.c.0.s8 %v7624
      %v7626 = vlaneseq
      %v7627 = vshrl.u32 %v7626, 7
      %v7628 = vsub.s32 %v7625, %v7627
      %v7629 = vrot.slane %v7601, %v7628
      %v7630 = vcombine.low %v7608, %v7622
      %v7631 = vcombine.low %v7615, %v7629
      %v7682 = vunpack.c.l.b16 %v7510
      %v7683 = vunpack.c.l.b16 %v7511
      %v7684 = vunpack.c.l.b16 %v7512
      %v7685 = vunpack.c.l.b16 %v7513
      %v7686 = vunpack.c.l.b16 %v7514
      %v7687 = vunpack.c.l.b16 %v7515
      %v7688 = vunpack.c.l.b16 %v7516
      %v7689 = vunpack.c.l.b16 %v7517
      %v7690 = vunpack.c.l.b16 %v7518
      %v7691 = vunpack.c.l.b16 %v7519
      %v7692 = vunpack.c.l.b16 %v7520
      %v7693 = vunpack.c.l.b16 %v7521
      %v7694 = vunpack.c.l.b16 %v7522
      %v7695 = vunpack.c.l.b16 %v7523
      %v7696 = vunpack.c.l.b16 %v7524
      %v7697 = vunpack.c.l.b16 %v7525
      %v7698 = vunpack.c.l.b16 %v7526
      %v7699 = vunpack.c.l.b16 %v7527
      %v7700 = vunpack.c.l.b16 %v7528
      %v7701 = vunpack.c.l.b16 %v7529
      %v7702 = vunpack.c.l.b16 %v7530
      %v7703 = vunpack.c.l.b16 %v7531
      %v7704 = vunpack.c.l.b16 %v7532
      %v7705 = vunpack.c.l.b16 %v7533
      %v7706 = vunpack.c.l.b16 %v7534
      %v7707 = vunpack.c.l.b16 %v7535
      %v7708 = vunpack.c.l.b16 %v7536
      %v7709 = vunpack.c.l.b16 %v7537
      %v7710 = vunpack.c.l.b16 %v7538
      %v7711 = vunpack.c.l.b16 %v7539
      %v7712 = vunpack.c.l.b16 %v7540
      %v7713 = vunpack.c.l.b16 %v7541
      %v7714 = vpack.c.b16 %v7683, %v7682
      %v7715 = vpack.c.b16 %v7685, %v7684
      %v7716 = vpack.c.b16 %v7687, %v7686
      %v7717 = vpack.c.b16 %v7689, %v7688
      %v7718 = vpack.c.b16 %v7691, %v7690
      %v7719 = vpack.c.b16 %v7693, %v7692
      %v7720 = vpack.c.b16 %v7695, %v7694
      %v7721 = vpack.c.b16 %v7697, %v7696
      %v7722 = vpack.c.b16 %v7699, %v7698
      %v7723 = vpack.c.b16 %v7701, %v7700
      %v7724 = vpack.c.b16 %v7703, %v7702
      %v7725 = vpack.c.b16 %v7705, %v7704
      %v7726 = vpack.c.b16 %v7707, %v7706
      %v7727 = vpack.c.b16 %v7709, %v7708
      %v7728 = vpack.c.b16 %v7711, %v7710
      %v7729 = vpack.c.b16 %v7713, %v7712
      %7746 = vmatprep.subr.bf16.mxu0 0
      %7747 = vmatpush1.bf16.msra.mxu0 %v7714
      %7748 = vmatprep.subr.bf16.mxu0 0
      %7749 = vmatpush1.bf16.msra.mxu0 %v7715
      %7750 = vmatprep.subr.bf16.mxu0 0
      %7751 = vmatpush1.bf16.msra.mxu0 %v7716
      %7752 = vmatprep.subr.bf16.mxu0 0
      %7753 = vmatpush1.bf16.msra.mxu0 %v7717
      %7754 = vmatprep.subr.bf16.mxu0 0
      %7755 = vmatpush1.bf16.msra.mxu0 %v7718
      %7756 = vmatprep.subr.bf16.mxu0 0
      %7757 = vmatpush1.bf16.msra.mxu0 %v7719
      %7758 = vmatprep.subr.bf16.mxu0 0
      %7759 = vmatpush1.bf16.msra.mxu0 %v7720
      %7760 = vmatprep.subr.bf16.mxu0 0
      %7761 = vmatpush1.bf16.msra.mxu0 %v7721
      %7762 = vmatprep.subr.bf16.mxu0 0
      %7763 = vmatpush1.bf16.msra.mxu0 %v7722
      %7764 = vmatprep.subr.bf16.mxu0 0
      %7765 = vmatpush1.bf16.msra.mxu0 %v7723
      %7766 = vmatprep.subr.bf16.mxu0 0
      %7767 = vmatpush1.bf16.msra.mxu0 %v7724
      %7768 = vmatprep.subr.bf16.mxu0 0
      %7769 = vmatpush1.bf16.msra.mxu0 %v7725
      %7770 = vmatprep.subr.bf16.mxu0 0
      %7771 = vmatpush1.bf16.msra.mxu0 %v7726
      %7772 = vmatprep.subr.bf16.mxu0 0
      %7773 = vmatpush1.bf16.msra.mxu0 %v7727
      %7774 = vmatprep.subr.bf16.mxu0 0
      %7775 = vmatpush1.bf16.msra.mxu0 %v7728
      %7776 = vmatprep.subr.bf16.mxu0 0
      %7777 = vmatpush1.bf16.msra.mxu0 %v7729
      %7778 = vmatprep.mubr.bf16.mxu0 %v7543
      %7779 = vmatmul.mubr.bf16.gmra.mrb[0].mxu0 %v7542
      %v7780 = vpop.f32.mrb[0].mxu0
      %v7781 = vadd.f32 0.0, %v7780
      %v7782 = vpop.f32.mrb[0].mxu0
      %v7783 = vpop.f32.mrb[0].mxu0
      %v7784 = vadd.f32 0.0, %v7783
      %v7785 = vpop.f32.mrb[0].mxu0
      %7786 = vmatprep.mubr.bf16.mxu0 %v7545
      %7787 = vmatmul.mubr.bf16.gmra.mrb[0].mxu0 %v7544
      %v7788 = vpop.f32.mrb[0].mxu0
      %v7789 = vadd.f32 0.0, %v7788
      %v7790 = vpop.f32.mrb[0].mxu0
      %v7791 = vpop.f32.mrb[0].mxu0
      %v7792 = vadd.f32 0.0, %v7791
      %v7793 = vpop.f32.mrb[0].mxu0
      %7794 = vmatprep.mubr.bf16.mxu0 %v7547
      %7795 = vmatmul.mubr.bf16.gmra.mrb[0].mxu0 %v7546
      %v7796 = vpop.f32.mrb[0].mxu0
      %v7797 = vadd.f32 0.0, %v7796
      %v7798 = vpop.f32.mrb[0].mxu0
      %v7799 = vpop.f32.mrb[0].mxu0
      %v7800 = vadd.f32 0.0, %v7799
      %v7801 = vpop.f32.mrb[0].mxu0
      %7802 = vmatprep.mubr.bf16.mxu0 %v7549
      %7803 = vmatmul.mubr.bf16.gmra.mrb[0].mxu0 %v7548
      %v7804 = vpop.f32.mrb[0].mxu0
      %v7805 = vadd.f32 0.0, %v7804
      %v7806 = vpop.f32.mrb[0].mxu0
      %v7807 = vpop.f32.mrb[0].mxu0
      %v7808 = vadd.f32 0.0, %v7807
      %v7809 = vpop.f32.mrb[0].mxu0
      %7810 = vmatprep.mubr.bf16.mxu0 %v7551
      %7811 = vmatmul.mubr.bf16.gmra.mrb[0].mxu0 %v7550
      %v7812 = vpop.f32.mrb[0].mxu0
      %v7813 = vadd.f32 0.0, %v7812
      %v7814 = vpop.f32.mrb[0].mxu0
      %v7815 = vpop.f32.mrb[0].mxu0
      %v7816 = vadd.f32 0.0, %v7815
      %v7817 = vpop.f32.mrb[0].mxu0
      %7818 = vmatprep.mubr.bf16.mxu0 %v7553
      %7819 = vmatmul.mubr.bf16.gmra.mrb[0].mxu0 %v7552
      %v7820 = vpop.f32.mrb[0].mxu0
      %v7821 = vadd.f32 0.0, %v7820
      %v7822 = vpop.f32.mrb[0].mxu0
      %v7823 = vpop.f32.mrb[0].mxu0
      %v7824 = vadd.f32 0.0, %v7823
      %v7825 = vpop.f32.mrb[0].mxu0
      %7826 = vmatprep.mubr.bf16.mxu0 %v7555
      %7827 = vmatmul.mubr.bf16.gmra.mrb[0].mxu0 %v7554
      %v7828 = vpop.f32.mrb[0].mxu0
      %v7829 = vadd.f32 0.0, %v7828
      %v7830 = vpop.f32.mrb[0].mxu0
      %v7831 = vpop.f32.mrb[0].mxu0
      %v7832 = vadd.f32 0.0, %v7831
      %v7833 = vpop.f32.mrb[0].mxu0
      %7834 = vmatprep.mubr.bf16.mxu0 %v7573
      %7835 = vmatmul.mubr.bf16.gmra.mrb[0].mxu0 %v7572
      %v7836 = vpop.f32.mrb[0].mxu0
      %v7837 = vadd.f32 0.0, %v7836
      %v7838 = vpop.f32.mrb[0].mxu0
      %v7839 = vpop.f32.mrb[0].mxu0
      %v7840 = vadd.f32 0.0, %v7839
      %v7841 = vpop.f32.mrb[0].mxu0
      %7842 = vmatprep.mubr.bf16.mxu0 %v7631
      %7843 = vmatmul.mubr.bf16.gmra.mrb[0].mxu0 %v7630
      %v7844 = vpop.f32.mrb[0].mxu0
      %v7845 = vadd.f32 0.0, %v7844
      %v7846 = vpop.f32.mrb[0].mxu0
      %v7847 = vpop.f32.mrb[0].mxu0
      %v7848 = vadd.f32 0.0, %v7847
      %v7849 = vpop.f32.mrb[0].mxu0
      %7850 = vdwg.mxu0
      %v7851 = vadd.f32 %v7491, %v7781
      %v7852 = vadd.f32 %v7492, %v7784
      %v7853 = vadd.f32 %v7493, %v7789
      %v7854 = vadd.f32 %v7494, %v7792
      %v7855 = vadd.f32 %v7495, %v7797
      %v7856 = vadd.f32 %v7496, %v7800
      %v7857 = vadd.f32 %v7497, %v7805
      %v7858 = vadd.f32 %v7498, %v7808
      %v7859 = vadd.f32 %v7499, %v7813
      %v7860 = vadd.f32 %v7500, %v7816
      %v7861 = vadd.f32 %v7501, %v7821
      %v7862 = vadd.f32 %v7502, %v7824
      %v7863 = vadd.f32 %v7503, %v7829
      %v7864 = vadd.f32 %v7504, %v7832
      %v7865 = vadd.f32 %v7505, %v7837
      %v7866 = vadd.f32 %v7506, %v7840
      %v7867 = vadd.f32 %v7507, %v7845
      %v7868 = vadd.f32 %v7508, %v7848
      %v7870 = vshrl.u32 %v2477, 16
      %v7872 = vrot.slane %v7870, 7
      %v7873 = vrot.slane %v7872, 1
      %v7875 = vshll.u32 %v2460, 16
      %v7877 = vsel %vm2548, %v7873, %v7875
      %v7878 = vshrl.u32 %v2460, 16
      %v7880 = vrot.slane %v7878, 7
      %v7881 = vrot.slane %v7880, 1
      %v7883 = vshll.u32 %v2474, 16
      %v7885 = vsel %vm2548, %v7881, %v7883
      %v7886 = vshrl.u32 %v2474, 16
      %v7888 = vrot.slane %v7886, 7
      %v7889 = vrot.slane %v7888, 1
      %v7891 = vshll.u32 %v2476, 16
      %v7893 = vsel %vm2548, %v7889, %v7891
      %v7894 = vshrl.u32 %v2476, 16
      %v7896 = vrot.slane %v7894, 7
      %v7897 = vrot.slane %v7896, 1
      %v7899 = vshll.u32 %v2478, 16
      %v7901 = vsel %vm2548, %v7897, %v7899
      %v7902 = vshrl.u32 %v2478, 16
      %v7904 = vrot.slane %v7902, 7
      %v7905 = vrot.slane %v7904, 1
      %v7907 = vshll.u32 %v2494, 16
      %v7909 = vsel %vm2548, %v7905, %v7907
      %v7910 = vshrl.u32 %v2494, 16
      %v7912 = vrot.slane %v7910, 7
      %v7913 = vrot.slane %v7912, 1
      %v7915 = vshll.u32 %v2501, 16
      %v7917 = vsel %vm2548, %v7913, %v7915
      %s7918 = scalar_lea.vmem %s2, 896
      %v7919 = vld [vmem:[%s7918] sm:$0xf]
      %v7920 = vld [vmem:[%s7918 + $0x4] sm:$0xf]
      %v7921 = vld [vmem:[%s7918 + $0x8] sm:$0xf]
      %v7922 = vld [vmem:[%s7918 + $0xc] sm:$0xf]
      %v7923 = vld [vmem:[%s7918 + $0x10] sm:$0xf]
      %v7924 = vld [vmem:[%s7918 + $0x14] sm:$0xf]
      %v7925 = vld [vmem:[%s7918 + $0x18] sm:$0xf]
      %v7926 = vld [vmem:[%s7918 + $0x1c] sm:$0xf]
      %v7927 = vld [vmem:[%s7918 + $0x20] sm:$0xf]
      %v7928 = vld [vmem:[%s7918 + $0x24] sm:$0xf]
      %v7929 = vld [vmem:[%s7918 + $0x28] sm:$0xf]
      %v7930 = vld [vmem:[%s7918 + $0x2c] sm:$0xf]
      %v7931 = vld [vmem:[%s7918 + $0x30] sm:$0xf]
      %v7932 = vld [vmem:[%s7918 + $0x34] sm:$0xf]
      %v7933 = vld [vmem:[%s7918 + $0x38] sm:$0xf]
      %v7934 = vld [vmem:[%s7918 + $0x3c] sm:$0xf]
      %v7935 = vld [vmem:[%s7918 + $0x40] sm:$0xf]
      %v7936 = vld [vmem:[%s7918 + $0x44] sm:$0xf]
      %v7937 = vld [vmem:[%s7918 + $0x48] sm:$0xf]
      %v7938 = vld [vmem:[%s7918 + $0x4c] sm:$0xf]
      %v7939 = vld [vmem:[%s7918 + $0x50] sm:$0xf]
      %v7940 = vld [vmem:[%s7918 + $0x54] sm:$0xf]
      %v7941 = vld [vmem:[%s7918 + $0x58] sm:$0xf]
      %v7942 = vld [vmem:[%s7918 + $0x5c] sm:$0xf]
      %v7943 = vld [vmem:[%s7918 + $0x60] sm:$0xf]
      %v7944 = vld [vmem:[%s7918 + $0x64] sm:$0xf]
      %v7945 = vld [vmem:[%s7918 + $0x68] sm:$0xf]
      %v7946 = vld [vmem:[%s7918 + $0x6c] sm:$0xf]
      %v7947 = vld [vmem:[%s7918 + $0x70] sm:$0xf]
      %v7948 = vld [vmem:[%s7918 + $0x74] sm:$0xf]
      %v7949 = vld [vmem:[%s7918 + $0x78] sm:$0xf]
      %v7950 = vld [vmem:[%s7918 + $0x7c] sm:$0xf]
      %v7951 = vcombine.low %v3292, %v3344
      %v7952 = vcombine.low %v3299, %v3351
      %v7953 = vcombine.low %v3358, %v3410
      %v7954 = vcombine.low %v3365, %v3417
      %v7955 = vcombine.low %v3424, %v3476
      %v7956 = vcombine.low %v3431, %v3483
      %v7957 = vcombine.low %v3490, %v3542
      %v7958 = vcombine.low %v3497, %v3549
      %v7959 = vcombine.low %v3556, %v3608
      %v7960 = vcombine.low %v3563, %v3615
      %v7961 = vcombine.low %v3622, %v3674
      %v7962 = vcombine.low %v3629, %v3681
      %v7963 = vcombine.low %v3688, %v3740
      %v7964 = vcombine.low %v3695, %v3747
      %v7965 = vcombine.low %v6623, %v6630
      %v7966 = vcombine.high %v6623, %v6630
      %v7968 = vunpack.c.l.s4 1966171168
      %v7969 = vunpack.c.0.s8 %v7968
      %v7970 = vlaneseq
      %v7971 = vshrl.u32 %v7970, 7
      %v7972 = vsub.s32 %v7969, %v7971
      %v7973 = vrot.slane %v7965, %v7972
      %v7975 = vunpack.c.l.s4 1966171168
      %v7976 = vunpack.c.0.s8 %v7975
      %v7977 = vlaneseq
      %v7978 = vshrl.u32 %v7977, 7
      %v7979 = vsub.s32 %v7976, %v7978
      %v7980 = vrot.slane %v7966, %v7979
      %v7981 = vcombine.low %v3754, %v7973
      %v7982 = vcombine.low %v3761, %v7980
      %v7983 = vcombine.low %v7877, %v7885
      %v7984 = vcombine.low %v7893, %v7901
      %v7985 = vcombine.low %v7909, %v7917
      %v7987 = vunpack.c.l.s4 1966171168
      %v7988 = vunpack.c.0.s8 %v7987
      %v7989 = vlaneseq
      %v7990 = vshrl.u32 %v7989, 7
      %v7991 = vsub.s32 %v7988, %v7990
      %v7992 = vrot.slane %v7983, %v7991
      %v7994 = vunpack.c.l.s4 1966171168
      %v7995 = vunpack.c.0.s8 %v7994
      %v7996 = vlaneseq
      %v7997 = vshrl.u32 %v7996, 7
      %v7998 = vsub.s32 %v7995, %v7997
      %v7999 = vrot.slane %v7984, %v7998
      %v8001 = vunpack.c.l.s4 1966171168
      %v8002 = vunpack.c.0.s8 %v8001
      %v8003 = vlaneseq
      %v8004 = vshrl.u32 %v8003, 7
      %v8005 = vsub.s32 %v8002, %v8004
      %v8006 = vrot.slane %v7985, %v8005
      %v8007 = vcombine.low %v6637, %v7992
      %v8008 = vcombine.high %v6637, %v7992
      %v8009 = vcombine.low %v7999, %v8006
      %v8010 = vcombine.high %v7999, %v8006
      %v8012 = vunpack.c.l.s4 1966171168
      %v8013 = vunpack.c.0.s8 %v8012
      %v8014 = vlaneseq
      %v8015 = vshrl.u32 %v8014, 7
      %v8016 = vsub.s32 %v8013, %v8015
      %v8017 = vrot.slane %v8007, %v8016
      %v8019 = vunpack.c.l.s4 1966171168
      %v8020 = vunpack.c.0.s8 %v8019
      %v8021 = vlaneseq
      %v8022 = vshrl.u32 %v8021, 7
      %v8023 = vsub.s32 %v8020, %v8022
      %v8024 = vrot.slane %v8008, %v8023
      %v8026 = vunpack.c.l.s4 1966171168
      %v8027 = vunpack.c.0.s8 %v8026
      %v8028 = vlaneseq
      %v8029 = vshrl.u32 %v8028, 7
      %v8030 = vsub.s32 %v8027, %v8029
      %v8031 = vrot.slane %v8009, %v8030
      %v8033 = vunpack.c.l.s4 1966171168
      %v8034 = vunpack.c.0.s8 %v8033
      %v8035 = vlaneseq
      %v8036 = vshrl.u32 %v8035, 7
      %v8037 = vsub.s32 %v8034, %v8036
      %v8038 = vrot.slane %v8010, %v8037
      %v8039 = vcombine.low %v8017, %v8031
      %v8040 = vcombine.low %v8024, %v8038
      %v8091 = vunpack.c.l.b16 %v7919
      %v8092 = vunpack.c.l.b16 %v7920
      %v8093 = vunpack.c.l.b16 %v7921
      %v8094 = vunpack.c.l.b16 %v7922
      %v8095 = vunpack.c.l.b16 %v7923
      %v8096 = vunpack.c.l.b16 %v7924
      %v8097 = vunpack.c.l.b16 %v7925
      %v8098 = vunpack.c.l.b16 %v7926
      %v8099 = vunpack.c.l.b16 %v7927
      %v8100 = vunpack.c.l.b16 %v7928
      %v8101 = vunpack.c.l.b16 %v7929
      %v8102 = vunpack.c.l.b16 %v7930
      %v8103 = vunpack.c.l.b16 %v7931
      %v8104 = vunpack.c.l.b16 %v7932
      %v8105 = vunpack.c.l.b16 %v7933
      %v8106 = vunpack.c.l.b16 %v7934
      %v8107 = vunpack.c.l.b16 %v7935
      %v8108 = vunpack.c.l.b16 %v7936
      %v8109 = vunpack.c.l.b16 %v7937
      %v8110 = vunpack.c.l.b16 %v7938
      %v8111 = vunpack.c.l.b16 %v7939
      %v8112 = vunpack.c.l.b16 %v7940
      %v8113 = vunpack.c.l.b16 %v7941
      %v8114 = vunpack.c.l.b16 %v7942
      %v8115 = vunpack.c.l.b16 %v7943
      %v8116 = vunpack.c.l.b16 %v7944
      %v8117 = vunpack.c.l.b16 %v7945
      %v8118 = vunpack.c.l.b16 %v7946
      %v8119 = vunpack.c.l.b16 %v7947
      %v8120 = vunpack.c.l.b16 %v7948
      %v8121 = vunpack.c.l.b16 %v7949
      %v8122 = vunpack.c.l.b16 %v7950
      %v8123 = vpack.c.b16 %v8092, %v8091
      %v8124 = vpack.c.b16 %v8094, %v8093
      %v8125 = vpack.c.b16 %v8096, %v8095
      %v8126 = vpack.c.b16 %v8098, %v8097
      %v8127 = vpack.c.b16 %v8100, %v8099
      %v8128 = vpack.c.b16 %v8102, %v8101
      %v8129 = vpack.c.b16 %v8104, %v8103
      %v8130 = vpack.c.b16 %v8106, %v8105
      %v8131 = vpack.c.b16 %v8108, %v8107
      %v8132 = vpack.c.b16 %v8110, %v8109
      %v8133 = vpack.c.b16 %v8112, %v8111
      %v8134 = vpack.c.b16 %v8114, %v8113
      %v8135 = vpack.c.b16 %v8116, %v8115
      %v8136 = vpack.c.b16 %v8118, %v8117
      %v8137 = vpack.c.b16 %v8120, %v8119
      %v8138 = vpack.c.b16 %v8122, %v8121
      %8155 = vmatprep.subr.bf16.mxu0 0
      %8156 = vmatpush1.bf16.msra.mxu0 %v8123
      %8157 = vmatprep.subr.bf16.mxu0 0
      %8158 = vmatpush1.bf16.msra.mxu0 %v8124
      %8159 = vmatprep.subr.bf16.mxu0 0
      %8160 = vmatpush1.bf16.msra.mxu0 %v8125
      %8161 = vmatprep.subr.bf16.mxu0 0
      %8162 = vmatpush1.bf16.msra.mxu0 %v8126
      %8163 = vmatprep.subr.bf16.mxu0 0
      %8164 = vmatpush1.bf16.msra.mxu0 %v8127
      %8165 = vmatprep.subr.bf16.mxu0 0
      %8166 = vmatpush1.bf16.msra.mxu0 %v8128
      %8167 = vmatprep.subr.bf16.mxu0 0
      %8168 = vmatpush1.bf16.msra.mxu0 %v8129
      %8169 = vmatprep.subr.bf16.mxu0 0
      %8170 = vmatpush1.bf16.msra.mxu0 %v8130
      %8171 = vmatprep.subr.bf16.mxu0 0
      %8172 = vmatpush1.bf16.msra.mxu0 %v8131
      %8173 = vmatprep.subr.bf16.mxu0 0
      %8174 = vmatpush1.bf16.msra.mxu0 %v8132
      %8175 = vmatprep.subr.bf16.mxu0 0
      %8176 = vmatpush1.bf16.msra.mxu0 %v8133
      %8177 = vmatprep.subr.bf16.mxu0 0
      %8178 = vmatpush1.bf16.msra.mxu0 %v8134
      %8179 = vmatprep.subr.bf16.mxu0 0
      %8180 = vmatpush1.bf16.msra.mxu0 %v8135
      %8181 = vmatprep.subr.bf16.mxu0 0
      %8182 = vmatpush1.bf16.msra.mxu0 %v8136
      %8183 = vmatprep.subr.bf16.mxu0 0
      %8184 = vmatpush1.bf16.msra.mxu0 %v8137
      %8185 = vmatprep.subr.bf16.mxu0 0
      %8186 = vmatpush1.bf16.msra.mxu0 %v8138
      %8187 = vmatprep.mubr.bf16.mxu0 %v7952
      %8188 = vmatmul.mubr.bf16.gmra.mrb[0].mxu0 %v7951
      %v8189 = vpop.f32.mrb[0].mxu0
      %v8190 = vadd.f32 0.0, %v8189
      %v8191 = vpop.f32.mrb[0].mxu0
      %v8192 = vpop.f32.mrb[0].mxu0
      %v8193 = vadd.f32 0.0, %v8192
      %v8194 = vpop.f32.mrb[0].mxu0
      %8195 = vmatprep.mubr.bf16.mxu0 %v7954
      %8196 = vmatmul.mubr.bf16.gmra.mrb[0].mxu0 %v7953
      %v8197 = vpop.f32.mrb[0].mxu0
      %v8198 = vadd.f32 0.0, %v8197
      %v8199 = vpop.f32.mrb[0].mxu0
      %v8200 = vpop.f32.mrb[0].mxu0
      %v8201 = vadd.f32 0.0, %v8200
      %v8202 = vpop.f32.mrb[0].mxu0
      %8203 = vmatprep.mubr.bf16.mxu0 %v7956
      %8204 = vmatmul.mubr.bf16.gmra.mrb[0].mxu0 %v7955
      %v8205 = vpop.f32.mrb[0].mxu0
      %v8206 = vadd.f32 0.0, %v8205
      %v8207 = vpop.f32.mrb[0].mxu0
      %v8208 = vpop.f32.mrb[0].mxu0
      %v8209 = vadd.f32 0.0, %v8208
      %v8210 = vpop.f32.mrb[0].mxu0
      %8211 = vmatprep.mubr.bf16.mxu0 %v7958
      %8212 = vmatmul.mubr.bf16.gmra.mrb[0].mxu0 %v7957
      %v8213 = vpop.f32.mrb[0].mxu0
      %v8214 = vadd.f32 0.0, %v8213
      %v8215 = vpop.f32.mrb[0].mxu0
      %v8216 = vpop.f32.mrb[0].mxu0
      %v8217 = vadd.f32 0.0, %v8216
      %v8218 = vpop.f32.mrb[0].mxu0
      %8219 = vmatprep.mubr.bf16.mxu0 %v7960
      %8220 = vmatmul.mubr.bf16.gmra.mrb[0].mxu0 %v7959
      %v8221 = vpop.f32.mrb[0].mxu0
      %v8222 = vadd.f32 0.0, %v8221
      %v8223 = vpop.f32.mrb[0].mxu0
      %v8224 = vpop.f32.mrb[0].mxu0
      %v8225 = vadd.f32 0.0, %v8224
      %v8226 = vpop.f32.mrb[0].mxu0
      %8227 = vmatprep.mubr.bf16.mxu0 %v7962
      %8228 = vmatmul.mubr.bf16.gmra.mrb[0].mxu0 %v7961
      %v8229 = vpop.f32.mrb[0].mxu0
      %v8230 = vadd.f32 0.0, %v8229
      %v8231 = vpop.f32.mrb[0].mxu0
      %v8232 = vpop.f32.mrb[0].mxu0
      %v8233 = vadd.f32 0.0, %v8232
      %v8234 = vpop.f32.mrb[0].mxu0
      %8235 = vmatprep.mubr.bf16.mxu0 %v7964
      %8236 = vmatmul.mubr.bf16.gmra.mrb[0].mxu0 %v7963
      %v8237 = vpop.f32.mrb[0].mxu0
      %v8238 = vadd.f32 0.0, %v8237
      %v8239 = vpop.f32.mrb[0].mxu0
      %v8240 = vpop.f32.mrb[0].mxu0
      %v8241 = vadd.f32 0.0, %v8240
      %v8242 = vpop.f32.mrb[0].mxu0
      %8243 = vmatprep.mubr.bf16.mxu0 %v7982
      %8244 = vmatmul.mubr.bf16.gmra.mrb[0].mxu0 %v7981
      %v8245 = vpop.f32.mrb[0].mxu0
      %v8246 = vadd.f32 0.0, %v8245
      %v8247 = vpop.f32.mrb[0].mxu0
      %v8248 = vpop.f32.mrb[0].mxu0
      %v8249 = vadd.f32 0.0, %v8248
      %v8250 = vpop.f32.mrb[0].mxu0
      %8251 = vmatprep.mubr.bf16.mxu0 %v8040
      %8252 = vmatmul.mubr.bf16.gmra.mrb[0].mxu0 %v8039
      %v8253 = vpop.f32.mrb[0].mxu0
      %v8254 = vadd.f32 0.0, %v8253
      %v8255 = vpop.f32.mrb[0].mxu0
      %v8256 = vpop.f32.mrb[0].mxu0
      %v8257 = vadd.f32 0.0, %v8256
      %v8258 = vpop.f32.mrb[0].mxu0
      %8259 = vdwg.mxu0
      %v8260 = vadd.f32 %v7851, %v8190
      %v8261 = vadd.f32 %v7852, %v8193
      %v8262 = vadd.f32 %v7853, %v8198
      %v8263 = vadd.f32 %v7854, %v8201
      %v8264 = vadd.f32 %v7855, %v8206
      %v8265 = vadd.f32 %v7856, %v8209
      %v8266 = vadd.f32 %v7857, %v8214
      %v8267 = vadd.f32 %v7858, %v8217
      %v8268 = vadd.f32 %v7859, %v8222
      %v8269 = vadd.f32 %v7860, %v8225
      %v8270 = vadd.f32 %v7861, %v8230
      %v8271 = vadd.f32 %v7862, %v8233
      %v8272 = vadd.f32 %v7863, %v8238
      %v8273 = vadd.f32 %v7864, %v8241
      %v8274 = vadd.f32 %v7865, %v8246
      %v8275 = vadd.f32 %v7866, %v8249
      %v8276 = vadd.f32 %v7867, %v8254
      %v8277 = vadd.f32 %v7868, %v8257
      %s8278 = scalar_lea.vmem %s2, 1024
      %v8279 = vld [vmem:[%s8278] sm:$0xf]
      %v8280 = vld [vmem:[%s8278 + $0x4] sm:$0xf]
      %v8281 = vld [vmem:[%s8278 + $0x8] sm:$0xf]
      %v8282 = vld [vmem:[%s8278 + $0xc] sm:$0xf]
      %v8283 = vld [vmem:[%s8278 + $0x10] sm:$0xf]
      %v8284 = vld [vmem:[%s8278 + $0x14] sm:$0xf]
      %v8285 = vld [vmem:[%s8278 + $0x18] sm:$0xf]
      %v8286 = vld [vmem:[%s8278 + $0x1c] sm:$0xf]
      %v8287 = vld [vmem:[%s8278 + $0x20] sm:$0xf]
      %v8288 = vld [vmem:[%s8278 + $0x24] sm:$0xf]
      %v8289 = vld [vmem:[%s8278 + $0x28] sm:$0xf]
      %v8290 = vld [vmem:[%s8278 + $0x2c] sm:$0xf]
      %v8291 = vld [vmem:[%s8278 + $0x30] sm:$0xf]
      %v8292 = vld [vmem:[%s8278 + $0x34] sm:$0xf]
      %v8293 = vld [vmem:[%s8278 + $0x38] sm:$0xf]
      %v8294 = vld [vmem:[%s8278 + $0x3c] sm:$0xf]
      %v8295 = vld [vmem:[%s8278 + $0x40] sm:$0xf]
      %v8296 = vld [vmem:[%s8278 + $0x44] sm:$0xf]
      %v8297 = vld [vmem:[%s8278 + $0x48] sm:$0xf]
      %v8298 = vld [vmem:[%s8278 + $0x4c] sm:$0xf]
      %v8299 = vld [vmem:[%s8278 + $0x50] sm:$0xf]
      %v8300 = vld [vmem:[%s8278 + $0x54] sm:$0xf]
      %v8301 = vld [vmem:[%s8278 + $0x58] sm:$0xf]
      %v8302 = vld [vmem:[%s8278 + $0x5c] sm:$0xf]
      %v8303 = vld [vmem:[%s8278 + $0x60] sm:$0xf]
      %v8304 = vld [vmem:[%s8278 + $0x64] sm:$0xf]
      %v8305 = vld [vmem:[%s8278 + $0x68] sm:$0xf]
      %v8306 = vld [vmem:[%s8278 + $0x6c] sm:$0xf]
      %v8307 = vld [vmem:[%s8278 + $0x70] sm:$0xf]
      %v8308 = vld [vmem:[%s8278 + $0x74] sm:$0xf]
      %v8309 = vld [vmem:[%s8278 + $0x78] sm:$0xf]
      %v8310 = vld [vmem:[%s8278 + $0x7c] sm:$0xf]
      %v8311 = vcombine.low %v4951, %v5003
      %v8312 = vcombine.low %v4958, %v5010
      %v8313 = vcombine.low %v5017, %v5069
      %v8314 = vcombine.low %v5024, %v5076
      %v8315 = vcombine.low %v5083, %v5135
      %v8316 = vcombine.low %v5090, %v5142
      %v8317 = vcombine.low %v5149, %v5201
      %v8318 = vcombine.low %v5156, %v5208
      %v8319 = vcombine.low %v5215, %v5267
      %v8320 = vcombine.low %v5222, %v5274
      %v8321 = vcombine.low %v5281, %v5333
      %v8322 = vcombine.low %v5288, %v5340
      %v8323 = vcombine.low %v5347, %v5399
      %v8324 = vcombine.low %v5354, %v5406
      %v8325 = vcombine.low %v7223, %v7230
      %v8326 = vcombine.high %v7223, %v7230
      %v8328 = vunpack.c.l.s4 1966171168
      %v8329 = vunpack.c.0.s8 %v8328
      %v8330 = vlaneseq
      %v8331 = vshrl.u32 %v8330, 7
      %v8332 = vsub.s32 %v8329, %v8331
      %v8333 = vrot.slane %v8325, %v8332
      %v8335 = vunpack.c.l.s4 1966171168
      %v8336 = vunpack.c.0.s8 %v8335
      %v8337 = vlaneseq
      %v8338 = vshrl.u32 %v8337, 7
      %v8339 = vsub.s32 %v8336, %v8338
      %v8340 = vrot.slane %v8326, %v8339
      %v8341 = vcombine.low %v5413, %v8333
      %v8342 = vcombine.low %v5420, %v8340
      %v8343 = vcombine.low %v2460, %v2474
      %v8344 = vcombine.low %v2476, %v2478
      %v8345 = vcombine.low %v2494, %v2501
      %v8347 = vunpack.c.l.s4 1966171168
      %v8348 = vunpack.c.0.s8 %v8347
      %v8349 = vlaneseq
      %v8350 = vshrl.u32 %v8349, 7
      %v8351 = vsub.s32 %v8348, %v8350
      %v8352 = vrot.slane %v8343, %v8351
      %v8354 = vunpack.c.l.s4 1966171168
      %v8355 = vunpack.c.0.s8 %v8354
      %v8356 = vlaneseq
      %v8357 = vshrl.u32 %v8356, 7
      %v8358 = vsub.s32 %v8355, %v8357
      %v8359 = vrot.slane %v8344, %v8358
      %v8361 = vunpack.c.l.s4 1966171168
      %v8362 = vunpack.c.0.s8 %v8361
      %v8363 = vlaneseq
      %v8364 = vshrl.u32 %v8363, 7
      %v8365 = vsub.s32 %v8362, %v8364
      %v8366 = vrot.slane %v8345, %v8365
      %v8367 = vcombine.low %v7237, %v8352
      %v8368 = vcombine.high %v7237, %v8352
      %v8369 = vcombine.low %v8359, %v8366
      %v8370 = vcombine.high %v8359, %v8366
      %v8372 = vunpack.c.l.s4 1966171168
      %v8373 = vunpack.c.0.s8 %v8372
      %v8374 = vlaneseq
      %v8375 = vshrl.u32 %v8374, 7
      %v8376 = vsub.s32 %v8373, %v8375
      %v8377 = vrot.slane %v8367, %v8376
      %v8379 = vunpack.c.l.s4 1966171168
      %v8380 = vunpack.c.0.s8 %v8379
      %v8381 = vlaneseq
      %v8382 = vshrl.u32 %v8381, 7
      %v8383 = vsub.s32 %v8380, %v8382
      %v8384 = vrot.slane %v8368, %v8383
      %v8386 = vunpack.c.l.s4 1966171168
      %v8387 = vunpack.c.0.s8 %v8386
      %v8388 = vlaneseq
      %v8389 = vshrl.u32 %v8388, 7
      %v8390 = vsub.s32 %v8387, %v8389
      %v8391 = vrot.slane %v8369, %v8390
      %v8393 = vunpack.c.l.s4 1966171168
      %v8394 = vunpack.c.0.s8 %v8393
      %v8395 = vlaneseq
      %v8396 = vshrl.u32 %v8395, 7
      %v8397 = vsub.s32 %v8394, %v8396
      %v8398 = vrot.slane %v8370, %v8397
      %v8399 = vcombine.low %v8377, %v8391
      %v8400 = vcombine.low %v8384, %v8398
      %v8451 = vunpack.c.l.b16 %v8279
      %v8452 = vunpack.c.l.b16 %v8280
      %v8453 = vunpack.c.l.b16 %v8281
      %v8454 = vunpack.c.l.b16 %v8282
      %v8455 = vunpack.c.l.b16 %v8283
      %v8456 = vunpack.c.l.b16 %v8284
      %v8457 = vunpack.c.l.b16 %v8285
      %v8458 = vunpack.c.l.b16 %v8286
      %v8459 = vunpack.c.l.b16 %v8287
      %v8460 = vunpack.c.l.b16 %v8288
      %v8461 = vunpack.c.l.b16 %v8289
      %v8462 = vunpack.c.l.b16 %v8290
      %v8463 = vunpack.c.l.b16 %v8291
      %v8464 = vunpack.c.l.b16 %v8292
      %v8465 = vunpack.c.l.b16 %v8293
      %v8466 = vunpack.c.l.b16 %v8294
      %v8467 = vunpack.c.l.b16 %v8295
      %v8468 = vunpack.c.l.b16 %v8296
      %v8469 = vunpack.c.l.b16 %v8297
      %v8470 = vunpack.c.l.b16 %v8298
      %v8471 = vunpack.c.l.b16 %v8299
      %v8472 = vunpack.c.l.b16 %v8300
      %v8473 = vunpack.c.l.b16 %v8301
      %v8474 = vunpack.c.l.b16 %v8302
      %v8475 = vunpack.c.l.b16 %v8303
      %v8476 = vunpack.c.l.b16 %v8304
      %v8477 = vunpack.c.l.b16 %v8305
      %v8478 = vunpack.c.l.b16 %v8306
      %v8479 = vunpack.c.l.b16 %v8307
      %v8480 = vunpack.c.l.b16 %v8308
      %v8481 = vunpack.c.l.b16 %v8309
      %v8482 = vunpack.c.l.b16 %v8310
      %v8483 = vpack.c.b16 %v8452, %v8451
      %v8484 = vpack.c.b16 %v8454, %v8453
      %v8485 = vpack.c.b16 %v8456, %v8455
      %v8486 = vpack.c.b16 %v8458, %v8457
      %v8487 = vpack.c.b16 %v8460, %v8459
      %v8488 = vpack.c.b16 %v8462, %v8461
      %v8489 = vpack.c.b16 %v8464, %v8463
      %v8490 = vpack.c.b16 %v8466, %v8465
      %v8491 = vpack.c.b16 %v8468, %v8467
      %v8492 = vpack.c.b16 %v8470, %v8469
      %v8493 = vpack.c.b16 %v8472, %v8471
      %v8494 = vpack.c.b16 %v8474, %v8473
      %v8495 = vpack.c.b16 %v8476, %v8475
      %v8496 = vpack.c.b16 %v8478, %v8477
      %v8497 = vpack.c.b16 %v8480, %v8479
      %v8498 = vpack.c.b16 %v8482, %v8481
      %8515 = vmatprep.subr.bf16.mxu0 0
      %8516 = vmatpush1.bf16.msra.mxu0 %v8483
      %8517 = vmatprep.subr.bf16.mxu0 0
      %8518 = vmatpush1.bf16.msra.mxu0 %v8484
      %8519 = vmatprep.subr.bf16.mxu0 0
      %8520 = vmatpush1.bf16.msra.mxu0 %v8485
      %8521 = vmatprep.subr.bf16.mxu0 0
      %8522 = vmatpush1.bf16.msra.mxu0 %v8486
      %8523 = vmatprep.subr.bf16.mxu0 0
      %8524 = vmatpush1.bf16.msra.mxu0 %v8487
      %8525 = vmatprep.subr.bf16.mxu0 0
      %8526 = vmatpush1.bf16.msra.mxu0 %v8488
      %8527 = vmatprep.subr.bf16.mxu0 0
      %8528 = vmatpush1.bf16.msra.mxu0 %v8489
      %8529 = vmatprep.subr.bf16.mxu0 0
      %8530 = vmatpush1.bf16.msra.mxu0 %v8490
      %8531 = vmatprep.subr.bf16.mxu0 0
      %8532 = vmatpush1.bf16.msra.mxu0 %v8491
      %8533 = vmatprep.subr.bf16.mxu0 0
      %8534 = vmatpush1.bf16.msra.mxu0 %v8492
      %8535 = vmatprep.subr.bf16.mxu0 0
      %8536 = vmatpush1.bf16.msra.mxu0 %v8493
      %8537 = vmatprep.subr.bf16.mxu0 0
      %8538 = vmatpush1.bf16.msra.mxu0 %v8494
      %8539 = vmatprep.subr.bf16.mxu0 0
      %8540 = vmatpush1.bf16.msra.mxu0 %v8495
      %8541 = vmatprep.subr.bf16.mxu0 0
      %8542 = vmatpush1.bf16.msra.mxu0 %v8496
      %8543 = vmatprep.subr.bf16.mxu0 0
      %8544 = vmatpush1.bf16.msra.mxu0 %v8497
      %8545 = vmatprep.subr.bf16.mxu0 0
      %8546 = vmatpush1.bf16.msra.mxu0 %v8498
      %8547 = vmatprep.mubr.bf16.mxu0 %v8312
      %8548 = vmatmul.mubr.bf16.gmra.mrb[0].mxu0 %v8311
      %v8549 = vpop.f32.mrb[0].mxu0
      %v8550 = vadd.f32 0.0, %v8549
      %v8551 = vpop.f32.mrb[0].mxu0
      %v8552 = vpop.f32.mrb[0].mxu0
      %v8553 = vadd.f32 0.0, %v8552
      %v8554 = vpop.f32.mrb[0].mxu0
      %8555 = vmatprep.mubr.bf16.mxu0 %v8314
      %8556 = vmatmul.mubr.bf16.gmra.mrb[0].mxu0 %v8313
      %v8557 = vpop.f32.mrb[0].mxu0
      %v8558 = vadd.f32 0.0, %v8557
      %v8559 = vpop.f32.mrb[0].mxu0
      %v8560 = vpop.f32.mrb[0].mxu0
      %v8561 = vadd.f32 0.0, %v8560
      %v8562 = vpop.f32.mrb[0].mxu0
      %8563 = vmatprep.mubr.bf16.mxu0 %v8316
      %8564 = vmatmul.mubr.bf16.gmra.mrb[0].mxu0 %v8315
      %v8565 = vpop.f32.mrb[0].mxu0
      %v8566 = vadd.f32 0.0, %v8565
      %v8567 = vpop.f32.mrb[0].mxu0
      %v8568 = vpop.f32.mrb[0].mxu0
      %v8569 = vadd.f32 0.0, %v8568
      %v8570 = vpop.f32.mrb[0].mxu0
      %8571 = vmatprep.mubr.bf16.mxu0 %v8318
      %8572 = vmatmul.mubr.bf16.gmra.mrb[0].mxu0 %v8317
      %v8573 = vpop.f32.mrb[0].mxu0
      %v8574 = vadd.f32 0.0, %v8573
      %v8575 = vpop.f32.mrb[0].mxu0
      %v8576 = vpop.f32.mrb[0].mxu0
      %v8577 = vadd.f32 0.0, %v8576
      %v8578 = vpop.f32.mrb[0].mxu0
      %8579 = vmatprep.mubr.bf16.mxu0 %v8320
      %8580 = vmatmul.mubr.bf16.gmra.mrb[0].mxu0 %v8319
      %v8581 = vpop.f32.mrb[0].mxu0
      %v8582 = vadd.f32 0.0, %v8581
      %v8583 = vpop.f32.mrb[0].mxu0
      %v8584 = vpop.f32.mrb[0].mxu0
      %v8585 = vadd.f32 0.0, %v8584
      %v8586 = vpop.f32.mrb[0].mxu0
      %8587 = vmatprep.mubr.bf16.mxu0 %v8322
      %8588 = vmatmul.mubr.bf16.gmra.mrb[0].mxu0 %v8321
      %v8589 = vpop.f32.mrb[0].mxu0
      %v8590 = vadd.f32 0.0, %v8589
      %v8591 = vpop.f32.mrb[0].mxu0
      %v8592 = vpop.f32.mrb[0].mxu0
      %v8593 = vadd.f32 0.0, %v8592
      %v8594 = vpop.f32.mrb[0].mxu0
      %8595 = vmatprep.mubr.bf16.mxu0 %v8324
      %8596 = vmatmul.mubr.bf16.gmra.mrb[0].mxu0 %v8323
      %v8597 = vpop.f32.mrb[0].mxu0
      %v8598 = vadd.f32 0.0, %v8597
      %v8599 = vpop.f32.mrb[0].mxu0
      %v8600 = vpop.f32.mrb[0].mxu0
      %v8601 = vadd.f32 0.0, %v8600
      %v8602 = vpop.f32.mrb[0].mxu0
      %8603 = vmatprep.mubr.bf16.mxu0 %v8342
      %8604 = vmatmul.mubr.bf16.gmra.mrb[0].mxu0 %v8341
      %v8605 = vpop.f32.mrb[0].mxu0
      %v8606 = vadd.f32 0.0, %v8605
      %v8607 = vpop.f32.mrb[0].mxu0
      %v8608 = vpop.f32.mrb[0].mxu0
      %v8609 = vadd.f32 0.0, %v8608
      %v8610 = vpop.f32.mrb[0].mxu0
      %8611 = vmatprep.mubr.bf16.mxu0 %v8400
      %8612 = vmatmul.mubr.bf16.gmra.mrb[0].mxu0 %v8399
      %v8613 = vpop.f32.mrb[0].mxu0
      %v8614 = vadd.f32 0.0, %v8613
      %v8615 = vpop.f32.mrb[0].mxu0
      %v8616 = vpop.f32.mrb[0].mxu0
      %v8617 = vadd.f32 0.0, %v8616
      %v8618 = vpop.f32.mrb[0].mxu0
      %8619 = vdwg.mxu0
      %v8620 = vadd.f32 %v8260, %v8550
      %v8621 = vadd.f32 %v8261, %v8553
      %v8622 = vadd.f32 %v8262, %v8558
      %v8623 = vadd.f32 %v8263, %v8561
      %v8624 = vadd.f32 %v8264, %v8566
      %v8625 = vadd.f32 %v8265, %v8569
      %v8626 = vadd.f32 %v8266, %v8574
      %v8627 = vadd.f32 %v8267, %v8577
      %v8628 = vadd.f32 %v8268, %v8582
      %v8629 = vadd.f32 %v8269, %v8585
      %v8630 = vadd.f32 %v8270, %v8590
      %v8631 = vadd.f32 %v8271, %v8593
      %v8632 = vadd.f32 %v8272, %v8598
      %v8633 = vadd.f32 %v8273, %v8601
      %v8634 = vadd.f32 %v8274, %v8606
      %v8635 = vadd.f32 %v8275, %v8609
      %v8636 = vadd.f32 %v8276, %v8614
      %v8637 = vadd.f32 %v8277, %v8617
      %v8638 = vmax.f32 %v8620, 0.0
      %v8639 = vmax.f32 %v8621, 0.0
      %v8640 = vmax.f32 %v8622, 0.0
      %v8641 = vmax.f32 %v8623, 0.0
      %v8642 = vmax.f32 %v8624, 0.0
      %v8643 = vmax.f32 %v8625, 0.0
      %v8644 = vmax.f32 %v8626, 0.0
      %v8645 = vmax.f32 %v8627, 0.0
      %v8646 = vmax.f32 %v8628, 0.0
      %v8647 = vmax.f32 %v8629, 0.0
      %v8648 = vmax.f32 %v8630, 0.0
      %v8649 = vmax.f32 %v8631, 0.0
      %v8650 = vmax.f32 %v8632, 0.0
      %v8651 = vmax.f32 %v8633, 0.0
      %v8652 = vmax.f32 %v8634, 0.0
      %v8653 = vmax.f32 %v8635, 0.0
      %v8654 = vmax.f32 %v8636, 0.0
      %v8655 = vmax.f32 %v8637, 0.0
      %v8656 = vpack.c.bf16 %v8639, %v8638
      %v8657 = vpack.c.bf16 %v8641, %v8640
      %v8658 = vpack.c.bf16 %v8643, %v8642
      %v8659 = vpack.c.bf16 %v8645, %v8644
      %v8660 = vpack.c.bf16 %v8647, %v8646
      %v8661 = vpack.c.bf16 %v8649, %v8648
      %v8662 = vpack.c.bf16 %v8651, %v8650
      %v8663 = vpack.c.bf16 %v8653, %v8652
      %v8664 = vpack.c.bf16 %v8655, %v8654
      %v8674 = vcombine.high %v8656, %v8656
      %v8676 = vunpack.c.l.s4 1983009808
      %v8677 = vunpack.c.0.s8 %v8676
      %v8678 = vlaneseq
      %v8679 = vshrl.u32 %v8678, 7
      %v8680 = vsub.s32 %v8677, %v8679
      %v8681 = vrot.slane %v8656, %v8680
      %v8683 = vunpack.c.l.s4 1983009808
      %v8684 = vunpack.c.0.s8 %v8683
      %v8685 = vlaneseq
      %v8686 = vshrl.u32 %v8685, 7
      %v8687 = vsub.s32 %v8684, %v8686
      %v8688 = vrot.slane %v8674, %v8687
      %v8689 = vcombine.high %v8681, %v8681
      %v8690 = vcombine.high %v8688, %v8688
      %v8691 = vcombine.high %v8657, %v8657
      %v8693 = vunpack.c.l.s4 1983009808
      %v8694 = vunpack.c.0.s8 %v8693
      %v8695 = vlaneseq
      %v8696 = vshrl.u32 %v8695, 7
      %v8697 = vsub.s32 %v8694, %v8696
      %v8698 = vrot.slane %v8657, %v8697
      %v8700 = vunpack.c.l.s4 1983009808
      %v8701 = vunpack.c.0.s8 %v8700
      %v8702 = vlaneseq
      %v8703 = vshrl.u32 %v8702, 7
      %v8704 = vsub.s32 %v8701, %v8703
      %v8705 = vrot.slane %v8691, %v8704
      %v8706 = vcombine.high %v8698, %v8698
      %v8707 = vcombine.high %v8705, %v8705
      %v8708 = vcombine.high %v8658, %v8658
      %v8710 = vunpack.c.l.s4 1983009808
      %v8711 = vunpack.c.0.s8 %v8710
      %v8712 = vlaneseq
      %v8713 = vshrl.u32 %v8712, 7
      %v8714 = vsub.s32 %v8711, %v8713
      %v8715 = vrot.slane %v8658, %v8714
      %v8717 = vunpack.c.l.s4 1983009808
      %v8718 = vunpack.c.0.s8 %v8717
      %v8719 = vlaneseq
      %v8720 = vshrl.u32 %v8719, 7
      %v8721 = vsub.s32 %v8718, %v8720
      %v8722 = vrot.slane %v8708, %v8721
      %v8723 = vcombine.high %v8715, %v8715
      %v8724 = vcombine.high %v8722, %v8722
      %v8725 = vcombine.high %v8659, %v8659
      %v8727 = vunpack.c.l.s4 1983009808
      %v8728 = vunpack.c.0.s8 %v8727
      %v8729 = vlaneseq
      %v8730 = vshrl.u32 %v8729, 7
      %v8731 = vsub.s32 %v8728, %v8730
      %v8732 = vrot.slane %v8659, %v8731
      %v8734 = vunpack.c.l.s4 1983009808
      %v8735 = vunpack.c.0.s8 %v8734
      %v8736 = vlaneseq
      %v8737 = vshrl.u32 %v8736, 7
      %v8738 = vsub.s32 %v8735, %v8737
      %v8739 = vrot.slane %v8725, %v8738
      %v8740 = vcombine.high %v8732, %v8732
      %v8741 = vcombine.high %v8739, %v8739
      %v8742 = vcombine.high %v8660, %v8660
      %v8744 = vunpack.c.l.s4 1983009808
      %v8745 = vunpack.c.0.s8 %v8744
      %v8746 = vlaneseq
      %v8747 = vshrl.u32 %v8746, 7
      %v8748 = vsub.s32 %v8745, %v8747
      %v8749 = vrot.slane %v8660, %v8748
      %v8751 = vunpack.c.l.s4 1983009808
      %v8752 = vunpack.c.0.s8 %v8751
      %v8753 = vlaneseq
      %v8754 = vshrl.u32 %v8753, 7
      %v8755 = vsub.s32 %v8752, %v8754
      %v8756 = vrot.slane %v8742, %v8755
      %v8757 = vcombine.high %v8749, %v8749
      %v8758 = vcombine.high %v8756, %v8756
      %v8759 = vcombine.high %v8661, %v8661
      %v8761 = vunpack.c.l.s4 1983009808
      %v8762 = vunpack.c.0.s8 %v8761
      %v8763 = vlaneseq
      %v8764 = vshrl.u32 %v8763, 7
      %v8765 = vsub.s32 %v8762, %v8764
      %v8766 = vrot.slane %v8661, %v8765
      %v8768 = vunpack.c.l.s4 1983009808
      %v8769 = vunpack.c.0.s8 %v8768
      %v8770 = vlaneseq
      %v8771 = vshrl.u32 %v8770, 7
      %v8772 = vsub.s32 %v8769, %v8771
      %v8773 = vrot.slane %v8759, %v8772
      %v8774 = vcombine.high %v8766, %v8766
      %v8775 = vcombine.high %v8773, %v8773
      %v8776 = vcombine.high %v8662, %v8662
      %v8778 = vunpack.c.l.s4 1983009808
      %v8779 = vunpack.c.0.s8 %v8778
      %v8780 = vlaneseq
      %v8781 = vshrl.u32 %v8780, 7
      %v8782 = vsub.s32 %v8779, %v8781
      %v8783 = vrot.slane %v8662, %v8782
      %v8785 = vunpack.c.l.s4 1983009808
      %v8786 = vunpack.c.0.s8 %v8785
      %v8787 = vlaneseq
      %v8788 = vshrl.u32 %v8787, 7
      %v8789 = vsub.s32 %v8786, %v8788
      %v8790 = vrot.slane %v8776, %v8789
      %v8791 = vcombine.high %v8783, %v8783
      %v8792 = vcombine.high %v8790, %v8790
      %v8793 = vcombine.high %v8663, %v8663
      %v8795 = vunpack.c.l.s4 1983009808
      %v8796 = vunpack.c.0.s8 %v8795
      %v8797 = vlaneseq
      %v8798 = vshrl.u32 %v8797, 7
      %v8799 = vsub.s32 %v8796, %v8798
      %v8800 = vrot.slane %v8663, %v8799
      %v8802 = vunpack.c.l.s4 1983009808
      %v8803 = vunpack.c.0.s8 %v8802
      %v8804 = vlaneseq
      %v8805 = vshrl.u32 %v8804, 7
      %v8806 = vsub.s32 %v8803, %v8805
      %v8807 = vrot.slane %v8793, %v8806
      %v8808 = vcombine.high %v8800, %v8800
      %v8809 = vcombine.high %v8807, %v8807
      %v8810 = vcombine.high %v8664, %v8664
      %v8812 = vunpack.c.l.s4 1983009808
      %v8813 = vunpack.c.0.s8 %v8812
      %v8814 = vlaneseq
      %v8815 = vshrl.u32 %v8814, 7
      %v8816 = vsub.s32 %v8813, %v8815
      %v8817 = vrot.slane %v8664, %v8816
      %v8819 = vunpack.c.l.s4 1983009808
      %v8820 = vunpack.c.0.s8 %v8819
      %v8821 = vlaneseq
      %v8822 = vshrl.u32 %v8821, 7
      %v8823 = vsub.s32 %v8820, %v8822
      %v8824 = vrot.slane %v8810, %v8823
      %v8825 = vcombine.high %v8817, %v8817
      %v8826 = vcombine.high %v8824, %v8824
      %v8828 = vunpack.c.l.s4 1966171168
      %v8829 = vunpack.c.0.s8 %v8828
      %v8830 = vlaneseq
      %v8831 = vshrl.u32 %v8830, 7
      %v8832 = vsub.s32 %v8829, %v8831
      %v8833 = vrot.slane %v8681, %v8832
      %v8834 = vcombine.high %v8833, %v8833
      %v8836 = vunpack.c.l.s4 1966171168
      %v8837 = vunpack.c.0.s8 %v8836
      %v8838 = vlaneseq
      %v8839 = vshrl.u32 %v8838, 7
      %v8840 = vsub.s32 %v8837, %v8839
      %v8841 = vrot.slane %v8689, %v8840
      %v8842 = vcombine.high %v8841, %v8841
      %v8844 = vunpack.c.l.s4 1966171168
      %v8845 = vunpack.c.0.s8 %v8844
      %v8846 = vlaneseq
      %v8847 = vshrl.u32 %v8846, 7
      %v8848 = vsub.s32 %v8845, %v8847
      %v8849 = vrot.slane %v8688, %v8848
      %v8851 = vunpack.c.l.s4 1966171168
      %v8852 = vunpack.c.0.s8 %v8851
      %v8853 = vlaneseq
      %v8854 = vshrl.u32 %v8853, 7
      %v8855 = vsub.s32 %v8852, %v8854
      %v8856 = vrot.slane %v8690, %v8855
      %v8857 = vcombine.high %v8856, %v8856
      %v8859 = vunpack.c.l.s4 1966171168
      %v8860 = vunpack.c.0.s8 %v8859
      %v8861 = vlaneseq
      %v8862 = vshrl.u32 %v8861, 7
      %v8863 = vsub.s32 %v8860, %v8862
      %v8864 = vrot.slane %v8698, %v8863
      %v8865 = vcombine.high %v8864, %v8864
      %v8867 = vunpack.c.l.s4 1966171168
      %v8868 = vunpack.c.0.s8 %v8867
      %v8869 = vlaneseq
      %v8870 = vshrl.u32 %v8869, 7
      %v8871 = vsub.s32 %v8868, %v8870
      %v8872 = vrot.slane %v8706, %v8871
      %v8874 = vunpack.c.l.s4 1966171168
      %v8875 = vunpack.c.0.s8 %v8874
      %v8876 = vlaneseq
      %v8877 = vshrl.u32 %v8876, 7
      %v8878 = vsub.s32 %v8875, %v8877
      %v8879 = vrot.slane %v8705, %v8878
      %v8880 = vcombine.high %v8879, %v8879
      %v8882 = vunpack.c.l.s4 1966171168
      %v8883 = vunpack.c.0.s8 %v8882
      %v8884 = vlaneseq
      %v8885 = vshrl.u32 %v8884, 7
      %v8886 = vsub.s32 %v8883, %v8885
      %v8887 = vrot.slane %v8707, %v8886
      %v8888 = vcombine.high %v8887, %v8887
      %v8890 = vunpack.c.l.s4 1966171168
      %v8891 = vunpack.c.0.s8 %v8890
      %v8892 = vlaneseq
      %v8893 = vshrl.u32 %v8892, 7
      %v8894 = vsub.s32 %v8891, %v8893
      %v8895 = vrot.slane %v8715, %v8894
      %v8897 = vunpack.c.l.s4 1966171168
      %v8898 = vunpack.c.0.s8 %v8897
      %v8899 = vlaneseq
      %v8900 = vshrl.u32 %v8899, 7
      %v8901 = vsub.s32 %v8898, %v8900
      %v8902 = vrot.slane %v8723, %v8901
      %v8903 = vcombine.high %v8902, %v8902
      %v8905 = vunpack.c.l.s4 1966171168
      %v8906 = vunpack.c.0.s8 %v8905
      %v8907 = vlaneseq
      %v8908 = vshrl.u32 %v8907, 7
      %v8909 = vsub.s32 %v8906, %v8908
      %v8910 = vrot.slane %v8722, %v8909
      %v8911 = vcombine.high %v8910, %v8910
      %v8913 = vunpack.c.l.s4 1966171168
      %v8914 = vunpack.c.0.s8 %v8913
      %v8915 = vlaneseq
      %v8916 = vshrl.u32 %v8915, 7
      %v8917 = vsub.s32 %v8914, %v8916
      %v8918 = vrot.slane %v8724, %v8917
      %v8920 = vunpack.c.l.s4 1966171168
      %v8921 = vunpack.c.0.s8 %v8920
      %v8922 = vlaneseq
      %v8923 = vshrl.u32 %v8922, 7
      %v8924 = vsub.s32 %v8921, %v8923
      %v8925 = vrot.slane %v8732, %v8924
      %v8926 = vcombine.high %v8925, %v8925
      %v8928 = vunpack.c.l.s4 1966171168
      %v8929 = vunpack.c.0.s8 %v8928
      %v8930 = vlaneseq
      %v8931 = vshrl.u32 %v8930, 7
      %v8932 = vsub.s32 %v8929, %v8931
      %v8933 = vrot.slane %v8740, %v8932
      %v8934 = vcombine.high %v8933, %v8933
      %v8936 = vunpack.c.l.s4 1966171168
      %v8937 = vunpack.c.0.s8 %v8936
      %v8938 = vlaneseq
      %v8939 = vshrl.u32 %v8938, 7
      %v8940 = vsub.s32 %v8937, %v8939
      %v8941 = vrot.slane %v8739, %v8940
      %v8943 = vunpack.c.l.s4 1966171168
      %v8944 = vunpack.c.0.s8 %v8943
      %v8945 = vlaneseq
      %v8946 = vshrl.u32 %v8945, 7
      %v8947 = vsub.s32 %v8944, %v8946
      %v8948 = vrot.slane %v8741, %v8947
      %v8949 = vcombine.high %v8948, %v8948
      %v8951 = vunpack.c.l.s4 1966171168
      %v8952 = vunpack.c.0.s8 %v8951
      %v8953 = vlaneseq
      %v8954 = vshrl.u32 %v8953, 7
      %v8955 = vsub.s32 %v8952, %v8954
      %v8956 = vrot.slane %v8749, %v8955
      %v8957 = vcombine.high %v8956, %v8956
      %v8959 = vunpack.c.l.s4 1966171168
      %v8960 = vunpack.c.0.s8 %v8959
      %v8961 = vlaneseq
      %v8962 = vshrl.u32 %v8961, 7
      %v8963 = vsub.s32 %v8960, %v8962
      %v8964 = vrot.slane %v8757, %v8963
      %v8966 = vunpack.c.l.s4 1966171168
      %v8967 = vunpack.c.0.s8 %v8966
      %v8968 = vlaneseq
      %v8969 = vshrl.u32 %v8968, 7
      %v8970 = vsub.s32 %v8967, %v8969
      %v8971 = vrot.slane %v8756, %v8970
      %v8972 = vcombine.high %v8971, %v8971
      %v8974 = vunpack.c.l.s4 1966171168
      %v8975 = vunpack.c.0.s8 %v8974
      %v8976 = vlaneseq
      %v8977 = vshrl.u32 %v8976, 7
      %v8978 = vsub.s32 %v8975, %v8977
      %v8979 = vrot.slane %v8758, %v8978
      %v8980 = vcombine.high %v8979, %v8979
      %v8982 = vunpack.c.l.s4 1966171168
      %v8983 = vunpack.c.0.s8 %v8982
      %v8984 = vlaneseq
      %v8985 = vshrl.u32 %v8984, 7
      %v8986 = vsub.s32 %v8983, %v8985
      %v8987 = vrot.slane %v8766, %v8986
      %v8989 = vunpack.c.l.s4 1966171168
      %v8990 = vunpack.c.0.s8 %v8989
      %v8991 = vlaneseq
      %v8992 = vshrl.u32 %v8991, 7
      %v8993 = vsub.s32 %v8990, %v8992
      %v8994 = vrot.slane %v8774, %v8993
      %v8995 = vcombine.high %v8994, %v8994
      %v8997 = vunpack.c.l.s4 1966171168
      %v8998 = vunpack.c.0.s8 %v8997
      %v8999 = vlaneseq
      %v9000 = vshrl.u32 %v8999, 7
      %v9001 = vsub.s32 %v8998, %v9000
      %v9002 = vrot.slane %v8773, %v9001
      %v9003 = vcombine.high %v9002, %v9002
      %v9005 = vunpack.c.l.s4 1966171168
      %v9006 = vunpack.c.0.s8 %v9005
      %v9007 = vlaneseq
      %v9008 = vshrl.u32 %v9007, 7
      %v9009 = vsub.s32 %v9006, %v9008
      %v9010 = vrot.slane %v8775, %v9009
      %v9012 = vunpack.c.l.s4 1966171168
      %v9013 = vunpack.c.0.s8 %v9012
      %v9014 = vlaneseq
      %v9015 = vshrl.u32 %v9014, 7
      %v9016 = vsub.s32 %v9013, %v9015
      %v9017 = vrot.slane %v8783, %v9016
      %v9018 = vcombine.high %v9017, %v9017
      %v9020 = vunpack.c.l.s4 1966171168
      %v9021 = vunpack.c.0.s8 %v9020
      %v9022 = vlaneseq
      %v9023 = vshrl.u32 %v9022, 7
      %v9024 = vsub.s32 %v9021, %v9023
      %v9025 = vrot.slane %v8791, %v9024
      %v9026 = vcombine.high %v9025, %v9025
      %v9028 = vunpack.c.l.s4 1966171168
      %v9029 = vunpack.c.0.s8 %v9028
      %v9030 = vlaneseq
      %v9031 = vshrl.u32 %v9030, 7
      %v9032 = vsub.s32 %v9029, %v9031
      %v9033 = vrot.slane %v8790, %v9032
      %v9035 = vunpack.c.l.s4 1966171168
      %v9036 = vunpack.c.0.s8 %v9035
      %v9037 = vlaneseq
      %v9038 = vshrl.u32 %v9037, 7
      %v9039 = vsub.s32 %v9036, %v9038
      %v9040 = vrot.slane %v8792, %v9039
      %v9041 = vcombine.high %v9040, %v9040
      %v9043 = vunpack.c.l.s4 1966171168
      %v9044 = vunpack.c.0.s8 %v9043
      %v9045 = vlaneseq
      %v9046 = vshrl.u32 %v9045, 7
      %v9047 = vsub.s32 %v9044, %v9046
      %v9048 = vrot.slane %v8800, %v9047
      %v9049 = vcombine.high %v9048, %v9048
      %v9051 = vunpack.c.l.s4 1966171168
      %v9052 = vunpack.c.0.s8 %v9051
      %v9053 = vlaneseq
      %v9054 = vshrl.u32 %v9053, 7
      %v9055 = vsub.s32 %v9052, %v9054
      %v9056 = vrot.slane %v8808, %v9055
      %v9057 = vld [vmem:[%s3] sm:$0xf]
      %v9058 = vld [vmem:[%s3 + $0x4] sm:$0xf]
      %v9059 = vld [vmem:[%s3 + $0x8] sm:$0xf]
      %v9060 = vld [vmem:[%s3 + $0xc] sm:$0xf]
      %v9061 = vld [vmem:[%s3 + $0x10] sm:$0xf]
      %v9062 = vld [vmem:[%s3 + $0x14] sm:$0xf]
      %v9063 = vld [vmem:[%s3 + $0x18] sm:$0xf]
      %v9064 = vld [vmem:[%s3 + $0x1c] sm:$0xf]
      %v9065 = vcombine.high %v8849, %v8849
      %v9066 = vcombine.high %v8872, %v8872
      %v9067 = vcombine.high %v8895, %v8895
      %v9068 = vcombine.high %v8918, %v8918
      %v9069 = vcombine.high %v8941, %v8941
      %v9070 = vcombine.high %v8964, %v8964
      %v9071 = vcombine.high %v8987, %v8987
      %v9072 = vcombine.high %v9010, %v9010
      %v9073 = vcombine.high %v9033, %v9033
      %v9074 = vcombine.high %v9056, %v9056
      %v9076 = vshrl.u32 %v8833, 16
      %v9078 = vrot.slane %v9076, 7
      %v9079 = vrot.slane %v9078, 1
      %v9081 = vshll.u32 %v8834, 16
      %v9083 = vsel %vm2548, %v9079, %v9081
      %v9084 = vshrl.u32 %v8834, 16
      %v9086 = vrot.slane %v9084, 7
      %v9087 = vrot.slane %v9086, 1
      %v9089 = vshll.u32 %v8841, 16
      %v9091 = vsel %vm2548, %v9087, %v9089
      %v9092 = vshrl.u32 %v8841, 16
      %v9094 = vrot.slane %v9092, 7
      %v9095 = vrot.slane %v9094, 1
      %v9097 = vshll.u32 %v8842, 16
      %v9099 = vsel %vm2548, %v9095, %v9097
      %v9100 = vshrl.u32 %v8842, 16
      %v9102 = vrot.slane %v9100, 7
      %v9103 = vrot.slane %v9102, 1
      %v9105 = vshll.u32 %v8849, 16
      %v9107 = vsel %vm2548, %v9103, %v9105
      %v9108 = vshrl.u32 %v8849, 16
      %v9110 = vrot.slane %v9108, 7
      %v9111 = vrot.slane %v9110, 1
      %v9113 = vshll.u32 %v9065, 16
      %v9115 = vsel %vm2548, %v9111, %v9113
      %v9117 = vshrl.u32 %v8856, 16
      %v9119 = vrot.slane %v9117, 7
      %v9120 = vrot.slane %v9119, 1
      %v9122 = vshll.u32 %v8857, 16
      %v9124 = vsel %vm2548, %v9120, %v9122
      %v9125 = vshrl.u32 %v8857, 16
      %v9127 = vrot.slane %v9125, 7
      %v9128 = vrot.slane %v9127, 1
      %v9130 = vshll.u32 %v8864, 16
      %v9132 = vsel %vm2548, %v9128, %v9130
      %v9133 = vshrl.u32 %v8864, 16
      %v9135 = vrot.slane %v9133, 7
      %v9136 = vrot.slane %v9135, 1
      %v9138 = vshll.u32 %v8865, 16
      %v9140 = vsel %vm2548, %v9136, %v9138
      %v9141 = vshrl.u32 %v8865, 16
      %v9143 = vrot.slane %v9141, 7
      %v9144 = vrot.slane %v9143, 1
      %v9146 = vshll.u32 %v8872, 16
      %v9148 = vsel %vm2548, %v9144, %v9146
      %v9149 = vshrl.u32 %v8872, 16
      %v9151 = vrot.slane %v9149, 7
      %v9152 = vrot.slane %v9151, 1
      %v9154 = vshll.u32 %v9066, 16
      %v9156 = vsel %vm2548, %v9152, %v9154
      %v9158 = vshrl.u32 %v8879, 16
      %v9160 = vrot.slane %v9158, 7
      %v9161 = vrot.slane %v9160, 1
      %v9163 = vshll.u32 %v8880, 16
      %v9165 = vsel %vm2548, %v9161, %v9163
      %v9166 = vshrl.u32 %v8880, 16
      %v9168 = vrot.slane %v9166, 7
      %v9169 = vrot.slane %v9168, 1
      %v9171 = vshll.u32 %v8887, 16
      %v9173 = vsel %vm2548, %v9169, %v9171
      %v9174 = vshrl.u32 %v8887, 16
      %v9176 = vrot.slane %v9174, 7
      %v9177 = vrot.slane %v9176, 1
      %v9179 = vshll.u32 %v8888, 16
      %v9181 = vsel %vm2548, %v9177, %v9179
      %v9182 = vshrl.u32 %v8888, 16
      %v9184 = vrot.slane %v9182, 7
      %v9185 = vrot.slane %v9184, 1
      %v9187 = vshll.u32 %v8895, 16
      %v9189 = vsel %vm2548, %v9185, %v9187
      %v9190 = vshrl.u32 %v8895, 16
      %v9192 = vrot.slane %v9190, 7
      %v9193 = vrot.slane %v9192, 1
      %v9195 = vshll.u32 %v9067, 16
      %v9197 = vsel %vm2548, %v9193, %v9195
      %v9199 = vshrl.u32 %v8902, 16
      %v9201 = vrot.slane %v9199, 7
      %v9202 = vrot.slane %v9201, 1
      %v9204 = vshll.u32 %v8903, 16
      %v9206 = vsel %vm2548, %v9202, %v9204
      %v9207 = vshrl.u32 %v8903, 16
      %v9209 = vrot.slane %v9207, 7
      %v9210 = vrot.slane %v9209, 1
      %v9212 = vshll.u32 %v8910, 16
      %v9214 = vsel %vm2548, %v9210, %v9212
      %v9215 = vshrl.u32 %v8910, 16
      %v9217 = vrot.slane %v9215, 7
      %v9218 = vrot.slane %v9217, 1
      %v9220 = vshll.u32 %v8911, 16
      %v9222 = vsel %vm2548, %v9218, %v9220
      %v9223 = vshrl.u32 %v8911, 16
      %v9225 = vrot.slane %v9223, 7
      %v9226 = vrot.slane %v9225, 1
      %v9228 = vshll.u32 %v8918, 16
      %v9230 = vsel %vm2548, %v9226, %v9228
      %v9231 = vshrl.u32 %v8918, 16
      %v9233 = vrot.slane %v9231, 7
      %v9234 = vrot.slane %v9233, 1
      %v9236 = vshll.u32 %v9068, 16
      %v9238 = vsel %vm2548, %v9234, %v9236
      %v9240 = vshrl.u32 %v8925, 16
      %v9242 = vrot.slane %v9240, 7
      %v9243 = vrot.slane %v9242, 1
      %v9245 = vshll.u32 %v8926, 16
      %v9247 = vsel %vm2548, %v9243, %v9245
      %v9248 = vshrl.u32 %v8926, 16
      %v9250 = vrot.slane %v9248, 7
      %v9251 = vrot.slane %v9250, 1
      %v9253 = vshll.u32 %v8933, 16
      %v9255 = vsel %vm2548, %v9251, %v9253
      %v9256 = vshrl.u32 %v8933, 16
      %v9258 = vrot.slane %v9256, 7
      %v9259 = vrot.slane %v9258, 1
      %v9261 = vshll.u32 %v8934, 16
      %v9263 = vsel %vm2548, %v9259, %v9261
      %v9264 = vshrl.u32 %v8934, 16
      %v9266 = vrot.slane %v9264, 7
      %v9267 = vrot.slane %v9266, 1
      %v9269 = vshll.u32 %v8941, 16
      %v9271 = vsel %vm2548, %v9267, %v9269
      %v9272 = vshrl.u32 %v8941, 16
      %v9274 = vrot.slane %v9272, 7
      %v9275 = vrot.slane %v9274, 1
      %v9277 = vshll.u32 %v9069, 16
      %v9279 = vsel %vm2548, %v9275, %v9277
      %v9281 = vshrl.u32 %v8948, 16
      %v9283 = vrot.slane %v9281, 7
      %v9284 = vrot.slane %v9283, 1
      %v9286 = vshll.u32 %v8949, 16
      %v9288 = vsel %vm2548, %v9284, %v9286
      %v9289 = vshrl.u32 %v8949, 16
      %v9291 = vrot.slane %v9289, 7
      %v9292 = vrot.slane %v9291, 1
      %v9294 = vshll.u32 %v8956, 16
      %v9296 = vsel %vm2548, %v9292, %v9294
      %v9297 = vshrl.u32 %v8956, 16
      %v9299 = vrot.slane %v9297, 7
      %v9300 = vrot.slane %v9299, 1
      %v9302 = vshll.u32 %v8957, 16
      %v9304 = vsel %vm2548, %v9300, %v9302
      %v9305 = vshrl.u32 %v8957, 16
      %v9307 = vrot.slane %v9305, 7
      %v9308 = vrot.slane %v9307, 1
      %v9310 = vshll.u32 %v8964, 16
      %v9312 = vsel %vm2548, %v9308, %v9310
      %v9313 = vshrl.u32 %v8964, 16
      %v9315 = vrot.slane %v9313, 7
      %v9316 = vrot.slane %v9315, 1
      %v9318 = vshll.u32 %v9070, 16
      %v9320 = vsel %vm2548, %v9316, %v9318
      %v9322 = vshrl.u32 %v8971, 16
      %v9324 = vrot.slane %v9322, 7
      %v9325 = vrot.slane %v9324, 1
      %v9327 = vshll.u32 %v8972, 16
      %v9329 = vsel %vm2548, %v9325, %v9327
      %v9330 = vshrl.u32 %v8972, 16
      %v9332 = vrot.slane %v9330, 7
      %v9333 = vrot.slane %v9332, 1
      %v9335 = vshll.u32 %v8979, 16
      %v9337 = vsel %vm2548, %v9333, %v9335
      %v9338 = vshrl.u32 %v8979, 16
      %v9340 = vrot.slane %v9338, 7
      %v9341 = vrot.slane %v9340, 1
      %v9343 = vshll.u32 %v8980, 16
      %v9345 = vsel %vm2548, %v9341, %v9343
      %v9346 = vshrl.u32 %v8980, 16
      %v9348 = vrot.slane %v9346, 7
      %v9349 = vrot.slane %v9348, 1
      %v9351 = vshll.u32 %v8987, 16
      %v9353 = vsel %vm2548, %v9349, %v9351
      %v9354 = vshrl.u32 %v8987, 16
      %v9356 = vrot.slane %v9354, 7
      %v9357 = vrot.slane %v9356, 1
      %v9359 = vshll.u32 %v9071, 16
      %v9361 = vsel %vm2548, %v9357, %v9359
      %v9363 = vshrl.u32 %v8994, 16
      %v9365 = vrot.slane %v9363, 7
      %v9366 = vrot.slane %v9365, 1
      %v9368 = vshll.u32 %v8995, 16
      %v9370 = vsel %vm2548, %v9366, %v9368
      %v9371 = vshrl.u32 %v8995, 16
      %v9373 = vrot.slane %v9371, 7
      %v9374 = vrot.slane %v9373, 1
      %v9376 = vshll.u32 %v9002, 16
      %v9378 = vsel %vm2548, %v9374, %v9376
      %v9379 = vshrl.u32 %v9002, 16
      %v9381 = vrot.slane %v9379, 7
      %v9382 = vrot.slane %v9381, 1
      %v9384 = vshll.u32 %v9003, 16
      %v9386 = vsel %vm2548, %v9382, %v9384
      %v9387 = vshrl.u32 %v9003, 16
      %v9389 = vrot.slane %v9387, 7
      %v9390 = vrot.slane %v9389, 1
      %v9392 = vshll.u32 %v9010, 16
      %v9394 = vsel %vm2548, %v9390, %v9392
      %v9395 = vshrl.u32 %v9010, 16
      %v9397 = vrot.slane %v9395, 7
      %v9398 = vrot.slane %v9397, 1
      %v9400 = vshll.u32 %v9072, 16
      %v9402 = vsel %vm2548, %v9398, %v9400
      %v9404 = vshrl.u32 %v9017, 16
      %v9406 = vrot.slane %v9404, 7
      %v9407 = vrot.slane %v9406, 1
      %v9409 = vshll.u32 %v9018, 16
      %v9411 = vsel %vm2548, %v9407, %v9409
      %v9412 = vshrl.u32 %v9018, 16
      %v9414 = vrot.slane %v9412, 7
      %v9415 = vrot.slane %v9414, 1
      %v9417 = vshll.u32 %v9025, 16
      %v9419 = vsel %vm2548, %v9415, %v9417
      %v9420 = vshrl.u32 %v9025, 16
      %v9422 = vrot.slane %v9420, 7
      %v9423 = vrot.slane %v9422, 1
      %v9425 = vshll.u32 %v9026, 16
      %v9427 = vsel %vm2548, %v9423, %v9425
      %v9428 = vshrl.u32 %v9026, 16
      %v9430 = vrot.slane %v9428, 7
      %v9431 = vrot.slane %v9430, 1
      %v9433 = vshll.u32 %v9033, 16
      %v9435 = vsel %vm2548, %v9431, %v9433
      %v9436 = vshrl.u32 %v9033, 16
      %v9438 = vrot.slane %v9436, 7
      %v9439 = vrot.slane %v9438, 1
      %v9441 = vshll.u32 %v9073, 16
      %v9443 = vsel %vm2548, %v9439, %v9441
      %v9445 = vshrl.u32 %v9040, 16
      %v9447 = vrot.slane %v9445, 7
      %v9448 = vrot.slane %v9447, 1
      %v9450 = vshll.u32 %v9041, 16
      %v9452 = vsel %vm2548, %v9448, %v9450
      %v9453 = vshrl.u32 %v9041, 16
      %v9455 = vrot.slane %v9453, 7
      %v9456 = vrot.slane %v9455, 1
      %v9458 = vshll.u32 %v9048, 16
      %v9460 = vsel %vm2548, %v9456, %v9458
      %v9461 = vshrl.u32 %v9048, 16
      %v9463 = vrot.slane %v9461, 7
      %v9464 = vrot.slane %v9463, 1
      %v9466 = vshll.u32 %v9049, 16
      %v9468 = vsel %vm2548, %v9464, %v9466
      %v9469 = vshrl.u32 %v9049, 16
      %v9471 = vrot.slane %v9469, 7
      %v9472 = vrot.slane %v9471, 1
      %v9474 = vshll.u32 %v9056, 16
      %v9476 = vsel %vm2548, %v9472, %v9474
      %v9477 = vshrl.u32 %v9056, 16
      %v9479 = vrot.slane %v9477, 7
      %v9480 = vrot.slane %v9479, 1
      %v9482 = vshll.u32 %v9074, 16
      %v9484 = vsel %vm2548, %v9480, %v9482
      %s9485 = scalar_lea.vmem %s3, 32
      %v9486 = vld [vmem:[%s9485] sm:$0xf]
      %v9487 = vld [vmem:[%s9485 + $0x4] sm:$0xf]
      %v9488 = vld [vmem:[%s9485 + $0x8] sm:$0xf]
      %v9489 = vld [vmem:[%s9485 + $0xc] sm:$0xf]
      %v9490 = vld [vmem:[%s9485 + $0x10] sm:$0xf]
      %v9491 = vld [vmem:[%s9485 + $0x14] sm:$0xf]
      %v9492 = vld [vmem:[%s9485 + $0x18] sm:$0xf]
      %v9493 = vld [vmem:[%s9485 + $0x1c] sm:$0xf]
      %v9494 = vcombine.low %v9083, %v9091
      %v9495 = vcombine.low %v9099, %v9107
      %v9496 = vcombine.low %v9115, %v9124
      %v9497 = vcombine.low %v9132, %v9140
      %v9499 = vunpack.c.l.s4 1966171168
      %v9500 = vunpack.c.0.s8 %v9499
      %v9501 = vlaneseq
      %v9502 = vshrl.u32 %v9501, 7
      %v9503 = vsub.s32 %v9500, %v9502
      %v9504 = vrot.slane %v9494, %v9503
      %v9506 = vunpack.c.l.s4 1966171168
      %v9507 = vunpack.c.0.s8 %v9506
      %v9508 = vlaneseq
      %v9509 = vshrl.u32 %v9508, 7
      %v9510 = vsub.s32 %v9507, %v9509
      %v9511 = vrot.slane %v9495, %v9510
      %v9513 = vunpack.c.l.s4 1966171168
      %v9514 = vunpack.c.0.s8 %v9513
      %v9515 = vlaneseq
      %v9516 = vshrl.u32 %v9515, 7
      %v9517 = vsub.s32 %v9514, %v9516
      %v9518 = vrot.slane %v9496, %v9517
      %v9520 = vunpack.c.l.s4 1966171168
      %v9521 = vunpack.c.0.s8 %v9520
      %v9522 = vlaneseq
      %v9523 = vshrl.u32 %v9522, 7
      %v9524 = vsub.s32 %v9521, %v9523
      %v9525 = vrot.slane %v9497, %v9524
      %v9526 = vcombine.low %v9504, %v9511
      %v9527 = vcombine.low %v9518, %v9525
      %v9529 = vunpack.c.l.s4 1966171168
      %v9530 = vunpack.c.0.s8 %v9529
      %v9531 = vlaneseq
      %v9532 = vshrl.u32 %v9531, 7
      %v9533 = vsub.s32 %v9530, %v9532
      %v9534 = vrot.slane %v9526, %v9533
      %v9536 = vunpack.c.l.s4 1966171168
      %v9537 = vunpack.c.0.s8 %v9536
      %v9538 = vlaneseq
      %v9539 = vshrl.u32 %v9538, 7
      %v9540 = vsub.s32 %v9537, %v9539
      %v9541 = vrot.slane %v9527, %v9540
      %v9542 = vcombine.low %v9534, %v9541
      %v9543 = vcombine.low %v9148, %v9156
      %v9544 = vcombine.low %v9165, %v9173
      %v9545 = vcombine.low %v9181, %v9189
      %v9546 = vcombine.low %v9197, %v9206
      %v9548 = vunpack.c.l.s4 1966171168
      %v9549 = vunpack.c.0.s8 %v9548
      %v9550 = vlaneseq
      %v9551 = vshrl.u32 %v9550, 7
      %v9552 = vsub.s32 %v9549, %v9551
      %v9553 = vrot.slane %v9543, %v9552
      %v9555 = vunpack.c.l.s4 1966171168
      %v9556 = vunpack.c.0.s8 %v9555
      %v9557 = vlaneseq
      %v9558 = vshrl.u32 %v9557, 7
      %v9559 = vsub.s32 %v9556, %v9558
      %v9560 = vrot.slane %v9544, %v9559
      %v9562 = vunpack.c.l.s4 1966171168
      %v9563 = vunpack.c.0.s8 %v9562
      %v9564 = vlaneseq
      %v9565 = vshrl.u32 %v9564, 7
      %v9566 = vsub.s32 %v9563, %v9565
      %v9567 = vrot.slane %v9545, %v9566
      %v9569 = vunpack.c.l.s4 1966171168
      %v9570 = vunpack.c.0.s8 %v9569
      %v9571 = vlaneseq
      %v9572 = vshrl.u32 %v9571, 7
      %v9573 = vsub.s32 %v9570, %v9572
      %v9574 = vrot.slane %v9546, %v9573
      %v9575 = vcombine.low %v9553, %v9560
      %v9576 = vcombine.low %v9567, %v9574
      %v9578 = vunpack.c.l.s4 1966171168
      %v9579 = vunpack.c.0.s8 %v9578
      %v9580 = vlaneseq
      %v9581 = vshrl.u32 %v9580, 7
      %v9582 = vsub.s32 %v9579, %v9581
      %v9583 = vrot.slane %v9575, %v9582
      %v9585 = vunpack.c.l.s4 1966171168
      %v9586 = vunpack.c.0.s8 %v9585
      %v9587 = vlaneseq
      %v9588 = vshrl.u32 %v9587, 7
      %v9589 = vsub.s32 %v9586, %v9588
      %v9590 = vrot.slane %v9576, %v9589
      %v9591 = vcombine.low %v9583, %v9590
      %v9592 = vcombine.low %v9214, %v9222
      %v9593 = vcombine.low %v9230, %v9238
      %v9594 = vcombine.low %v9247, %v9255
      %v9595 = vcombine.low %v9263, %v9271
      %v9597 = vunpack.c.l.s4 1966171168
      %v9598 = vunpack.c.0.s8 %v9597
      %v9599 = vlaneseq
      %v9600 = vshrl.u32 %v9599, 7
      %v9601 = vsub.s32 %v9598, %v9600
      %v9602 = vrot.slane %v9592, %v9601
      %v9604 = vunpack.c.l.s4 1966171168
      %v9605 = vunpack.c.0.s8 %v9604
      %v9606 = vlaneseq
      %v9607 = vshrl.u32 %v9606, 7
      %v9608 = vsub.s32 %v9605, %v9607
      %v9609 = vrot.slane %v9593, %v9608
      %v9611 = vunpack.c.l.s4 1966171168
      %v9612 = vunpack.c.0.s8 %v9611
      %v9613 = vlaneseq
      %v9614 = vshrl.u32 %v9613, 7
      %v9615 = vsub.s32 %v9612, %v9614
      %v9616 = vrot.slane %v9594, %v9615
      %v9618 = vunpack.c.l.s4 1966171168
      %v9619 = vunpack.c.0.s8 %v9618
      %v9620 = vlaneseq
      %v9621 = vshrl.u32 %v9620, 7
      %v9622 = vsub.s32 %v9619, %v9621
      %v9623 = vrot.slane %v9595, %v9622
      %v9624 = vcombine.low %v9602, %v9609
      %v9625 = vcombine.low %v9616, %v9623
      %v9627 = vunpack.c.l.s4 1966171168
      %v9628 = vunpack.c.0.s8 %v9627
      %v9629 = vlaneseq
      %v9630 = vshrl.u32 %v9629, 7
      %v9631 = vsub.s32 %v9628, %v9630
      %v9632 = vrot.slane %v9624, %v9631
      %v9634 = vunpack.c.l.s4 1966171168
      %v9635 = vunpack.c.0.s8 %v9634
      %v9636 = vlaneseq
      %v9637 = vshrl.u32 %v9636, 7
      %v9638 = vsub.s32 %v9635, %v9637
      %v9639 = vrot.slane %v9625, %v9638
      %v9640 = vcombine.low %v9632, %v9639
      %v9641 = vcombine.low %v9279, %v9288
      %v9642 = vcombine.low %v9296, %v9304
      %v9643 = vcombine.low %v9312, %v9320
      %v9644 = vcombine.low %v9329, %v9337
      %v9646 = vunpack.c.l.s4 1966171168
      %v9647 = vunpack.c.0.s8 %v9646
      %v9648 = vlaneseq
      %v9649 = vshrl.u32 %v9648, 7
      %v9650 = vsub.s32 %v9647, %v9649
      %v9651 = vrot.slane %v9641, %v9650
      %v9653 = vunpack.c.l.s4 1966171168
      %v9654 = vunpack.c.0.s8 %v9653
      %v9655 = vlaneseq
      %v9656 = vshrl.u32 %v9655, 7
      %v9657 = vsub.s32 %v9654, %v9656
      %v9658 = vrot.slane %v9642, %v9657
      %v9660 = vunpack.c.l.s4 1966171168
      %v9661 = vunpack.c.0.s8 %v9660
      %v9662 = vlaneseq
      %v9663 = vshrl.u32 %v9662, 7
      %v9664 = vsub.s32 %v9661, %v9663
      %v9665 = vrot.slane %v9643, %v9664
      %v9667 = vunpack.c.l.s4 1966171168
      %v9668 = vunpack.c.0.s8 %v9667
      %v9669 = vlaneseq
      %v9670 = vshrl.u32 %v9669, 7
      %v9671 = vsub.s32 %v9668, %v9670
      %v9672 = vrot.slane %v9644, %v9671
      %v9673 = vcombine.low %v9651, %v9658
      %v9674 = vcombine.low %v9665, %v9672
      %v9676 = vunpack.c.l.s4 1966171168
      %v9677 = vunpack.c.0.s8 %v9676
      %v9678 = vlaneseq
      %v9679 = vshrl.u32 %v9678, 7
      %v9680 = vsub.s32 %v9677, %v9679
      %v9681 = vrot.slane %v9673, %v9680
      %v9683 = vunpack.c.l.s4 1966171168
      %v9684 = vunpack.c.0.s8 %v9683
      %v9685 = vlaneseq
      %v9686 = vshrl.u32 %v9685, 7
      %v9687 = vsub.s32 %v9684, %v9686
      %v9688 = vrot.slane %v9674, %v9687
      %v9689 = vcombine.low %v9681, %v9688
      %v9690 = vcombine.low %v9345, %v9353
      %v9691 = vcombine.low %v9361, %v9370
      %v9692 = vcombine.low %v9378, %v9386
      %v9693 = vcombine.low %v9394, %v9402
      %v9695 = vunpack.c.l.s4 1966171168
      %v9696 = vunpack.c.0.s8 %v9695
      %v9697 = vlaneseq
      %v9698 = vshrl.u32 %v9697, 7
      %v9699 = vsub.s32 %v9696, %v9698
      %v9700 = vrot.slane %v9690, %v9699
      %v9702 = vunpack.c.l.s4 1966171168
      %v9703 = vunpack.c.0.s8 %v9702
      %v9704 = vlaneseq
      %v9705 = vshrl.u32 %v9704, 7
      %v9706 = vsub.s32 %v9703, %v9705
      %v9707 = vrot.slane %v9691, %v9706
      %v9709 = vunpack.c.l.s4 1966171168
      %v9710 = vunpack.c.0.s8 %v9709
      %v9711 = vlaneseq
      %v9712 = vshrl.u32 %v9711, 7
      %v9713 = vsub.s32 %v9710, %v9712
      %v9714 = vrot.slane %v9692, %v9713
      %v9716 = vunpack.c.l.s4 1966171168
      %v9717 = vunpack.c.0.s8 %v9716
      %v9718 = vlaneseq
      %v9719 = vshrl.u32 %v9718, 7
      %v9720 = vsub.s32 %v9717, %v9719
      %v9721 = vrot.slane %v9693, %v9720
      %v9722 = vcombine.low %v9700, %v9707
      %v9723 = vcombine.low %v9714, %v9721
      %v9725 = vunpack.c.l.s4 1966171168
      %v9726 = vunpack.c.0.s8 %v9725
      %v9727 = vlaneseq
      %v9728 = vshrl.u32 %v9727, 7
      %v9729 = vsub.s32 %v9726, %v9728
      %v9730 = vrot.slane %v9722, %v9729
      %v9732 = vunpack.c.l.s4 1966171168
      %v9733 = vunpack.c.0.s8 %v9732
      %v9734 = vlaneseq
      %v9735 = vshrl.u32 %v9734, 7
      %v9736 = vsub.s32 %v9733, %v9735
      %v9737 = vrot.slane %v9723, %v9736
      %v9738 = vcombine.low %v9730, %v9737
      %v9739 = vcombine.low %v9411, %v9419
      %v9740 = vcombine.low %v9427, %v9435
      %v9741 = vcombine.low %v9443, %v9452
      %v9742 = vcombine.low %v9460, %v9468
      %v9744 = vunpack.c.l.s4 1966171168
      %v9745 = vunpack.c.0.s8 %v9744
      %v9746 = vlaneseq
      %v9747 = vshrl.u32 %v9746, 7
      %v9748 = vsub.s32 %v9745, %v9747
      %v9749 = vrot.slane %v9739, %v9748
      %v9751 = vunpack.c.l.s4 1966171168
      %v9752 = vunpack.c.0.s8 %v9751
      %v9753 = vlaneseq
      %v9754 = vshrl.u32 %v9753, 7
      %v9755 = vsub.s32 %v9752, %v9754
      %v9756 = vrot.slane %v9740, %v9755
      %v9758 = vunpack.c.l.s4 1966171168
      %v9759 = vunpack.c.0.s8 %v9758
      %v9760 = vlaneseq
      %v9761 = vshrl.u32 %v9760, 7
      %v9762 = vsub.s32 %v9759, %v9761
      %v9763 = vrot.slane %v9741, %v9762
      %v9765 = vunpack.c.l.s4 1966171168
      %v9766 = vunpack.c.0.s8 %v9765
      %v9767 = vlaneseq
      %v9768 = vshrl.u32 %v9767, 7
      %v9769 = vsub.s32 %v9766, %v9768
      %v9770 = vrot.slane %v9742, %v9769
      %v9771 = vcombine.low %v9749, %v9756
      %v9772 = vcombine.low %v9763, %v9770
      %v9774 = vunpack.c.l.s4 1966171168
      %v9775 = vunpack.c.0.s8 %v9774
      %v9776 = vlaneseq
      %v9777 = vshrl.u32 %v9776, 7
      %v9778 = vsub.s32 %v9775, %v9777
      %v9779 = vrot.slane %v9771, %v9778
      %v9781 = vunpack.c.l.s4 1966171168
      %v9782 = vunpack.c.0.s8 %v9781
      %v9783 = vlaneseq
      %v9784 = vshrl.u32 %v9783, 7
      %v9785 = vsub.s32 %v9782, %v9784
      %v9786 = vrot.slane %v9772, %v9785
      %v9787 = vcombine.low %v9779, %v9786
      %v9788 = vcombine.low %v9476, %v9484
      %v9790 = vunpack.c.l.s4 1966171168
      %v9791 = vunpack.c.0.s8 %v9790
      %v9792 = vlaneseq
      %v9793 = vshrl.u32 %v9792, 7
      %v9794 = vsub.s32 %v9791, %v9793
      %v9795 = vrot.slane %v9788, %v9794
      %v9797 = vunpack.c.l.s4 1966171168
      %v9798 = vunpack.c.0.s8 %v9797
      %v9799 = vlaneseq
      %v9800 = vshrl.u32 %v9799, 7
      %v9801 = vsub.s32 %v9798, %v9800
      %v9802 = vrot.slane %v9795, %v9801
      %v9811 = vunpack.c.l.b16 %v9486
      %v9812 = vunpack.c.l.b16 %v9487
      %v9813 = vunpack.c.l.b16 %v9488
      %v9814 = vunpack.c.l.b16 %v9489
      %v9815 = vunpack.c.l.b16 %v9490
      %v9816 = vunpack.c.l.b16 %v9491
      %v9817 = vunpack.c.l.b16 %v9492
      %v9818 = vunpack.c.l.b16 %v9493
      %v9819 = vpack.c.b16 %v9812, %v9811
      %v9820 = vpack.c.b16 %v9814, %v9813
      %v9821 = vpack.c.b16 %v9816, %v9815
      %v9822 = vpack.c.b16 %v9818, %v9817
      %vm9827 = vcmask 523264
      %v9829 = vsel %vm9827, %v9542, 0
      %v9832 = vsel %vm9827, %v9591, 0
      %v9835 = vsel %vm9827, %v9640, 0
      %v9838 = vsel %vm9827, %v9689, 0
      %v9841 = vsel %vm9827, %v9738, 0
      %v9844 = vsel %vm9827, %v9787, 0
      %v9847 = vsel %vm9827, %v9802, 0
      %9849 = vmatprep.subr.bf16.mxu0 0
      %9850 = vmatpush1.bf16.msra.mxu0 %v9819
      %9851 = vmatprep.subr.bf16.mxu0 0
      %9852 = vmatpush1.bf16.msra.mxu0 %v9820
      %9853 = vmatprep.subr.bf16.mxu0 0
      %9854 = vmatpush1.bf16.msra.mxu0 %v9821
      %9855 = vmatprep.subr.bf16.mxu0 0
      %9856 = vmatpush1.bf16.msra.mxu0 %v9822
      %9857 = vmatprep.subr.bf16.mxu0 0
      %9858 = vmatpush1.bf16.msra.mxu0 0
      %9859 = vmatprep.subr.bf16.mxu0 0
      %9860 = vmatpush1.bf16.msra.mxu0 0
      %9861 = vmatprep.subr.bf16.mxu0 0
      %9862 = vmatpush1.bf16.msra.mxu0 0
      %9863 = vmatprep.subr.bf16.mxu0 0
      %9864 = vmatpush1.bf16.msra.mxu0 0
      %9865 = vmatprep.subr.bf16.mxu0 0
      %9866 = vmatpush1.bf16.msra.mxu0 0
      %9867 = vmatprep.subr.bf16.mxu0 0
      %9868 = vmatpush1.bf16.msra.mxu0 0
      %9869 = vmatprep.subr.bf16.mxu0 0
      %9870 = vmatpush1.bf16.msra.mxu0 0
      %9871 = vmatprep.subr.bf16.mxu0 0
      %9872 = vmatpush1.bf16.msra.mxu0 0
      %9873 = vmatprep.subr.bf16.mxu0 0
      %9874 = vmatpush1.bf16.msra.mxu0 0
      %9875 = vmatprep.subr.bf16.mxu0 0
      %9876 = vmatpush1.bf16.msra.mxu0 0
      %9877 = vmatprep.subr.bf16.mxu0 0
      %9878 = vmatpush1.bf16.msra.mxu0 0
      %9879 = vmatprep.subr.bf16.mxu0 0
      %9880 = vmatpush1.bf16.msra.mxu0 0
      %9881 = vmatprep.mubr.bf16.mxu0 0
      %9882 = vmatmul.mubr.bf16.gmra.mrb[0].mxu0 %v9829
      %v9883 = vpop.f32.mrb[0].mxu0
      %v9884 = vadd.f32 0.0, %v9883
      %v9885 = vpop.f32.mrb[0].mxu0
      %v9886 = vpop.f32.mrb[0].mxu0
      %v9887 = vadd.f32 0.0, %v9886
      %v9888 = vpop.f32.mrb[0].mxu0
      %9889 = vmatprep.mubr.bf16.mxu0 0
      %9890 = vmatmul.mubr.bf16.gmra.mrb[0].mxu0 %v9832
      %v9891 = vpop.f32.mrb[0].mxu0
      %v9892 = vadd.f32 0.0, %v9891
      %v9893 = vpop.f32.mrb[0].mxu0
      %v9894 = vpop.f32.mrb[0].mxu0
      %v9895 = vadd.f32 0.0, %v9894
      %v9896 = vpop.f32.mrb[0].mxu0
      %9897 = vmatprep.mubr.bf16.mxu0 0
      %9898 = vmatmul.mubr.bf16.gmra.mrb[0].mxu0 %v9835
      %v9899 = vpop.f32.mrb[0].mxu0
      %v9900 = vadd.f32 0.0, %v9899
      %v9901 = vpop.f32.mrb[0].mxu0
      %v9902 = vpop.f32.mrb[0].mxu0
      %v9903 = vadd.f32 0.0, %v9902
      %v9904 = vpop.f32.mrb[0].mxu0
      %9905 = vmatprep.mubr.bf16.mxu0 0
      %9906 = vmatmul.mubr.bf16.gmra.mrb[0].mxu0 %v9838
      %v9907 = vpop.f32.mrb[0].mxu0
      %v9908 = vadd.f32 0.0, %v9907
      %v9909 = vpop.f32.mrb[0].mxu0
      %v9910 = vpop.f32.mrb[0].mxu0
      %v9911 = vadd.f32 0.0, %v9910
      %v9912 = vpop.f32.mrb[0].mxu0
      %9913 = vmatprep.mubr.bf16.mxu0 0
      %9914 = vmatmul.mubr.bf16.gmra.mrb[0].mxu0 %v9841
      %v9915 = vpop.f32.mrb[0].mxu0
      %v9916 = vadd.f32 0.0, %v9915
      %v9917 = vpop.f32.mrb[0].mxu0
      %v9918 = vpop.f32.mrb[0].mxu0
      %v9919 = vadd.f32 0.0, %v9918
      %v9920 = vpop.f32.mrb[0].mxu0
      %9921 = vmatprep.mubr.bf16.mxu0 0
      %9922 = vmatmul.mubr.bf16.gmra.mrb[0].mxu0 %v9844
      %v9923 = vpop.f32.mrb[0].mxu0
      %v9924 = vadd.f32 0.0, %v9923
      %v9925 = vpop.f32.mrb[0].mxu0
      %v9926 = vpop.f32.mrb[0].mxu0
      %v9927 = vadd.f32 0.0, %v9926
      %v9928 = vpop.f32.mrb[0].mxu0
      %9929 = vmatprep.mubr.bf16.mxu0 0
      %9930 = vmatmul.mubr.bf16.gmra.mrb[0].mxu0 %v9847
      %v9931 = vpop.f32.mrb[0].mxu0
      %v9932 = vadd.f32 0.0, %v9931
      %v9933 = vpop.f32.mrb[0].mxu0
      %v9934 = vpop.f32.mrb[0].mxu0
      %v9935 = vpop.f32.mrb[0].mxu0
      %9936 = vdwg.mxu0
      %v9937 = vcombine.low %v8833, %v8834
      %v9938 = vcombine.low %v8841, %v8842
      %v9939 = vcombine.low %v8849, %v8856
      %v9940 = vcombine.low %v8857, %v8864
      %v9942 = vunpack.c.l.s4 1966171168
      %v9943 = vunpack.c.0.s8 %v9942
      %v9944 = vlaneseq
      %v9945 = vshrl.u32 %v9944, 7
      %v9946 = vsub.s32 %v9943, %v9945
      %v9947 = vrot.slane %v9937, %v9946
      %v9949 = vunpack.c.l.s4 1966171168
      %v9950 = vunpack.c.0.s8 %v9949
      %v9951 = vlaneseq
      %v9952 = vshrl.u32 %v9951, 7
      %v9953 = vsub.s32 %v9950, %v9952
      %v9954 = vrot.slane %v9938, %v9953
      %v9956 = vunpack.c.l.s4 1966171168
      %v9957 = vunpack.c.0.s8 %v9956
      %v9958 = vlaneseq
      %v9959 = vshrl.u32 %v9958, 7
      %v9960 = vsub.s32 %v9957, %v9959
      %v9961 = vrot.slane %v9939, %v9960
      %v9963 = vunpack.c.l.s4 1966171168
      %v9964 = vunpack.c.0.s8 %v9963
      %v9965 = vlaneseq
      %v9966 = vshrl.u32 %v9965, 7
      %v9967 = vsub.s32 %v9964, %v9966
      %v9968 = vrot.slane %v9940, %v9967
      %v9969 = vcombine.low %v9947, %v9954
      %v9970 = vcombine.low %v9961, %v9968
      %v9972 = vunpack.c.l.s4 1966171168
      %v9973 = vunpack.c.0.s8 %v9972
      %v9974 = vlaneseq
      %v9975 = vshrl.u32 %v9974, 7
      %v9976 = vsub.s32 %v9973, %v9975
      %v9977 = vrot.slane %v9969, %v9976
      %v9979 = vunpack.c.l.s4 1966171168
      %v9980 = vunpack.c.0.s8 %v9979
      %v9981 = vlaneseq
      %v9982 = vshrl.u32 %v9981, 7
      %v9983 = vsub.s32 %v9980, %v9982
      %v9984 = vrot.slane %v9970, %v9983
      %v9985 = vcombine.low %v9977, %v9984
      %v9986 = vcombine.low %v8865, %v8872
      %v9987 = vcombine.low %v8879, %v8880
      %v9988 = vcombine.low %v8887, %v8888
      %v9989 = vcombine.low %v8895, %v8902
      %v9991 = vunpack.c.l.s4 1966171168
      %v9992 = vunpack.c.0.s8 %v9991
      %v9993 = vlaneseq
      %v9994 = vshrl.u32 %v9993, 7
      %v9995 = vsub.s32 %v9992, %v9994
      %v9996 = vrot.slane %v9986, %v9995
      %v9998 = vunpack.c.l.s4 1966171168
      %v9999 = vunpack.c.0.s8 %v9998
      %v10000 = vlaneseq
      %v10001 = vshrl.u32 %v10000, 7
      %v10002 = vsub.s32 %v9999, %v10001
      %v10003 = vrot.slane %v9987, %v10002
      %v10005 = vunpack.c.l.s4 1966171168
      %v10006 = vunpack.c.0.s8 %v10005
      %v10007 = vlaneseq
      %v10008 = vshrl.u32 %v10007, 7
      %v10009 = vsub.s32 %v10006, %v10008
      %v10010 = vrot.slane %v9988, %v10009
      %v10012 = vunpack.c.l.s4 1966171168
      %v10013 = vunpack.c.0.s8 %v10012
      %v10014 = vlaneseq
      %v10015 = vshrl.u32 %v10014, 7
      %v10016 = vsub.s32 %v10013, %v10015
      %v10017 = vrot.slane %v9989, %v10016
      %v10018 = vcombine.low %v9996, %v10003
      %v10019 = vcombine.low %v10010, %v10017
      %v10021 = vunpack.c.l.s4 1966171168
      %v10022 = vunpack.c.0.s8 %v10021
      %v10023 = vlaneseq
      %v10024 = vshrl.u32 %v10023, 7
      %v10025 = vsub.s32 %v10022, %v10024
      %v10026 = vrot.slane %v10018, %v10025
      %v10028 = vunpack.c.l.s4 1966171168
      %v10029 = vunpack.c.0.s8 %v10028
      %v10030 = vlaneseq
      %v10031 = vshrl.u32 %v10030, 7
      %v10032 = vsub.s32 %v10029, %v10031
      %v10033 = vrot.slane %v10019, %v10032
      %v10034 = vcombine.low %v10026, %v10033
      %v10035 = vcombine.low %v8903, %v8910
      %v10036 = vcombine.low %v8911, %v8918
      %v10037 = vcombine.low %v8925, %v8926
      %v10038 = vcombine.low %v8933, %v8934
      %v10040 = vunpack.c.l.s4 1966171168
      %v10041 = vunpack.c.0.s8 %v10040
      %v10042 = vlaneseq
      %v10043 = vshrl.u32 %v10042, 7
      %v10044 = vsub.s32 %v10041, %v10043
      %v10045 = vrot.slane %v10035, %v10044
      %v10047 = vunpack.c.l.s4 1966171168
      %v10048 = vunpack.c.0.s8 %v10047
      %v10049 = vlaneseq
      %v10050 = vshrl.u32 %v10049, 7
      %v10051 = vsub.s32 %v10048, %v10050
      %v10052 = vrot.slane %v10036, %v10051
      %v10054 = vunpack.c.l.s4 1966171168
      %v10055 = vunpack.c.0.s8 %v10054
      %v10056 = vlaneseq
      %v10057 = vshrl.u32 %v10056, 7
      %v10058 = vsub.s32 %v10055, %v10057
      %v10059 = vrot.slane %v10037, %v10058
      %v10061 = vunpack.c.l.s4 1966171168
      %v10062 = vunpack.c.0.s8 %v10061
      %v10063 = vlaneseq
      %v10064 = vshrl.u32 %v10063, 7
      %v10065 = vsub.s32 %v10062, %v10064
      %v10066 = vrot.slane %v10038, %v10065
      %v10067 = vcombine.low %v10045, %v10052
      %v10068 = vcombine.low %v10059, %v10066
      %v10070 = vunpack.c.l.s4 1966171168
      %v10071 = vunpack.c.0.s8 %v10070
      %v10072 = vlaneseq
      %v10073 = vshrl.u32 %v10072, 7
      %v10074 = vsub.s32 %v10071, %v10073
      %v10075 = vrot.slane %v10067, %v10074
      %v10077 = vunpack.c.l.s4 1966171168
      %v10078 = vunpack.c.0.s8 %v10077
      %v10079 = vlaneseq
      %v10080 = vshrl.u32 %v10079, 7
      %v10081 = vsub.s32 %v10078, %v10080
      %v10082 = vrot.slane %v10068, %v10081
      %v10083 = vcombine.low %v10075, %v10082
      %v10084 = vcombine.low %v8941, %v8948
      %v10085 = vcombine.low %v8949, %v8956
      %v10086 = vcombine.low %v8957, %v8964
      %v10087 = vcombine.low %v8971, %v8972
      %v10089 = vunpack.c.l.s4 1966171168
      %v10090 = vunpack.c.0.s8 %v10089
      %v10091 = vlaneseq
      %v10092 = vshrl.u32 %v10091, 7
      %v10093 = vsub.s32 %v10090, %v10092
      %v10094 = vrot.slane %v10084, %v10093
      %v10096 = vunpack.c.l.s4 1966171168
      %v10097 = vunpack.c.0.s8 %v10096
      %v10098 = vlaneseq
      %v10099 = vshrl.u32 %v10098, 7
      %v10100 = vsub.s32 %v10097, %v10099
      %v10101 = vrot.slane %v10085, %v10100
      %v10103 = vunpack.c.l.s4 1966171168
      %v10104 = vunpack.c.0.s8 %v10103
      %v10105 = vlaneseq
      %v10106 = vshrl.u32 %v10105, 7
      %v10107 = vsub.s32 %v10104, %v10106
      %v10108 = vrot.slane %v10086, %v10107
      %v10110 = vunpack.c.l.s4 1966171168
      %v10111 = vunpack.c.0.s8 %v10110
      %v10112 = vlaneseq
      %v10113 = vshrl.u32 %v10112, 7
      %v10114 = vsub.s32 %v10111, %v10113
      %v10115 = vrot.slane %v10087, %v10114
      %v10116 = vcombine.low %v10094, %v10101
      %v10117 = vcombine.low %v10108, %v10115
      %v10119 = vunpack.c.l.s4 1966171168
      %v10120 = vunpack.c.0.s8 %v10119
      %v10121 = vlaneseq
      %v10122 = vshrl.u32 %v10121, 7
      %v10123 = vsub.s32 %v10120, %v10122
      %v10124 = vrot.slane %v10116, %v10123
      %v10126 = vunpack.c.l.s4 1966171168
      %v10127 = vunpack.c.0.s8 %v10126
      %v10128 = vlaneseq
      %v10129 = vshrl.u32 %v10128, 7
      %v10130 = vsub.s32 %v10127, %v10129
      %v10131 = vrot.slane %v10117, %v10130
      %v10132 = vcombine.low %v10124, %v10131
      %v10133 = vcombine.low %v8979, %v8980
      %v10134 = vcombine.low %v8987, %v8994
      %v10135 = vcombine.low %v8995, %v9002
      %v10136 = vcombine.low %v9003, %v9010
      %v10138 = vunpack.c.l.s4 1966171168
      %v10139 = vunpack.c.0.s8 %v10138
      %v10140 = vlaneseq
      %v10141 = vshrl.u32 %v10140, 7
      %v10142 = vsub.s32 %v10139, %v10141
      %v10143 = vrot.slane %v10133, %v10142
      %v10145 = vunpack.c.l.s4 1966171168
      %v10146 = vunpack.c.0.s8 %v10145
      %v10147 = vlaneseq
      %v10148 = vshrl.u32 %v10147, 7
      %v10149 = vsub.s32 %v10146, %v10148
      %v10150 = vrot.slane %v10134, %v10149
      %v10152 = vunpack.c.l.s4 1966171168
      %v10153 = vunpack.c.0.s8 %v10152
      %v10154 = vlaneseq
      %v10155 = vshrl.u32 %v10154, 7
      %v10156 = vsub.s32 %v10153, %v10155
      %v10157 = vrot.slane %v10135, %v10156
      %v10159 = vunpack.c.l.s4 1966171168
      %v10160 = vunpack.c.0.s8 %v10159
      %v10161 = vlaneseq
      %v10162 = vshrl.u32 %v10161, 7
      %v10163 = vsub.s32 %v10160, %v10162
      %v10164 = vrot.slane %v10136, %v10163
      %v10165 = vcombine.low %v10143, %v10150
      %v10166 = vcombine.low %v10157, %v10164
      %v10168 = vunpack.c.l.s4 1966171168
      %v10169 = vunpack.c.0.s8 %v10168
      %v10170 = vlaneseq
      %v10171 = vshrl.u32 %v10170, 7
      %v10172 = vsub.s32 %v10169, %v10171
      %v10173 = vrot.slane %v10165, %v10172
      %v10175 = vunpack.c.l.s4 1966171168
      %v10176 = vunpack.c.0.s8 %v10175
      %v10177 = vlaneseq
      %v10178 = vshrl.u32 %v10177, 7
      %v10179 = vsub.s32 %v10176, %v10178
      %v10180 = vrot.slane %v10166, %v10179
      %v10181 = vcombine.low %v10173, %v10180
      %v10182 = vcombine.low %v9017, %v9018
      %v10183 = vcombine.low %v9025, %v9026
      %v10184 = vcombine.low %v9033, %v9040
      %v10185 = vcombine.low %v9041, %v9048
      %v10187 = vunpack.c.l.s4 1966171168
      %v10188 = vunpack.c.0.s8 %v10187
      %v10189 = vlaneseq
      %v10190 = vshrl.u32 %v10189, 7
      %v10191 = vsub.s32 %v10188, %v10190
      %v10192 = vrot.slane %v10182, %v10191
      %v10194 = vunpack.c.l.s4 1966171168
      %v10195 = vunpack.c.0.s8 %v10194
      %v10196 = vlaneseq
      %v10197 = vshrl.u32 %v10196, 7
      %v10198 = vsub.s32 %v10195, %v10197
      %v10199 = vrot.slane %v10183, %v10198
      %v10201 = vunpack.c.l.s4 1966171168
      %v10202 = vunpack.c.0.s8 %v10201
      %v10203 = vlaneseq
      %v10204 = vshrl.u32 %v10203, 7
      %v10205 = vsub.s32 %v10202, %v10204
      %v10206 = vrot.slane %v10184, %v10205
      %v10208 = vunpack.c.l.s4 1966171168
      %v10209 = vunpack.c.0.s8 %v10208
      %v10210 = vlaneseq
      %v10211 = vshrl.u32 %v10210, 7
      %v10212 = vsub.s32 %v10209, %v10211
      %v10213 = vrot.slane %v10185, %v10212
      %v10214 = vcombine.low %v10192, %v10199
      %v10215 = vcombine.low %v10206, %v10213
      %v10217 = vunpack.c.l.s4 1966171168
      %v10218 = vunpack.c.0.s8 %v10217
      %v10219 = vlaneseq
      %v10220 = vshrl.u32 %v10219, 7
      %v10221 = vsub.s32 %v10218, %v10220
      %v10222 = vrot.slane %v10214, %v10221
      %v10224 = vunpack.c.l.s4 1966171168
      %v10225 = vunpack.c.0.s8 %v10224
      %v10226 = vlaneseq
      %v10227 = vshrl.u32 %v10226, 7
      %v10228 = vsub.s32 %v10225, %v10227
      %v10229 = vrot.slane %v10215, %v10228
      %v10230 = vcombine.low %v10222, %v10229
      %v10231 = vcombine.low %v9049, %v9056
      %v10233 = vunpack.c.l.s4 1966171168
      %v10234 = vunpack.c.0.s8 %v10233
      %v10235 = vlaneseq
      %v10236 = vshrl.u32 %v10235, 7
      %v10237 = vsub.s32 %v10234, %v10236
      %v10238 = vrot.slane %v10231, %v10237
      %v10240 = vunpack.c.l.s4 1966171168
      %v10241 = vunpack.c.0.s8 %v10240
      %v10242 = vlaneseq
      %v10243 = vshrl.u32 %v10242, 7
      %v10244 = vsub.s32 %v10241, %v10243
      %v10245 = vrot.slane %v10238, %v10244
      %v10254 = vunpack.c.l.b16 %v9057
      %v10255 = vunpack.c.l.b16 %v9058
      %v10256 = vunpack.c.l.b16 %v9059
      %v10257 = vunpack.c.l.b16 %v9060
      %v10258 = vunpack.c.l.b16 %v9061
      %v10259 = vunpack.c.l.b16 %v9062
      %v10260 = vunpack.c.l.b16 %v9063
      %v10261 = vunpack.c.l.b16 %v9064
      %v10262 = vpack.c.b16 %v10255, %v10254
      %v10263 = vpack.c.b16 %v10257, %v10256
      %v10264 = vpack.c.b16 %v10259, %v10258
      %v10265 = vpack.c.b16 %v10261, %v10260
      %v10271 = vsel %vm9827, %v9985, 0
      %v10274 = vsel %vm9827, %v10034, 0
      %v10277 = vsel %vm9827, %v10083, 0
      %v10280 = vsel %vm9827, %v10132, 0
      %v10283 = vsel %vm9827, %v10181, 0
      %v10286 = vsel %vm9827, %v10230, 0
      %v10289 = vsel %vm9827, %v10245, 0
      %10291 = vmatprep.subr.bf16.mxu0 0
      %10292 = vmatpush1.bf16.msra.mxu0 %v10262
      %10293 = vmatprep.subr.bf16.mxu0 0
      %10294 = vmatpush1.bf16.msra.mxu0 %v10263
      %10295 = vmatprep.subr.bf16.mxu0 0
      %10296 = vmatpush1.bf16.msra.mxu0 %v10264
      %10297 = vmatprep.subr.bf16.mxu0 0
      %10298 = vmatpush1.bf16.msra.mxu0 %v10265
      %10299 = vmatprep.subr.bf16.mxu0 0
      %10300 = vmatpush1.bf16.msra.mxu0 0
      %10301 = vmatprep.subr.bf16.mxu0 0
      %10302 = vmatpush1.bf16.msra.mxu0 0
      %10303 = vmatprep.subr.bf16.mxu0 0
      %10304 = vmatpush1.bf16.msra.mxu0 0
      %10305 = vmatprep.subr.bf16.mxu0 0
      %10306 = vmatpush1.bf16.msra.mxu0 0
      %10307 = vmatprep.subr.bf16.mxu0 0
      %10308 = vmatpush1.bf16.msra.mxu0 0
      %10309 = vmatprep.subr.bf16.mxu0 0
      %10310 = vmatpush1.bf16.msra.mxu0 0
      %10311 = vmatprep.subr.bf16.mxu0 0
      %10312 = vmatpush1.bf16.msra.mxu0 0
      %10313 = vmatprep.subr.bf16.mxu0 0
      %10314 = vmatpush1.bf16.msra.mxu0 0
      %10315 = vmatprep.subr.bf16.mxu0 0
      %10316 = vmatpush1.bf16.msra.mxu0 0
      %10317 = vmatprep.subr.bf16.mxu0 0
      %10318 = vmatpush1.bf16.msra.mxu0 0
      %10319 = vmatprep.subr.bf16.mxu0 0
      %10320 = vmatpush1.bf16.msra.mxu0 0
      %10321 = vmatprep.subr.bf16.mxu0 0
      %10322 = vmatpush1.bf16.msra.mxu0 0
      %10323 = vmatprep.mubr.bf16.mxu0 0
      %10324 = vmatmul.mubr.bf16.gmra.mrb[0].mxu0 %v10271
      %v10325 = vpop.f32.mrb[0].mxu0
      %v10326 = vadd.f32 %v9884, %v10325
      %v10327 = vpop.f32.mrb[0].mxu0
      %v10328 = vpop.f32.mrb[0].mxu0
      %v10329 = vadd.f32 %v9887, %v10328
      %v10330 = vpop.f32.mrb[0].mxu0
      %10331 = vmatprep.mubr.bf16.mxu0 0
      %10332 = vmatmul.mubr.bf16.gmra.mrb[0].mxu0 %v10274
      %v10333 = vpop.f32.mrb[0].mxu0
      %v10334 = vadd.f32 %v9892, %v10333
      %v10335 = vpop.f32.mrb[0].mxu0
      %v10336 = vpop.f32.mrb[0].mxu0
      %v10337 = vadd.f32 %v9895, %v10336
      %v10338 = vpop.f32.mrb[0].mxu0
      %10339 = vmatprep.mubr.bf16.mxu0 0
      %10340 = vmatmul.mubr.bf16.gmra.mrb[0].mxu0 %v10277
      %v10341 = vpop.f32.mrb[0].mxu0
      %v10342 = vadd.f32 %v9900, %v10341
      %v10343 = vpop.f32.mrb[0].mxu0
      %v10344 = vpop.f32.mrb[0].mxu0
      %v10345 = vadd.f32 %v9903, %v10344
      %v10346 = vpop.f32.mrb[0].mxu0
      %10347 = vmatprep.mubr.bf16.mxu0 0
      %10348 = vmatmul.mubr.bf16.gmra.mrb[0].mxu0 %v10280
      %v10349 = vpop.f32.mrb[0].mxu0
      %v10350 = vadd.f32 %v9908, %v10349
      %v10351 = vpop.f32.mrb[0].mxu0
      %v10352 = vpop.f32.mrb[0].mxu0
      %v10353 = vadd.f32 %v9911, %v10352
      %v10354 = vpop.f32.mrb[0].mxu0
      %10355 = vmatprep.mubr.bf16.mxu0 0
      %10356 = vmatmul.mubr.bf16.gmra.mrb[0].mxu0 %v10283
      %v10357 = vpop.f32.mrb[0].mxu0
      %v10358 = vadd.f32 %v9916, %v10357
      %v10359 = vpop.f32.mrb[0].mxu0
      %v10360 = vpop.f32.mrb[0].mxu0
      %v10361 = vadd.f32 %v9919, %v10360
      %v10362 = vpop.f32.mrb[0].mxu0
      %10363 = vmatprep.mubr.bf16.mxu0 0
      %10364 = vmatmul.mubr.bf16.gmra.mrb[0].mxu0 %v10286
      %v10365 = vpop.f32.mrb[0].mxu0
      %v10366 = vadd.f32 %v9924, %v10365
      %v10367 = vpop.f32.mrb[0].mxu0
      %v10368 = vpop.f32.mrb[0].mxu0
      %v10369 = vadd.f32 %v9927, %v10368
      %v10370 = vpop.f32.mrb[0].mxu0
      %10371 = vmatprep.mubr.bf16.mxu0 0
      %10372 = vmatmul.mubr.bf16.gmra.mrb[0].mxu0 %v10289
      %v10373 = vpop.f32.mrb[0].mxu0
      %v10374 = vadd.f32 %v9932, %v10373
      %v10375 = vpop.f32.mrb[0].mxu0
      %v10376 = vpop.f32.mrb[0].mxu0
      %v10377 = vpop.f32.mrb[0].mxu0
      %10378 = vdwg.mxu0
      %s10379 = scalar_lea.vmem %s3, 64
      %v10380 = vld [vmem:[%s10379] sm:$0xf]
      %v10381 = vld [vmem:[%s10379 + $0x4] sm:$0xf]
      %v10382 = vld [vmem:[%s10379 + $0x8] sm:$0xf]
      %v10383 = vld [vmem:[%s10379 + $0xc] sm:$0xf]
      %v10384 = vld [vmem:[%s10379 + $0x10] sm:$0xf]
      %v10385 = vld [vmem:[%s10379 + $0x14] sm:$0xf]
      %v10386 = vld [vmem:[%s10379 + $0x18] sm:$0xf]
      %v10387 = vld [vmem:[%s10379 + $0x1c] sm:$0xf]
      %v10388 = vcombine.low %v8834, %v8841
      %v10389 = vcombine.low %v8842, %v8849
      %v10390 = vcombine.low %v9065, %v8857
      %v10391 = vcombine.low %v8864, %v8865
      %v10393 = vunpack.c.l.s4 1966171168
      %v10394 = vunpack.c.0.s8 %v10393
      %v10395 = vlaneseq
      %v10396 = vshrl.u32 %v10395, 7
      %v10397 = vsub.s32 %v10394, %v10396
      %v10398 = vrot.slane %v10388, %v10397
      %v10400 = vunpack.c.l.s4 1966171168
      %v10401 = vunpack.c.0.s8 %v10400
      %v10402 = vlaneseq
      %v10403 = vshrl.u32 %v10402, 7
      %v10404 = vsub.s32 %v10401, %v10403
      %v10405 = vrot.slane %v10389, %v10404
      %v10407 = vunpack.c.l.s4 1966171168
      %v10408 = vunpack.c.0.s8 %v10407
      %v10409 = vlaneseq
      %v10410 = vshrl.u32 %v10409, 7
      %v10411 = vsub.s32 %v10408, %v10410
      %v10412 = vrot.slane %v10390, %v10411
      %v10414 = vunpack.c.l.s4 1966171168
      %v10415 = vunpack.c.0.s8 %v10414
      %v10416 = vlaneseq
      %v10417 = vshrl.u32 %v10416, 7
      %v10418 = vsub.s32 %v10415, %v10417
      %v10419 = vrot.slane %v10391, %v10418
      %v10420 = vcombine.low %v10398, %v10405
      %v10421 = vcombine.low %v10412, %v10419
      %v10423 = vunpack.c.l.s4 1966171168
      %v10424 = vunpack.c.0.s8 %v10423
      %v10425 = vlaneseq
      %v10426 = vshrl.u32 %v10425, 7
      %v10427 = vsub.s32 %v10424, %v10426
      %v10428 = vrot.slane %v10420, %v10427
      %v10430 = vunpack.c.l.s4 1966171168
      %v10431 = vunpack.c.0.s8 %v10430
      %v10432 = vlaneseq
      %v10433 = vshrl.u32 %v10432, 7
      %v10434 = vsub.s32 %v10431, %v10433
      %v10435 = vrot.slane %v10421, %v10434
      %v10436 = vcombine.low %v10428, %v10435
      %v10437 = vcombine.low %v8872, %v9066
      %v10438 = vcombine.low %v8880, %v8887
      %v10439 = vcombine.low %v8888, %v8895
      %v10440 = vcombine.low %v9067, %v8903
      %v10442 = vunpack.c.l.s4 1966171168
      %v10443 = vunpack.c.0.s8 %v10442
      %v10444 = vlaneseq
      %v10445 = vshrl.u32 %v10444, 7
      %v10446 = vsub.s32 %v10443, %v10445
      %v10447 = vrot.slane %v10437, %v10446
      %v10449 = vunpack.c.l.s4 1966171168
      %v10450 = vunpack.c.0.s8 %v10449
      %v10451 = vlaneseq
      %v10452 = vshrl.u32 %v10451, 7
      %v10453 = vsub.s32 %v10450, %v10452
      %v10454 = vrot.slane %v10438, %v10453
      %v10456 = vunpack.c.l.s4 1966171168
      %v10457 = vunpack.c.0.s8 %v10456
      %v10458 = vlaneseq
      %v10459 = vshrl.u32 %v10458, 7
      %v10460 = vsub.s32 %v10457, %v10459
      %v10461 = vrot.slane %v10439, %v10460
      %v10463 = vunpack.c.l.s4 1966171168
      %v10464 = vunpack.c.0.s8 %v10463
      %v10465 = vlaneseq
      %v10466 = vshrl.u32 %v10465, 7
      %v10467 = vsub.s32 %v10464, %v10466
      %v10468 = vrot.slane %v10440, %v10467
      %v10469 = vcombine.low %v10447, %v10454
      %v10470 = vcombine.low %v10461, %v10468
      %v10472 = vunpack.c.l.s4 1966171168
      %v10473 = vunpack.c.0.s8 %v10472
      %v10474 = vlaneseq
      %v10475 = vshrl.u32 %v10474, 7
      %v10476 = vsub.s32 %v10473, %v10475
      %v10477 = vrot.slane %v10469, %v10476
      %v10479 = vunpack.c.l.s4 1966171168
      %v10480 = vunpack.c.0.s8 %v10479
      %v10481 = vlaneseq
      %v10482 = vshrl.u32 %v10481, 7
      %v10483 = vsub.s32 %v10480, %v10482
      %v10484 = vrot.slane %v10470, %v10483
      %v10485 = vcombine.low %v10477, %v10484
      %v10486 = vcombine.low %v8910, %v8911
      %v10487 = vcombine.low %v8918, %v9068
      %v10488 = vcombine.low %v8926, %v8933
      %v10489 = vcombine.low %v8934, %v8941
      %v10491 = vunpack.c.l.s4 1966171168
      %v10492 = vunpack.c.0.s8 %v10491
      %v10493 = vlaneseq
      %v10494 = vshrl.u32 %v10493, 7
      %v10495 = vsub.s32 %v10492, %v10494
      %v10496 = vrot.slane %v10486, %v10495
      %v10498 = vunpack.c.l.s4 1966171168
      %v10499 = vunpack.c.0.s8 %v10498
      %v10500 = vlaneseq
      %v10501 = vshrl.u32 %v10500, 7
      %v10502 = vsub.s32 %v10499, %v10501
      %v10503 = vrot.slane %v10487, %v10502
      %v10505 = vunpack.c.l.s4 1966171168
      %v10506 = vunpack.c.0.s8 %v10505
      %v10507 = vlaneseq
      %v10508 = vshrl.u32 %v10507, 7
      %v10509 = vsub.s32 %v10506, %v10508
      %v10510 = vrot.slane %v10488, %v10509
      %v10512 = vunpack.c.l.s4 1966171168
      %v10513 = vunpack.c.0.s8 %v10512
      %v10514 = vlaneseq
      %v10515 = vshrl.u32 %v10514, 7
      %v10516 = vsub.s32 %v10513, %v10515
      %v10517 = vrot.slane %v10489, %v10516
      %v10518 = vcombine.low %v10496, %v10503
      %v10519 = vcombine.low %v10510, %v10517
      %v10521 = vunpack.c.l.s4 1966171168
      %v10522 = vunpack.c.0.s8 %v10521
      %v10523 = vlaneseq
      %v10524 = vshrl.u32 %v10523, 7
      %v10525 = vsub.s32 %v10522, %v10524
      %v10526 = vrot.slane %v10518, %v10525
      %v10528 = vunpack.c.l.s4 1966171168
      %v10529 = vunpack.c.0.s8 %v10528
      %v10530 = vlaneseq
      %v10531 = vshrl.u32 %v10530, 7
      %v10532 = vsub.s32 %v10529, %v10531
      %v10533 = vrot.slane %v10519, %v10532
      %v10534 = vcombine.low %v10526, %v10533
      %v10535 = vcombine.low %v9069, %v8949
      %v10536 = vcombine.low %v8956, %v8957
      %v10537 = vcombine.low %v8964, %v9070
      %v10538 = vcombine.low %v8972, %v8979
      %v10540 = vunpack.c.l.s4 1966171168
      %v10541 = vunpack.c.0.s8 %v10540
      %v10542 = vlaneseq
      %v10543 = vshrl.u32 %v10542, 7
      %v10544 = vsub.s32 %v10541, %v10543
      %v10545 = vrot.slane %v10535, %v10544
      %v10547 = vunpack.c.l.s4 1966171168
      %v10548 = vunpack.c.0.s8 %v10547
      %v10549 = vlaneseq
      %v10550 = vshrl.u32 %v10549, 7
      %v10551 = vsub.s32 %v10548, %v10550
      %v10552 = vrot.slane %v10536, %v10551
      %v10554 = vunpack.c.l.s4 1966171168
      %v10555 = vunpack.c.0.s8 %v10554
      %v10556 = vlaneseq
      %v10557 = vshrl.u32 %v10556, 7
      %v10558 = vsub.s32 %v10555, %v10557
      %v10559 = vrot.slane %v10537, %v10558
      %v10561 = vunpack.c.l.s4 1966171168
      %v10562 = vunpack.c.0.s8 %v10561
      %v10563 = vlaneseq
      %v10564 = vshrl.u32 %v10563, 7
      %v10565 = vsub.s32 %v10562, %v10564
      %v10566 = vrot.slane %v10538, %v10565
      %v10567 = vcombine.low %v10545, %v10552
      %v10568 = vcombine.low %v10559, %v10566
      %v10570 = vunpack.c.l.s4 1966171168
      %v10571 = vunpack.c.0.s8 %v10570
      %v10572 = vlaneseq
      %v10573 = vshrl.u32 %v10572, 7
      %v10574 = vsub.s32 %v10571, %v10573
      %v10575 = vrot.slane %v10567, %v10574
      %v10577 = vunpack.c.l.s4 1966171168
      %v10578 = vunpack.c.0.s8 %v10577
      %v10579 = vlaneseq
      %v10580 = vshrl.u32 %v10579, 7
      %v10581 = vsub.s32 %v10578, %v10580
      %v10582 = vrot.slane %v10568, %v10581
      %v10583 = vcombine.low %v10575, %v10582
      %v10584 = vcombine.low %v8980, %v8987
      %v10585 = vcombine.low %v9071, %v8995
      %v10586 = vcombine.low %v9002, %v9003
      %v10587 = vcombine.low %v9010, %v9072
      %v10589 = vunpack.c.l.s4 1966171168
      %v10590 = vunpack.c.0.s8 %v10589
      %v10591 = vlaneseq
      %v10592 = vshrl.u32 %v10591, 7
      %v10593 = vsub.s32 %v10590, %v10592
      %v10594 = vrot.slane %v10584, %v10593
      %v10596 = vunpack.c.l.s4 1966171168
      %v10597 = vunpack.c.0.s8 %v10596
      %v10598 = vlaneseq
      %v10599 = vshrl.u32 %v10598, 7
      %v10600 = vsub.s32 %v10597, %v10599
      %v10601 = vrot.slane %v10585, %v10600
      %v10603 = vunpack.c.l.s4 1966171168
      %v10604 = vunpack.c.0.s8 %v10603
      %v10605 = vlaneseq
      %v10606 = vshrl.u32 %v10605, 7
      %v10607 = vsub.s32 %v10604, %v10606
      %v10608 = vrot.slane %v10586, %v10607
      %v10610 = vunpack.c.l.s4 1966171168
      %v10611 = vunpack.c.0.s8 %v10610
      %v10612 = vlaneseq
      %v10613 = vshrl.u32 %v10612, 7
      %v10614 = vsub.s32 %v10611, %v10613
      %v10615 = vrot.slane %v10587, %v10614
      %v10616 = vcombine.low %v10594, %v10601
      %v10617 = vcombine.low %v10608, %v10615
      %v10619 = vunpack.c.l.s4 1966171168
      %v10620 = vunpack.c.0.s8 %v10619
      %v10621 = vlaneseq
      %v10622 = vshrl.u32 %v10621, 7
      %v10623 = vsub.s32 %v10620, %v10622
      %v10624 = vrot.slane %v10616, %v10623
      %v10626 = vunpack.c.l.s4 1966171168
      %v10627 = vunpack.c.0.s8 %v10626
      %v10628 = vlaneseq
      %v10629 = vshrl.u32 %v10628, 7
      %v10630 = vsub.s32 %v10627, %v10629
      %v10631 = vrot.slane %v10617, %v10630
      %v10632 = vcombine.low %v10624, %v10631
      %v10633 = vcombine.low %v9018, %v9025
      %v10634 = vcombine.low %v9026, %v9033
      %v10635 = vcombine.low %v9073, %v9041
      %v10636 = vcombine.low %v9048, %v9049
      %v10638 = vunpack.c.l.s4 1966171168
      %v10639 = vunpack.c.0.s8 %v10638
      %v10640 = vlaneseq
      %v10641 = vshrl.u32 %v10640, 7
      %v10642 = vsub.s32 %v10639, %v10641
      %v10643 = vrot.slane %v10633, %v10642
      %v10645 = vunpack.c.l.s4 1966171168
      %v10646 = vunpack.c.0.s8 %v10645
      %v10647 = vlaneseq
      %v10648 = vshrl.u32 %v10647, 7
      %v10649 = vsub.s32 %v10646, %v10648
      %v10650 = vrot.slane %v10634, %v10649
      %v10652 = vunpack.c.l.s4 1966171168
      %v10653 = vunpack.c.0.s8 %v10652
      %v10654 = vlaneseq
      %v10655 = vshrl.u32 %v10654, 7
      %v10656 = vsub.s32 %v10653, %v10655
      %v10657 = vrot.slane %v10635, %v10656
      %v10659 = vunpack.c.l.s4 1966171168
      %v10660 = vunpack.c.0.s8 %v10659
      %v10661 = vlaneseq
      %v10662 = vshrl.u32 %v10661, 7
      %v10663 = vsub.s32 %v10660, %v10662
      %v10664 = vrot.slane %v10636, %v10663
      %v10665 = vcombine.low %v10643, %v10650
      %v10666 = vcombine.low %v10657, %v10664
      %v10668 = vunpack.c.l.s4 1966171168
      %v10669 = vunpack.c.0.s8 %v10668
      %v10670 = vlaneseq
      %v10671 = vshrl.u32 %v10670, 7
      %v10672 = vsub.s32 %v10669, %v10671
      %v10673 = vrot.slane %v10665, %v10672
      %v10675 = vunpack.c.l.s4 1966171168
      %v10676 = vunpack.c.0.s8 %v10675
      %v10677 = vlaneseq
      %v10678 = vshrl.u32 %v10677, 7
      %v10679 = vsub.s32 %v10676, %v10678
      %v10680 = vrot.slane %v10666, %v10679
      %v10681 = vcombine.low %v10673, %v10680
      %v10682 = vcombine.low %v9056, %v9074
      %v10684 = vunpack.c.l.s4 1966171168
      %v10685 = vunpack.c.0.s8 %v10684
      %v10686 = vlaneseq
      %v10687 = vshrl.u32 %v10686, 7
      %v10688 = vsub.s32 %v10685, %v10687
      %v10689 = vrot.slane %v10682, %v10688
      %v10691 = vunpack.c.l.s4 1966171168
      %v10692 = vunpack.c.0.s8 %v10691
      %v10693 = vlaneseq
      %v10694 = vshrl.u32 %v10693, 7
      %v10695 = vsub.s32 %v10692, %v10694
      %v10696 = vrot.slane %v10689, %v10695
      %v10705 = vunpack.c.l.b16 %v10380
      %v10706 = vunpack.c.l.b16 %v10381
      %v10707 = vunpack.c.l.b16 %v10382
      %v10708 = vunpack.c.l.b16 %v10383
      %v10709 = vunpack.c.l.b16 %v10384
      %v10710 = vunpack.c.l.b16 %v10385
      %v10711 = vunpack.c.l.b16 %v10386
      %v10712 = vunpack.c.l.b16 %v10387
      %v10713 = vpack.c.b16 %v10706, %v10705
      %v10714 = vpack.c.b16 %v10708, %v10707
      %v10715 = vpack.c.b16 %v10710, %v10709
      %v10716 = vpack.c.b16 %v10712, %v10711
      %v10722 = vsel %vm9827, %v10436, 0
      %v10725 = vsel %vm9827, %v10485, 0
      %v10728 = vsel %vm9827, %v10534, 0
      %v10731 = vsel %vm9827, %v10583, 0
      %v10734 = vsel %vm9827, %v10632, 0
      %v10737 = vsel %vm9827, %v10681, 0
      %v10740 = vsel %vm9827, %v10696, 0
      %10742 = vmatprep.subr.bf16.mxu0 0
      %10743 = vmatpush1.bf16.msra.mxu0 %v10713
      %10744 = vmatprep.subr.bf16.mxu0 0
      %10745 = vmatpush1.bf16.msra.mxu0 %v10714
      %10746 = vmatprep.subr.bf16.mxu0 0
      %10747 = vmatpush1.bf16.msra.mxu0 %v10715
      %10748 = vmatprep.subr.bf16.mxu0 0
      %10749 = vmatpush1.bf16.msra.mxu0 %v10716
      %10750 = vmatprep.subr.bf16.mxu0 0
      %10751 = vmatpush1.bf16.msra.mxu0 0
      %10752 = vmatprep.subr.bf16.mxu0 0
      %10753 = vmatpush1.bf16.msra.mxu0 0
      %10754 = vmatprep.subr.bf16.mxu0 0
      %10755 = vmatpush1.bf16.msra.mxu0 0
      %10756 = vmatprep.subr.bf16.mxu0 0
      %10757 = vmatpush1.bf16.msra.mxu0 0
      %10758 = vmatprep.subr.bf16.mxu0 0
      %10759 = vmatpush1.bf16.msra.mxu0 0
      %10760 = vmatprep.subr.bf16.mxu0 0
      %10761 = vmatpush1.bf16.msra.mxu0 0
      %10762 = vmatprep.subr.bf16.mxu0 0
      %10763 = vmatpush1.bf16.msra.mxu0 0
      %10764 = vmatprep.subr.bf16.mxu0 0
      %10765 = vmatpush1.bf16.msra.mxu0 0
      %10766 = vmatprep.subr.bf16.mxu0 0
      %10767 = vmatpush1.bf16.msra.mxu0 0
      %10768 = vmatprep.subr.bf16.mxu0 0
      %10769 = vmatpush1.bf16.msra.mxu0 0
      %10770 = vmatprep.subr.bf16.mxu0 0
      %10771 = vmatpush1.bf16.msra.mxu0 0
      %10772 = vmatprep.subr.bf16.mxu0 0
      %10773 = vmatpush1.bf16.msra.mxu0 0
      %10774 = vmatprep.mubr.bf16.mxu0 0
      %10775 = vmatmul.mubr.bf16.gmra.mrb[0].mxu0 %v10722
      %v10776 = vpop.f32.mrb[0].mxu0
      %v10777 = vadd.f32 0.0, %v10776
      %v10778 = vpop.f32.mrb[0].mxu0
      %v10779 = vpop.f32.mrb[0].mxu0
      %v10780 = vadd.f32 0.0, %v10779
      %v10781 = vpop.f32.mrb[0].mxu0
      %10782 = vmatprep.mubr.bf16.mxu0 0
      %10783 = vmatmul.mubr.bf16.gmra.mrb[0].mxu0 %v10725
      %v10784 = vpop.f32.mrb[0].mxu0
      %v10785 = vadd.f32 0.0, %v10784
      %v10786 = vpop.f32.mrb[0].mxu0
      %v10787 = vpop.f32.mrb[0].mxu0
      %v10788 = vadd.f32 0.0, %v10787
      %v10789 = vpop.f32.mrb[0].mxu0
      %10790 = vmatprep.mubr.bf16.mxu0 0
      %10791 = vmatmul.mubr.bf16.gmra.mrb[0].mxu0 %v10728
      %v10792 = vpop.f32.mrb[0].mxu0
      %v10793 = vadd.f32 0.0, %v10792
      %v10794 = vpop.f32.mrb[0].mxu0
      %v10795 = vpop.f32.mrb[0].mxu0
      %v10796 = vadd.f32 0.0, %v10795
      %v10797 = vpop.f32.mrb[0].mxu0
      %10798 = vmatprep.mubr.bf16.mxu0 0
      %10799 = vmatmul.mubr.bf16.gmra.mrb[0].mxu0 %v10731
      %v10800 = vpop.f32.mrb[0].mxu0
      %v10801 = vadd.f32 0.0, %v10800
      %v10802 = vpop.f32.mrb[0].mxu0
      %v10803 = vpop.f32.mrb[0].mxu0
      %v10804 = vadd.f32 0.0, %v10803
      %v10805 = vpop.f32.mrb[0].mxu0
      %10806 = vmatprep.mubr.bf16.mxu0 0
      %10807 = vmatmul.mubr.bf16.gmra.mrb[0].mxu0 %v10734
      %v10808 = vpop.f32.mrb[0].mxu0
      %v10809 = vadd.f32 0.0, %v10808
      %v10810 = vpop.f32.mrb[0].mxu0
      %v10811 = vpop.f32.mrb[0].mxu0
      %v10812 = vadd.f32 0.0, %v10811
      %v10813 = vpop.f32.mrb[0].mxu0
      %10814 = vmatprep.mubr.bf16.mxu0 0
      %10815 = vmatmul.mubr.bf16.gmra.mrb[0].mxu0 %v10737
      %v10816 = vpop.f32.mrb[0].mxu0
      %v10817 = vadd.f32 0.0, %v10816
      %v10818 = vpop.f32.mrb[0].mxu0
      %v10819 = vpop.f32.mrb[0].mxu0
      %v10820 = vadd.f32 0.0, %v10819
      %v10821 = vpop.f32.mrb[0].mxu0
      %10822 = vmatprep.mubr.bf16.mxu0 0
      %10823 = vmatmul.mubr.bf16.gmra.mrb[0].mxu0 %v10740
      %v10824 = vpop.f32.mrb[0].mxu0
      %v10825 = vadd.f32 0.0, %v10824
      %v10826 = vpop.f32.mrb[0].mxu0
      %v10827 = vpop.f32.mrb[0].mxu0
      %v10828 = vpop.f32.mrb[0].mxu0
      %10829 = vdwg.mxu0
      %v10830 = vadd.f32 %v10326, %v10777
      %v10831 = vadd.f32 %v10329, %v10780
      %v10832 = vadd.f32 %v10334, %v10785
      %v10833 = vadd.f32 %v10337, %v10788
      %v10834 = vadd.f32 %v10342, %v10793
      %v10835 = vadd.f32 %v10345, %v10796
      %v10836 = vadd.f32 %v10350, %v10801
      %v10837 = vadd.f32 %v10353, %v10804
      %v10838 = vadd.f32 %v10358, %v10809
      %v10839 = vadd.f32 %v10361, %v10812
      %v10840 = vadd.f32 %v10366, %v10817
      %v10841 = vadd.f32 %v10369, %v10820
      %v10842 = vadd.f32 %v10374, %v10825
      %v10844 = vunpack.c.l.s4 1966171168
      %v10845 = vunpack.c.0.s8 %v10844
      %v10846 = vlaneseq
      %v10847 = vshrl.u32 %v10846, 7
      %v10848 = vsub.s32 %v10845, %v10847
      %v10849 = vrot.slane %v8807, %v10848
      %v10850 = vcombine.high %v10849, %v10849
      %v10852 = vunpack.c.l.s4 1966171168
      %v10853 = vunpack.c.0.s8 %v10852
      %v10854 = vlaneseq
      %v10855 = vshrl.u32 %v10854, 7
      %v10856 = vsub.s32 %v10853, %v10855
      %v10857 = vrot.slane %v8809, %v10856
      %v10858 = vcombine.high %v10857, %v10857
      %v10860 = vunpack.c.l.s4 1966171168
      %v10861 = vunpack.c.0.s8 %v10860
      %v10862 = vlaneseq
      %v10863 = vshrl.u32 %v10862, 7
      %v10864 = vsub.s32 %v10861, %v10863
      %v10865 = vrot.slane %v8817, %v10864
      %s10866 = scalar_lea.vmem %s3, 96
      %v10867 = vld [vmem:[%s10866] sm:$0xf]
      %v10868 = vld [vmem:[%s10866 + $0x4] sm:$0xf]
      %v10869 = vld [vmem:[%s10866 + $0x8] sm:$0xf]
      %v10870 = vld [vmem:[%s10866 + $0xc] sm:$0xf]
      %v10871 = vld [vmem:[%s10866 + $0x10] sm:$0xf]
      %v10872 = vld [vmem:[%s10866 + $0x14] sm:$0xf]
      %v10873 = vld [vmem:[%s10866 + $0x18] sm:$0xf]
      %v10874 = vld [vmem:[%s10866 + $0x1c] sm:$0xf]
      %v10875 = vcombine.low %v8856, %v8857
      %v10876 = vcombine.low %v8872, %v8879
      %v10878 = vunpack.c.l.s4 1966171168
      %v10879 = vunpack.c.0.s8 %v10878
      %v10880 = vlaneseq
      %v10881 = vshrl.u32 %v10880, 7
      %v10882 = vsub.s32 %v10879, %v10881
      %v10883 = vrot.slane %v10875, %v10882
      %v10885 = vunpack.c.l.s4 1966171168
      %v10886 = vunpack.c.0.s8 %v10885
      %v10887 = vlaneseq
      %v10888 = vshrl.u32 %v10887, 7
      %v10889 = vsub.s32 %v10886, %v10888
      %v10890 = vrot.slane %v10876, %v10889
      %v10891 = vcombine.low %v10883, %v10419
      %v10892 = vcombine.low %v10890, %v10454
      %v10894 = vunpack.c.l.s4 1966171168
      %v10895 = vunpack.c.0.s8 %v10894
      %v10896 = vlaneseq
      %v10897 = vshrl.u32 %v10896, 7
      %v10898 = vsub.s32 %v10895, %v10897
      %v10899 = vrot.slane %v10891, %v10898
      %v10901 = vunpack.c.l.s4 1966171168
      %v10902 = vunpack.c.0.s8 %v10901
      %v10903 = vlaneseq
      %v10904 = vshrl.u32 %v10903, 7
      %v10905 = vsub.s32 %v10902, %v10904
      %v10906 = vrot.slane %v10892, %v10905
      %v10907 = vcombine.low %v10899, %v10906
      %v10908 = vcombine.low %v8902, %v8903
      %v10909 = vcombine.low %v8918, %v8925
      %v10911 = vunpack.c.l.s4 1966171168
      %v10912 = vunpack.c.0.s8 %v10911
      %v10913 = vlaneseq
      %v10914 = vshrl.u32 %v10913, 7
      %v10915 = vsub.s32 %v10912, %v10914
      %v10916 = vrot.slane %v10908, %v10915
      %v10918 = vunpack.c.l.s4 1966171168
      %v10919 = vunpack.c.0.s8 %v10918
      %v10920 = vlaneseq
      %v10921 = vshrl.u32 %v10920, 7
      %v10922 = vsub.s32 %v10919, %v10921
      %v10923 = vrot.slane %v10909, %v10922
      %v10924 = vcombine.low %v10461, %v10916
      %v10925 = vcombine.low %v10496, %v10923
      %v10927 = vunpack.c.l.s4 1966171168
      %v10928 = vunpack.c.0.s8 %v10927
      %v10929 = vlaneseq
      %v10930 = vshrl.u32 %v10929, 7
      %v10931 = vsub.s32 %v10928, %v10930
      %v10932 = vrot.slane %v10924, %v10931
      %v10934 = vunpack.c.l.s4 1966171168
      %v10935 = vunpack.c.0.s8 %v10934
      %v10936 = vlaneseq
      %v10937 = vshrl.u32 %v10936, 7
      %v10938 = vsub.s32 %v10935, %v10937
      %v10939 = vrot.slane %v10925, %v10938
      %v10940 = vcombine.low %v10932, %v10939
      %v10941 = vcombine.low %v8948, %v8949
      %v10943 = vunpack.c.l.s4 1966171168
      %v10944 = vunpack.c.0.s8 %v10943
      %v10945 = vlaneseq
      %v10946 = vshrl.u32 %v10945, 7
      %v10947 = vsub.s32 %v10944, %v10946
      %v10948 = vrot.slane %v10941, %v10947
      %v10949 = vcombine.low %v10948, %v10552
      %v10951 = vunpack.c.l.s4 1966171168
      %v10952 = vunpack.c.0.s8 %v10951
      %v10953 = vlaneseq
      %v10954 = vshrl.u32 %v10953, 7
      %v10955 = vsub.s32 %v10952, %v10954
      %v10956 = vrot.slane %v10949, %v10955
      %v10957 = vcombine.low %v10533, %v10956
      %v10958 = vcombine.low %v8964, %v8971
      %v10959 = vcombine.low %v8994, %v8995
      %v10961 = vunpack.c.l.s4 1966171168
      %v10962 = vunpack.c.0.s8 %v10961
      %v10963 = vlaneseq
      %v10964 = vshrl.u32 %v10963, 7
      %v10965 = vsub.s32 %v10962, %v10964
      %v10966 = vrot.slane %v10958, %v10965
      %v10968 = vunpack.c.l.s4 1966171168
      %v10969 = vunpack.c.0.s8 %v10968
      %v10970 = vlaneseq
      %v10971 = vshrl.u32 %v10970, 7
      %v10972 = vsub.s32 %v10969, %v10971
      %v10973 = vrot.slane %v10959, %v10972
      %v10974 = vcombine.low %v10966, %v10566
      %v10975 = vcombine.low %v10594, %v10973
      %v10977 = vunpack.c.l.s4 1966171168
      %v10978 = vunpack.c.0.s8 %v10977
      %v10979 = vlaneseq
      %v10980 = vshrl.u32 %v10979, 7
      %v10981 = vsub.s32 %v10978, %v10980
      %v10982 = vrot.slane %v10974, %v10981
      %v10984 = vunpack.c.l.s4 1966171168
      %v10985 = vunpack.c.0.s8 %v10984
      %v10986 = vlaneseq
      %v10987 = vshrl.u32 %v10986, 7
      %v10988 = vsub.s32 %v10985, %v10987
      %v10989 = vrot.slane %v10975, %v10988
      %v10990 = vcombine.low %v10982, %v10989
      %v10991 = vcombine.low %v9010, %v9017
      %v10993 = vunpack.c.l.s4 1966171168
      %v10994 = vunpack.c.0.s8 %v10993
      %v10995 = vlaneseq
      %v10996 = vshrl.u32 %v10995, 7
      %v10997 = vsub.s32 %v10994, %v10996
      %v10998 = vrot.slane %v10991, %v10997
      %v10999 = vcombine.low %v10608, %v10998
      %v11001 = vunpack.c.l.s4 1966171168
      %v11002 = vunpack.c.0.s8 %v11001
      %v11003 = vlaneseq
      %v11004 = vshrl.u32 %v11003, 7
      %v11005 = vsub.s32 %v11002, %v11004
      %v11006 = vrot.slane %v10999, %v11005
      %v11007 = vcombine.low %v11006, %v10673
      %v11008 = vcombine.low %v9040, %v9041
      %v11009 = vcombine.low %v9056, %v10849
      %v11010 = vcombine.low %v10850, %v10857
      %v11012 = vunpack.c.l.s4 1966171168
      %v11013 = vunpack.c.0.s8 %v11012
      %v11014 = vlaneseq
      %v11015 = vshrl.u32 %v11014, 7
      %v11016 = vsub.s32 %v11013, %v11015
      %v11017 = vrot.slane %v11008, %v11016
      %v11019 = vunpack.c.l.s4 1966171168
      %v11020 = vunpack.c.0.s8 %v11019
      %v11021 = vlaneseq
      %v11022 = vshrl.u32 %v11021, 7
      %v11023 = vsub.s32 %v11020, %v11022
      %v11024 = vrot.slane %v11009, %v11023
      %v11026 = vunpack.c.l.s4 1966171168
      %v11027 = vunpack.c.0.s8 %v11026
      %v11028 = vlaneseq
      %v11029 = vshrl.u32 %v11028, 7
      %v11030 = vsub.s32 %v11027, %v11029
      %v11031 = vrot.slane %v11010, %v11030
      %v11032 = vcombine.low %v11017, %v10664
      %v11033 = vcombine.low %v11024, %v11031
      %v11035 = vunpack.c.l.s4 1966171168
      %v11036 = vunpack.c.0.s8 %v11035
      %v11037 = vlaneseq
      %v11038 = vshrl.u32 %v11037, 7
      %v11039 = vsub.s32 %v11036, %v11038
      %v11040 = vrot.slane %v11032, %v11039
      %v11042 = vunpack.c.l.s4 1966171168
      %v11043 = vunpack.c.0.s8 %v11042
      %v11044 = vlaneseq
      %v11045 = vshrl.u32 %v11044, 7
      %v11046 = vsub.s32 %v11043, %v11045
      %v11047 = vrot.slane %v11033, %v11046
      %v11048 = vcombine.low %v11040, %v11047
      %v11049 = vcombine.low %v10858, %v10865
      %v11051 = vunpack.c.l.s4 1966171168
      %v11052 = vunpack.c.0.s8 %v11051
      %v11053 = vlaneseq
      %v11054 = vshrl.u32 %v11053, 7
      %v11055 = vsub.s32 %v11052, %v11054
      %v11056 = vrot.slane %v11049, %v11055
      %v11058 = vunpack.c.l.s4 1966171168
      %v11059 = vunpack.c.0.s8 %v11058
      %v11060 = vlaneseq
      %v11061 = vshrl.u32 %v11060, 7
      %v11062 = vsub.s32 %v11059, %v11061
      %v11063 = vrot.slane %v11056, %v11062
      %v11072 = vunpack.c.l.b16 %v10867
      %v11073 = vunpack.c.l.b16 %v10868
      %v11074 = vunpack.c.l.b16 %v10869
      %v11075 = vunpack.c.l.b16 %v10870
      %v11076 = vunpack.c.l.b16 %v10871
      %v11077 = vunpack.c.l.b16 %v10872
      %v11078 = vunpack.c.l.b16 %v10873
      %v11079 = vunpack.c.l.b16 %v10874
      %v11080 = vpack.c.b16 %v11073, %v11072
      %v11081 = vpack.c.b16 %v11075, %v11074
      %v11082 = vpack.c.b16 %v11077, %v11076
      %v11083 = vpack.c.b16 %v11079, %v11078
      %v11089 = vsel %vm9827, %v10907, 0
      %v11092 = vsel %vm9827, %v10940, 0
      %v11095 = vsel %vm9827, %v10957, 0
      %v11098 = vsel %vm9827, %v10990, 0
      %v11101 = vsel %vm9827, %v11007, 0
      %v11104 = vsel %vm9827, %v11048, 0
      %v11107 = vsel %vm9827, %v11063, 0
      %11109 = vmatprep.subr.bf16.mxu0 0
      %11110 = vmatpush1.bf16.msra.mxu0 %v11080
      %11111 = vmatprep.subr.bf16.mxu0 0
      %11112 = vmatpush1.bf16.msra.mxu0 %v11081
      %11113 = vmatprep.subr.bf16.mxu0 0
      %11114 = vmatpush1.bf16.msra.mxu0 %v11082
      %11115 = vmatprep.subr.bf16.mxu0 0
      %11116 = vmatpush1.bf16.msra.mxu0 %v11083
      %11117 = vmatprep.subr.bf16.mxu0 0
      %11118 = vmatpush1.bf16.msra.mxu0 0
      %11119 = vmatprep.subr.bf16.mxu0 0
      %11120 = vmatpush1.bf16.msra.mxu0 0
      %11121 = vmatprep.subr.bf16.mxu0 0
      %11122 = vmatpush1.bf16.msra.mxu0 0
      %11123 = vmatprep.subr.bf16.mxu0 0
      %11124 = vmatpush1.bf16.msra.mxu0 0
      %11125 = vmatprep.subr.bf16.mxu0 0
      %11126 = vmatpush1.bf16.msra.mxu0 0
      %11127 = vmatprep.subr.bf16.mxu0 0
      %11128 = vmatpush1.bf16.msra.mxu0 0
      %11129 = vmatprep.subr.bf16.mxu0 0
      %11130 = vmatpush1.bf16.msra.mxu0 0
      %11131 = vmatprep.subr.bf16.mxu0 0
      %11132 = vmatpush1.bf16.msra.mxu0 0
      %11133 = vmatprep.subr.bf16.mxu0 0
      %11134 = vmatpush1.bf16.msra.mxu0 0
      %11135 = vmatprep.subr.bf16.mxu0 0
      %11136 = vmatpush1.bf16.msra.mxu0 0
      %11137 = vmatprep.subr.bf16.mxu0 0
      %11138 = vmatpush1.bf16.msra.mxu0 0
      %11139 = vmatprep.subr.bf16.mxu0 0
      %11140 = vmatpush1.bf16.msra.mxu0 0
      %11141 = vmatprep.mubr.bf16.mxu0 0
      %11142 = vmatmul.mubr.bf16.gmra.mrb[0].mxu0 %v11089
      %v11143 = vpop.f32.mrb[0].mxu0
      %v11144 = vadd.f32 0.0, %v11143
      %v11145 = vpop.f32.mrb[0].mxu0
      %v11146 = vpop.f32.mrb[0].mxu0
      %v11147 = vadd.f32 0.0, %v11146
      %v11148 = vpop.f32.mrb[0].mxu0
      %11149 = vmatprep.mubr.bf16.mxu0 0
      %11150 = vmatmul.mubr.bf16.gmra.mrb[0].mxu0 %v11092
      %v11151 = vpop.f32.mrb[0].mxu0
      %v11152 = vadd.f32 0.0, %v11151
      %v11153 = vpop.f32.mrb[0].mxu0
      %v11154 = vpop.f32.mrb[0].mxu0
      %v11155 = vadd.f32 0.0, %v11154
      %v11156 = vpop.f32.mrb[0].mxu0
      %11157 = vmatprep.mubr.bf16.mxu0 0
      %11158 = vmatmul.mubr.bf16.gmra.mrb[0].mxu0 %v11095
      %v11159 = vpop.f32.mrb[0].mxu0
      %v11160 = vadd.f32 0.0, %v11159
      %v11161 = vpop.f32.mrb[0].mxu0
      %v11162 = vpop.f32.mrb[0].mxu0
      %v11163 = vadd.f32 0.0, %v11162
      %v11164 = vpop.f32.mrb[0].mxu0
      %11165 = vmatprep.mubr.bf16.mxu0 0
      %11166 = vmatmul.mubr.bf16.gmra.mrb[0].mxu0 %v11098
      %v11167 = vpop.f32.mrb[0].mxu0
      %v11168 = vadd.f32 0.0, %v11167
      %v11169 = vpop.f32.mrb[0].mxu0
      %v11170 = vpop.f32.mrb[0].mxu0
      %v11171 = vadd.f32 0.0, %v11170
      %v11172 = vpop.f32.mrb[0].mxu0
      %11173 = vmatprep.mubr.bf16.mxu0 0
      %11174 = vmatmul.mubr.bf16.gmra.mrb[0].mxu0 %v11101
      %v11175 = vpop.f32.mrb[0].mxu0
      %v11176 = vadd.f32 0.0, %v11175
      %v11177 = vpop.f32.mrb[0].mxu0
      %v11178 = vpop.f32.mrb[0].mxu0
      %v11179 = vadd.f32 0.0, %v11178
      %v11180 = vpop.f32.mrb[0].mxu0
      %11181 = vmatprep.mubr.bf16.mxu0 0
      %11182 = vmatmul.mubr.bf16.gmra.mrb[0].mxu0 %v11104
      %v11183 = vpop.f32.mrb[0].mxu0
      %v11184 = vadd.f32 0.0, %v11183
      %v11185 = vpop.f32.mrb[0].mxu0
      %v11186 = vpop.f32.mrb[0].mxu0
      %v11187 = vadd.f32 0.0, %v11186
      %v11188 = vpop.f32.mrb[0].mxu0
      %11189 = vmatprep.mubr.bf16.mxu0 0
      %11190 = vmatmul.mubr.bf16.gmra.mrb[0].mxu0 %v11107
      %v11191 = vpop.f32.mrb[0].mxu0
      %v11192 = vadd.f32 0.0, %v11191
      %v11193 = vpop.f32.mrb[0].mxu0
      %v11194 = vpop.f32.mrb[0].mxu0
      %v11195 = vpop.f32.mrb[0].mxu0
      %11196 = vdwg.mxu0
      %v11197 = vadd.f32 %v10830, %v11144
      %v11198 = vadd.f32 %v10831, %v11147
      %v11199 = vadd.f32 %v10832, %v11152
      %v11200 = vadd.f32 %v10833, %v11155
      %v11201 = vadd.f32 %v10834, %v11160
      %v11202 = vadd.f32 %v10835, %v11163
      %v11203 = vadd.f32 %v10836, %v11168
      %v11204 = vadd.f32 %v10837, %v11171
      %v11205 = vadd.f32 %v10838, %v11176
      %v11206 = vadd.f32 %v10839, %v11179
      %v11207 = vadd.f32 %v10840, %v11184
      %v11208 = vadd.f32 %v10841, %v11187
      %v11209 = vadd.f32 %v10842, %v11192
      %v11210 = vcombine.high %v10865, %v10865
      %v11212 = vshrl.u32 %v10849, 16
      %v11214 = vrot.slane %v11212, 7
      %v11215 = vrot.slane %v11214, 1
      %v11217 = vshll.u32 %v10850, 16
      %v11219 = vsel %vm2548, %v11215, %v11217
      %v11220 = vshrl.u32 %v10850, 16
      %v11222 = vrot.slane %v11220, 7
      %v11223 = vrot.slane %v11222, 1
      %v11225 = vshll.u32 %v10857, 16
      %v11227 = vsel %vm2548, %v11223, %v11225
      %v11228 = vshrl.u32 %v10857, 16
      %v11230 = vrot.slane %v11228, 7
      %v11231 = vrot.slane %v11230, 1
      %v11233 = vshll.u32 %v10858, 16
      %v11235 = vsel %vm2548, %v11231, %v11233
      %v11236 = vshrl.u32 %v10858, 16
      %v11238 = vrot.slane %v11236, 7
      %v11239 = vrot.slane %v11238, 1
      %v11241 = vshll.u32 %v10865, 16
      %v11243 = vsel %vm2548, %v11239, %v11241
      %v11244 = vshrl.u32 %v10865, 16
      %v11246 = vrot.slane %v11244, 7
      %v11247 = vrot.slane %v11246, 1
      %v11249 = vshll.u32 %v11210, 16
      %v11251 = vsel %vm2548, %v11247, %v11249
      %s11252 = scalar_lea.vmem %s3, 128
      %v11253 = vld [vmem:[%s11252] sm:$0xf]
      %v11254 = vld [vmem:[%s11252 + $0x4] sm:$0xf]
      %v11255 = vld [vmem:[%s11252 + $0x8] sm:$0xf]
      %v11256 = vld [vmem:[%s11252 + $0xc] sm:$0xf]
      %v11257 = vld [vmem:[%s11252 + $0x10] sm:$0xf]
      %v11258 = vld [vmem:[%s11252 + $0x14] sm:$0xf]
      %v11259 = vld [vmem:[%s11252 + $0x18] sm:$0xf]
      %v11260 = vld [vmem:[%s11252 + $0x1c] sm:$0xf]
      %v11261 = vcombine.low %v9124, %v9132
      %v11262 = vcombine.low %v9140, %v9148
      %v11263 = vcombine.low %v9156, %v9165
      %v11264 = vcombine.low %v9173, %v9181
      %v11266 = vunpack.c.l.s4 1966171168
      %v11267 = vunpack.c.0.s8 %v11266
      %v11268 = vlaneseq
      %v11269 = vshrl.u32 %v11268, 7
      %v11270 = vsub.s32 %v11267, %v11269
      %v11271 = vrot.slane %v11261, %v11270
      %v11273 = vunpack.c.l.s4 1966171168
      %v11274 = vunpack.c.0.s8 %v11273
      %v11275 = vlaneseq
      %v11276 = vshrl.u32 %v11275, 7
      %v11277 = vsub.s32 %v11274, %v11276
      %v11278 = vrot.slane %v11262, %v11277
      %v11280 = vunpack.c.l.s4 1966171168
      %v11281 = vunpack.c.0.s8 %v11280
      %v11282 = vlaneseq
      %v11283 = vshrl.u32 %v11282, 7
      %v11284 = vsub.s32 %v11281, %v11283
      %v11285 = vrot.slane %v11263, %v11284
      %v11287 = vunpack.c.l.s4 1966171168
      %v11288 = vunpack.c.0.s8 %v11287
      %v11289 = vlaneseq
      %v11290 = vshrl.u32 %v11289, 7
      %v11291 = vsub.s32 %v11288, %v11290
      %v11292 = vrot.slane %v11264, %v11291
      %v11293 = vcombine.low %v11271, %v11278
      %v11294 = vcombine.low %v11285, %v11292
      %v11296 = vunpack.c.l.s4 1966171168
      %v11297 = vunpack.c.0.s8 %v11296
      %v11298 = vlaneseq
      %v11299 = vshrl.u32 %v11298, 7
      %v11300 = vsub.s32 %v11297, %v11299
      %v11301 = vrot.slane %v11293, %v11300
      %v11303 = vunpack.c.l.s4 1966171168
      %v11304 = vunpack.c.0.s8 %v11303
      %v11305 = vlaneseq
      %v11306 = vshrl.u32 %v11305, 7
      %v11307 = vsub.s32 %v11304, %v11306
      %v11308 = vrot.slane %v11294, %v11307
      %v11309 = vcombine.low %v11301, %v11308
      %v11310 = vcombine.low %v9189, %v9197
      %v11311 = vcombine.low %v9206, %v9214
      %v11312 = vcombine.low %v9222, %v9230
      %v11313 = vcombine.low %v9238, %v9247
      %v11315 = vunpack.c.l.s4 1966171168
      %v11316 = vunpack.c.0.s8 %v11315
      %v11317 = vlaneseq
      %v11318 = vshrl.u32 %v11317, 7
      %v11319 = vsub.s32 %v11316, %v11318
      %v11320 = vrot.slane %v11310, %v11319
      %v11322 = vunpack.c.l.s4 1966171168
      %v11323 = vunpack.c.0.s8 %v11322
      %v11324 = vlaneseq
      %v11325 = vshrl.u32 %v11324, 7
      %v11326 = vsub.s32 %v11323, %v11325
      %v11327 = vrot.slane %v11311, %v11326
      %v11329 = vunpack.c.l.s4 1966171168
      %v11330 = vunpack.c.0.s8 %v11329
      %v11331 = vlaneseq
      %v11332 = vshrl.u32 %v11331, 7
      %v11333 = vsub.s32 %v11330, %v11332
      %v11334 = vrot.slane %v11312, %v11333
      %v11336 = vunpack.c.l.s4 1966171168
      %v11337 = vunpack.c.0.s8 %v11336
      %v11338 = vlaneseq
      %v11339 = vshrl.u32 %v11338, 7
      %v11340 = vsub.s32 %v11337, %v11339
      %v11341 = vrot.slane %v11313, %v11340
      %v11342 = vcombine.low %v11320, %v11327
      %v11343 = vcombine.low %v11334, %v11341
      %v11345 = vunpack.c.l.s4 1966171168
      %v11346 = vunpack.c.0.s8 %v11345
      %v11347 = vlaneseq
      %v11348 = vshrl.u32 %v11347, 7
      %v11349 = vsub.s32 %v11346, %v11348
      %v11350 = vrot.slane %v11342, %v11349
      %v11352 = vunpack.c.l.s4 1966171168
      %v11353 = vunpack.c.0.s8 %v11352
      %v11354 = vlaneseq
      %v11355 = vshrl.u32 %v11354, 7
      %v11356 = vsub.s32 %v11353, %v11355
      %v11357 = vrot.slane %v11343, %v11356
      %v11358 = vcombine.low %v11350, %v11357
      %v11359 = vcombine.low %v9255, %v9263
      %v11360 = vcombine.low %v9271, %v9279
      %v11361 = vcombine.low %v9288, %v9296
      %v11362 = vcombine.low %v9304, %v9312
      %v11364 = vunpack.c.l.s4 1966171168
      %v11365 = vunpack.c.0.s8 %v11364
      %v11366 = vlaneseq
      %v11367 = vshrl.u32 %v11366, 7
      %v11368 = vsub.s32 %v11365, %v11367
      %v11369 = vrot.slane %v11359, %v11368
      %v11371 = vunpack.c.l.s4 1966171168
      %v11372 = vunpack.c.0.s8 %v11371
      %v11373 = vlaneseq
      %v11374 = vshrl.u32 %v11373, 7
      %v11375 = vsub.s32 %v11372, %v11374
      %v11376 = vrot.slane %v11360, %v11375
      %v11378 = vunpack.c.l.s4 1966171168
      %v11379 = vunpack.c.0.s8 %v11378
      %v11380 = vlaneseq
      %v11381 = vshrl.u32 %v11380, 7
      %v11382 = vsub.s32 %v11379, %v11381
      %v11383 = vrot.slane %v11361, %v11382
      %v11385 = vunpack.c.l.s4 1966171168
      %v11386 = vunpack.c.0.s8 %v11385
      %v11387 = vlaneseq
      %v11388 = vshrl.u32 %v11387, 7
      %v11389 = vsub.s32 %v11386, %v11388
      %v11390 = vrot.slane %v11362, %v11389
      %v11391 = vcombine.low %v11369, %v11376
      %v11392 = vcombine.low %v11383, %v11390
      %v11394 = vunpack.c.l.s4 1966171168
      %v11395 = vunpack.c.0.s8 %v11394
      %v11396 = vlaneseq
      %v11397 = vshrl.u32 %v11396, 7
      %v11398 = vsub.s32 %v11395, %v11397
      %v11399 = vrot.slane %v11391, %v11398
      %v11401 = vunpack.c.l.s4 1966171168
      %v11402 = vunpack.c.0.s8 %v11401
      %v11403 = vlaneseq
      %v11404 = vshrl.u32 %v11403, 7
      %v11405 = vsub.s32 %v11402, %v11404
      %v11406 = vrot.slane %v11392, %v11405
      %v11407 = vcombine.low %v11399, %v11406
      %v11408 = vcombine.low %v9320, %v9329
      %v11409 = vcombine.low %v9337, %v9345
      %v11410 = vcombine.low %v9353, %v9361
      %v11411 = vcombine.low %v9370, %v9378
      %v11413 = vunpack.c.l.s4 1966171168
      %v11414 = vunpack.c.0.s8 %v11413
      %v11415 = vlaneseq
      %v11416 = vshrl.u32 %v11415, 7
      %v11417 = vsub.s32 %v11414, %v11416
      %v11418 = vrot.slane %v11408, %v11417
      %v11420 = vunpack.c.l.s4 1966171168
      %v11421 = vunpack.c.0.s8 %v11420
      %v11422 = vlaneseq
      %v11423 = vshrl.u32 %v11422, 7
      %v11424 = vsub.s32 %v11421, %v11423
      %v11425 = vrot.slane %v11409, %v11424
      %v11427 = vunpack.c.l.s4 1966171168
      %v11428 = vunpack.c.0.s8 %v11427
      %v11429 = vlaneseq
      %v11430 = vshrl.u32 %v11429, 7
      %v11431 = vsub.s32 %v11428, %v11430
      %v11432 = vrot.slane %v11410, %v11431
      %v11434 = vunpack.c.l.s4 1966171168
      %v11435 = vunpack.c.0.s8 %v11434
      %v11436 = vlaneseq
      %v11437 = vshrl.u32 %v11436, 7
      %v11438 = vsub.s32 %v11435, %v11437
      %v11439 = vrot.slane %v11411, %v11438
      %v11440 = vcombine.low %v11418, %v11425
      %v11441 = vcombine.low %v11432, %v11439
      %v11443 = vunpack.c.l.s4 1966171168
      %v11444 = vunpack.c.0.s8 %v11443
      %v11445 = vlaneseq
      %v11446 = vshrl.u32 %v11445, 7
      %v11447 = vsub.s32 %v11444, %v11446
      %v11448 = vrot.slane %v11440, %v11447
      %v11450 = vunpack.c.l.s4 1966171168
      %v11451 = vunpack.c.0.s8 %v11450
      %v11452 = vlaneseq
      %v11453 = vshrl.u32 %v11452, 7
      %v11454 = vsub.s32 %v11451, %v11453
      %v11455 = vrot.slane %v11441, %v11454
      %v11456 = vcombine.low %v11448, %v11455
      %v11457 = vcombine.low %v9386, %v9394
      %v11458 = vcombine.low %v9402, %v9411
      %v11459 = vcombine.low %v9419, %v9427
      %v11460 = vcombine.low %v9435, %v9443
      %v11462 = vunpack.c.l.s4 1966171168
      %v11463 = vunpack.c.0.s8 %v11462
      %v11464 = vlaneseq
      %v11465 = vshrl.u32 %v11464, 7
      %v11466 = vsub.s32 %v11463, %v11465
      %v11467 = vrot.slane %v11457, %v11466
      %v11469 = vunpack.c.l.s4 1966171168
      %v11470 = vunpack.c.0.s8 %v11469
      %v11471 = vlaneseq
      %v11472 = vshrl.u32 %v11471, 7
      %v11473 = vsub.s32 %v11470, %v11472
      %v11474 = vrot.slane %v11458, %v11473
      %v11476 = vunpack.c.l.s4 1966171168
      %v11477 = vunpack.c.0.s8 %v11476
      %v11478 = vlaneseq
      %v11479 = vshrl.u32 %v11478, 7
      %v11480 = vsub.s32 %v11477, %v11479
      %v11481 = vrot.slane %v11459, %v11480
      %v11483 = vunpack.c.l.s4 1966171168
      %v11484 = vunpack.c.0.s8 %v11483
      %v11485 = vlaneseq
      %v11486 = vshrl.u32 %v11485, 7
      %v11487 = vsub.s32 %v11484, %v11486
      %v11488 = vrot.slane %v11460, %v11487
      %v11489 = vcombine.low %v11467, %v11474
      %v11490 = vcombine.low %v11481, %v11488
      %v11492 = vunpack.c.l.s4 1966171168
      %v11493 = vunpack.c.0.s8 %v11492
      %v11494 = vlaneseq
      %v11495 = vshrl.u32 %v11494, 7
      %v11496 = vsub.s32 %v11493, %v11495
      %v11497 = vrot.slane %v11489, %v11496
      %v11499 = vunpack.c.l.s4 1966171168
      %v11500 = vunpack.c.0.s8 %v11499
      %v11501 = vlaneseq
      %v11502 = vshrl.u32 %v11501, 7
      %v11503 = vsub.s32 %v11500, %v11502
      %v11504 = vrot.slane %v11490, %v11503
      %v11505 = vcombine.low %v11497, %v11504
      %v11506 = vcombine.low %v9452, %v9460
      %v11507 = vcombine.low %v9468, %v9476
      %v11508 = vcombine.low %v9484, %v11219
      %v11509 = vcombine.low %v11227, %v11235
      %v11511 = vunpack.c.l.s4 1966171168
      %v11512 = vunpack.c.0.s8 %v11511
      %v11513 = vlaneseq
      %v11514 = vshrl.u32 %v11513, 7
      %v11515 = vsub.s32 %v11512, %v11514
      %v11516 = vrot.slane %v11506, %v11515
      %v11518 = vunpack.c.l.s4 1966171168
      %v11519 = vunpack.c.0.s8 %v11518
      %v11520 = vlaneseq
      %v11521 = vshrl.u32 %v11520, 7
      %v11522 = vsub.s32 %v11519, %v11521
      %v11523 = vrot.slane %v11507, %v11522
      %v11525 = vunpack.c.l.s4 1966171168
      %v11526 = vunpack.c.0.s8 %v11525
      %v11527 = vlaneseq
      %v11528 = vshrl.u32 %v11527, 7
      %v11529 = vsub.s32 %v11526, %v11528
      %v11530 = vrot.slane %v11508, %v11529
      %v11532 = vunpack.c.l.s4 1966171168
      %v11533 = vunpack.c.0.s8 %v11532
      %v11534 = vlaneseq
      %v11535 = vshrl.u32 %v11534, 7
      %v11536 = vsub.s32 %v11533, %v11535
      %v11537 = vrot.slane %v11509, %v11536
      %v11538 = vcombine.low %v11516, %v11523
      %v11539 = vcombine.low %v11530, %v11537
      %v11541 = vunpack.c.l.s4 1966171168
      %v11542 = vunpack.c.0.s8 %v11541
      %v11543 = vlaneseq
      %v11544 = vshrl.u32 %v11543, 7
      %v11545 = vsub.s32 %v11542, %v11544
      %v11546 = vrot.slane %v11538, %v11545
      %v11548 = vunpack.c.l.s4 1966171168
      %v11549 = vunpack.c.0.s8 %v11548
      %v11550 = vlaneseq
      %v11551 = vshrl.u32 %v11550, 7
      %v11552 = vsub.s32 %v11549, %v11551
      %v11553 = vrot.slane %v11539, %v11552
      %v11554 = vcombine.low %v11546, %v11553
      %v11555 = vcombine.low %v11243, %v11251
      %v11557 = vunpack.c.l.s4 1966171168
      %v11558 = vunpack.c.0.s8 %v11557
      %v11559 = vlaneseq
      %v11560 = vshrl.u32 %v11559, 7
      %v11561 = vsub.s32 %v11558, %v11560
      %v11562 = vrot.slane %v11555, %v11561
      %v11564 = vunpack.c.l.s4 1966171168
      %v11565 = vunpack.c.0.s8 %v11564
      %v11566 = vlaneseq
      %v11567 = vshrl.u32 %v11566, 7
      %v11568 = vsub.s32 %v11565, %v11567
      %v11569 = vrot.slane %v11562, %v11568
      %v11578 = vunpack.c.l.b16 %v11253
      %v11579 = vunpack.c.l.b16 %v11254
      %v11580 = vunpack.c.l.b16 %v11255
      %v11581 = vunpack.c.l.b16 %v11256
      %v11582 = vunpack.c.l.b16 %v11257
      %v11583 = vunpack.c.l.b16 %v11258
      %v11584 = vunpack.c.l.b16 %v11259
      %v11585 = vunpack.c.l.b16 %v11260
      %v11586 = vpack.c.b16 %v11579, %v11578
      %v11587 = vpack.c.b16 %v11581, %v11580
      %v11588 = vpack.c.b16 %v11583, %v11582
      %v11589 = vpack.c.b16 %v11585, %v11584
      %v11595 = vsel %vm9827, %v11309, 0
      %v11598 = vsel %vm9827, %v11358, 0
      %v11601 = vsel %vm9827, %v11407, 0
      %v11604 = vsel %vm9827, %v11456, 0
      %v11607 = vsel %vm9827, %v11505, 0
      %v11610 = vsel %vm9827, %v11554, 0
      %v11613 = vsel %vm9827, %v11569, 0
      %11615 = vmatprep.subr.bf16.mxu0 0
      %11616 = vmatpush1.bf16.msra.mxu0 %v11586
      %11617 = vmatprep.subr.bf16.mxu0 0
      %11618 = vmatpush1.bf16.msra.mxu0 %v11587
      %11619 = vmatprep.subr.bf16.mxu0 0
      %11620 = vmatpush1.bf16.msra.mxu0 %v11588
      %11621 = vmatprep.subr.bf16.mxu0 0
      %11622 = vmatpush1.bf16.msra.mxu0 %v11589
      %11623 = vmatprep.subr.bf16.mxu0 0
      %11624 = vmatpush1.bf16.msra.mxu0 0
      %11625 = vmatprep.subr.bf16.mxu0 0
      %11626 = vmatpush1.bf16.msra.mxu0 0
      %11627 = vmatprep.subr.bf16.mxu0 0
      %11628 = vmatpush1.bf16.msra.mxu0 0
      %11629 = vmatprep.subr.bf16.mxu0 0
      %11630 = vmatpush1.bf16.msra.mxu0 0
      %11631 = vmatprep.subr.bf16.mxu0 0
      %11632 = vmatpush1.bf16.msra.mxu0 0
      %11633 = vmatprep.subr.bf16.mxu0 0
      %11634 = vmatpush1.bf16.msra.mxu0 0
      %11635 = vmatprep.subr.bf16.mxu0 0
      %11636 = vmatpush1.bf16.msra.mxu0 0
      %11637 = vmatprep.subr.bf16.mxu0 0
      %11638 = vmatpush1.bf16.msra.mxu0 0
      %11639 = vmatprep.subr.bf16.mxu0 0
      %11640 = vmatpush1.bf16.msra.mxu0 0
      %11641 = vmatprep.subr.bf16.mxu0 0
      %11642 = vmatpush1.bf16.msra.mxu0 0
      %11643 = vmatprep.subr.bf16.mxu0 0
      %11644 = vmatpush1.bf16.msra.mxu0 0
      %11645 = vmatprep.subr.bf16.mxu0 0
      %11646 = vmatpush1.bf16.msra.mxu0 0
      %11647 = vmatprep.mubr.bf16.mxu0 0
      %11648 = vmatmul.mubr.bf16.gmra.mrb[0].mxu0 %v11595
      %v11649 = vpop.f32.mrb[0].mxu0
      %v11650 = vadd.f32 0.0, %v11649
      %v11651 = vpop.f32.mrb[0].mxu0
      %v11652 = vpop.f32.mrb[0].mxu0
      %v11653 = vadd.f32 0.0, %v11652
      %v11654 = vpop.f32.mrb[0].mxu0
      %11655 = vmatprep.mubr.bf16.mxu0 0
      %11656 = vmatmul.mubr.bf16.gmra.mrb[0].mxu0 %v11598
      %v11657 = vpop.f32.mrb[0].mxu0
      %v11658 = vadd.f32 0.0, %v11657
      %v11659 = vpop.f32.mrb[0].mxu0
      %v11660 = vpop.f32.mrb[0].mxu0
      %v11661 = vadd.f32 0.0, %v11660
      %v11662 = vpop.f32.mrb[0].mxu0
      %11663 = vmatprep.mubr.bf16.mxu0 0
      %11664 = vmatmul.mubr.bf16.gmra.mrb[0].mxu0 %v11601
      %v11665 = vpop.f32.mrb[0].mxu0
      %v11666 = vadd.f32 0.0, %v11665
      %v11667 = vpop.f32.mrb[0].mxu0
      %v11668 = vpop.f32.mrb[0].mxu0
      %v11669 = vadd.f32 0.0, %v11668
      %v11670 = vpop.f32.mrb[0].mxu0
      %11671 = vmatprep.mubr.bf16.mxu0 0
      %11672 = vmatmul.mubr.bf16.gmra.mrb[0].mxu0 %v11604
      %v11673 = vpop.f32.mrb[0].mxu0
      %v11674 = vadd.f32 0.0, %v11673
      %v11675 = vpop.f32.mrb[0].mxu0
      %v11676 = vpop.f32.mrb[0].mxu0
      %v11677 = vadd.f32 0.0, %v11676
      %v11678 = vpop.f32.mrb[0].mxu0
      %11679 = vmatprep.mubr.bf16.mxu0 0
      %11680 = vmatmul.mubr.bf16.gmra.mrb[0].mxu0 %v11607
      %v11681 = vpop.f32.mrb[0].mxu0
      %v11682 = vadd.f32 0.0, %v11681
      %v11683 = vpop.f32.mrb[0].mxu0
      %v11684 = vpop.f32.mrb[0].mxu0
      %v11685 = vadd.f32 0.0, %v11684
      %v11686 = vpop.f32.mrb[0].mxu0
      %11687 = vmatprep.mubr.bf16.mxu0 0
      %11688 = vmatmul.mubr.bf16.gmra.mrb[0].mxu0 %v11610
      %v11689 = vpop.f32.mrb[0].mxu0
      %v11690 = vadd.f32 0.0, %v11689
      %v11691 = vpop.f32.mrb[0].mxu0
      %v11692 = vpop.f32.mrb[0].mxu0
      %v11693 = vadd.f32 0.0, %v11692
      %v11694 = vpop.f32.mrb[0].mxu0
      %11695 = vmatprep.mubr.bf16.mxu0 0
      %11696 = vmatmul.mubr.bf16.gmra.mrb[0].mxu0 %v11613
      %v11697 = vpop.f32.mrb[0].mxu0
      %v11698 = vadd.f32 0.0, %v11697
      %v11699 = vpop.f32.mrb[0].mxu0
      %v11700 = vpop.f32.mrb[0].mxu0
      %v11701 = vpop.f32.mrb[0].mxu0
      %11702 = vdwg.mxu0
      %v11703 = vadd.f32 %v11197, %v11650
      %v11704 = vadd.f32 %v11198, %v11653
      %v11705 = vadd.f32 %v11199, %v11658
      %v11706 = vadd.f32 %v11200, %v11661
      %v11707 = vadd.f32 %v11201, %v11666
      %v11708 = vadd.f32 %v11202, %v11669
      %v11709 = vadd.f32 %v11203, %v11674
      %v11710 = vadd.f32 %v11204, %v11677
      %v11711 = vadd.f32 %v11205, %v11682
      %v11712 = vadd.f32 %v11206, %v11685
      %v11713 = vadd.f32 %v11207, %v11690
      %v11714 = vadd.f32 %v11208, %v11693
      %v11715 = vadd.f32 %v11209, %v11698
      %s11716 = scalar_lea.vmem %s3, 160
      %v11717 = vld [vmem:[%s11716] sm:$0xf]
      %v11718 = vld [vmem:[%s11716 + $0x4] sm:$0xf]
      %v11719 = vld [vmem:[%s11716 + $0x8] sm:$0xf]
      %v11720 = vld [vmem:[%s11716 + $0xc] sm:$0xf]
      %v11721 = vld [vmem:[%s11716 + $0x10] sm:$0xf]
      %v11722 = vld [vmem:[%s11716 + $0x14] sm:$0xf]
      %v11723 = vld [vmem:[%s11716 + $0x18] sm:$0xf]
      %v11724 = vld [vmem:[%s11716 + $0x1c] sm:$0xf]
      %v11725 = vcombine.low %v9066, %v8880
      %v11727 = vunpack.c.l.s4 1966171168
      %v11728 = vunpack.c.0.s8 %v11727
      %v11729 = vlaneseq
      %v11730 = vshrl.u32 %v11729, 7
      %v11731 = vsub.s32 %v11728, %v11730
      %v11732 = vrot.slane %v11725, %v11731
      %v11733 = vcombine.low %v9968, %v9996
      %v11734 = vcombine.low %v11732, %v10010
      %v11736 = vunpack.c.l.s4 1966171168
      %v11737 = vunpack.c.0.s8 %v11736
      %v11738 = vlaneseq
      %v11739 = vshrl.u32 %v11738, 7
      %v11740 = vsub.s32 %v11737, %v11739
      %v11741 = vrot.slane %v11733, %v11740
      %v11743 = vunpack.c.l.s4 1966171168
      %v11744 = vunpack.c.0.s8 %v11743
      %v11745 = vlaneseq
      %v11746 = vshrl.u32 %v11745, 7
      %v11747 = vsub.s32 %v11744, %v11746
      %v11748 = vrot.slane %v11734, %v11747
      %v11749 = vcombine.low %v11741, %v11748
      %v11750 = vcombine.low %v8895, %v9067
      %v11751 = vcombine.low %v9068, %v8926
      %v11753 = vunpack.c.l.s4 1966171168
      %v11754 = vunpack.c.0.s8 %v11753
      %v11755 = vlaneseq
      %v11756 = vshrl.u32 %v11755, 7
      %v11757 = vsub.s32 %v11754, %v11756
      %v11758 = vrot.slane %v11750, %v11757
      %v11760 = vunpack.c.l.s4 1966171168
      %v11761 = vunpack.c.0.s8 %v11760
      %v11762 = vlaneseq
      %v11763 = vshrl.u32 %v11762, 7
      %v11764 = vsub.s32 %v11761, %v11763
      %v11765 = vrot.slane %v11751, %v11764
      %v11766 = vcombine.low %v11758, %v10045
      %v11767 = vcombine.low %v10052, %v11765
      %v11769 = vunpack.c.l.s4 1966171168
      %v11770 = vunpack.c.0.s8 %v11769
      %v11771 = vlaneseq
      %v11772 = vshrl.u32 %v11771, 7
      %v11773 = vsub.s32 %v11770, %v11772
      %v11774 = vrot.slane %v11766, %v11773
      %v11776 = vunpack.c.l.s4 1966171168
      %v11777 = vunpack.c.0.s8 %v11776
      %v11778 = vlaneseq
      %v11779 = vshrl.u32 %v11778, 7
      %v11780 = vsub.s32 %v11777, %v11779
      %v11781 = vrot.slane %v11767, %v11780
      %v11782 = vcombine.low %v11774, %v11781
      %v11783 = vcombine.low %v8941, %v9069
      %v11785 = vunpack.c.l.s4 1966171168
      %v11786 = vunpack.c.0.s8 %v11785
      %v11787 = vlaneseq
      %v11788 = vshrl.u32 %v11787, 7
      %v11789 = vsub.s32 %v11786, %v11788
      %v11790 = vrot.slane %v11783, %v11789
      %v11791 = vcombine.low %v10066, %v11790
      %v11792 = vcombine.low %v10101, %v10108
      %v11794 = vunpack.c.l.s4 1966171168
      %v11795 = vunpack.c.0.s8 %v11794
      %v11796 = vlaneseq
      %v11797 = vshrl.u32 %v11796, 7
      %v11798 = vsub.s32 %v11795, %v11797
      %v11799 = vrot.slane %v11791, %v11798
      %v11801 = vunpack.c.l.s4 1966171168
      %v11802 = vunpack.c.0.s8 %v11801
      %v11803 = vlaneseq
      %v11804 = vshrl.u32 %v11803, 7
      %v11805 = vsub.s32 %v11802, %v11804
      %v11806 = vrot.slane %v11792, %v11805
      %v11807 = vcombine.low %v11799, %v11806
      %v11808 = vcombine.low %v9070, %v8972
      %v11809 = vcombine.low %v8987, %v9071
      %v11811 = vunpack.c.l.s4 1966171168
      %v11812 = vunpack.c.0.s8 %v11811
      %v11813 = vlaneseq
      %v11814 = vshrl.u32 %v11813, 7
      %v11815 = vsub.s32 %v11812, %v11814
      %v11816 = vrot.slane %v11808, %v11815
      %v11818 = vunpack.c.l.s4 1966171168
      %v11819 = vunpack.c.0.s8 %v11818
      %v11820 = vlaneseq
      %v11821 = vshrl.u32 %v11820, 7
      %v11822 = vsub.s32 %v11819, %v11821
      %v11823 = vrot.slane %v11809, %v11822
      %v11824 = vcombine.low %v11816, %v10143
      %v11825 = vcombine.low %v11823, %v10157
      %v11827 = vunpack.c.l.s4 1966171168
      %v11828 = vunpack.c.0.s8 %v11827
      %v11829 = vlaneseq
      %v11830 = vshrl.u32 %v11829, 7
      %v11831 = vsub.s32 %v11828, %v11830
      %v11832 = vrot.slane %v11824, %v11831
      %v11834 = vunpack.c.l.s4 1966171168
      %v11835 = vunpack.c.0.s8 %v11834
      %v11836 = vlaneseq
      %v11837 = vshrl.u32 %v11836, 7
      %v11838 = vsub.s32 %v11835, %v11837
      %v11839 = vrot.slane %v11825, %v11838
      %v11840 = vcombine.low %v11832, %v11839
      %v11841 = vcombine.low %v9072, %v9018
      %v11842 = vcombine.low %v9033, %v9073
      %v11844 = vunpack.c.l.s4 1966171168
      %v11845 = vunpack.c.0.s8 %v11844
      %v11846 = vlaneseq
      %v11847 = vshrl.u32 %v11846, 7
      %v11848 = vsub.s32 %v11845, %v11847
      %v11849 = vrot.slane %v11841, %v11848
      %v11851 = vunpack.c.l.s4 1966171168
      %v11852 = vunpack.c.0.s8 %v11851
      %v11853 = vlaneseq
      %v11854 = vshrl.u32 %v11853, 7
      %v11855 = vsub.s32 %v11852, %v11854
      %v11856 = vrot.slane %v11842, %v11855
      %v11857 = vcombine.low %v10164, %v11849
      %v11858 = vcombine.low %v10199, %v11856
      %v11860 = vunpack.c.l.s4 1966171168
      %v11861 = vunpack.c.0.s8 %v11860
      %v11862 = vlaneseq
      %v11863 = vshrl.u32 %v11862, 7
      %v11864 = vsub.s32 %v11861, %v11863
      %v11865 = vrot.slane %v11857, %v11864
      %v11867 = vunpack.c.l.s4 1966171168
      %v11868 = vunpack.c.0.s8 %v11867
      %v11869 = vlaneseq
      %v11870 = vshrl.u32 %v11869, 7
      %v11871 = vsub.s32 %v11868, %v11870
      %v11872 = vrot.slane %v11858, %v11871
      %v11873 = vcombine.low %v11865, %v11872
      %v11874 = vcombine.low %v9074, %v10850
      %v11875 = vcombine.low %v10857, %v10858
      %v11877 = vunpack.c.l.s4 1966171168
      %v11878 = vunpack.c.0.s8 %v11877
      %v11879 = vlaneseq
      %v11880 = vshrl.u32 %v11879, 7
      %v11881 = vsub.s32 %v11878, %v11880
      %v11882 = vrot.slane %v11874, %v11881
      %v11884 = vunpack.c.l.s4 1966171168
      %v11885 = vunpack.c.0.s8 %v11884
      %v11886 = vlaneseq
      %v11887 = vshrl.u32 %v11886, 7
      %v11888 = vsub.s32 %v11885, %v11887
      %v11889 = vrot.slane %v11875, %v11888
      %v11890 = vcombine.low %v10213, %v10238
      %v11891 = vcombine.low %v11882, %v11889
      %v11893 = vunpack.c.l.s4 1966171168
      %v11894 = vunpack.c.0.s8 %v11893
      %v11895 = vlaneseq
      %v11896 = vshrl.u32 %v11895, 7
      %v11897 = vsub.s32 %v11894, %v11896
      %v11898 = vrot.slane %v11890, %v11897
      %v11900 = vunpack.c.l.s4 1966171168
      %v11901 = vunpack.c.0.s8 %v11900
      %v11902 = vlaneseq
      %v11903 = vshrl.u32 %v11902, 7
      %v11904 = vsub.s32 %v11901, %v11903
      %v11905 = vrot.slane %v11891, %v11904
      %v11906 = vcombine.low %v11898, %v11905
      %v11907 = vcombine.low %v10865, %v11210
      %v11909 = vunpack.c.l.s4 1966171168
      %v11910 = vunpack.c.0.s8 %v11909
      %v11911 = vlaneseq
      %v11912 = vshrl.u32 %v11911, 7
      %v11913 = vsub.s32 %v11910, %v11912
      %v11914 = vrot.slane %v11907, %v11913
      %v11916 = vunpack.c.l.s4 1966171168
      %v11917 = vunpack.c.0.s8 %v11916
      %v11918 = vlaneseq
      %v11919 = vshrl.u32 %v11918, 7
      %v11920 = vsub.s32 %v11917, %v11919
      %v11921 = vrot.slane %v11914, %v11920
      %v11930 = vunpack.c.l.b16 %v11717
      %v11931 = vunpack.c.l.b16 %v11718
      %v11932 = vunpack.c.l.b16 %v11719
      %v11933 = vunpack.c.l.b16 %v11720
      %v11934 = vunpack.c.l.b16 %v11721
      %v11935 = vunpack.c.l.b16 %v11722
      %v11936 = vunpack.c.l.b16 %v11723
      %v11937 = vunpack.c.l.b16 %v11724
      %v11938 = vpack.c.b16 %v11931, %v11930
      %v11939 = vpack.c.b16 %v11933, %v11932
      %v11940 = vpack.c.b16 %v11935, %v11934
      %v11941 = vpack.c.b16 %v11937, %v11936
      %v11947 = vsel %vm9827, %v11749, 0
      %v11950 = vsel %vm9827, %v11782, 0
      %v11953 = vsel %vm9827, %v11807, 0
      %v11956 = vsel %vm9827, %v11840, 0
      %v11959 = vsel %vm9827, %v11873, 0
      %v11962 = vsel %vm9827, %v11906, 0
      %v11965 = vsel %vm9827, %v11921, 0
      %11967 = vmatprep.subr.bf16.mxu0 0
      %11968 = vmatpush1.bf16.msra.mxu0 %v11938
      %11969 = vmatprep.subr.bf16.mxu0 0
      %11970 = vmatpush1.bf16.msra.mxu0 %v11939
      %11971 = vmatprep.subr.bf16.mxu0 0
      %11972 = vmatpush1.bf16.msra.mxu0 %v11940
      %11973 = vmatprep.subr.bf16.mxu0 0
      %11974 = vmatpush1.bf16.msra.mxu0 %v11941
      %11975 = vmatprep.subr.bf16.mxu0 0
      %11976 = vmatpush1.bf16.msra.mxu0 0
      %11977 = vmatprep.subr.bf16.mxu0 0
      %11978 = vmatpush1.bf16.msra.mxu0 0
      %11979 = vmatprep.subr.bf16.mxu0 0
      %11980 = vmatpush1.bf16.msra.mxu0 0
      %11981 = vmatprep.subr.bf16.mxu0 0
      %11982 = vmatpush1.bf16.msra.mxu0 0
      %11983 = vmatprep.subr.bf16.mxu0 0
      %11984 = vmatpush1.bf16.msra.mxu0 0
      %11985 = vmatprep.subr.bf16.mxu0 0
      %11986 = vmatpush1.bf16.msra.mxu0 0
      %11987 = vmatprep.subr.bf16.mxu0 0
      %11988 = vmatpush1.bf16.msra.mxu0 0
      %11989 = vmatprep.subr.bf16.mxu0 0
      %11990 = vmatpush1.bf16.msra.mxu0 0
      %11991 = vmatprep.subr.bf16.mxu0 0
      %11992 = vmatpush1.bf16.msra.mxu0 0
      %11993 = vmatprep.subr.bf16.mxu0 0
      %11994 = vmatpush1.bf16.msra.mxu0 0
      %11995 = vmatprep.subr.bf16.mxu0 0
      %11996 = vmatpush1.bf16.msra.mxu0 0
      %11997 = vmatprep.subr.bf16.mxu0 0
      %11998 = vmatpush1.bf16.msra.mxu0 0
      %11999 = vmatprep.mubr.bf16.mxu0 0
      %12000 = vmatmul.mubr.bf16.gmra.mrb[0].mxu0 %v11947
      %v12001 = vpop.f32.mrb[0].mxu0
      %v12002 = vadd.f32 0.0, %v12001
      %v12003 = vpop.f32.mrb[0].mxu0
      %v12004 = vpop.f32.mrb[0].mxu0
      %v12005 = vadd.f32 0.0, %v12004
      %v12006 = vpop.f32.mrb[0].mxu0
      %12007 = vmatprep.mubr.bf16.mxu0 0
      %12008 = vmatmul.mubr.bf16.gmra.mrb[0].mxu0 %v11950
      %v12009 = vpop.f32.mrb[0].mxu0
      %v12010 = vadd.f32 0.0, %v12009
      %v12011 = vpop.f32.mrb[0].mxu0
      %v12012 = vpop.f32.mrb[0].mxu0
      %v12013 = vadd.f32 0.0, %v12012
      %v12014 = vpop.f32.mrb[0].mxu0
      %12015 = vmatprep.mubr.bf16.mxu0 0
      %12016 = vmatmul.mubr.bf16.gmra.mrb[0].mxu0 %v11953
      %v12017 = vpop.f32.mrb[0].mxu0
      %v12018 = vadd.f32 0.0, %v12017
      %v12019 = vpop.f32.mrb[0].mxu0
      %v12020 = vpop.f32.mrb[0].mxu0
      %v12021 = vadd.f32 0.0, %v12020
      %v12022 = vpop.f32.mrb[0].mxu0
      %12023 = vmatprep.mubr.bf16.mxu0 0
      %12024 = vmatmul.mubr.bf16.gmra.mrb[0].mxu0 %v11956
      %v12025 = vpop.f32.mrb[0].mxu0
      %v12026 = vadd.f32 0.0, %v12025
      %v12027 = vpop.f32.mrb[0].mxu0
      %v12028 = vpop.f32.mrb[0].mxu0
      %v12029 = vadd.f32 0.0, %v12028
      %v12030 = vpop.f32.mrb[0].mxu0
      %12031 = vmatprep.mubr.bf16.mxu0 0
      %12032 = vmatmul.mubr.bf16.gmra.mrb[0].mxu0 %v11959
      %v12033 = vpop.f32.mrb[0].mxu0
      %v12034 = vadd.f32 0.0, %v12033
      %v12035 = vpop.f32.mrb[0].mxu0
      %v12036 = vpop.f32.mrb[0].mxu0
      %v12037 = vadd.f32 0.0, %v12036
      %v12038 = vpop.f32.mrb[0].mxu0
      %12039 = vmatprep.mubr.bf16.mxu0 0
      %12040 = vmatmul.mubr.bf16.gmra.mrb[0].mxu0 %v11962
      %v12041 = vpop.f32.mrb[0].mxu0
      %v12042 = vadd.f32 0.0, %v12041
      %v12043 = vpop.f32.mrb[0].mxu0
      %v12044 = vpop.f32.mrb[0].mxu0
      %v12045 = vadd.f32 0.0, %v12044
      %v12046 = vpop.f32.mrb[0].mxu0
      %12047 = vmatprep.mubr.bf16.mxu0 0
      %12048 = vmatmul.mubr.bf16.gmra.mrb[0].mxu0 %v11965
      %v12049 = vpop.f32.mrb[0].mxu0
      %v12050 = vadd.f32 0.0, %v12049
      %v12051 = vpop.f32.mrb[0].mxu0
      %v12052 = vpop.f32.mrb[0].mxu0
      %v12053 = vpop.f32.mrb[0].mxu0
      %12054 = vdwg.mxu0
      %v12055 = vadd.f32 %v11703, %v12002
      %v12056 = vadd.f32 %v11704, %v12005
      %v12057 = vadd.f32 %v11705, %v12010
      %v12058 = vadd.f32 %v11706, %v12013
      %v12059 = vadd.f32 %v11707, %v12018
      %v12060 = vadd.f32 %v11708, %v12021
      %v12061 = vadd.f32 %v11709, %v12026
      %v12062 = vadd.f32 %v11710, %v12029
      %v12063 = vadd.f32 %v11711, %v12034
      %v12064 = vadd.f32 %v11712, %v12037
      %v12065 = vadd.f32 %v11713, %v12042
      %v12066 = vadd.f32 %v11714, %v12045
      %v12067 = vadd.f32 %v11715, %v12050
      %v12069 = vunpack.c.l.s4 1966171168
      %v12070 = vunpack.c.0.s8 %v12069
      %v12071 = vlaneseq
      %v12072 = vshrl.u32 %v12071, 7
      %v12073 = vsub.s32 %v12070, %v12072
      %v12074 = vrot.slane %v8825, %v12073
      %v12075 = vcombine.high %v12074, %v12074
      %v12077 = vunpack.c.l.s4 1966171168
      %v12078 = vunpack.c.0.s8 %v12077
      %v12079 = vlaneseq
      %v12080 = vshrl.u32 %v12079, 7
      %v12081 = vsub.s32 %v12078, %v12080
      %v12082 = vrot.slane %v8824, %v12081
      %v12083 = vcombine.high %v12082, %v12082
      %v12085 = vunpack.c.l.s4 1966171168
      %v12086 = vunpack.c.0.s8 %v12085
      %v12087 = vlaneseq
      %v12088 = vshrl.u32 %v12087, 7
      %v12089 = vsub.s32 %v12086, %v12088
      %v12090 = vrot.slane %v8826, %v12089
      %s12091 = scalar_lea.vmem %s3, 192
      %v12092 = vld [vmem:[%s12091] sm:$0xf]
      %v12093 = vld [vmem:[%s12091 + $0x4] sm:$0xf]
      %v12094 = vld [vmem:[%s12091 + $0x8] sm:$0xf]
      %v12095 = vld [vmem:[%s12091 + $0xc] sm:$0xf]
      %v12096 = vld [vmem:[%s12091 + $0x10] sm:$0xf]
      %v12097 = vld [vmem:[%s12091 + $0x14] sm:$0xf]
      %v12098 = vld [vmem:[%s12091 + $0x18] sm:$0xf]
      %v12099 = vld [vmem:[%s12091 + $0x1c] sm:$0xf]
      %v12100 = vcombine.low %v10003, %v10010
      %v12101 = vcombine.low %v10017, %v10045
      %v12103 = vunpack.c.l.s4 1966171168
      %v12104 = vunpack.c.0.s8 %v12103
      %v12105 = vlaneseq
      %v12106 = vshrl.u32 %v12105, 7
      %v12107 = vsub.s32 %v12104, %v12106
      %v12108 = vrot.slane %v12100, %v12107
      %v12110 = vunpack.c.l.s4 1966171168
      %v12111 = vunpack.c.0.s8 %v12110
      %v12112 = vlaneseq
      %v12113 = vshrl.u32 %v12112, 7
      %v12114 = vsub.s32 %v12111, %v12113
      %v12115 = vrot.slane %v12101, %v12114
      %v12116 = vcombine.low %v12108, %v12115
      %v12117 = vcombine.low %v10052, %v10059
      %v12118 = vcombine.low %v10066, %v10094
      %v12120 = vunpack.c.l.s4 1966171168
      %v12121 = vunpack.c.0.s8 %v12120
      %v12122 = vlaneseq
      %v12123 = vshrl.u32 %v12122, 7
      %v12124 = vsub.s32 %v12121, %v12123
      %v12125 = vrot.slane %v12117, %v12124
      %v12127 = vunpack.c.l.s4 1966171168
      %v12128 = vunpack.c.0.s8 %v12127
      %v12129 = vlaneseq
      %v12130 = vshrl.u32 %v12129, 7
      %v12131 = vsub.s32 %v12128, %v12130
      %v12132 = vrot.slane %v12118, %v12131
      %v12133 = vcombine.low %v12125, %v12132
      %v12134 = vcombine.low %v10115, %v10143
      %v12136 = vunpack.c.l.s4 1966171168
      %v12137 = vunpack.c.0.s8 %v12136
      %v12138 = vlaneseq
      %v12139 = vshrl.u32 %v12138, 7
      %v12140 = vsub.s32 %v12137, %v12139
      %v12141 = vrot.slane %v12134, %v12140
      %v12142 = vcombine.low %v11806, %v12141
      %v12143 = vcombine.low %v10150, %v10157
      %v12144 = vcombine.low %v10164, %v10192
      %v12146 = vunpack.c.l.s4 1966171168
      %v12147 = vunpack.c.0.s8 %v12146
      %v12148 = vlaneseq
      %v12149 = vshrl.u32 %v12148, 7
      %v12150 = vsub.s32 %v12147, %v12149
      %v12151 = vrot.slane %v12143, %v12150
      %v12153 = vunpack.c.l.s4 1966171168
      %v12154 = vunpack.c.0.s8 %v12153
      %v12155 = vlaneseq
      %v12156 = vshrl.u32 %v12155, 7
      %v12157 = vsub.s32 %v12154, %v12156
      %v12158 = vrot.slane %v12144, %v12157
      %v12159 = vcombine.low %v12151, %v12158
      %v12160 = vcombine.low %v10199, %v10206
      %v12162 = vunpack.c.l.s4 1966171168
      %v12163 = vunpack.c.0.s8 %v12162
      %v12164 = vlaneseq
      %v12165 = vshrl.u32 %v12164, 7
      %v12166 = vsub.s32 %v12163, %v12165
      %v12167 = vrot.slane %v12160, %v12166
      %v12168 = vcombine.low %v12167, %v11898
      %v12169 = vcombine.low %v10849, %v10850
      %v12170 = vcombine.low %v10865, %v12074
      %v12171 = vcombine.low %v12075, %v12082
      %v12173 = vunpack.c.l.s4 1966171168
      %v12174 = vunpack.c.0.s8 %v12173
      %v12175 = vlaneseq
      %v12176 = vshrl.u32 %v12175, 7
      %v12177 = vsub.s32 %v12174, %v12176
      %v12178 = vrot.slane %v12169, %v12177
      %v12180 = vunpack.c.l.s4 1966171168
      %v12181 = vunpack.c.0.s8 %v12180
      %v12182 = vlaneseq
      %v12183 = vshrl.u32 %v12182, 7
      %v12184 = vsub.s32 %v12181, %v12183
      %v12185 = vrot.slane %v12170, %v12184
      %v12187 = vunpack.c.l.s4 1966171168
      %v12188 = vunpack.c.0.s8 %v12187
      %v12189 = vlaneseq
      %v12190 = vshrl.u32 %v12189, 7
      %v12191 = vsub.s32 %v12188, %v12190
      %v12192 = vrot.slane %v12171, %v12191
      %v12193 = vcombine.low %v12178, %v11889
      %v12194 = vcombine.low %v12185, %v12192
      %v12196 = vunpack.c.l.s4 1966171168
      %v12197 = vunpack.c.0.s8 %v12196
      %v12198 = vlaneseq
      %v12199 = vshrl.u32 %v12198, 7
      %v12200 = vsub.s32 %v12197, %v12199
      %v12201 = vrot.slane %v12193, %v12200
      %v12203 = vunpack.c.l.s4 1966171168
      %v12204 = vunpack.c.0.s8 %v12203
      %v12205 = vlaneseq
      %v12206 = vshrl.u32 %v12205, 7
      %v12207 = vsub.s32 %v12204, %v12206
      %v12208 = vrot.slane %v12194, %v12207
      %v12209 = vcombine.low %v12201, %v12208
      %v12210 = vcombine.low %v12083, %v12090
      %v12212 = vunpack.c.l.s4 1966171168
      %v12213 = vunpack.c.0.s8 %v12212
      %v12214 = vlaneseq
      %v12215 = vshrl.u32 %v12214, 7
      %v12216 = vsub.s32 %v12213, %v12215
      %v12217 = vrot.slane %v12210, %v12216
      %v12219 = vunpack.c.l.s4 1966171168
      %v12220 = vunpack.c.0.s8 %v12219
      %v12221 = vlaneseq
      %v12222 = vshrl.u32 %v12221, 7
      %v12223 = vsub.s32 %v12220, %v12222
      %v12224 = vrot.slane %v12217, %v12223
      %v12233 = vunpack.c.l.b16 %v12092
      %v12234 = vunpack.c.l.b16 %v12093
      %v12235 = vunpack.c.l.b16 %v12094
      %v12236 = vunpack.c.l.b16 %v12095
      %v12237 = vunpack.c.l.b16 %v12096
      %v12238 = vunpack.c.l.b16 %v12097
      %v12239 = vunpack.c.l.b16 %v12098
      %v12240 = vunpack.c.l.b16 %v12099
      %v12241 = vpack.c.b16 %v12234, %v12233
      %v12242 = vpack.c.b16 %v12236, %v12235
      %v12243 = vpack.c.b16 %v12238, %v12237
      %v12244 = vpack.c.b16 %v12240, %v12239
      %v12250 = vsel %vm9827, %v12116, 0
      %v12253 = vsel %vm9827, %v12133, 0
      %v12256 = vsel %vm9827, %v12142, 0
      %v12259 = vsel %vm9827, %v12159, 0
      %v12262 = vsel %vm9827, %v12168, 0
      %v12265 = vsel %vm9827, %v12209, 0
      %v12268 = vsel %vm9827, %v12224, 0
      %12270 = vmatprep.subr.bf16.mxu0 0
      %12271 = vmatpush1.bf16.msra.mxu0 %v12241
      %12272 = vmatprep.subr.bf16.mxu0 0
      %12273 = vmatpush1.bf16.msra.mxu0 %v12242
      %12274 = vmatprep.subr.bf16.mxu0 0
      %12275 = vmatpush1.bf16.msra.mxu0 %v12243
      %12276 = vmatprep.subr.bf16.mxu0 0
      %12277 = vmatpush1.bf16.msra.mxu0 %v12244
      %12278 = vmatprep.subr.bf16.mxu0 0
      %12279 = vmatpush1.bf16.msra.mxu0 0
      %12280 = vmatprep.subr.bf16.mxu0 0
      %12281 = vmatpush1.bf16.msra.mxu0 0
      %12282 = vmatprep.subr.bf16.mxu0 0
      %12283 = vmatpush1.bf16.msra.mxu0 0
      %12284 = vmatprep.subr.bf16.mxu0 0
      %12285 = vmatpush1.bf16.msra.mxu0 0
      %12286 = vmatprep.subr.bf16.mxu0 0
      %12287 = vmatpush1.bf16.msra.mxu0 0
      %12288 = vmatprep.subr.bf16.mxu0 0
      %12289 = vmatpush1.bf16.msra.mxu0 0
      %12290 = vmatprep.subr.bf16.mxu0 0
      %12291 = vmatpush1.bf16.msra.mxu0 0
      %12292 = vmatprep.subr.bf16.mxu0 0
      %12293 = vmatpush1.bf16.msra.mxu0 0
      %12294 = vmatprep.subr.bf16.mxu0 0
      %12295 = vmatpush1.bf16.msra.mxu0 0
      %12296 = vmatprep.subr.bf16.mxu0 0
      %12297 = vmatpush1.bf16.msra.mxu0 0
      %12298 = vmatprep.subr.bf16.mxu0 0
      %12299 = vmatpush1.bf16.msra.mxu0 0
      %12300 = vmatprep.subr.bf16.mxu0 0
      %12301 = vmatpush1.bf16.msra.mxu0 0
      %12302 = vmatprep.mubr.bf16.mxu0 0
      %12303 = vmatmul.mubr.bf16.gmra.mrb[0].mxu0 %v12250
      %v12304 = vpop.f32.mrb[0].mxu0
      %v12305 = vadd.f32 0.0, %v12304
      %v12306 = vpop.f32.mrb[0].mxu0
      %v12307 = vpop.f32.mrb[0].mxu0
      %v12308 = vadd.f32 0.0, %v12307
      %v12309 = vpop.f32.mrb[0].mxu0
      %12310 = vmatprep.mubr.bf16.mxu0 0
      %12311 = vmatmul.mubr.bf16.gmra.mrb[0].mxu0 %v12253
      %v12312 = vpop.f32.mrb[0].mxu0
      %v12313 = vadd.f32 0.0, %v12312
      %v12314 = vpop.f32.mrb[0].mxu0
      %v12315 = vpop.f32.mrb[0].mxu0
      %v12316 = vadd.f32 0.0, %v12315
      %v12317 = vpop.f32.mrb[0].mxu0
      %12318 = vmatprep.mubr.bf16.mxu0 0
      %12319 = vmatmul.mubr.bf16.gmra.mrb[0].mxu0 %v12256
      %v12320 = vpop.f32.mrb[0].mxu0
      %v12321 = vadd.f32 0.0, %v12320
      %v12322 = vpop.f32.mrb[0].mxu0
      %v12323 = vpop.f32.mrb[0].mxu0
      %v12324 = vadd.f32 0.0, %v12323
      %v12325 = vpop.f32.mrb[0].mxu0
      %12326 = vmatprep.mubr.bf16.mxu0 0
      %12327 = vmatmul.mubr.bf16.gmra.mrb[0].mxu0 %v12259
      %v12328 = vpop.f32.mrb[0].mxu0
      %v12329 = vadd.f32 0.0, %v12328
      %v12330 = vpop.f32.mrb[0].mxu0
      %v12331 = vpop.f32.mrb[0].mxu0
      %v12332 = vadd.f32 0.0, %v12331
      %v12333 = vpop.f32.mrb[0].mxu0
      %12334 = vmatprep.mubr.bf16.mxu0 0
      %12335 = vmatmul.mubr.bf16.gmra.mrb[0].mxu0 %v12262
      %v12336 = vpop.f32.mrb[0].mxu0
      %v12337 = vadd.f32 0.0, %v12336
      %v12338 = vpop.f32.mrb[0].mxu0
      %v12339 = vpop.f32.mrb[0].mxu0
      %v12340 = vadd.f32 0.0, %v12339
      %v12341 = vpop.f32.mrb[0].mxu0
      %12342 = vmatprep.mubr.bf16.mxu0 0
      %12343 = vmatmul.mubr.bf16.gmra.mrb[0].mxu0 %v12265
      %v12344 = vpop.f32.mrb[0].mxu0
      %v12345 = vadd.f32 0.0, %v12344
      %v12346 = vpop.f32.mrb[0].mxu0
      %v12347 = vpop.f32.mrb[0].mxu0
      %v12348 = vadd.f32 0.0, %v12347
      %v12349 = vpop.f32.mrb[0].mxu0
      %12350 = vmatprep.mubr.bf16.mxu0 0
      %12351 = vmatmul.mubr.bf16.gmra.mrb[0].mxu0 %v12268
      %v12352 = vpop.f32.mrb[0].mxu0
      %v12353 = vadd.f32 0.0, %v12352
      %v12354 = vpop.f32.mrb[0].mxu0
      %v12355 = vpop.f32.mrb[0].mxu0
      %v12356 = vpop.f32.mrb[0].mxu0
      %12357 = vdwg.mxu0
      %v12358 = vadd.f32 %v12055, %v12305
      %v12359 = vadd.f32 %v12056, %v12308
      %v12360 = vadd.f32 %v12057, %v12313
      %v12361 = vadd.f32 %v12058, %v12316
      %v12362 = vadd.f32 %v12059, %v12321
      %v12363 = vadd.f32 %v12060, %v12324
      %v12364 = vadd.f32 %v12061, %v12329
      %v12365 = vadd.f32 %v12062, %v12332
      %v12366 = vadd.f32 %v12063, %v12337
      %v12367 = vadd.f32 %v12064, %v12340
      %v12368 = vadd.f32 %v12065, %v12345
      %v12369 = vadd.f32 %v12066, %v12348
      %v12370 = vadd.f32 %v12067, %v12353
      %v12371 = vcombine.high %v12090, %v12090
      %v12373 = vshrl.u32 %v12074, 16
      %v12375 = vrot.slane %v12373, 7
      %v12376 = vrot.slane %v12375, 1
      %v12378 = vshll.u32 %v12075, 16
      %v12380 = vsel %vm2548, %v12376, %v12378
      %v12381 = vshrl.u32 %v12075, 16
      %v12383 = vrot.slane %v12381, 7
      %v12384 = vrot.slane %v12383, 1
      %v12386 = vshll.u32 %v12082, 16
      %v12388 = vsel %vm2548, %v12384, %v12386
      %v12389 = vshrl.u32 %v12082, 16
      %v12391 = vrot.slane %v12389, 7
      %v12392 = vrot.slane %v12391, 1
      %v12394 = vshll.u32 %v12083, 16
      %v12396 = vsel %vm2548, %v12392, %v12394
      %v12397 = vshrl.u32 %v12083, 16
      %v12399 = vrot.slane %v12397, 7
      %v12400 = vrot.slane %v12399, 1
      %v12402 = vshll.u32 %v12090, 16
      %v12404 = vsel %vm2548, %v12400, %v12402
      %v12405 = vshrl.u32 %v12090, 16
      %v12407 = vrot.slane %v12405, 7
      %v12408 = vrot.slane %v12407, 1
      %v12410 = vshll.u32 %v12371, 16
      %v12412 = vsel %vm2548, %v12408, %v12410
      %s12413 = scalar_lea.vmem %s3, 224
      %v12414 = vld [vmem:[%s12413] sm:$0xf]
      %v12415 = vld [vmem:[%s12413 + $0x4] sm:$0xf]
      %v12416 = vld [vmem:[%s12413 + $0x8] sm:$0xf]
      %v12417 = vld [vmem:[%s12413 + $0xc] sm:$0xf]
      %v12418 = vld [vmem:[%s12413 + $0x10] sm:$0xf]
      %v12419 = vld [vmem:[%s12413 + $0x14] sm:$0xf]
      %v12420 = vld [vmem:[%s12413 + $0x18] sm:$0xf]
      %v12421 = vld [vmem:[%s12413 + $0x1c] sm:$0xf]
      %v12422 = vcombine.low %v9560, %v9567
      %v12423 = vcombine.low %v9574, %v9602
      %v12425 = vunpack.c.l.s4 1966171168
      %v12426 = vunpack.c.0.s8 %v12425
      %v12427 = vlaneseq
      %v12428 = vshrl.u32 %v12427, 7
      %v12429 = vsub.s32 %v12426, %v12428
      %v12430 = vrot.slane %v12422, %v12429
      %v12432 = vunpack.c.l.s4 1966171168
      %v12433 = vunpack.c.0.s8 %v12432
      %v12434 = vlaneseq
      %v12435 = vshrl.u32 %v12434, 7
      %v12436 = vsub.s32 %v12433, %v12435
      %v12437 = vrot.slane %v12423, %v12436
      %v12438 = vcombine.low %v12430, %v12437
      %v12439 = vcombine.low %v9609, %v9616
      %v12440 = vcombine.low %v9623, %v9651
      %v12442 = vunpack.c.l.s4 1966171168
      %v12443 = vunpack.c.0.s8 %v12442
      %v12444 = vlaneseq
      %v12445 = vshrl.u32 %v12444, 7
      %v12446 = vsub.s32 %v12443, %v12445
      %v12447 = vrot.slane %v12439, %v12446
      %v12449 = vunpack.c.l.s4 1966171168
      %v12450 = vunpack.c.0.s8 %v12449
      %v12451 = vlaneseq
      %v12452 = vshrl.u32 %v12451, 7
      %v12453 = vsub.s32 %v12450, %v12452
      %v12454 = vrot.slane %v12440, %v12453
      %v12455 = vcombine.low %v12447, %v12454
      %v12456 = vcombine.low %v9658, %v9665
      %v12457 = vcombine.low %v9672, %v9700
      %v12459 = vunpack.c.l.s4 1966171168
      %v12460 = vunpack.c.0.s8 %v12459
      %v12461 = vlaneseq
      %v12462 = vshrl.u32 %v12461, 7
      %v12463 = vsub.s32 %v12460, %v12462
      %v12464 = vrot.slane %v12456, %v12463
      %v12466 = vunpack.c.l.s4 1966171168
      %v12467 = vunpack.c.0.s8 %v12466
      %v12468 = vlaneseq
      %v12469 = vshrl.u32 %v12468, 7
      %v12470 = vsub.s32 %v12467, %v12469
      %v12471 = vrot.slane %v12457, %v12470
      %v12472 = vcombine.low %v12464, %v12471
      %v12473 = vcombine.low %v9707, %v9714
      %v12474 = vcombine.low %v9721, %v9749
      %v12476 = vunpack.c.l.s4 1966171168
      %v12477 = vunpack.c.0.s8 %v12476
      %v12478 = vlaneseq
      %v12479 = vshrl.u32 %v12478, 7
      %v12480 = vsub.s32 %v12477, %v12479
      %v12481 = vrot.slane %v12473, %v12480
      %v12483 = vunpack.c.l.s4 1966171168
      %v12484 = vunpack.c.0.s8 %v12483
      %v12485 = vlaneseq
      %v12486 = vshrl.u32 %v12485, 7
      %v12487 = vsub.s32 %v12484, %v12486
      %v12488 = vrot.slane %v12474, %v12487
      %v12489 = vcombine.low %v12481, %v12488
      %v12490 = vcombine.low %v9756, %v9763
      %v12491 = vcombine.low %v9770, %v9795
      %v12493 = vunpack.c.l.s4 1966171168
      %v12494 = vunpack.c.0.s8 %v12493
      %v12495 = vlaneseq
      %v12496 = vshrl.u32 %v12495, 7
      %v12497 = vsub.s32 %v12494, %v12496
      %v12498 = vrot.slane %v12490, %v12497
      %v12500 = vunpack.c.l.s4 1966171168
      %v12501 = vunpack.c.0.s8 %v12500
      %v12502 = vlaneseq
      %v12503 = vshrl.u32 %v12502, 7
      %v12504 = vsub.s32 %v12501, %v12503
      %v12505 = vrot.slane %v12491, %v12504
      %v12506 = vcombine.low %v12498, %v12505
      %v12507 = vcombine.low %v11219, %v11227
      %v12508 = vcombine.low %v11235, %v11243
      %v12509 = vcombine.low %v11251, %v12380
      %v12510 = vcombine.low %v12388, %v12396
      %v12512 = vunpack.c.l.s4 1966171168
      %v12513 = vunpack.c.0.s8 %v12512
      %v12514 = vlaneseq
      %v12515 = vshrl.u32 %v12514, 7
      %v12516 = vsub.s32 %v12513, %v12515
      %v12517 = vrot.slane %v12507, %v12516
      %v12519 = vunpack.c.l.s4 1966171168
      %v12520 = vunpack.c.0.s8 %v12519
      %v12521 = vlaneseq
      %v12522 = vshrl.u32 %v12521, 7
      %v12523 = vsub.s32 %v12520, %v12522
      %v12524 = vrot.slane %v12508, %v12523
      %v12526 = vunpack.c.l.s4 1966171168
      %v12527 = vunpack.c.0.s8 %v12526
      %v12528 = vlaneseq
      %v12529 = vshrl.u32 %v12528, 7
      %v12530 = vsub.s32 %v12527, %v12529
      %v12531 = vrot.slane %v12509, %v12530
      %v12533 = vunpack.c.l.s4 1966171168
      %v12534 = vunpack.c.0.s8 %v12533
      %v12535 = vlaneseq
      %v12536 = vshrl.u32 %v12535, 7
      %v12537 = vsub.s32 %v12534, %v12536
      %v12538 = vrot.slane %v12510, %v12537
      %v12539 = vcombine.low %v12517, %v12524
      %v12540 = vcombine.low %v12531, %v12538
      %v12542 = vunpack.c.l.s4 1966171168
      %v12543 = vunpack.c.0.s8 %v12542
      %v12544 = vlaneseq
      %v12545 = vshrl.u32 %v12544, 7
      %v12546 = vsub.s32 %v12543, %v12545
      %v12547 = vrot.slane %v12539, %v12546
      %v12549 = vunpack.c.l.s4 1966171168
      %v12550 = vunpack.c.0.s8 %v12549
      %v12551 = vlaneseq
      %v12552 = vshrl.u32 %v12551, 7
      %v12553 = vsub.s32 %v12550, %v12552
      %v12554 = vrot.slane %v12540, %v12553
      %v12555 = vcombine.low %v12547, %v12554
      %v12556 = vcombine.low %v12404, %v12412
      %v12558 = vunpack.c.l.s4 1966171168
      %v12559 = vunpack.c.0.s8 %v12558
      %v12560 = vlaneseq
      %v12561 = vshrl.u32 %v12560, 7
      %v12562 = vsub.s32 %v12559, %v12561
      %v12563 = vrot.slane %v12556, %v12562
      %v12565 = vunpack.c.l.s4 1966171168
      %v12566 = vunpack.c.0.s8 %v12565
      %v12567 = vlaneseq
      %v12568 = vshrl.u32 %v12567, 7
      %v12569 = vsub.s32 %v12566, %v12568
      %v12570 = vrot.slane %v12563, %v12569
      %v12579 = vunpack.c.l.b16 %v12414
      %v12580 = vunpack.c.l.b16 %v12415
      %v12581 = vunpack.c.l.b16 %v12416
      %v12582 = vunpack.c.l.b16 %v12417
      %v12583 = vunpack.c.l.b16 %v12418
      %v12584 = vunpack.c.l.b16 %v12419
      %v12585 = vunpack.c.l.b16 %v12420
      %v12586 = vunpack.c.l.b16 %v12421
      %v12587 = vpack.c.b16 %v12580, %v12579
      %v12588 = vpack.c.b16 %v12582, %v12581
      %v12589 = vpack.c.b16 %v12584, %v12583
      %v12590 = vpack.c.b16 %v12586, %v12585
      %v12596 = vsel %vm9827, %v12438, 0
      %v12599 = vsel %vm9827, %v12455, 0
      %v12602 = vsel %vm9827, %v12472, 0
      %v12605 = vsel %vm9827, %v12489, 0
      %v12608 = vsel %vm9827, %v12506, 0
      %v12611 = vsel %vm9827, %v12555, 0
      %v12614 = vsel %vm9827, %v12570, 0
      %12616 = vmatprep.subr.bf16.mxu0 0
      %12617 = vmatpush1.bf16.msra.mxu0 %v12587
      %12618 = vmatprep.subr.bf16.mxu0 0
      %12619 = vmatpush1.bf16.msra.mxu0 %v12588
      %12620 = vmatprep.subr.bf16.mxu0 0
      %12621 = vmatpush1.bf16.msra.mxu0 %v12589
      %12622 = vmatprep.subr.bf16.mxu0 0
      %12623 = vmatpush1.bf16.msra.mxu0 %v12590
      %12624 = vmatprep.subr.bf16.mxu0 0
      %12625 = vmatpush1.bf16.msra.mxu0 0
      %12626 = vmatprep.subr.bf16.mxu0 0
      %12627 = vmatpush1.bf16.msra.mxu0 0
      %12628 = vmatprep.subr.bf16.mxu0 0
      %12629 = vmatpush1.bf16.msra.mxu0 0
      %12630 = vmatprep.subr.bf16.mxu0 0
      %12631 = vmatpush1.bf16.msra.mxu0 0
      %12632 = vmatprep.subr.bf16.mxu0 0
      %12633 = vmatpush1.bf16.msra.mxu0 0
      %12634 = vmatprep.subr.bf16.mxu0 0
      %12635 = vmatpush1.bf16.msra.mxu0 0
      %12636 = vmatprep.subr.bf16.mxu0 0
      %12637 = vmatpush1.bf16.msra.mxu0 0
      %12638 = vmatprep.subr.bf16.mxu0 0
      %12639 = vmatpush1.bf16.msra.mxu0 0
      %12640 = vmatprep.subr.bf16.mxu0 0
      %12641 = vmatpush1.bf16.msra.mxu0 0
      %12642 = vmatprep.subr.bf16.mxu0 0
      %12643 = vmatpush1.bf16.msra.mxu0 0
      %12644 = vmatprep.subr.bf16.mxu0 0
      %12645 = vmatpush1.bf16.msra.mxu0 0
      %12646 = vmatprep.subr.bf16.mxu0 0
      %12647 = vmatpush1.bf16.msra.mxu0 0
      %12648 = vmatprep.mubr.bf16.mxu0 0
      %12649 = vmatmul.mubr.bf16.gmra.mrb[0].mxu0 %v12596
      %v12650 = vpop.f32.mrb[0].mxu0
      %v12651 = vadd.f32 0.0, %v12650
      %v12652 = vpop.f32.mrb[0].mxu0
      %v12653 = vpop.f32.mrb[0].mxu0
      %v12654 = vadd.f32 0.0, %v12653
      %v12655 = vpop.f32.mrb[0].mxu0
      %12656 = vmatprep.mubr.bf16.mxu0 0
      %12657 = vmatmul.mubr.bf16.gmra.mrb[0].mxu0 %v12599
      %v12658 = vpop.f32.mrb[0].mxu0
      %v12659 = vadd.f32 0.0, %v12658
      %v12660 = vpop.f32.mrb[0].mxu0
      %v12661 = vpop.f32.mrb[0].mxu0
      %v12662 = vadd.f32 0.0, %v12661
      %v12663 = vpop.f32.mrb[0].mxu0
      %12664 = vmatprep.mubr.bf16.mxu0 0
      %12665 = vmatmul.mubr.bf16.gmra.mrb[0].mxu0 %v12602
      %v12666 = vpop.f32.mrb[0].mxu0
      %v12667 = vadd.f32 0.0, %v12666
      %v12668 = vpop.f32.mrb[0].mxu0
      %v12669 = vpop.f32.mrb[0].mxu0
      %v12670 = vadd.f32 0.0, %v12669
      %v12671 = vpop.f32.mrb[0].mxu0
      %12672 = vmatprep.mubr.bf16.mxu0 0
      %12673 = vmatmul.mubr.bf16.gmra.mrb[0].mxu0 %v12605
      %v12674 = vpop.f32.mrb[0].mxu0
      %v12675 = vadd.f32 0.0, %v12674
      %v12676 = vpop.f32.mrb[0].mxu0
      %v12677 = vpop.f32.mrb[0].mxu0
      %v12678 = vadd.f32 0.0, %v12677
      %v12679 = vpop.f32.mrb[0].mxu0
      %12680 = vmatprep.mubr.bf16.mxu0 0
      %12681 = vmatmul.mubr.bf16.gmra.mrb[0].mxu0 %v12608
      %v12682 = vpop.f32.mrb[0].mxu0
      %v12683 = vadd.f32 0.0, %v12682
      %v12684 = vpop.f32.mrb[0].mxu0
      %v12685 = vpop.f32.mrb[0].mxu0
      %v12686 = vadd.f32 0.0, %v12685
      %v12687 = vpop.f32.mrb[0].mxu0
      %12688 = vmatprep.mubr.bf16.mxu0 0
      %12689 = vmatmul.mubr.bf16.gmra.mrb[0].mxu0 %v12611
      %v12690 = vpop.f32.mrb[0].mxu0
      %v12691 = vadd.f32 0.0, %v12690
      %v12692 = vpop.f32.mrb[0].mxu0
      %v12693 = vpop.f32.mrb[0].mxu0
      %v12694 = vadd.f32 0.0, %v12693
      %v12695 = vpop.f32.mrb[0].mxu0
      %12696 = vmatprep.mubr.bf16.mxu0 0
      %12697 = vmatmul.mubr.bf16.gmra.mrb[0].mxu0 %v12614
      %v12698 = vpop.f32.mrb[0].mxu0
      %v12699 = vadd.f32 0.0, %v12698
      %v12700 = vpop.f32.mrb[0].mxu0
      %v12701 = vpop.f32.mrb[0].mxu0
      %v12702 = vpop.f32.mrb[0].mxu0
      %12703 = vdwg.mxu0
      %v12704 = vadd.f32 %v12358, %v12651
      %v12705 = vadd.f32 %v12359, %v12654
      %v12706 = vadd.f32 %v12360, %v12659
      %v12707 = vadd.f32 %v12361, %v12662
      %v12708 = vadd.f32 %v12362, %v12667
      %v12709 = vadd.f32 %v12363, %v12670
      %v12710 = vadd.f32 %v12364, %v12675
      %v12711 = vadd.f32 %v12365, %v12678
      %v12712 = vadd.f32 %v12366, %v12683
      %v12713 = vadd.f32 %v12367, %v12686
      %v12714 = vadd.f32 %v12368, %v12691
      %v12715 = vadd.f32 %v12369, %v12694
      %v12716 = vadd.f32 %v12370, %v12699
      %s12717 = scalar_lea.vmem %s3, 256
      %v12718 = vld [vmem:[%s12717] sm:$0xf]
      %v12719 = vld [vmem:[%s12717 + $0x4] sm:$0xf]
      %v12720 = vld [vmem:[%s12717 + $0x8] sm:$0xf]
      %v12721 = vld [vmem:[%s12717 + $0xc] sm:$0xf]
      %v12722 = vld [vmem:[%s12717 + $0x10] sm:$0xf]
      %v12723 = vld [vmem:[%s12717 + $0x14] sm:$0xf]
      %v12724 = vld [vmem:[%s12717 + $0x18] sm:$0xf]
      %v12725 = vld [vmem:[%s12717 + $0x1c] sm:$0xf]
      %v12726 = vcombine.low %v10454, %v10461
      %v12727 = vcombine.low %v10468, %v10496
      %v12729 = vunpack.c.l.s4 1966171168
      %v12730 = vunpack.c.0.s8 %v12729
      %v12731 = vlaneseq
      %v12732 = vshrl.u32 %v12731, 7
      %v12733 = vsub.s32 %v12730, %v12732
      %v12734 = vrot.slane %v12726, %v12733
      %v12736 = vunpack.c.l.s4 1966171168
      %v12737 = vunpack.c.0.s8 %v12736
      %v12738 = vlaneseq
      %v12739 = vshrl.u32 %v12738, 7
      %v12740 = vsub.s32 %v12737, %v12739
      %v12741 = vrot.slane %v12727, %v12740
      %v12742 = vcombine.low %v12734, %v12741
      %v12743 = vcombine.low %v10503, %v10510
      %v12744 = vcombine.low %v10517, %v10545
      %v12746 = vunpack.c.l.s4 1966171168
      %v12747 = vunpack.c.0.s8 %v12746
      %v12748 = vlaneseq
      %v12749 = vshrl.u32 %v12748, 7
      %v12750 = vsub.s32 %v12747, %v12749
      %v12751 = vrot.slane %v12743, %v12750
      %v12753 = vunpack.c.l.s4 1966171168
      %v12754 = vunpack.c.0.s8 %v12753
      %v12755 = vlaneseq
      %v12756 = vshrl.u32 %v12755, 7
      %v12757 = vsub.s32 %v12754, %v12756
      %v12758 = vrot.slane %v12744, %v12757
      %v12759 = vcombine.low %v12751, %v12758
      %v12760 = vcombine.low %v10552, %v10559
      %v12761 = vcombine.low %v10566, %v10594
      %v12763 = vunpack.c.l.s4 1966171168
      %v12764 = vunpack.c.0.s8 %v12763
      %v12765 = vlaneseq
      %v12766 = vshrl.u32 %v12765, 7
      %v12767 = vsub.s32 %v12764, %v12766
      %v12768 = vrot.slane %v12760, %v12767
      %v12770 = vunpack.c.l.s4 1966171168
      %v12771 = vunpack.c.0.s8 %v12770
      %v12772 = vlaneseq
      %v12773 = vshrl.u32 %v12772, 7
      %v12774 = vsub.s32 %v12771, %v12773
      %v12775 = vrot.slane %v12761, %v12774
      %v12776 = vcombine.low %v12768, %v12775
      %v12777 = vcombine.low %v10601, %v10608
      %v12778 = vcombine.low %v10615, %v10643
      %v12780 = vunpack.c.l.s4 1966171168
      %v12781 = vunpack.c.0.s8 %v12780
      %v12782 = vlaneseq
      %v12783 = vshrl.u32 %v12782, 7
      %v12784 = vsub.s32 %v12781, %v12783
      %v12785 = vrot.slane %v12777, %v12784
      %v12787 = vunpack.c.l.s4 1966171168
      %v12788 = vunpack.c.0.s8 %v12787
      %v12789 = vlaneseq
      %v12790 = vshrl.u32 %v12789, 7
      %v12791 = vsub.s32 %v12788, %v12790
      %v12792 = vrot.slane %v12778, %v12791
      %v12793 = vcombine.low %v12785, %v12792
      %v12794 = vcombine.low %v10650, %v10657
      %v12795 = vcombine.low %v10664, %v10689
      %v12797 = vunpack.c.l.s4 1966171168
      %v12798 = vunpack.c.0.s8 %v12797
      %v12799 = vlaneseq
      %v12800 = vshrl.u32 %v12799, 7
      %v12801 = vsub.s32 %v12798, %v12800
      %v12802 = vrot.slane %v12794, %v12801
      %v12804 = vunpack.c.l.s4 1966171168
      %v12805 = vunpack.c.0.s8 %v12804
      %v12806 = vlaneseq
      %v12807 = vshrl.u32 %v12806, 7
      %v12808 = vsub.s32 %v12805, %v12807
      %v12809 = vrot.slane %v12795, %v12808
      %v12810 = vcombine.low %v12802, %v12809
      %v12811 = vcombine.low %v11210, %v12075
      %v12812 = vcombine.low %v12082, %v12083
      %v12814 = vunpack.c.l.s4 1966171168
      %v12815 = vunpack.c.0.s8 %v12814
      %v12816 = vlaneseq
      %v12817 = vshrl.u32 %v12816, 7
      %v12818 = vsub.s32 %v12815, %v12817
      %v12819 = vrot.slane %v12811, %v12818
      %v12821 = vunpack.c.l.s4 1966171168
      %v12822 = vunpack.c.0.s8 %v12821
      %v12823 = vlaneseq
      %v12824 = vshrl.u32 %v12823, 7
      %v12825 = vsub.s32 %v12822, %v12824
      %v12826 = vrot.slane %v12812, %v12825
      %v12827 = vcombine.low %v11031, %v11056
      %v12828 = vcombine.low %v12819, %v12826
      %v12830 = vunpack.c.l.s4 1966171168
      %v12831 = vunpack.c.0.s8 %v12830
      %v12832 = vlaneseq
      %v12833 = vshrl.u32 %v12832, 7
      %v12834 = vsub.s32 %v12831, %v12833
      %v12835 = vrot.slane %v12827, %v12834
      %v12837 = vunpack.c.l.s4 1966171168
      %v12838 = vunpack.c.0.s8 %v12837
      %v12839 = vlaneseq
      %v12840 = vshrl.u32 %v12839, 7
      %v12841 = vsub.s32 %v12838, %v12840
      %v12842 = vrot.slane %v12828, %v12841
      %v12843 = vcombine.low %v12835, %v12842
      %v12844 = vcombine.low %v12090, %v12371
      %v12846 = vunpack.c.l.s4 1966171168
      %v12847 = vunpack.c.0.s8 %v12846
      %v12848 = vlaneseq
      %v12849 = vshrl.u32 %v12848, 7
      %v12850 = vsub.s32 %v12847, %v12849
      %v12851 = vrot.slane %v12844, %v12850
      %v12853 = vunpack.c.l.s4 1966171168
      %v12854 = vunpack.c.0.s8 %v12853
      %v12855 = vlaneseq
      %v12856 = vshrl.u32 %v12855, 7
      %v12857 = vsub.s32 %v12854, %v12856
      %v12858 = vrot.slane %v12851, %v12857
      %v12867 = vunpack.c.l.b16 %v12718
      %v12868 = vunpack.c.l.b16 %v12719
      %v12869 = vunpack.c.l.b16 %v12720
      %v12870 = vunpack.c.l.b16 %v12721
      %v12871 = vunpack.c.l.b16 %v12722
      %v12872 = vunpack.c.l.b16 %v12723
      %v12873 = vunpack.c.l.b16 %v12724
      %v12874 = vunpack.c.l.b16 %v12725
      %v12875 = vpack.c.b16 %v12868, %v12867
      %v12876 = vpack.c.b16 %v12870, %v12869
      %v12877 = vpack.c.b16 %v12872, %v12871
      %v12878 = vpack.c.b16 %v12874, %v12873
      %v12884 = vsel %vm9827, %v12742, 0
      %v12887 = vsel %vm9827, %v12759, 0
      %v12890 = vsel %vm9827, %v12776, 0
      %v12893 = vsel %vm9827, %v12793, 0
      %v12896 = vsel %vm9827, %v12810, 0
      %v12899 = vsel %vm9827, %v12843, 0
      %v12902 = vsel %vm9827, %v12858, 0
      %12904 = vmatprep.subr.bf16.mxu0 0
      %12905 = vmatpush1.bf16.msra.mxu0 %v12875
      %12906 = vmatprep.subr.bf16.mxu0 0
      %12907 = vmatpush1.bf16.msra.mxu0 %v12876
      %12908 = vmatprep.subr.bf16.mxu0 0
      %12909 = vmatpush1.bf16.msra.mxu0 %v12877
      %12910 = vmatprep.subr.bf16.mxu0 0
      %12911 = vmatpush1.bf16.msra.mxu0 %v12878
      %12912 = vmatprep.subr.bf16.mxu0 0
      %12913 = vmatpush1.bf16.msra.mxu0 0
      %12914 = vmatprep.subr.bf16.mxu0 0
      %12915 = vmatpush1.bf16.msra.mxu0 0
      %12916 = vmatprep.subr.bf16.mxu0 0
      %12917 = vmatpush1.bf16.msra.mxu0 0
      %12918 = vmatprep.subr.bf16.mxu0 0
      %12919 = vmatpush1.bf16.msra.mxu0 0
      %12920 = vmatprep.subr.bf16.mxu0 0
      %12921 = vmatpush1.bf16.msra.mxu0 0
      %12922 = vmatprep.subr.bf16.mxu0 0
      %12923 = vmatpush1.bf16.msra.mxu0 0
      %12924 = vmatprep.subr.bf16.mxu0 0
      %12925 = vmatpush1.bf16.msra.mxu0 0
      %12926 = vmatprep.subr.bf16.mxu0 0
      %12927 = vmatpush1.bf16.msra.mxu0 0
      %12928 = vmatprep.subr.bf16.mxu0 0
      %12929 = vmatpush1.bf16.msra.mxu0 0
      %12930 = vmatprep.subr.bf16.mxu0 0
      %12931 = vmatpush1.bf16.msra.mxu0 0
      %12932 = vmatprep.subr.bf16.mxu0 0
      %12933 = vmatpush1.bf16.msra.mxu0 0
      %12934 = vmatprep.subr.bf16.mxu0 0
      %12935 = vmatpush1.bf16.msra.mxu0 0
      %12936 = vmatprep.mubr.bf16.mxu0 0
      %12937 = vmatmul.mubr.bf16.gmra.mrb[0].mxu0 %v12884
      %v12938 = vpop.f32.mrb[0].mxu0
      %v12939 = vadd.f32 0.0, %v12938
      %v12940 = vpop.f32.mrb[0].mxu0
      %v12941 = vpop.f32.mrb[0].mxu0
      %v12942 = vadd.f32 0.0, %v12941
      %v12943 = vpop.f32.mrb[0].mxu0
      %12944 = vmatprep.mubr.bf16.mxu0 0
      %12945 = vmatmul.mubr.bf16.gmra.mrb[0].mxu0 %v12887
      %v12946 = vpop.f32.mrb[0].mxu0
      %v12947 = vadd.f32 0.0, %v12946
      %v12948 = vpop.f32.mrb[0].mxu0
      %v12949 = vpop.f32.mrb[0].mxu0
      %v12950 = vadd.f32 0.0, %v12949
      %v12951 = vpop.f32.mrb[0].mxu0
      %12952 = vmatprep.mubr.bf16.mxu0 0
      %12953 = vmatmul.mubr.bf16.gmra.mrb[0].mxu0 %v12890
      %v12954 = vpop.f32.mrb[0].mxu0
      %v12955 = vadd.f32 0.0, %v12954
      %v12956 = vpop.f32.mrb[0].mxu0
      %v12957 = vpop.f32.mrb[0].mxu0
      %v12958 = vadd.f32 0.0, %v12957
      %v12959 = vpop.f32.mrb[0].mxu0
      %12960 = vmatprep.mubr.bf16.mxu0 0
      %12961 = vmatmul.mubr.bf16.gmra.mrb[0].mxu0 %v12893
      %v12962 = vpop.f32.mrb[0].mxu0
      %v12963 = vadd.f32 0.0, %v12962
      %v12964 = vpop.f32.mrb[0].mxu0
      %v12965 = vpop.f32.mrb[0].mxu0
      %v12966 = vadd.f32 0.0, %v12965
      %v12967 = vpop.f32.mrb[0].mxu0
      %12968 = vmatprep.mubr.bf16.mxu0 0
      %12969 = vmatmul.mubr.bf16.gmra.mrb[0].mxu0 %v12896
      %v12970 = vpop.f32.mrb[0].mxu0
      %v12971 = vadd.f32 0.0, %v12970
      %v12972 = vpop.f32.mrb[0].mxu0
      %v12973 = vpop.f32.mrb[0].mxu0
      %v12974 = vadd.f32 0.0, %v12973
      %v12975 = vpop.f32.mrb[0].mxu0
      %12976 = vmatprep.mubr.bf16.mxu0 0
      %12977 = vmatmul.mubr.bf16.gmra.mrb[0].mxu0 %v12899
      %v12978 = vpop.f32.mrb[0].mxu0
      %v12979 = vadd.f32 0.0, %v12978
      %v12980 = vpop.f32.mrb[0].mxu0
      %v12981 = vpop.f32.mrb[0].mxu0
      %v12982 = vadd.f32 0.0, %v12981
      %v12983 = vpop.f32.mrb[0].mxu0
      %12984 = vmatprep.mubr.bf16.mxu0 0
      %12985 = vmatmul.mubr.bf16.gmra.mrb[0].mxu0 %v12902
      %v12986 = vpop.f32.mrb[0].mxu0
      %v12987 = vadd.f32 0.0, %v12986
      %v12988 = vpop.f32.mrb[0].mxu0
      %v12989 = vpop.f32.mrb[0].mxu0
      %v12990 = vpop.f32.mrb[0].mxu0
      %12991 = vdwg.mxu0
      %v12992 = vadd.f32 %v12704, %v12939
      %v12993 = vadd.f32 %v12705, %v12942
      %v12994 = vadd.f32 %v12706, %v12947
      %v12995 = vadd.f32 %v12707, %v12950
      %v12996 = vadd.f32 %v12708, %v12955
      %v12997 = vadd.f32 %v12709, %v12958
      %v12998 = vadd.f32 %v12710, %v12963
      %v12999 = vadd.f32 %v12711, %v12966
      %v13000 = vadd.f32 %v12712, %v12971
      %v13001 = vadd.f32 %v12713, %v12974
      %v13002 = vadd.f32 %v12714, %v12979
      %v13003 = vadd.f32 %v12715, %v12982
      %v13004 = vadd.f32 %v12716, %v12987
      %v13005 = vmax.f32 %v12992, 0.0
      %v13006 = vmax.f32 %v12993, 0.0
      %v13007 = vmax.f32 %v12994, 0.0
      %v13008 = vmax.f32 %v12995, 0.0
      %v13009 = vmax.f32 %v12996, 0.0
      %v13010 = vmax.f32 %v12997, 0.0
      %v13011 = vmax.f32 %v12998, 0.0
      %v13012 = vmax.f32 %v12999, 0.0
      %v13013 = vmax.f32 %v13000, 0.0
      %v13014 = vmax.f32 %v13001, 0.0
      %v13015 = vmax.f32 %v13002, 0.0
      %v13016 = vmax.f32 %v13003, 0.0
      %v13017 = vmax.f32 %v13004, 0.0
      %v13031 = vcombine.high %v13005, %v13005
      %v13033 = vunpack.c.l.s4 1983009808
      %v13034 = vunpack.c.0.s8 %v13033
      %v13035 = vlaneseq
      %v13036 = vshrl.u32 %v13035, 7
      %v13037 = vsub.s32 %v13034, %v13036
      %v13038 = vrot.slane %v13005, %v13037
      %v13040 = vunpack.c.l.s4 1983009808
      %v13041 = vunpack.c.0.s8 %v13040
      %v13042 = vlaneseq
      %v13043 = vshrl.u32 %v13042, 7
      %v13044 = vsub.s32 %v13041, %v13043
      %v13045 = vrot.slane %v13031, %v13044
      %v13046 = vcombine.high %v13038, %v13038
      %v13047 = vcombine.high %v13045, %v13045
      %v13048 = vcombine.high %v13006, %v13006
      %v13050 = vunpack.c.l.s4 1983009808
      %v13051 = vunpack.c.0.s8 %v13050
      %v13052 = vlaneseq
      %v13053 = vshrl.u32 %v13052, 7
      %v13054 = vsub.s32 %v13051, %v13053
      %v13055 = vrot.slane %v13006, %v13054
      %v13057 = vunpack.c.l.s4 1983009808
      %v13058 = vunpack.c.0.s8 %v13057
      %v13059 = vlaneseq
      %v13060 = vshrl.u32 %v13059, 7
      %v13061 = vsub.s32 %v13058, %v13060
      %v13062 = vrot.slane %v13048, %v13061
      %v13063 = vcombine.high %v13055, %v13055
      %v13064 = vcombine.high %v13062, %v13062
      %v13065 = vcombine.high %v13007, %v13007
      %v13067 = vunpack.c.l.s4 1983009808
      %v13068 = vunpack.c.0.s8 %v13067
      %v13069 = vlaneseq
      %v13070 = vshrl.u32 %v13069, 7
      %v13071 = vsub.s32 %v13068, %v13070
      %v13072 = vrot.slane %v13007, %v13071
      %v13074 = vunpack.c.l.s4 1983009808
      %v13075 = vunpack.c.0.s8 %v13074
      %v13076 = vlaneseq
      %v13077 = vshrl.u32 %v13076, 7
      %v13078 = vsub.s32 %v13075, %v13077
      %v13079 = vrot.slane %v13065, %v13078
      %v13080 = vcombine.high %v13072, %v13072
      %v13081 = vcombine.high %v13079, %v13079
      %v13082 = vcombine.high %v13008, %v13008
      %v13084 = vunpack.c.l.s4 1983009808
      %v13085 = vunpack.c.0.s8 %v13084
      %v13086 = vlaneseq
      %v13087 = vshrl.u32 %v13086, 7
      %v13088 = vsub.s32 %v13085, %v13087
      %v13089 = vrot.slane %v13008, %v13088
      %v13091 = vunpack.c.l.s4 1983009808
      %v13092 = vunpack.c.0.s8 %v13091
      %v13093 = vlaneseq
      %v13094 = vshrl.u32 %v13093, 7
      %v13095 = vsub.s32 %v13092, %v13094
      %v13096 = vrot.slane %v13082, %v13095
      %v13097 = vcombine.high %v13089, %v13089
      %v13098 = vcombine.high %v13096, %v13096
      %v13099 = vcombine.high %v13009, %v13009
      %v13101 = vunpack.c.l.s4 1983009808
      %v13102 = vunpack.c.0.s8 %v13101
      %v13103 = vlaneseq
      %v13104 = vshrl.u32 %v13103, 7
      %v13105 = vsub.s32 %v13102, %v13104
      %v13106 = vrot.slane %v13009, %v13105
      %v13108 = vunpack.c.l.s4 1983009808
      %v13109 = vunpack.c.0.s8 %v13108
      %v13110 = vlaneseq
      %v13111 = vshrl.u32 %v13110, 7
      %v13112 = vsub.s32 %v13109, %v13111
      %v13113 = vrot.slane %v13099, %v13112
      %v13114 = vcombine.high %v13106, %v13106
      %v13115 = vcombine.high %v13113, %v13113
      %v13116 = vcombine.high %v13010, %v13010
      %v13118 = vunpack.c.l.s4 1983009808
      %v13119 = vunpack.c.0.s8 %v13118
      %v13120 = vlaneseq
      %v13121 = vshrl.u32 %v13120, 7
      %v13122 = vsub.s32 %v13119, %v13121
      %v13123 = vrot.slane %v13010, %v13122
      %v13125 = vunpack.c.l.s4 1983009808
      %v13126 = vunpack.c.0.s8 %v13125
      %v13127 = vlaneseq
      %v13128 = vshrl.u32 %v13127, 7
      %v13129 = vsub.s32 %v13126, %v13128
      %v13130 = vrot.slane %v13116, %v13129
      %v13131 = vcombine.high %v13123, %v13123
      %v13132 = vcombine.high %v13130, %v13130
      %v13133 = vcombine.high %v13011, %v13011
      %v13135 = vunpack.c.l.s4 1983009808
      %v13136 = vunpack.c.0.s8 %v13135
      %v13137 = vlaneseq
      %v13138 = vshrl.u32 %v13137, 7
      %v13139 = vsub.s32 %v13136, %v13138
      %v13140 = vrot.slane %v13011, %v13139
      %v13142 = vunpack.c.l.s4 1983009808
      %v13143 = vunpack.c.0.s8 %v13142
      %v13144 = vlaneseq
      %v13145 = vshrl.u32 %v13144, 7
      %v13146 = vsub.s32 %v13143, %v13145
      %v13147 = vrot.slane %v13133, %v13146
      %v13148 = vcombine.high %v13140, %v13140
      %v13149 = vcombine.high %v13147, %v13147
      %v13150 = vcombine.high %v13012, %v13012
      %v13152 = vunpack.c.l.s4 1983009808
      %v13153 = vunpack.c.0.s8 %v13152
      %v13154 = vlaneseq
      %v13155 = vshrl.u32 %v13154, 7
      %v13156 = vsub.s32 %v13153, %v13155
      %v13157 = vrot.slane %v13012, %v13156
      %v13159 = vunpack.c.l.s4 1983009808
      %v13160 = vunpack.c.0.s8 %v13159
      %v13161 = vlaneseq
      %v13162 = vshrl.u32 %v13161, 7
      %v13163 = vsub.s32 %v13160, %v13162
      %v13164 = vrot.slane %v13150, %v13163
      %v13165 = vcombine.high %v13157, %v13157
      %v13166 = vcombine.high %v13164, %v13164
      %v13167 = vcombine.high %v13013, %v13013
      %v13169 = vunpack.c.l.s4 1983009808
      %v13170 = vunpack.c.0.s8 %v13169
      %v13171 = vlaneseq
      %v13172 = vshrl.u32 %v13171, 7
      %v13173 = vsub.s32 %v13170, %v13172
      %v13174 = vrot.slane %v13013, %v13173
      %v13176 = vunpack.c.l.s4 1983009808
      %v13177 = vunpack.c.0.s8 %v13176
      %v13178 = vlaneseq
      %v13179 = vshrl.u32 %v13178, 7
      %v13180 = vsub.s32 %v13177, %v13179
      %v13181 = vrot.slane %v13167, %v13180
      %v13182 = vcombine.high %v13174, %v13174
      %v13183 = vcombine.high %v13181, %v13181
      %v13184 = vcombine.high %v13014, %v13014
      %v13186 = vunpack.c.l.s4 1983009808
      %v13187 = vunpack.c.0.s8 %v13186
      %v13188 = vlaneseq
      %v13189 = vshrl.u32 %v13188, 7
      %v13190 = vsub.s32 %v13187, %v13189
      %v13191 = vrot.slane %v13014, %v13190
      %v13193 = vunpack.c.l.s4 1983009808
      %v13194 = vunpack.c.0.s8 %v13193
      %v13195 = vlaneseq
      %v13196 = vshrl.u32 %v13195, 7
      %v13197 = vsub.s32 %v13194, %v13196
      %v13198 = vrot.slane %v13184, %v13197
      %v13199 = vcombine.high %v13191, %v13191
      %v13200 = vcombine.high %v13198, %v13198
      %v13201 = vcombine.high %v13015, %v13015
      %v13203 = vunpack.c.l.s4 1983009808
      %v13204 = vunpack.c.0.s8 %v13203
      %v13205 = vlaneseq
      %v13206 = vshrl.u32 %v13205, 7
      %v13207 = vsub.s32 %v13204, %v13206
      %v13208 = vrot.slane %v13015, %v13207
      %v13210 = vunpack.c.l.s4 1983009808
      %v13211 = vunpack.c.0.s8 %v13210
      %v13212 = vlaneseq
      %v13213 = vshrl.u32 %v13212, 7
      %v13214 = vsub.s32 %v13211, %v13213
      %v13215 = vrot.slane %v13201, %v13214
      %v13216 = vcombine.high %v13208, %v13208
      %v13217 = vcombine.high %v13215, %v13215
      %v13218 = vcombine.high %v13016, %v13016
      %v13220 = vunpack.c.l.s4 1983009808
      %v13221 = vunpack.c.0.s8 %v13220
      %v13222 = vlaneseq
      %v13223 = vshrl.u32 %v13222, 7
      %v13224 = vsub.s32 %v13221, %v13223
      %v13225 = vrot.slane %v13016, %v13224
      %v13227 = vunpack.c.l.s4 1983009808
      %v13228 = vunpack.c.0.s8 %v13227
      %v13229 = vlaneseq
      %v13230 = vshrl.u32 %v13229, 7
      %v13231 = vsub.s32 %v13228, %v13230
      %v13232 = vrot.slane %v13218, %v13231
      %v13233 = vcombine.high %v13225, %v13225
      %v13234 = vcombine.high %v13232, %v13232
      %v13236 = vunpack.c.l.s4 1983009808
      %v13237 = vunpack.c.0.s8 %v13236
      %v13238 = vlaneseq
      %v13239 = vshrl.u32 %v13238, 7
      %v13240 = vsub.s32 %v13237, %v13239
      %v13241 = vrot.slane %v13017, %v13240
      %v13242 = vcombine.high %v13241, %v13241
      %v13243 = vcombine.low %v13038, %v13046
      %v13244 = vcombine.low %v13045, %v13047
      %v13246 = vunpack.c.l.s4 1983009808
      %v13247 = vunpack.c.0.s8 %v13246
      %v13248 = vlaneseq
      %v13249 = vshrl.u32 %v13248, 7
      %v13250 = vsub.s32 %v13247, %v13249
      %v13251 = vrot.slane %v13243, %v13250
      %v13253 = vunpack.c.l.s4 1983009808
      %v13254 = vunpack.c.0.s8 %v13253
      %v13255 = vlaneseq
      %v13256 = vshrl.u32 %v13255, 7
      %v13257 = vsub.s32 %v13254, %v13256
      %v13258 = vrot.slane %v13244, %v13257
      %v13259 = vcombine.low %v13251, %v13258
      %v13260 = vcombine.low %v13063, %v13062
      %v13261 = vcombine.low %v13064, %v13072
      %v13263 = vunpack.c.l.s4 1983009808
      %v13264 = vunpack.c.0.s8 %v13263
      %v13265 = vlaneseq
      %v13266 = vshrl.u32 %v13265, 7
      %v13267 = vsub.s32 %v13264, %v13266
      %v13268 = vrot.slane %v13260, %v13267
      %v13270 = vunpack.c.l.s4 1983009808
      %v13271 = vunpack.c.0.s8 %v13270
      %v13272 = vlaneseq
      %v13273 = vshrl.u32 %v13272, 7
      %v13274 = vsub.s32 %v13271, %v13273
      %v13275 = vrot.slane %v13261, %v13274
      %v13276 = vcombine.low %v13268, %v13275
      %v13277 = vcombine.low %v13079, %v13081
      %v13278 = vcombine.low %v13089, %v13097
      %v13280 = vunpack.c.l.s4 1983009808
      %v13281 = vunpack.c.0.s8 %v13280
      %v13282 = vlaneseq
      %v13283 = vshrl.u32 %v13282, 7
      %v13284 = vsub.s32 %v13281, %v13283
      %v13285 = vrot.slane %v13277, %v13284
      %v13287 = vunpack.c.l.s4 1983009808
      %v13288 = vunpack.c.0.s8 %v13287
      %v13289 = vlaneseq
      %v13290 = vshrl.u32 %v13289, 7
      %v13291 = vsub.s32 %v13288, %v13290
      %v13292 = vrot.slane %v13278, %v13291
      %v13293 = vcombine.low %v13285, %v13292
      %v13294 = vcombine.low %v13098, %v13106
      %v13295 = vcombine.low %v13114, %v13113
      %v13297 = vunpack.c.l.s4 1983009808
      %v13298 = vunpack.c.0.s8 %v13297
      %v13299 = vlaneseq
      %v13300 = vshrl.u32 %v13299, 7
      %v13301 = vsub.s32 %v13298, %v13300
      %v13302 = vrot.slane %v13294, %v13301
      %v13304 = vunpack.c.l.s4 1983009808
      %v13305 = vunpack.c.0.s8 %v13304
      %v13306 = vlaneseq
      %v13307 = vshrl.u32 %v13306, 7
      %v13308 = vsub.s32 %v13305, %v13307
      %v13309 = vrot.slane %v13295, %v13308
      %v13310 = vcombine.low %v13302, %v13309
      %v13311 = vcombine.low %v13123, %v13131
      %v13312 = vcombine.low %v13130, %v13132
      %v13314 = vunpack.c.l.s4 1983009808
      %v13315 = vunpack.c.0.s8 %v13314
      %v13316 = vlaneseq
      %v13317 = vshrl.u32 %v13316, 7
      %v13318 = vsub.s32 %v13315, %v13317
      %v13319 = vrot.slane %v13311, %v13318
      %v13321 = vunpack.c.l.s4 1983009808
      %v13322 = vunpack.c.0.s8 %v13321
      %v13323 = vlaneseq
      %v13324 = vshrl.u32 %v13323, 7
      %v13325 = vsub.s32 %v13322, %v13324
      %v13326 = vrot.slane %v13312, %v13325
      %v13327 = vcombine.low %v13319, %v13326
      %v13328 = vcombine.low %v13148, %v13147
      %v13329 = vcombine.low %v13149, %v13157
      %v13331 = vunpack.c.l.s4 1983009808
      %v13332 = vunpack.c.0.s8 %v13331
      %v13333 = vlaneseq
      %v13334 = vshrl.u32 %v13333, 7
      %v13335 = vsub.s32 %v13332, %v13334
      %v13336 = vrot.slane %v13328, %v13335
      %v13338 = vunpack.c.l.s4 1983009808
      %v13339 = vunpack.c.0.s8 %v13338
      %v13340 = vlaneseq
      %v13341 = vshrl.u32 %v13340, 7
      %v13342 = vsub.s32 %v13339, %v13341
      %v13343 = vrot.slane %v13329, %v13342
      %v13344 = vcombine.low %v13336, %v13343
      %v13345 = vcombine.low %v13164, %v13166
      %v13346 = vcombine.low %v13174, %v13182
      %v13348 = vunpack.c.l.s4 1983009808
      %v13349 = vunpack.c.0.s8 %v13348
      %v13350 = vlaneseq
      %v13351 = vshrl.u32 %v13350, 7
      %v13352 = vsub.s32 %v13349, %v13351
      %v13353 = vrot.slane %v13345, %v13352
      %v13355 = vunpack.c.l.s4 1983009808
      %v13356 = vunpack.c.0.s8 %v13355
      %v13357 = vlaneseq
      %v13358 = vshrl.u32 %v13357, 7
      %v13359 = vsub.s32 %v13356, %v13358
      %v13360 = vrot.slane %v13346, %v13359
      %v13361 = vcombine.low %v13353, %v13360
      %v13362 = vcombine.low %v13183, %v13191
      %v13363 = vcombine.low %v13199, %v13198
      %v13365 = vunpack.c.l.s4 1983009808
      %v13366 = vunpack.c.0.s8 %v13365
      %v13367 = vlaneseq
      %v13368 = vshrl.u32 %v13367, 7
      %v13369 = vsub.s32 %v13366, %v13368
      %v13370 = vrot.slane %v13362, %v13369
      %v13372 = vunpack.c.l.s4 1983009808
      %v13373 = vunpack.c.0.s8 %v13372
      %v13374 = vlaneseq
      %v13375 = vshrl.u32 %v13374, 7
      %v13376 = vsub.s32 %v13373, %v13375
      %v13377 = vrot.slane %v13363, %v13376
      %v13378 = vcombine.low %v13370, %v13377
      %vm13387 = vcmask 64512
      %v13388 = vsel %vm13387, %v13259, 0.0
      %v13389 = vsel %vm13387, %v13276, 0.0
      %v13390 = vadd.f32 %v13388, %v13389
      %v13391 = vsel %vm13387, %v13293, 0.0
      %v13392 = vadd.f32 %v13390, %v13391
      %v13393 = vsel %vm13387, %v13310, 0.0
      %v13394 = vadd.f32 %v13392, %v13393
      %v13395 = vsel %vm13387, %v13327, 0.0
      %v13396 = vadd.f32 %v13394, %v13395
      %v13397 = vsel %vm13387, %v13344, 0.0
      %v13398 = vadd.f32 %v13396, %v13397
      %v13399 = vsel %vm13387, %v13361, 0.0
      %v13400 = vadd.f32 %v13398, %v13399
      %v13401 = vsel %vm13387, %v13378, 0.0
      %v13402 = vadd.f32 %v13400, %v13401
      %v13403 = vrot.slane %v13402, 4
      %v13404 = vadd.f32 %v13402, %v13403
      %v13405 = vrot.slane %v13404, 2
      %v13406 = vadd.f32 %v13404, %v13405
      %v13407 = vrot.slane %v13406, 1
      %v13408 = vadd.f32 %v13406, %v13407
      %v13409 = vrcp.pop 64.0
      %v13410 = vmul.f32 %v13408, %v13409
      %v13412 = vunpack.c.l.s4 1983009808
      %v13413 = vunpack.c.0.s8 %v13412
      %v13414 = vlaneseq
      %v13415 = vshrl.u32 %v13414, 7
      %v13416 = vsub.s32 %v13413, %v13415
      %v13417 = vrot.slane %v13055, %v13416
      %v13419 = vunpack.c.l.s4 1983009808
      %v13420 = vunpack.c.0.s8 %v13419
      %v13421 = vlaneseq
      %v13422 = vshrl.u32 %v13421, 7
      %v13423 = vsub.s32 %v13420, %v13422
      %v13424 = vrot.slane %v13080, %v13423
      %v13426 = vunpack.c.l.s4 1983009808
      %v13427 = vunpack.c.0.s8 %v13426
      %v13428 = vlaneseq
      %v13429 = vshrl.u32 %v13428, 7
      %v13430 = vsub.s32 %v13427, %v13429
      %v13431 = vrot.slane %v13096, %v13430
      %v13433 = vunpack.c.l.s4 1983009808
      %v13434 = vunpack.c.0.s8 %v13433
      %v13435 = vlaneseq
      %v13436 = vshrl.u32 %v13435, 7
      %v13437 = vsub.s32 %v13434, %v13436
      %v13438 = vrot.slane %v13115, %v13437
      %v13440 = vunpack.c.l.s4 1983009808
      %v13441 = vunpack.c.0.s8 %v13440
      %v13442 = vlaneseq
      %v13443 = vshrl.u32 %v13442, 7
      %v13444 = vsub.s32 %v13441, %v13443
      %v13445 = vrot.slane %v13140, %v13444
      %v13447 = vunpack.c.l.s4 1983009808
      %v13448 = vunpack.c.0.s8 %v13447
      %v13449 = vlaneseq
      %v13450 = vshrl.u32 %v13449, 7
      %v13451 = vsub.s32 %v13448, %v13450
      %v13452 = vrot.slane %v13165, %v13451
      %v13454 = vunpack.c.l.s4 1983009808
      %v13455 = vunpack.c.0.s8 %v13454
      %v13456 = vlaneseq
      %v13457 = vshrl.u32 %v13456, 7
      %v13458 = vsub.s32 %v13455, %v13457
      %v13459 = vrot.slane %v13181, %v13458
      %v13461 = vunpack.c.l.s4 1983009808
      %v13462 = vunpack.c.0.s8 %v13461
      %v13463 = vlaneseq
      %v13464 = vshrl.u32 %v13463, 7
      %v13465 = vsub.s32 %v13462, %v13464
      %v13466 = vrot.slane %v13200, %v13465
      %vm13467 = vcmask 1046528
      %v13468 = vrot.slane %v13259, 1
      %v13469 = vrot.slane %v13417, 1
      %v13470 = vsel %vm13467, %v13468, %v13469
      %v13471 = vrot.slane %v13276, 1
      %v13472 = vrot.slane %v13424, 1
      %v13473 = vsel %vm13467, %v13471, %v13472
      %v13474 = vrot.slane %v13293, 1
      %v13475 = vrot.slane %v13431, 1
      %v13476 = vsel %vm13467, %v13474, %v13475
      %v13477 = vrot.slane %v13310, 1
      %v13478 = vrot.slane %v13438, 1
      %v13479 = vsel %vm13467, %v13477, %v13478
      %v13480 = vrot.slane %v13327, 1
      %v13481 = vrot.slane %v13445, 1
      %v13482 = vsel %vm13467, %v13480, %v13481
      %v13483 = vrot.slane %v13344, 1
      %v13484 = vrot.slane %v13452, 1
      %v13485 = vsel %vm13467, %v13483, %v13484
      %v13486 = vrot.slane %v13361, 1
      %v13487 = vrot.slane %v13459, 1
      %v13488 = vsel %vm13467, %v13486, %v13487
      %v13489 = vrot.slane %v13378, 1
      %v13490 = vrot.slane %v13466, 1
      %v13491 = vsel %vm13467, %v13489, %v13490
      %v13500 = vsel %vm13387, %v13470, 0.0
      %v13501 = vsel %vm13387, %v13473, 0.0
      %v13502 = vadd.f32 %v13500, %v13501
      %v13503 = vsel %vm13387, %v13476, 0.0
      %v13504 = vadd.f32 %v13502, %v13503
      %v13505 = vsel %vm13387, %v13479, 0.0
      %v13506 = vadd.f32 %v13504, %v13505
      %v13507 = vsel %vm13387, %v13482, 0.0
      %v13508 = vadd.f32 %v13506, %v13507
      %v13509 = vsel %vm13387, %v13485, 0.0
      %v13510 = vadd.f32 %v13508, %v13509
      %v13511 = vsel %vm13387, %v13488, 0.0
      %v13512 = vadd.f32 %v13510, %v13511
      %v13513 = vsel %vm13387, %v13491, 0.0
      %v13514 = vadd.f32 %v13512, %v13513
      %v13515 = vrot.slane %v13514, 4
      %v13516 = vadd.f32 %v13514, %v13515
      %v13517 = vrot.slane %v13516, 2
      %v13518 = vadd.f32 %v13516, %v13517
      %v13519 = vrot.slane %v13518, 1
      %v13520 = vadd.f32 %v13518, %v13519
      %v13521 = vmul.f32 %v13520, %v13409
      %v13522 = vcombine.low %v13046, %v13045
      %v13523 = vcombine.low %v13047, %v13055
      %v13525 = vunpack.c.l.s4 1983009808
      %v13526 = vunpack.c.0.s8 %v13525
      %v13527 = vlaneseq
      %v13528 = vshrl.u32 %v13527, 7
      %v13529 = vsub.s32 %v13526, %v13528
      %v13530 = vrot.slane %v13522, %v13529
      %v13532 = vunpack.c.l.s4 1983009808
      %v13533 = vunpack.c.0.s8 %v13532
      %v13534 = vlaneseq
      %v13535 = vshrl.u32 %v13534, 7
      %v13536 = vsub.s32 %v13533, %v13535
      %v13537 = vrot.slane %v13523, %v13536
      %v13538 = vcombine.low %v13530, %v13537
      %v13539 = vcombine.low %v13062, %v13064
      %v13540 = vcombine.low %v13072, %v13080
      %v13542 = vunpack.c.l.s4 1983009808
      %v13543 = vunpack.c.0.s8 %v13542
      %v13544 = vlaneseq
      %v13545 = vshrl.u32 %v13544, 7
      %v13546 = vsub.s32 %v13543, %v13545
      %v13547 = vrot.slane %v13539, %v13546
      %v13549 = vunpack.c.l.s4 1983009808
      %v13550 = vunpack.c.0.s8 %v13549
      %v13551 = vlaneseq
      %v13552 = vshrl.u32 %v13551, 7
      %v13553 = vsub.s32 %v13550, %v13552
      %v13554 = vrot.slane %v13540, %v13553
      %v13555 = vcombine.low %v13547, %v13554
      %v13556 = vcombine.low %v13081, %v13089
      %v13557 = vcombine.low %v13097, %v13096
      %v13559 = vunpack.c.l.s4 1983009808
      %v13560 = vunpack.c.0.s8 %v13559
      %v13561 = vlaneseq
      %v13562 = vshrl.u32 %v13561, 7
      %v13563 = vsub.s32 %v13560, %v13562
      %v13564 = vrot.slane %v13556, %v13563
      %v13566 = vunpack.c.l.s4 1983009808
      %v13567 = vunpack.c.0.s8 %v13566
      %v13568 = vlaneseq
      %v13569 = vshrl.u32 %v13568, 7
      %v13570 = vsub.s32 %v13567, %v13569
      %v13571 = vrot.slane %v13557, %v13570
      %v13572 = vcombine.low %v13564, %v13571
      %v13573 = vcombine.low %v13106, %v13114
      %v13574 = vcombine.low %v13113, %v13115
      %v13576 = vunpack.c.l.s4 1983009808
      %v13577 = vunpack.c.0.s8 %v13576
      %v13578 = vlaneseq
      %v13579 = vshrl.u32 %v13578, 7
      %v13580 = vsub.s32 %v13577, %v13579
      %v13581 = vrot.slane %v13573, %v13580
      %v13583 = vunpack.c.l.s4 1983009808
      %v13584 = vunpack.c.0.s8 %v13583
      %v13585 = vlaneseq
      %v13586 = vshrl.u32 %v13585, 7
      %v13587 = vsub.s32 %v13584, %v13586
      %v13588 = vrot.slane %v13574, %v13587
      %v13589 = vcombine.low %v13581, %v13588
      %v13590 = vcombine.low %v13131, %v13130
      %v13591 = vcombine.low %v13132, %v13140
      %v13593 = vunpack.c.l.s4 1983009808
      %v13594 = vunpack.c.0.s8 %v13593
      %v13595 = vlaneseq
      %v13596 = vshrl.u32 %v13595, 7
      %v13597 = vsub.s32 %v13594, %v13596
      %v13598 = vrot.slane %v13590, %v13597
      %v13600 = vunpack.c.l.s4 1983009808
      %v13601 = vunpack.c.0.s8 %v13600
      %v13602 = vlaneseq
      %v13603 = vshrl.u32 %v13602, 7
      %v13604 = vsub.s32 %v13601, %v13603
      %v13605 = vrot.slane %v13591, %v13604
      %v13606 = vcombine.low %v13598, %v13605
      %v13607 = vcombine.low %v13147, %v13149
      %v13608 = vcombine.low %v13157, %v13165
      %v13610 = vunpack.c.l.s4 1983009808
      %v13611 = vunpack.c.0.s8 %v13610
      %v13612 = vlaneseq
      %v13613 = vshrl.u32 %v13612, 7
      %v13614 = vsub.s32 %v13611, %v13613
      %v13615 = vrot.slane %v13607, %v13614
      %v13617 = vunpack.c.l.s4 1983009808
      %v13618 = vunpack.c.0.s8 %v13617
      %v13619 = vlaneseq
      %v13620 = vshrl.u32 %v13619, 7
      %v13621 = vsub.s32 %v13618, %v13620
      %v13622 = vrot.slane %v13608, %v13621
      %v13623 = vcombine.low %v13615, %v13622
      %v13624 = vcombine.low %v13166, %v13174
      %v13625 = vcombine.low %v13182, %v13181
      %v13627 = vunpack.c.l.s4 1983009808
      %v13628 = vunpack.c.0.s8 %v13627
      %v13629 = vlaneseq
      %v13630 = vshrl.u32 %v13629, 7
      %v13631 = vsub.s32 %v13628, %v13630
      %v13632 = vrot.slane %v13624, %v13631
      %v13634 = vunpack.c.l.s4 1983009808
      %v13635 = vunpack.c.0.s8 %v13634
      %v13636 = vlaneseq
      %v13637 = vshrl.u32 %v13636, 7
      %v13638 = vsub.s32 %v13635, %v13637
      %v13639 = vrot.slane %v13625, %v13638
      %v13640 = vcombine.low %v13632, %v13639
      %v13641 = vcombine.low %v13191, %v13199
      %v13642 = vcombine.low %v13198, %v13200
      %v13644 = vunpack.c.l.s4 1983009808
      %v13645 = vunpack.c.0.s8 %v13644
      %v13646 = vlaneseq
      %v13647 = vshrl.u32 %v13646, 7
      %v13648 = vsub.s32 %v13645, %v13647
      %v13649 = vrot.slane %v13641, %v13648
      %v13651 = vunpack.c.l.s4 1983009808
      %v13652 = vunpack.c.0.s8 %v13651
      %v13653 = vlaneseq
      %v13654 = vshrl.u32 %v13653, 7
      %v13655 = vsub.s32 %v13652, %v13654
      %v13656 = vrot.slane %v13642, %v13655
      %v13657 = vcombine.low %v13649, %v13656
      %v13666 = vsel %vm13387, %v13538, 0.0
      %v13667 = vsel %vm13387, %v13555, 0.0
      %v13668 = vadd.f32 %v13666, %v13667
      %v13669 = vsel %vm13387, %v13572, 0.0
      %v13670 = vadd.f32 %v13668, %v13669
      %v13671 = vsel %vm13387, %v13589, 0.0
      %v13672 = vadd.f32 %v13670, %v13671
      %v13673 = vsel %vm13387, %v13606, 0.0
      %v13674 = vadd.f32 %v13672, %v13673
      %v13675 = vsel %vm13387, %v13623, 0.0
      %v13676 = vadd.f32 %v13674, %v13675
      %v13677 = vsel %vm13387, %v13640, 0.0
      %v13678 = vadd.f32 %v13676, %v13677
      %v13679 = vsel %vm13387, %v13657, 0.0
      %v13680 = vadd.f32 %v13678, %v13679
      %v13681 = vrot.slane %v13680, 4
      %v13682 = vadd.f32 %v13680, %v13681
      %v13683 = vrot.slane %v13682, 2
      %v13684 = vadd.f32 %v13682, %v13683
      %v13685 = vrot.slane %v13684, 1
      %v13686 = vadd.f32 %v13684, %v13685
      %v13687 = vmul.f32 %v13686, %v13409
      %v13688 = vcombine.low %v13208, %v13216
      %v13689 = vcombine.low %v13215, %v13217
      %v13691 = vunpack.c.l.s4 1983009808
      %v13692 = vunpack.c.0.s8 %v13691
      %v13693 = vlaneseq
      %v13694 = vshrl.u32 %v13693, 7
      %v13695 = vsub.s32 %v13692, %v13694
      %v13696 = vrot.slane %v13688, %v13695
      %v13698 = vunpack.c.l.s4 1983009808
      %v13699 = vunpack.c.0.s8 %v13698
      %v13700 = vlaneseq
      %v13701 = vshrl.u32 %v13700, 7
      %v13702 = vsub.s32 %v13699, %v13701
      %v13703 = vrot.slane %v13689, %v13702
      %v13704 = vcombine.low %v13696, %v13703
      %v13706 = vadd.f32 %v13389, %v13391
      %v13707 = vadd.f32 %v13706, %v13393
      %v13708 = vadd.f32 %v13707, %v13395
      %v13709 = vadd.f32 %v13708, %v13397
      %v13710 = vadd.f32 %v13709, %v13399
      %v13711 = vadd.f32 %v13710, %v13401
      %v13712 = vsel %vm13387, %v13704, 0.0
      %v13713 = vadd.f32 %v13711, %v13712
      %v13714 = vrot.slane %v13713, 4
      %v13715 = vadd.f32 %v13713, %v13714
      %v13716 = vrot.slane %v13715, 2
      %v13717 = vadd.f32 %v13715, %v13716
      %v13718 = vrot.slane %v13717, 1
      %v13719 = vadd.f32 %v13717, %v13718
      %v13720 = vmul.f32 %v13719, %v13409
      %v13722 = vunpack.c.l.s4 1983009808
      %v13723 = vunpack.c.0.s8 %v13722
      %v13724 = vlaneseq
      %v13725 = vshrl.u32 %v13724, 7
      %v13726 = vsub.s32 %v13723, %v13725
      %v13727 = vrot.slane %v13225, %v13726
      %v13728 = vrot.slane %v13704, 1
      %v13729 = vrot.slane %v13727, 1
      %v13730 = vsel %vm13467, %v13728, %v13729
      %v13732 = vadd.f32 %v13501, %v13503
      %v13733 = vadd.f32 %v13732, %v13505
      %v13734 = vadd.f32 %v13733, %v13507
      %v13735 = vadd.f32 %v13734, %v13509
      %v13736 = vadd.f32 %v13735, %v13511
      %v13737 = vadd.f32 %v13736, %v13513
      %v13738 = vsel %vm13387, %v13730, 0.0
      %v13739 = vadd.f32 %v13737, %v13738
      %v13740 = vrot.slane %v13739, 4
      %v13741 = vadd.f32 %v13739, %v13740
      %v13742 = vrot.slane %v13741, 2
      %v13743 = vadd.f32 %v13741, %v13742
      %v13744 = vrot.slane %v13743, 1
      %v13745 = vadd.f32 %v13743, %v13744
      %v13746 = vmul.f32 %v13745, %v13409
      %v13747 = vcombine.low %v13216, %v13215
      %v13748 = vcombine.low %v13217, %v13225
      %v13750 = vunpack.c.l.s4 1983009808
      %v13751 = vunpack.c.0.s8 %v13750
      %v13752 = vlaneseq
      %v13753 = vshrl.u32 %v13752, 7
      %v13754 = vsub.s32 %v13751, %v13753
      %v13755 = vrot.slane %v13747, %v13754
      %v13757 = vunpack.c.l.s4 1983009808
      %v13758 = vunpack.c.0.s8 %v13757
      %v13759 = vlaneseq
      %v13760 = vshrl.u32 %v13759, 7
      %v13761 = vsub.s32 %v13758, %v13760
      %v13762 = vrot.slane %v13748, %v13761
      %v13763 = vcombine.low %v13755, %v13762
      %v13765 = vadd.f32 %v13667, %v13669
      %v13766 = vadd.f32 %v13765, %v13671
      %v13767 = vadd.f32 %v13766, %v13673
      %v13768 = vadd.f32 %v13767, %v13675
      %v13769 = vadd.f32 %v13768, %v13677
      %v13770 = vadd.f32 %v13769, %v13679
      %v13771 = vsel %vm13387, %v13763, 0.0
      %v13772 = vadd.f32 %v13770, %v13771
      %v13773 = vrot.slane %v13772, 4
      %v13774 = vadd.f32 %v13772, %v13773
      %v13775 = vrot.slane %v13774, 2
      %v13776 = vadd.f32 %v13774, %v13775
      %v13777 = vrot.slane %v13776, 1
      %v13778 = vadd.f32 %v13776, %v13777
      %v13779 = vmul.f32 %v13778, %v13409
      %v13780 = vcombine.low %v13233, %v13232
      %v13781 = vcombine.low %v13234, %v13241
      %v13783 = vunpack.c.l.s4 1983009808
      %v13784 = vunpack.c.0.s8 %v13783
      %v13785 = vlaneseq
      %v13786 = vshrl.u32 %v13785, 7
      %v13787 = vsub.s32 %v13784, %v13786
      %v13788 = vrot.slane %v13780, %v13787
      %v13790 = vunpack.c.l.s4 1983009808
      %v13791 = vunpack.c.0.s8 %v13790
      %v13792 = vlaneseq
      %v13793 = vshrl.u32 %v13792, 7
      %v13794 = vsub.s32 %v13791, %v13793
      %v13795 = vrot.slane %v13781, %v13794
      %v13796 = vcombine.low %v13788, %v13795
      %v13798 = vadd.f32 %v13391, %v13393
      %v13799 = vadd.f32 %v13798, %v13395
      %v13800 = vadd.f32 %v13799, %v13397
      %v13801 = vadd.f32 %v13800, %v13399
      %v13802 = vadd.f32 %v13801, %v13401
      %v13803 = vadd.f32 %v13802, %v13712
      %v13804 = vsel %vm13387, %v13796, 0.0
      %v13805 = vadd.f32 %v13803, %v13804
      %v13806 = vrot.slane %v13805, 4
      %v13807 = vadd.f32 %v13805, %v13806
      %v13808 = vrot.slane %v13807, 2
      %v13809 = vadd.f32 %v13807, %v13808
      %v13810 = vrot.slane %v13809, 1
      %v13811 = vadd.f32 %v13809, %v13810
      %v13812 = vmul.f32 %v13811, %v13409
      %v13814 = vunpack.c.l.s4 1983009808
      %v13815 = vunpack.c.0.s8 %v13814
      %v13816 = vlaneseq
      %v13817 = vshrl.u32 %v13816, 7
      %v13818 = vsub.s32 %v13815, %v13817
      %v13819 = vrot.slane %v13242, %v13818
      %v13820 = vrot.slane %v13796, 1
      %v13821 = vrot.slane %v13819, 1
      %v13822 = vsel %vm13467, %v13820, %v13821
      %v13824 = vadd.f32 %v13503, %v13505
      %v13825 = vadd.f32 %v13824, %v13507
      %v13826 = vadd.f32 %v13825, %v13509
      %v13827 = vadd.f32 %v13826, %v13511
      %v13828 = vadd.f32 %v13827, %v13513
      %v13829 = vadd.f32 %v13828, %v13738
      %v13830 = vsel %vm13387, %v13822, 0.0
      %v13831 = vadd.f32 %v13829, %v13830
      %v13832 = vrot.slane %v13831, 4
      %v13833 = vadd.f32 %v13831, %v13832
      %v13834 = vrot.slane %v13833, 2
      %v13835 = vadd.f32 %v13833, %v13834
      %v13836 = vrot.slane %v13835, 1
      %v13837 = vadd.f32 %v13835, %v13836
      %v13838 = vmul.f32 %v13837, %v13409
      %v13839 = vcombine.low %v13232, %v13234
      %v13840 = vcombine.low %v13241, %v13242
      %v13842 = vunpack.c.l.s4 1983009808
      %v13843 = vunpack.c.0.s8 %v13842
      %v13844 = vlaneseq
      %v13845 = vshrl.u32 %v13844, 7
      %v13846 = vsub.s32 %v13843, %v13845
      %v13847 = vrot.slane %v13839, %v13846
      %v13849 = vunpack.c.l.s4 1983009808
      %v13850 = vunpack.c.0.s8 %v13849
      %v13851 = vlaneseq
      %v13852 = vshrl.u32 %v13851, 7
      %v13853 = vsub.s32 %v13850, %v13852
      %v13854 = vrot.slane %v13840, %v13853
      %v13855 = vcombine.low %v13847, %v13854
      %v13857 = vadd.f32 %v13669, %v13671
      %v13858 = vadd.f32 %v13857, %v13673
      %v13859 = vadd.f32 %v13858, %v13675
      %v13860 = vadd.f32 %v13859, %v13677
      %v13861 = vadd.f32 %v13860, %v13679
      %v13862 = vadd.f32 %v13861, %v13771
      %v13863 = vsel %vm13387, %v13855, 0.0
      %v13864 = vadd.f32 %v13862, %v13863
      %v13865 = vrot.slane %v13864, 4
      %v13866 = vadd.f32 %v13864, %v13865
      %v13867 = vrot.slane %v13866, 2
      %v13868 = vadd.f32 %v13866, %v13867
      %v13869 = vrot.slane %v13868, 1
      %v13870 = vadd.f32 %v13868, %v13869
      %v13871 = vmul.f32 %v13870, %v13409
      %13873 = vrot.lane.b32.xlu0 %v13521, 8
      %v13874 = vpop.permute.xlu0 %13873
      %13877 = vrot.lane.b32.xlu0 %v13687, 16
      %v13878 = vpop.permute.xlu0 %13877
      %13881 = vrot.lane.b32.xlu0 %v13720, 24
      %v13882 = vpop.permute.xlu0 %13881
      %13885 = vrot.lane.b32.xlu0 %v13746, 32
      %v13886 = vpop.permute.xlu0 %13885
      %13889 = vrot.lane.b32.xlu0 %v13779, 40
      %v13890 = vpop.permute.xlu0 %13889
      %13893 = vrot.lane.b32.xlu0 %v13812, 48
      %v13894 = vpop.permute.xlu0 %13893
      %13897 = vrot.lane.b32.xlu0 %v13838, 56
      %v13898 = vpop.permute.xlu0 %13897
      %13901 = vrot.lane.b32.xlu0 %v13871, 64
      %v13902 = vpop.permute.xlu0 %13901
      %v13904 = vsel %vm13387, %v13410, %v13874
      %vm13905 = vcmask 130048
      %v13906 = vsel %vm13905, %v13904, %v13878
      %vm13907 = vcmask 195584
      %v13908 = vsel %vm13907, %v13906, %v13882
      %vm13909 = vcmask 261120
      %v13910 = vsel %vm13909, %v13908, %v13886
      %vm13911 = vcmask 326656
      %v13912 = vsel %vm13911, %v13910, %v13890
      %vm13913 = vcmask 392192
      %v13914 = vsel %vm13913, %v13912, %v13894
      %vm13915 = vcmask 457728
      %v13916 = vsel %vm13915, %v13914, %v13898
      %v13917 = vsel %vm9827, %v13916, %v13902
      %v13918 = vld [vmem:[%s4] sm:$0x1]
      %v13919 = vmul.f32 %v13917, %v13918
      %vm13920 = vcmask 581632
      %v13921 = vsel %vm13920, %v13919, 0.0
      %13922 = vadd.xlane.f32.xlu0 %v13921
      %v13923 = vpop.xlane.xlu0 %13922
      %v13924 = vtanh.pop %v13923
      %vm13925 = vcmask 0
      %13926 = vst.msk [vmem:[%s220] sm:$0x1] %vm13925, %v13924
      %p13927 = scmp.lt.s32.totalorder %s16, 1
      %s13928 = scalar_select %p13927, %s16, 1
      %s13929 = scalar_lea.vmem %s5, %s13928
      // Predicated region
      $region41: #{tpu_custom_call.1} parent=39 // pred_check
        %p13930 = pneg %p144
      $region42: #{tpu_custom_call.1} parent=39 // pred_check_branch
        %13932 = sbr.rel (%p13930) target = $region44
      $region43: #{tpu_custom_call.1} parent=39 // pred_region
        _
      $region44: #{tpu_custom_call.1} parent=39 // pred_fallthru
        _
    $region40: #{tpu_custom_call.1} parent=5 // pred_fallthru
      _
    %p13933 = scmp.le.s32.totalorder 2, %s11
    // Predicated region
    $region45: #{tpu_custom_call.1} parent=5 // pred_check
      %p13934 = pneg %p13933
    $region46: #{tpu_custom_call.1} parent=5 // pred_check_branch
      %13936 = sbr.rel (%p13934) target = $region48
    $region47: #{tpu_custom_call.1} parent=5 // pred_region
      %s13937 = ssub.s32 %s11, 2
      // Predicated region
      $region49: #{tpu_custom_call.1} parent=47 // pred_check
        %p13938 = pneg %p150
      $region50: #{tpu_custom_call.1} parent=47 // pred_check_branch
        %13940 = sbr.rel (%p13938) target = $region52
      $region51: #{tpu_custom_call.1} parent=47 // pred_region
        %p13941 = scmp.lt.s32.totalorder %s17, 1
        %s13942 = scalar_select %p13941, %s17, 1
        %s13943 = scalar_lea.vmem %s5, %s13942
      $region52: #{tpu_custom_call.1} parent=47 // pred_fallthru
        _
    $region48: #{tpu_custom_call.1} parent=5 // pred_fallthru
      _
  $region6: #{tpu_custom_call.1} parent=0 // loop_footer
    %s15 = sadd.s32 1, %s11
  $region7: #{tpu_custom_call.1} parent=0 // loop_footer_branch
    %10 = sbr.rel target = $region3
  $region8: #{tpu_custom_call.1} parent=0 // loop_exit
    _

</llo_original>
